<compile_context>
chip_gen: v6e
topology: v6e:2x2x1
jax: 0.10.0
libtpu: 0.0.40
codegen_flags: <defaults>
</compile_context>

<pallas_src>
import functools

import jax
import jax.numpy as jnp
from jax import lax
from jax.experimental import pallas as pl
from jax.experimental.pallas import tpu as pltpu

INPUT_SIZE = 62
HIDDEN_SIZE = 128
OUTPUT_SIZE = 62
NUM_LAYERS = 2  # fixed 2 stacked layers, as in the reference script

SUBLANE = 8
IN_PAD = 128    # input feature dim padded 62 -> 128 (lane dense)
OUT_PAD = 128   # output feature dim padded 62 -> 128 (lane dense)
T_BLOCK = 8     # timesteps per grid step (statically unrolled in-kernel)


def _round_up(n, m):
    return (n + m - 1) // m * m


def _lstm_fc_kernel(x_ref,        # (T_BLOCK, Bp, IN_PAD)   bf16
                    wih0_ref,     # (IN_PAD, 4H)            bf16
                    whh0_ref,     # (H, 4H)                 bf16
                    b0_ref,       # (1, 4H)                 f32  (b_ih0 + b_hh0)
                    w1_ref,       # (2H, 4H)                bf16 ([W_ih1; W_hh1])
                    b1_ref,       # (1, 4H)                 f32  (b_ih1 + b_hh1)
                    wfc_ref,      # (H, OUT_PAD)            bf16
                    bfc_ref,      # (1, OUT_PAD)            f32
                    out_ref,      # (T_BLOCK, Bp, OUT_PAD)  f32
                    h0_sc, c0_sc, h1_sc, c1_sc,   # (Bp, H) states
                    pre0_sc,      # (T_BLOCK, Bp, 4H) f32   layer-0 pre-gates
                    h1seq_sc):    # (T_BLOCK, Bp, H)  bf16  layer-1 outputs
    TT, Bp, _ = x_ref.shape
    H = HIDDEN_SIZE

    # Zero initial state at the first grid step only (PyTorch starts from zeros).
    @pl.when(pl.program_id(0) == 0)
    def _():
        h0_sc[...] = jnp.zeros_like(h0_sc)
        c0_sc[...] = jnp.zeros_like(c0_sc)
        h1_sc[...] = jnp.zeros_like(h1_sc)
        c1_sc[...] = jnp.zeros_like(c1_sc)

    # ---- Hoisted layer-0 input projection: one large MXU matmul per block ----
    x_blk = x_ref[...].reshape(TT * Bp, IN_PAD)
    pre0 = jnp.dot(x_blk, wih0_ref[...], preferred_element_type=jnp.float32)
    pre0 = pre0 + b0_ref[...]                 # biases folded in once per block
    pre0_sc[...] = pre0.reshape(TT, Bp, 4 * H)

    b1b = jnp.broadcast_to(b1_ref[...], (Bp, 4 * H))  # hoisted broadcast

    def gate_split(g):
        i = jax.nn.sigmoid(g[:, 0:H])
        f = jax.nn.sigmoid(g[:, H:2 * H])
        gg = jnp.tanh(g[:, 2 * H:3 * H])
        o = jax.nn.sigmoid(g[:, 3 * H:4 * H])
        return i, f, gg, o

    # Fully-unrolled time loop (T_BLOCK is small & static): gives the LLO
    # scheduler cross-timestep visibility over the 2 MXU launches per step.
    for t in range(TT):
        # Layer 0: only the recurrent matmul remains on the critical path.
        g0 = pre0_sc[t] + jnp.dot(h0_sc[...], whh0_ref[...],
                                  preferred_element_type=jnp.float32)
        i0, f0, gg0, o0 = gate_split(g0)
        c0 = f0 * c0_sc[...] + i0 * gg0       # f32 elementwise
        h0 = o0 * jnp.tanh(c0)
        c0_sc[...] = c0
        h0b = h0.astype(jnp.bfloat16)
        h0_sc[...] = h0b

        # Layer 1: fused [x; h] @ [W_ih; W_hh] -> single MXU launch.
        xh1 = jnp.concatenate([h0b, h1_sc[...]], axis=1)   # (Bp, 2H) bf16
        g1 = jnp.dot(xh1, w1_ref[...],
                     preferred_element_type=jnp.float32) + b1b
        i1, f1, gg1, o1 = gate_split(g1)
        c1 = f1 * c1_sc[...] + i1 * gg1
        h1 = o1 * jnp.tanh(c1)
        c1_sc[...] = c1
        h1b = h1.astype(jnp.bfloat16)
        h1_sc[...] = h1b
        h1seq_sc[t] = h1b

    # ---- Batched FC head: one matmul + one lane-dense store per block ----
    h1_flat = h1seq_sc[...].reshape(TT * Bp, H)
    y = jnp.dot(h1_flat, wfc_ref[...], preferred_element_type=jnp.float32)
    y = y + bfc_ref[...]
    out_ref[...] = y.reshape(TT, Bp, OUT_PAD)


def prepare_kernel_params(params):
    """Pad / stack / cast the f32 reference params for the kernel."""
    H = HIDDEN_SIZE
    bf16 = jnp.bfloat16
    f32 = jnp.float32

    wih0 = jnp.zeros((IN_PAD, 4 * H), f32).at[:INPUT_SIZE].set(params["wih0"])
    wfc = jnp.zeros((H, OUT_PAD), f32).at[:, :OUTPUT_SIZE].set(params["wfc"])
    bfc = jnp.zeros((1, OUT_PAD), f32).at[:, :OUTPUT_SIZE].set(params["bfc"])
    w1 = jnp.concatenate([params["wih1"], params["whh1"]], axis=0)  # (2H, 4H)

    return dict(
        wih0=wih0.astype(bf16),
        whh0=params["whh0"].astype(bf16),
        b0=params["b0"].astype(f32),
        w1=w1.astype(bf16),
        b1=params["b1"].astype(f32),
        wfc=wfc.astype(bf16),
        bfc=bfc.astype(f32),
    )


def beyond_sight_lstm(x, params):
    """x: (B, T, INPUT_SIZE) float32 -> (B, T, OUTPUT_SIZE) float32."""
    B, T, I = x.shape
    H = HIDDEN_SIZE
    kp = prepare_kernel_params(params)

    Bp = _round_up(B, SUBLANE)
    Tp = _round_up(T, T_BLOCK)

    # time-major + pad: (T, B, I) -> (Tp, Bp, IN_PAD), bf16 matmul operands.
    x_tm = jnp.transpose(x, (1, 0, 2))
    x_tm = jnp.pad(x_tm, ((0, Tp - T), (0, Bp - B), (0, IN_PAD - I)))
    x_tm = x_tm.astype(jnp.bfloat16)

    grid_spec = pltpu.PrefetchScalarGridSpec(
        num_scalar_prefetch=0,
        grid=(Tp // T_BLOCK,),
        in_specs=[
            pl.BlockSpec((T_BLOCK, Bp, IN_PAD), lambda i: (i, 0, 0)),
            pl.BlockSpec((IN_PAD, 4 * H), lambda i: (0, 0)),
            pl.BlockSpec((H, 4 * H), lambda i: (0, 0)),
            pl.BlockSpec((1, 4 * H), lambda i: (0, 0)),
            pl.BlockSpec((2 * H, 4 * H), lambda i: (0, 0)),
            pl.BlockSpec((1, 4 * H), lambda i: (0, 0)),
            pl.BlockSpec((H, OUT_PAD), lambda i: (0, 0)),
            pl.BlockSpec((1, OUT_PAD), lambda i: (0, 0)),
        ],
        out_specs=pl.BlockSpec((T_BLOCK, Bp, OUT_PAD), lambda i: (i, 0, 0)),
        scratch_shapes=[
            pltpu.VMEM((Bp, H), jnp.bfloat16),               # h0
            pltpu.VMEM((Bp, H), jnp.float32),                # c0
            pltpu.VMEM((Bp, H), jnp.bfloat16),               # h1
            pltpu.VMEM((Bp, H), jnp.float32),                # c1
            pltpu.VMEM((T_BLOCK, Bp, 4 * H), jnp.float32),   # layer-0 pre-gates
            pltpu.VMEM((T_BLOCK, Bp, H), jnp.bfloat16),      # h1 over block
        ],
    )

    out_tm = pl.pallas_call(
        _lstm_fc_kernel,
        out_shape=jax.ShapeDtypeStruct((Tp, Bp, OUT_PAD), jnp.float32),
        grid_spec=grid_spec,
        compiler_params=pltpu.CompilerParams(
            dimension_semantics=("arbitrary",)),  # time axis carries h/c state
    )(x_tm, kp["wih0"], kp["whh0"], kp["b0"],
      kp["w1"], kp["b1"], kp["wfc"], kp["bfc"])

    out = out_tm[:T, :B, :OUTPUT_SIZE]
    return jnp.transpose(out, (1, 0, 2))


def init_params(key):
    """Deterministic init matching PyTorch's default U(-1/sqrt(H), 1/sqrt(H)).

    Weights are stored pre-transposed as (in_features, 4H) so gates =
    x @ W_ih + h @ W_hh + b with PyTorch gate order [i, f, g, o]."""
    k = 1.0 / jnp.sqrt(jnp.float32(HIDDEN_SIZE))
    keys = jax.random.split(key, 11)

    def u(kk, shape):
        return jax.random.uniform(kk, shape, jnp.float32, -k, k)

    wih0 = u(keys[0], (INPUT_SIZE, 4 * HIDDEN_SIZE))
    whh0 = u(keys[1], (HIDDEN_SIZE, 4 * HIDDEN_SIZE))
    b0 = u(keys[2], (1, 4 * HIDDEN_SIZE)) + u(keys[3], (1, 4 * HIDDEN_SIZE))
    wih1 = u(keys[4], (HIDDEN_SIZE, 4 * HIDDEN_SIZE))
    whh1 = u(keys[5], (HIDDEN_SIZE, 4 * HIDDEN_SIZE))
    b1 = u(keys[6], (1, 4 * HIDDEN_SIZE)) + u(keys[7], (1, 4 * HIDDEN_SIZE))
    wfc = u(keys[8], (HIDDEN_SIZE, OUTPUT_SIZE))
    bfc = u(keys[9], (1, OUTPUT_SIZE))

    return dict(wih0=wih0, whh0=whh0, b0=b0,
                wih1=wih1, whh1=whh1, b1=b1,
                wfc=wfc, bfc=bfc)


def reference_forward(x, params):
    """Pure-JAX f32 reference (lax.scan) mirroring PyTorch nn.LSTM + nn.Linear."""
    B = x.shape[0]
    H = HIDDEN_SIZE

    def cell(x_t, h, c, wih, whh, b):
        gates = x_t @ wih + h @ whh + b
        i = jax.nn.sigmoid(gates[:, 0:H])
        f = jax.nn.sigmoid(gates[:, H:2 * H])
        g = jnp.tanh(gates[:, 2 * H:3 * H])
        o = jax.nn.sigmoid(gates[:, 3 * H:4 * H])
        c_new = f * c + i * g
        return o * jnp.tanh(c_new), c_new

    def step(carry, x_t):
        h0, c0, h1, c1 = carry
        h0, c0 = cell(x_t, h0, c0, params["wih0"], params["whh0"], params["b0"])
        h1, c1 = cell(h0, h1, c1, params["wih1"], params["whh1"], params["b1"])
        y = h1 @ params["wfc"] + params["bfc"]
        return (h0, c0, h1, c1), y

    z = jnp.zeros((B, H), jnp.float32)
    _, ys = lax.scan(step, (z, z, z, z), jnp.transpose(x, (1, 0, 2)))
    return jnp.transpose(ys, (1, 0, 2))


if __name__ == "__main__":
    key = jax.random.PRNGKey(0)
    kparam, kx = jax.random.split(key)

    params = init_params(kparam)

    B, T = 2, 8  # small batch / sequence; feature dims fixed by the module
    x = jax.random.normal(kx, (B, T, INPUT_SIZE), jnp.float32)

    fwd = jax.jit(beyond_sight_lstm)
    out = jax.block_until_ready(fwd(x, params))

    assert out.shape == (B, T, OUTPUT_SIZE), out.shape

    ref = reference_forward(x, params)
    # bf16 matmul operands with f32 accumulation -> slightly looser tolerance.
    if not jnp.allclose(out, ref, rtol=2e-2, atol=2e-2):
        raise AssertionError("Pallas LSTM output does not match JAX reference")

    print("KERNEL_OK")
</pallas_src>

<mosaic_0001>
module attributes {stable_mosaic.version = 11 : i64} {
  func.func @_lstm_fc_kernel(%arg0: i32, %arg1: memref<8x8x128xbf16, #tpu.memory_space<vmem>>, %arg2: memref<128x512xbf16, #tpu.memory_space<vmem>>, %arg3: memref<128x512xbf16, #tpu.memory_space<vmem>>, %arg4: memref<1x512xf32, #tpu.memory_space<vmem>>, %arg5: memref<256x512xbf16, #tpu.memory_space<vmem>>, %arg6: memref<1x512xf32, #tpu.memory_space<vmem>>, %arg7: memref<128x128xbf16, #tpu.memory_space<vmem>>, %arg8: memref<1x128xf32, #tpu.memory_space<vmem>>, %arg9: memref<8x8x128xf32, #tpu.memory_space<vmem>>, %arg10: memref<8x128xbf16, #tpu.memory_space<vmem>>, %arg11: memref<8x128xf32, #tpu.memory_space<vmem>>, %arg12: memref<8x128xbf16, #tpu.memory_space<vmem>>, %arg13: memref<8x128xf32, #tpu.memory_space<vmem>>, %arg14: memref<8x8x512xf32, #tpu.memory_space<vmem>>, %arg15: memref<8x8x128xbf16, #tpu.memory_space<vmem>>) attributes {dimension_semantics = [#tpu.dimension_semantics<arbitrary>], iteration_bounds = array<i64: 1>, scalar_prefetch = 0 : i64, scratch_operands = 6 : i64, tpu.core_type = #tpu.core_type<tc>, window_params = [{transform_indices = @transform_0, window_bounds = array<i64: 8, 8, 128>}, {pipeline_mode = #tpu.pipeline_mode<synchronous>, transform_indices = @transform_1, window_bounds = array<i64: 128, 512>}, {pipeline_mode = #tpu.pipeline_mode<synchronous>, transform_indices = @transform_2, window_bounds = array<i64: 128, 512>}, {pipeline_mode = #tpu.pipeline_mode<synchronous>, transform_indices = @transform_3, window_bounds = array<i64: 1, 512>}, {pipeline_mode = #tpu.pipeline_mode<synchronous>, transform_indices = @transform_4, window_bounds = array<i64: 256, 512>}, {pipeline_mode = #tpu.pipeline_mode<synchronous>, transform_indices = @transform_5, window_bounds = array<i64: 1, 512>}, {pipeline_mode = #tpu.pipeline_mode<synchronous>, transform_indices = @transform_6, window_bounds = array<i64: 128, 128>}, {pipeline_mode = #tpu.pipeline_mode<synchronous>, transform_indices = @transform_7, window_bounds = array<i64: 1, 128>}, {transform_indices = @transform_8, window_bounds = array<i64: 8, 8, 128>}]} {
    %c0_i32 = arith.constant 0 : i32
    %0 = arith.cmpi eq, %arg0, %c0_i32 : i32
    %1 = arith.extui %0 : i1 to i32
    %c0_i32_0 = arith.constant 0 : i32
    %2 = arith.cmpi ne, %1, %c0_i32_0 : i32
    scf.if %2 {
      %cst_288 = arith.constant 0.000000e+00 : bf16
      %600 = vector.broadcast %cst_288 : bf16 to vector<8x128xbf16>
      %c0_289 = arith.constant 0 : index
      %c0_290 = arith.constant 0 : index
      %601 = vector.load %arg10[%c0_289, %c0_290] : memref<8x128xbf16, #tpu.memory_space<vmem>>, vector<8x128xbf16>
      tpu.vector_store %arg10[%c0_289, %c0_290], %600 {strides = array<i32>} : memref<8x128xbf16, #tpu.memory_space<vmem>>, vector<8x128xbf16>,
      %cst_291 = arith.constant 0.000000e+00 : f32
      %602 = vector.broadcast %cst_291 : f32 to vector<8x128xf32>
      %c0_292 = arith.constant 0 : index
      %c0_293 = arith.constant 0 : index
      %603 = vector.load %arg11[%c0_292, %c0_293] : memref<8x128xf32, #tpu.memory_space<vmem>>, vector<8x128xf32>
      tpu.vector_store %arg11[%c0_292, %c0_293], %602 {strides = array<i32>} : memref<8x128xf32, #tpu.memory_space<vmem>>, vector<8x128xf32>,
      %cst_294 = arith.constant 0.000000e+00 : bf16
      %604 = vector.broadcast %cst_294 : bf16 to vector<8x128xbf16>
      %c0_295 = arith.constant 0 : index
      %c0_296 = arith.constant 0 : index
      %605 = vector.load %arg12[%c0_295, %c0_296] : memref<8x128xbf16, #tpu.memory_space<vmem>>, vector<8x128xbf16>
      tpu.vector_store %arg12[%c0_295, %c0_296], %604 {strides = array<i32>} : memref<8x128xbf16, #tpu.memory_space<vmem>>, vector<8x128xbf16>,
      %cst_297 = arith.constant 0.000000e+00 : f32
      %606 = vector.broadcast %cst_297 : f32 to vector<8x128xf32>
      %c0_298 = arith.constant 0 : index
      %c0_299 = arith.constant 0 : index
      %607 = vector.load %arg13[%c0_298, %c0_299] : memref<8x128xf32, #tpu.memory_space<vmem>>, vector<8x128xf32>
      tpu.vector_store %arg13[%c0_298, %c0_299], %606 {strides = array<i32>} : memref<8x128xf32, #tpu.memory_space<vmem>>, vector<8x128xf32>,
    } else {
    }
    %c0 = arith.constant 0 : index
    %c0_1 = arith.constant 0 : index
    %c0_2 = arith.constant 0 : index
    %3 = vector.load %arg1[%c0, %c0_1, %c0_2] : memref<8x8x128xbf16, #tpu.memory_space<vmem>>, vector<8x8x128xbf16>
    %4 = vector.shape_cast %3 : vector<8x8x128xbf16> to vector<64x128xbf16>
    %c0_3 = arith.constant 0 : index
    %c0_4 = arith.constant 0 : index
    %5 = vector.load %arg2[%c0_3, %c0_4] : memref<128x512xbf16, #tpu.memory_space<vmem>>, vector<128x512xbf16>
    %cst = arith.constant dense<0.000000e+00> : vector<64x512xf32>
    %6 = tpu.matmul %4, %5, %cst {dimension_numbers = #tpu.dot_dimension_numbers<[1], [0], [0], [1], [0, 0, 1, 1], [], []>} : vector<64x128xbf16>, vector<128x512xbf16>, vector<64x512xf32> -> vector<64x512xf32>
    %c0_5 = arith.constant 0 : index
    %c0_6 = arith.constant 0 : index
    %7 = vector.load %arg4[%c0_5, %c0_6] : memref<1x512xf32, #tpu.memory_space<vmem>>, vector<1x512xf32>
    %8 = vector.broadcast %7 : vector<1x512xf32> to vector<64x512xf32>
    %9 = arith.addf %6, %8 : vector<64x512xf32>
    %10 = vector.shape_cast %9 : vector<64x512xf32> to vector<8x8x512xf32>
    %c0_7 = arith.constant 0 : index
    %c0_8 = arith.constant 0 : index
    %c0_9 = arith.constant 0 : index
    %11 = vector.load %arg14[%c0_7, %c0_8, %c0_9] : memref<8x8x512xf32, #tpu.memory_space<vmem>>, vector<8x8x512xf32>
    tpu.vector_store %arg14[%c0_7, %c0_8, %c0_9], %10 {strides = array<i32>} : memref<8x8x512xf32, #tpu.memory_space<vmem>>, vector<8x8x512xf32>,
    %c0_10 = arith.constant 0 : index
    %c0_11 = arith.constant 0 : index
    %12 = vector.load %arg6[%c0_10, %c0_11] : memref<1x512xf32, #tpu.memory_space<vmem>>, vector<1x512xf32>
    %13 = vector.shape_cast %12 : vector<1x512xf32> to vector<1x512xf32>
    %14 = vector.broadcast %13 : vector<1x512xf32> to vector<8x512xf32>
    %c0_12 = arith.constant 0 : index
    %c0_13 = arith.constant 0 : index
    %c0_14 = arith.constant 0 : index
    %15 = vector.load %arg14[%c0_12, %c0_13, %c0_14] : memref<8x8x512xf32, #tpu.memory_space<vmem>>, vector<1x8x512xf32>
    %16 = vector.shape_cast %15 : vector<1x8x512xf32> to vector<8x512xf32>
    %c0_15 = arith.constant 0 : index
    %c0_16 = arith.constant 0 : index
    %17 = vector.load %arg10[%c0_15, %c0_16] : memref<8x128xbf16, #tpu.memory_space<vmem>>, vector<8x128xbf16>
    %c0_17 = arith.constant 0 : index
    %c0_18 = arith.constant 0 : index
    %18 = vector.load %arg3[%c0_17, %c0_18] : memref<128x512xbf16, #tpu.memory_space<vmem>>, vector<128x512xbf16>
    %cst_19 = arith.constant dense<0.000000e+00> : vector<8x512xf32>
    %19 = tpu.matmul %17, %18, %cst_19 {dimension_numbers = #tpu.dot_dimension_numbers<[1], [0], [0], [1], [0, 0, 1, 1], [], []>} : vector<8x128xbf16>, vector<128x512xbf16>, vector<8x512xf32> -> vector<8x512xf32>
    %20 = arith.addf %16, %19 : vector<8x512xf32>
    %21 = vector.extract_strided_slice %20 {offsets = [0, 0], sizes = [8, 128], strides = [1, 1]} : vector<8x512xf32> to vector<8x128xf32>
    %22 = arith.negf %21 : vector<8x128xf32>
    %23 = math.exp %22 : vector<8x128xf32>
    %cst_20 = arith.constant 1.000000e+00 : f32
    %24 = vector.broadcast %cst_20 : f32 to vector<8x128xf32>
    %25 = arith.addf %24, %23 : vector<8x128xf32>
    %26 = arith.divf %24, %25 : vector<8x128xf32>
    %27 = vector.extract_strided_slice %20 {offsets = [0, 128], sizes = [8, 128], strides = [1, 1]} : vector<8x512xf32> to vector<8x128xf32>
    %28 = arith.negf %27 : vector<8x128xf32>
    %29 = math.exp %28 : vector<8x128xf32>
    %cst_21 = arith.constant 1.000000e+00 : f32
    %30 = vector.broadcast %cst_21 : f32 to vector<8x128xf32>
    %31 = arith.addf %30, %29 : vector<8x128xf32>
    %32 = arith.divf %30, %31 : vector<8x128xf32>
    %33 = vector.extract_strided_slice %20 {offsets = [0, 256], sizes = [8, 128], strides = [1, 1]} : vector<8x512xf32> to vector<8x128xf32>
    %34 = math.tanh %33 : vector<8x128xf32>
    %35 = vector.extract_strided_slice %20 {offsets = [0, 384], sizes = [8, 128], strides = [1, 1]} : vector<8x512xf32> to vector<8x128xf32>
    %36 = arith.negf %35 : vector<8x128xf32>
    %37 = math.exp %36 : vector<8x128xf32>
    %cst_22 = arith.constant 1.000000e+00 : f32
    %38 = vector.broadcast %cst_22 : f32 to vector<8x128xf32>
    %39 = arith.addf %38, %37 : vector<8x128xf32>
    %40 = arith.divf %38, %39 : vector<8x128xf32>
    %c0_23 = arith.constant 0 : index
    %c0_24 = arith.constant 0 : index
    %41 = vector.load %arg11[%c0_23, %c0_24] : memref<8x128xf32, #tpu.memory_space<vmem>>, vector<8x128xf32>
    %42 = arith.mulf %32, %41 : vector<8x128xf32>
    %43 = arith.mulf %26, %34 : vector<8x128xf32>
    %44 = arith.addf %42, %43 : vector<8x128xf32>
    %45 = math.tanh %44 : vector<8x128xf32>
    %46 = arith.mulf %40, %45 : vector<8x128xf32>
    %c0_25 = arith.constant 0 : index
    %c0_26 = arith.constant 0 : index
    %47 = vector.load %arg11[%c0_25, %c0_26] : memref<8x128xf32, #tpu.memory_space<vmem>>, vector<8x128xf32>
    tpu.vector_store %arg11[%c0_25, %c0_26], %44 {strides = array<i32>} : memref<8x128xf32, #tpu.memory_space<vmem>>, vector<8x128xf32>,
    %48 = arith.truncf %46 : vector<8x128xf32> to vector<8x128xbf16>
    %c0_27 = arith.constant 0 : index
    %c0_28 = arith.constant 0 : index
    %49 = vector.load %arg10[%c0_27, %c0_28] : memref<8x128xbf16, #tpu.memory_space<vmem>>, vector<8x128xbf16>
    tpu.vector_store %arg10[%c0_27, %c0_28], %48 {strides = array<i32>} : memref<8x128xbf16, #tpu.memory_space<vmem>>, vector<8x128xbf16>,
    %c0_29 = arith.constant 0 : index
    %c0_30 = arith.constant 0 : index
    %50 = vector.load %arg12[%c0_29, %c0_30] : memref<8x128xbf16, #tpu.memory_space<vmem>>, vector<8x128xbf16>
    %51 = tpu.concatenate %48, %50 in 1 : vector<8x128xbf16>, vector<8x128xbf16> -> vector<8x256xbf16>
    %c0_31 = arith.constant 0 : index
    %c0_32 = arith.constant 0 : index
    %52 = vector.load %arg5[%c0_31, %c0_32] : memref<256x512xbf16, #tpu.memory_space<vmem>>, vector<256x512xbf16>
    %cst_33 = arith.constant dense<0.000000e+00> : vector<8x512xf32>
    %53 = tpu.matmul %51, %52, %cst_33 {dimension_numbers = #tpu.dot_dimension_numbers<[1], [0], [0], [1], [0, 0, 1, 1], [], []>} : vector<8x256xbf16>, vector<256x512xbf16>, vector<8x512xf32> -> vector<8x512xf32>
    %54 = arith.addf %53, %14 : vector<8x512xf32>
    %55 = vector.extract_strided_slice %54 {offsets = [0, 0], sizes = [8, 128], strides = [1, 1]} : vector<8x512xf32> to vector<8x128xf32>
    %56 = arith.negf %55 : vector<8x128xf32>
    %57 = math.exp %56 : vector<8x128xf32>
    %cst_34 = arith.constant 1.000000e+00 : f32
    %58 = vector.broadcast %cst_34 : f32 to vector<8x128xf32>
    %59 = arith.addf %58, %57 : vector<8x128xf32>
    %60 = arith.divf %58, %59 : vector<8x128xf32>
    %61 = vector.extract_strided_slice %54 {offsets = [0, 128], sizes = [8, 128], strides = [1, 1]} : vector<8x512xf32> to vector<8x128xf32>
    %62 = arith.negf %61 : vector<8x128xf32>
    %63 = math.exp %62 : vector<8x128xf32>
    %cst_35 = arith.constant 1.000000e+00 : f32
    %64 = vector.broadcast %cst_35 : f32 to vector<8x128xf32>
    %65 = arith.addf %64, %63 : vector<8x128xf32>
    %66 = arith.divf %64, %65 : vector<8x128xf32>
    %67 = vector.extract_strided_slice %54 {offsets = [0, 256], sizes = [8, 128], strides = [1, 1]} : vector<8x512xf32> to vector<8x128xf32>
    %68 = math.tanh %67 : vector<8x128xf32>
    %69 = vector.extract_strided_slice %54 {offsets = [0, 384], sizes = [8, 128], strides = [1, 1]} : vector<8x512xf32> to vector<8x128xf32>
    %70 = arith.negf %69 : vector<8x128xf32>
    %71 = math.exp %70 : vector<8x128xf32>
    %cst_36 = arith.constant 1.000000e+00 : f32
    %72 = vector.broadcast %cst_36 : f32 to vector<8x128xf32>
    %73 = arith.addf %72, %71 : vector<8x128xf32>
    %74 = arith.divf %72, %73 : vector<8x128xf32>
    %c0_37 = arith.constant 0 : index
    %c0_38 = arith.constant 0 : index
    %75 = vector.load %arg13[%c0_37, %c0_38] : memref<8x128xf32, #tpu.memory_space<vmem>>, vector<8x128xf32>
    %76 = arith.mulf %66, %75 : vector<8x128xf32>
    %77 = arith.mulf %60, %68 : vector<8x128xf32>
    %78 = arith.addf %76, %77 : vector<8x128xf32>
    %79 = math.tanh %78 : vector<8x128xf32>
    %80 = arith.mulf %74, %79 : vector<8x128xf32>
    %c0_39 = arith.constant 0 : index
    %c0_40 = arith.constant 0 : index
    %81 = vector.load %arg13[%c0_39, %c0_40] : memref<8x128xf32, #tpu.memory_space<vmem>>, vector<8x128xf32>
    tpu.vector_store %arg13[%c0_39, %c0_40], %78 {strides = array<i32>} : memref<8x128xf32, #tpu.memory_space<vmem>>, vector<8x128xf32>,
    %82 = arith.truncf %80 : vector<8x128xf32> to vector<8x128xbf16>
    %c0_41 = arith.constant 0 : index
    %c0_42 = arith.constant 0 : index
    %83 = vector.load %arg12[%c0_41, %c0_42] : memref<8x128xbf16, #tpu.memory_space<vmem>>, vector<8x128xbf16>
    tpu.vector_store %arg12[%c0_41, %c0_42], %82 {strides = array<i32>} : memref<8x128xbf16, #tpu.memory_space<vmem>>, vector<8x128xbf16>,
    %c0_43 = arith.constant 0 : index
    %c0_44 = arith.constant 0 : index
    %c0_45 = arith.constant 0 : index
    %84 = vector.load %arg15[%c0_43, %c0_44, %c0_45] : memref<8x8x128xbf16, #tpu.memory_space<vmem>>, vector<1x8x128xbf16>
    %85 = vector.shape_cast %84 : vector<1x8x128xbf16> to vector<8x128xbf16>
    %86 = vector.shape_cast %82 : vector<8x128xbf16> to vector<1x8x128xbf16>
    tpu.vector_store %arg15[%c0_43, %c0_44, %c0_45], %86 {strides = array<i32>} : memref<8x8x128xbf16, #tpu.memory_space<vmem>>, vector<1x8x128xbf16>,
    %c1 = arith.constant 1 : index
    %c0_46 = arith.constant 0 : index
    %c0_47 = arith.constant 0 : index
    %87 = vector.load %arg14[%c1, %c0_46, %c0_47] : memref<8x8x512xf32, #tpu.memory_space<vmem>>, vector<1x8x512xf32>
    %88 = vector.shape_cast %87 : vector<1x8x512xf32> to vector<8x512xf32>
    %c0_48 = arith.constant 0 : index
    %c0_49 = arith.constant 0 : index
    %89 = vector.load %arg10[%c0_48, %c0_49] : memref<8x128xbf16, #tpu.memory_space<vmem>>, vector<8x128xbf16>
    %c0_50 = arith.constant 0 : index
    %c0_51 = arith.constant 0 : index
    %90 = vector.load %arg3[%c0_50, %c0_51] : memref<128x512xbf16, #tpu.memory_space<vmem>>, vector<128x512xbf16>
    %cst_52 = arith.constant dense<0.000000e+00> : vector<8x512xf32>
    %91 = tpu.matmul %89, %90, %cst_52 {dimension_numbers = #tpu.dot_dimension_numbers<[1], [0], [0], [1], [0, 0, 1, 1], [], []>} : vector<8x128xbf16>, vector<128x512xbf16>, vector<8x512xf32> -> vector<8x512xf32>
    %92 = arith.addf %88, %91 : vector<8x512xf32>
    %93 = vector.extract_strided_slice %92 {offsets = [0, 0], sizes = [8, 128], strides = [1, 1]} : vector<8x512xf32> to vector<8x128xf32>
    %94 = arith.negf %93 : vector<8x128xf32>
    %95 = math.exp %94 : vector<8x128xf32>
    %cst_53 = arith.constant 1.000000e+00 : f32
    %96 = vector.broadcast %cst_53 : f32 to vector<8x128xf32>
    %97 = arith.addf %96, %95 : vector<8x128xf32>
    %98 = arith.divf %96, %97 : vector<8x128xf32>
    %99 = vector.extract_strided_slice %92 {offsets = [0, 128], sizes = [8, 128], strides = [1, 1]} : vector<8x512xf32> to vector<8x128xf32>
    %100 = arith.negf %99 : vector<8x128xf32>
    %101 = math.exp %100 : vector<8x128xf32>
    %cst_54 = arith.constant 1.000000e+00 : f32
    %102 = vector.broadcast %cst_54 : f32 to vector<8x128xf32>
    %103 = arith.addf %102, %101 : vector<8x128xf32>
    %104 = arith.divf %102, %103 : vector<8x128xf32>
    %105 = vector.extract_strided_slice %92 {offsets = [0, 256], sizes = [8, 128], strides = [1, 1]} : vector<8x512xf32> to vector<8x128xf32>
    %106 = math.tanh %105 : vector<8x128xf32>
    %107 = vector.extract_strided_slice %92 {offsets = [0, 384], sizes = [8, 128], strides = [1, 1]} : vector<8x512xf32> to vector<8x128xf32>
    %108 = arith.negf %107 : vector<8x128xf32>
    %109 = math.exp %108 : vector<8x128xf32>
    %cst_55 = arith.constant 1.000000e+00 : f32
    %110 = vector.broadcast %cst_55 : f32 to vector<8x128xf32>
    %111 = arith.addf %110, %109 : vector<8x128xf32>
    %112 = arith.divf %110, %111 : vector<8x128xf32>
    %c0_56 = arith.constant 0 : index
    %c0_57 = arith.constant 0 : index
    %113 = vector.load %arg11[%c0_56, %c0_57] : memref<8x128xf32, #tpu.memory_space<vmem>>, vector<8x128xf32>
    %114 = arith.mulf %104, %113 : vector<8x128xf32>
    %115 = arith.mulf %98, %106 : vector<8x128xf32>
    %116 = arith.addf %114, %115 : vector<8x128xf32>
    %117 = math.tanh %116 : vector<8x128xf32>
    %118 = arith.mulf %112, %117 : vector<8x128xf32>
    %c0_58 = arith.constant 0 : index
    %c0_59 = arith.constant 0 : index
    %119 = vector.load %arg11[%c0_58, %c0_59] : memref<8x128xf32, #tpu.memory_space<vmem>>, vector<8x128xf32>
    tpu.vector_store %arg11[%c0_58, %c0_59], %116 {strides = array<i32>} : memref<8x128xf32, #tpu.memory_space<vmem>>, vector<8x128xf32>,
    %120 = arith.truncf %118 : vector<8x128xf32> to vector<8x128xbf16>
    %c0_60 = arith.constant 0 : index
    %c0_61 = arith.constant 0 : index
    %121 = vector.load %arg10[%c0_60, %c0_61] : memref<8x128xbf16, #tpu.memory_space<vmem>>, vector<8x128xbf16>
    tpu.vector_store %arg10[%c0_60, %c0_61], %120 {strides = array<i32>} : memref<8x128xbf16, #tpu.memory_space<vmem>>, vector<8x128xbf16>,
    %c0_62 = arith.constant 0 : index
    %c0_63 = arith.constant 0 : index
    %122 = vector.load %arg12[%c0_62, %c0_63] : memref<8x128xbf16, #tpu.memory_space<vmem>>, vector<8x128xbf16>
    %123 = tpu.concatenate %120, %122 in 1 : vector<8x128xbf16>, vector<8x128xbf16> -> vector<8x256xbf16>
    %c0_64 = arith.constant 0 : index
    %c0_65 = arith.constant 0 : index
    %124 = vector.load %arg5[%c0_64, %c0_65] : memref<256x512xbf16, #tpu.memory_space<vmem>>, vector<256x512xbf16>
    %cst_66 = arith.constant dense<0.000000e+00> : vector<8x512xf32>
    %125 = tpu.matmul %123, %124, %cst_66 {dimension_numbers = #tpu.dot_dimension_numbers<[1], [0], [0], [1], [0, 0, 1, 1], [], []>} : vector<8x256xbf16>, vector<256x512xbf16>, vector<8x512xf32> -> vector<8x512xf32>
    %126 = arith.addf %125, %14 : vector<8x512xf32>
    %127 = vector.extract_strided_slice %126 {offsets = [0, 0], sizes = [8, 128], strides = [1, 1]} : vector<8x512xf32> to vector<8x128xf32>
    %128 = arith.negf %127 : vector<8x128xf32>
    %129 = math.exp %128 : vector<8x128xf32>
    %cst_67 = arith.constant 1.000000e+00 : f32
    %130 = vector.broadcast %cst_67 : f32 to vector<8x128xf32>
    %131 = arith.addf %130, %129 : vector<8x128xf32>
    %132 = arith.divf %130, %131 : vector<8x128xf32>
    %133 = vector.extract_strided_slice %126 {offsets = [0, 128], sizes = [8, 128], strides = [1, 1]} : vector<8x512xf32> to vector<8x128xf32>
    %134 = arith.negf %133 : vector<8x128xf32>
    %135 = math.exp %134 : vector<8x128xf32>
    %cst_68 = arith.constant 1.000000e+00 : f32
    %136 = vector.broadcast %cst_68 : f32 to vector<8x128xf32>
    %137 = arith.addf %136, %135 : vector<8x128xf32>
    %138 = arith.divf %136, %137 : vector<8x128xf32>
    %139 = vector.extract_strided_slice %126 {offsets = [0, 256], sizes = [8, 128], strides = [1, 1]} : vector<8x512xf32> to vector<8x128xf32>
    %140 = math.tanh %139 : vector<8x128xf32>
    %141 = vector.extract_strided_slice %126 {offsets = [0, 384], sizes = [8, 128], strides = [1, 1]} : vector<8x512xf32> to vector<8x128xf32>
    %142 = arith.negf %141 : vector<8x128xf32>
    %143 = math.exp %142 : vector<8x128xf32>
    %cst_69 = arith.constant 1.000000e+00 : f32
    %144 = vector.broadcast %cst_69 : f32 to vector<8x128xf32>
    %145 = arith.addf %144, %143 : vector<8x128xf32>
    %146 = arith.divf %144, %145 : vector<8x128xf32>
    %c0_70 = arith.constant 0 : index
    %c0_71 = arith.constant 0 : index
    %147 = vector.load %arg13[%c0_70, %c0_71] : memref<8x128xf32, #tpu.memory_space<vmem>>, vector<8x128xf32>
    %148 = arith.mulf %138, %147 : vector<8x128xf32>
    %149 = arith.mulf %132, %140 : vector<8x128xf32>
    %150 = arith.addf %148, %149 : vector<8x128xf32>
    %151 = math.tanh %150 : vector<8x128xf32>
    %152 = arith.mulf %146, %151 : vector<8x128xf32>
    %c0_72 = arith.constant 0 : index
    %c0_73 = arith.constant 0 : index
    %153 = vector.load %arg13[%c0_72, %c0_73] : memref<8x128xf32, #tpu.memory_space<vmem>>, vector<8x128xf32>
    tpu.vector_store %arg13[%c0_72, %c0_73], %150 {strides = array<i32>} : memref<8x128xf32, #tpu.memory_space<vmem>>, vector<8x128xf32>,
    %154 = arith.truncf %152 : vector<8x128xf32> to vector<8x128xbf16>
    %c0_74 = arith.constant 0 : index
    %c0_75 = arith.constant 0 : index
    %155 = vector.load %arg12[%c0_74, %c0_75] : memref<8x128xbf16, #tpu.memory_space<vmem>>, vector<8x128xbf16>
    tpu.vector_store %arg12[%c0_74, %c0_75], %154 {strides = array<i32>} : memref<8x128xbf16, #tpu.memory_space<vmem>>, vector<8x128xbf16>,
    %c1_76 = arith.constant 1 : index
    %c0_77 = arith.constant 0 : index
    %c0_78 = arith.constant 0 : index
    %156 = vector.load %arg15[%c1_76, %c0_77, %c0_78] : memref<8x8x128xbf16, #tpu.memory_space<vmem>>, vector<1x8x128xbf16>
    %157 = vector.shape_cast %156 : vector<1x8x128xbf16> to vector<8x128xbf16>
    %158 = vector.shape_cast %154 : vector<8x128xbf16> to vector<1x8x128xbf16>
    tpu.vector_store %arg15[%c1_76, %c0_77, %c0_78], %158 {strides = array<i32>} : memref<8x8x128xbf16, #tpu.memory_space<vmem>>, vector<1x8x128xbf16>,
    %c2 = arith.constant 2 : index
    %c0_79 = arith.constant 0 : index
    %c0_80 = arith.constant 0 : index
    %159 = vector.load %arg14[%c2, %c0_79, %c0_80] : memref<8x8x512xf32, #tpu.memory_space<vmem>>, vector<1x8x512xf32>
    %160 = vector.shape_cast %159 : vector<1x8x512xf32> to vector<8x512xf32>
    %c0_81 = arith.constant 0 : index
    %c0_82 = arith.constant 0 : index
    %161 = vector.load %arg10[%c0_81, %c0_82] : memref<8x128xbf16, #tpu.memory_space<vmem>>, vector<8x128xbf16>
    %c0_83 = arith.constant 0 : index
    %c0_84 = arith.constant 0 : index
    %162 = vector.load %arg3[%c0_83, %c0_84] : memref<128x512xbf16, #tpu.memory_space<vmem>>, vector<128x512xbf16>
    %cst_85 = arith.constant dense<0.000000e+00> : vector<8x512xf32>
    %163 = tpu.matmul %161, %162, %cst_85 {dimension_numbers = #tpu.dot_dimension_numbers<[1], [0], [0], [1], [0, 0, 1, 1], [], []>} : vector<8x128xbf16>, vector<128x512xbf16>, vector<8x512xf32> -> vector<8x512xf32>
    %164 = arith.addf %160, %163 : vector<8x512xf32>
    %165 = vector.extract_strided_slice %164 {offsets = [0, 0], sizes = [8, 128], strides = [1, 1]} : vector<8x512xf32> to vector<8x128xf32>
    %166 = arith.negf %165 : vector<8x128xf32>
    %167 = math.exp %166 : vector<8x128xf32>
    %cst_86 = arith.constant 1.000000e+00 : f32
    %168 = vector.broadcast %cst_86 : f32 to vector<8x128xf32>
    %169 = arith.addf %168, %167 : vector<8x128xf32>
    %170 = arith.divf %168, %169 : vector<8x128xf32>
    %171 = vector.extract_strided_slice %164 {offsets = [0, 128], sizes = [8, 128], strides = [1, 1]} : vector<8x512xf32> to vector<8x128xf32>
    %172 = arith.negf %171 : vector<8x128xf32>
    %173 = math.exp %172 : vector<8x128xf32>
    %cst_87 = arith.constant 1.000000e+00 : f32
    %174 = vector.broadcast %cst_87 : f32 to vector<8x128xf32>
    %175 = arith.addf %174, %173 : vector<8x128xf32>
    %176 = arith.divf %174, %175 : vector<8x128xf32>
    %177 = vector.extract_strided_slice %164 {offsets = [0, 256], sizes = [8, 128], strides = [1, 1]} : vector<8x512xf32> to vector<8x128xf32>
    %178 = math.tanh %177 : vector<8x128xf32>
    %179 = vector.extract_strided_slice %164 {offsets = [0, 384], sizes = [8, 128], strides = [1, 1]} : vector<8x512xf32> to vector<8x128xf32>
    %180 = arith.negf %179 : vector<8x128xf32>
    %181 = math.exp %180 : vector<8x128xf32>
    %cst_88 = arith.constant 1.000000e+00 : f32
    %182 = vector.broadcast %cst_88 : f32 to vector<8x128xf32>
    %183 = arith.addf %182, %181 : vector<8x128xf32>
    %184 = arith.divf %182, %183 : vector<8x128xf32>
    %c0_89 = arith.constant 0 : index
    %c0_90 = arith.constant 0 : index
    %185 = vector.load %arg11[%c0_89, %c0_90] : memref<8x128xf32, #tpu.memory_space<vmem>>, vector<8x128xf32>
    %186 = arith.mulf %176, %185 : vector<8x128xf32>
    %187 = arith.mulf %170, %178 : vector<8x128xf32>
    %188 = arith.addf %186, %187 : vector<8x128xf32>
    %189 = math.tanh %188 : vector<8x128xf32>
    %190 = arith.mulf %184, %189 : vector<8x128xf32>
    %c0_91 = arith.constant 0 : index
    %c0_92 = arith.constant 0 : index
    %191 = vector.load %arg11[%c0_91, %c0_92] : memref<8x128xf32, #tpu.memory_space<vmem>>, vector<8x128xf32>
    tpu.vector_store %arg11[%c0_91, %c0_92], %188 {strides = array<i32>} : memref<8x128xf32, #tpu.memory_space<vmem>>, vector<8x128xf32>,
    %192 = arith.truncf %190 : vector<8x128xf32> to vector<8x128xbf16>
    %c0_93 = arith.constant 0 : index
    %c0_94 = arith.constant 0 : index
    %193 = vector.load %arg10[%c0_93, %c0_94] : memref<8x128xbf16, #tpu.memory_space<vmem>>, vector<8x128xbf16>
    tpu.vector_store %arg10[%c0_93, %c0_94], %192 {strides = array<i32>} : memref<8x128xbf16, #tpu.memory_space<vmem>>, vector<8x128xbf16>,
    %c0_95 = arith.constant 0 : index
    %c0_96 = arith.constant 0 : index
    %194 = vector.load %arg12[%c0_95, %c0_96] : memref<8x128xbf16, #tpu.memory_space<vmem>>, vector<8x128xbf16>
    %195 = tpu.concatenate %192, %194 in 1 : vector<8x128xbf16>, vector<8x128xbf16> -> vector<8x256xbf16>
    %c0_97 = arith.constant 0 : index
    %c0_98 = arith.constant 0 : index
    %196 = vector.load %arg5[%c0_97, %c0_98] : memref<256x512xbf16, #tpu.memory_space<vmem>>, vector<256x512xbf16>
    %cst_99 = arith.constant dense<0.000000e+00> : vector<8x512xf32>
    %197 = tpu.matmul %195, %196, %cst_99 {dimension_numbers = #tpu.dot_dimension_numbers<[1], [0], [0], [1], [0, 0, 1, 1], [], []>} : vector<8x256xbf16>, vector<256x512xbf16>, vector<8x512xf32> -> vector<8x512xf32>
    %198 = arith.addf %197, %14 : vector<8x512xf32>
    %199 = vector.extract_strided_slice %198 {offsets = [0, 0], sizes = [8, 128], strides = [1, 1]} : vector<8x512xf32> to vector<8x128xf32>
    %200 = arith.negf %199 : vector<8x128xf32>
    %201 = math.exp %200 : vector<8x128xf32>
    %cst_100 = arith.constant 1.000000e+00 : f32
    %202 = vector.broadcast %cst_100 : f32 to vector<8x128xf32>
    %203 = arith.addf %202, %201 : vector<8x128xf32>
    %204 = arith.divf %202, %203 : vector<8x128xf32>
    %205 = vector.extract_strided_slice %198 {offsets = [0, 128], sizes = [8, 128], strides = [1, 1]} : vector<8x512xf32> to vector<8x128xf32>
    %206 = arith.negf %205 : vector<8x128xf32>
    %207 = math.exp %206 : vector<8x128xf32>
    %cst_101 = arith.constant 1.000000e+00 : f32
    %208 = vector.broadcast %cst_101 : f32 to vector<8x128xf32>
    %209 = arith.addf %208, %207 : vector<8x128xf32>
    %210 = arith.divf %208, %209 : vector<8x128xf32>
    %211 = vector.extract_strided_slice %198 {offsets = [0, 256], sizes = [8, 128], strides = [1, 1]} : vector<8x512xf32> to vector<8x128xf32>
    %212 = math.tanh %211 : vector<8x128xf32>
    %213 = vector.extract_strided_slice %198 {offsets = [0, 384], sizes = [8, 128], strides = [1, 1]} : vector<8x512xf32> to vector<8x128xf32>
    %214 = arith.negf %213 : vector<8x128xf32>
    %215 = math.exp %214 : vector<8x128xf32>
    %cst_102 = arith.constant 1.000000e+00 : f32
    %216 = vector.broadcast %cst_102 : f32 to vector<8x128xf32>
    %217 = arith.addf %216, %215 : vector<8x128xf32>
    %218 = arith.divf %216, %217 : vector<8x128xf32>
    %c0_103 = arith.constant 0 : index
    %c0_104 = arith.constant 0 : index
    %219 = vector.load %arg13[%c0_103, %c0_104] : memref<8x128xf32, #tpu.memory_space<vmem>>, vector<8x128xf32>
    %220 = arith.mulf %210, %219 : vector<8x128xf32>
    %221 = arith.mulf %204, %212 : vector<8x128xf32>
    %222 = arith.addf %220, %221 : vector<8x128xf32>
    %223 = math.tanh %222 : vector<8x128xf32>
    %224 = arith.mulf %218, %223 : vector<8x128xf32>
    %c0_105 = arith.constant 0 : index
    %c0_106 = arith.constant 0 : index
    %225 = vector.load %arg13[%c0_105, %c0_106] : memref<8x128xf32, #tpu.memory_space<vmem>>, vector<8x128xf32>
    tpu.vector_store %arg13[%c0_105, %c0_106], %222 {strides = array<i32>} : memref<8x128xf32, #tpu.memory_space<vmem>>, vector<8x128xf32>,
    %226 = arith.truncf %224 : vector<8x128xf32> to vector<8x128xbf16>
    %c0_107 = arith.constant 0 : index
    %c0_108 = arith.constant 0 : index
    %227 = vector.load %arg12[%c0_107, %c0_108] : memref<8x128xbf16, #tpu.memory_space<vmem>>, vector<8x128xbf16>
    tpu.vector_store %arg12[%c0_107, %c0_108], %226 {strides = array<i32>} : memref<8x128xbf16, #tpu.memory_space<vmem>>, vector<8x128xbf16>,
    %c2_109 = arith.constant 2 : index
    %c0_110 = arith.constant 0 : index
    %c0_111 = arith.constant 0 : index
    %228 = vector.load %arg15[%c2_109, %c0_110, %c0_111] : memref<8x8x128xbf16, #tpu.memory_space<vmem>>, vector<1x8x128xbf16>
    %229 = vector.shape_cast %228 : vector<1x8x128xbf16> to vector<8x128xbf16>
    %230 = vector.shape_cast %226 : vector<8x128xbf16> to vector<1x8x128xbf16>
    tpu.vector_store %arg15[%c2_109, %c0_110, %c0_111], %230 {strides = array<i32>} : memref<8x8x128xbf16, #tpu.memory_space<vmem>>, vector<1x8x128xbf16>,
    %c3 = arith.constant 3 : index
    %c0_112 = arith.constant 0 : index
    %c0_113 = arith.constant 0 : index
    %231 = vector.load %arg14[%c3, %c0_112, %c0_113] : memref<8x8x512xf32, #tpu.memory_space<vmem>>, vector<1x8x512xf32>
    %232 = vector.shape_cast %231 : vector<1x8x512xf32> to vector<8x512xf32>
    %c0_114 = arith.constant 0 : index
    %c0_115 = arith.constant 0 : index
    %233 = vector.load %arg10[%c0_114, %c0_115] : memref<8x128xbf16, #tpu.memory_space<vmem>>, vector<8x128xbf16>
    %c0_116 = arith.constant 0 : index
    %c0_117 = arith.constant 0 : index
    %234 = vector.load %arg3[%c0_116, %c0_117] : memref<128x512xbf16, #tpu.memory_space<vmem>>, vector<128x512xbf16>
    %cst_118 = arith.constant dense<0.000000e+00> : vector<8x512xf32>
    %235 = tpu.matmul %233, %234, %cst_118 {dimension_numbers = #tpu.dot_dimension_numbers<[1], [0], [0], [1], [0, 0, 1, 1], [], []>} : vector<8x128xbf16>, vector<128x512xbf16>, vector<8x512xf32> -> vector<8x512xf32>
    %236 = arith.addf %232, %235 : vector<8x512xf32>
    %237 = vector.extract_strided_slice %236 {offsets = [0, 0], sizes = [8, 128], strides = [1, 1]} : vector<8x512xf32> to vector<8x128xf32>
    %238 = arith.negf %237 : vector<8x128xf32>
    %239 = math.exp %238 : vector<8x128xf32>
    %cst_119 = arith.constant 1.000000e+00 : f32
    %240 = vector.broadcast %cst_119 : f32 to vector<8x128xf32>
    %241 = arith.addf %240, %239 : vector<8x128xf32>
    %242 = arith.divf %240, %241 : vector<8x128xf32>
    %243 = vector.extract_strided_slice %236 {offsets = [0, 128], sizes = [8, 128], strides = [1, 1]} : vector<8x512xf32> to vector<8x128xf32>
    %244 = arith.negf %243 : vector<8x128xf32>
    %245 = math.exp %244 : vector<8x128xf32>
    %cst_120 = arith.constant 1.000000e+00 : f32
    %246 = vector.broadcast %cst_120 : f32 to vector<8x128xf32>
    %247 = arith.addf %246, %245 : vector<8x128xf32>
    %248 = arith.divf %246, %247 : vector<8x128xf32>
    %249 = vector.extract_strided_slice %236 {offsets = [0, 256], sizes = [8, 128], strides = [1, 1]} : vector<8x512xf32> to vector<8x128xf32>
    %250 = math.tanh %249 : vector<8x128xf32>
    %251 = vector.extract_strided_slice %236 {offsets = [0, 384], sizes = [8, 128], strides = [1, 1]} : vector<8x512xf32> to vector<8x128xf32>
    %252 = arith.negf %251 : vector<8x128xf32>
    %253 = math.exp %252 : vector<8x128xf32>
    %cst_121 = arith.constant 1.000000e+00 : f32
    %254 = vector.broadcast %cst_121 : f32 to vector<8x128xf32>
    %255 = arith.addf %254, %253 : vector<8x128xf32>
    %256 = arith.divf %254, %255 : vector<8x128xf32>
    %c0_122 = arith.constant 0 : index
    %c0_123 = arith.constant 0 : index
    %257 = vector.load %arg11[%c0_122, %c0_123] : memref<8x128xf32, #tpu.memory_space<vmem>>, vector<8x128xf32>
    %258 = arith.mulf %248, %257 : vector<8x128xf32>
    %259 = arith.mulf %242, %250 : vector<8x128xf32>
    %260 = arith.addf %258, %259 : vector<8x128xf32>
    %261 = math.tanh %260 : vector<8x128xf32>
    %262 = arith.mulf %256, %261 : vector<8x128xf32>
    %c0_124 = arith.constant 0 : index
    %c0_125 = arith.constant 0 : index
    %263 = vector.load %arg11[%c0_124, %c0_125] : memref<8x128xf32, #tpu.memory_space<vmem>>, vector<8x128xf32>
    tpu.vector_store %arg11[%c0_124, %c0_125], %260 {strides = array<i32>} : memref<8x128xf32, #tpu.memory_space<vmem>>, vector<8x128xf32>,
    %264 = arith.truncf %262 : vector<8x128xf32> to vector<8x128xbf16>
    %c0_126 = arith.constant 0 : index
    %c0_127 = arith.constant 0 : index
    %265 = vector.load %arg10[%c0_126, %c0_127] : memref<8x128xbf16, #tpu.memory_space<vmem>>, vector<8x128xbf16>
    tpu.vector_store %arg10[%c0_126, %c0_127], %264 {strides = array<i32>} : memref<8x128xbf16, #tpu.memory_space<vmem>>, vector<8x128xbf16>,
    %c0_128 = arith.constant 0 : index
    %c0_129 = arith.constant 0 : index
    %266 = vector.load %arg12[%c0_128, %c0_129] : memref<8x128xbf16, #tpu.memory_space<vmem>>, vector<8x128xbf16>
    %267 = tpu.concatenate %264, %266 in 1 : vector<8x128xbf16>, vector<8x128xbf16> -> vector<8x256xbf16>
    %c0_130 = arith.constant 0 : index
    %c0_131 = arith.constant 0 : index
    %268 = vector.load %arg5[%c0_130, %c0_131] : memref<256x512xbf16, #tpu.memory_space<vmem>>, vector<256x512xbf16>
    %cst_132 = arith.constant dense<0.000000e+00> : vector<8x512xf32>
    %269 = tpu.matmul %267, %268, %cst_132 {dimension_numbers = #tpu.dot_dimension_numbers<[1], [0], [0], [1], [0, 0, 1, 1], [], []>} : vector<8x256xbf16>, vector<256x512xbf16>, vector<8x512xf32> -> vector<8x512xf32>
    %270 = arith.addf %269, %14 : vector<8x512xf32>
    %271 = vector.extract_strided_slice %270 {offsets = [0, 0], sizes = [8, 128], strides = [1, 1]} : vector<8x512xf32> to vector<8x128xf32>
    %272 = arith.negf %271 : vector<8x128xf32>
    %273 = math.exp %272 : vector<8x128xf32>
    %cst_133 = arith.constant 1.000000e+00 : f32
    %274 = vector.broadcast %cst_133 : f32 to vector<8x128xf32>
    %275 = arith.addf %274, %273 : vector<8x128xf32>
    %276 = arith.divf %274, %275 : vector<8x128xf32>
    %277 = vector.extract_strided_slice %270 {offsets = [0, 128], sizes = [8, 128], strides = [1, 1]} : vector<8x512xf32> to vector<8x128xf32>
    %278 = arith.negf %277 : vector<8x128xf32>
    %279 = math.exp %278 : vector<8x128xf32>
    %cst_134 = arith.constant 1.000000e+00 : f32
    %280 = vector.broadcast %cst_134 : f32 to vector<8x128xf32>
    %281 = arith.addf %280, %279 : vector<8x128xf32>
    %282 = arith.divf %280, %281 : vector<8x128xf32>
    %283 = vector.extract_strided_slice %270 {offsets = [0, 256], sizes = [8, 128], strides = [1, 1]} : vector<8x512xf32> to vector<8x128xf32>
    %284 = math.tanh %283 : vector<8x128xf32>
    %285 = vector.extract_strided_slice %270 {offsets = [0, 384], sizes = [8, 128], strides = [1, 1]} : vector<8x512xf32> to vector<8x128xf32>
    %286 = arith.negf %285 : vector<8x128xf32>
    %287 = math.exp %286 : vector<8x128xf32>
    %cst_135 = arith.constant 1.000000e+00 : f32
    %288 = vector.broadcast %cst_135 : f32 to vector<8x128xf32>
    %289 = arith.addf %288, %287 : vector<8x128xf32>
    %290 = arith.divf %288, %289 : vector<8x128xf32>
    %c0_136 = arith.constant 0 : index
    %c0_137 = arith.constant 0 : index
    %291 = vector.load %arg13[%c0_136, %c0_137] : memref<8x128xf32, #tpu.memory_space<vmem>>, vector<8x128xf32>
    %292 = arith.mulf %282, %291 : vector<8x128xf32>
    %293 = arith.mulf %276, %284 : vector<8x128xf32>
    %294 = arith.addf %292, %293 : vector<8x128xf32>
    %295 = math.tanh %294 : vector<8x128xf32>
    %296 = arith.mulf %290, %295 : vector<8x128xf32>
    %c0_138 = arith.constant 0 : index
    %c0_139 = arith.constant 0 : index
    %297 = vector.load %arg13[%c0_138, %c0_139] : memref<8x128xf32, #tpu.memory_space<vmem>>, vector<8x128xf32>
    tpu.vector_store %arg13[%c0_138, %c0_139], %294 {strides = array<i32>} : memref<8x128xf32, #tpu.memory_space<vmem>>, vector<8x128xf32>,
    %298 = arith.truncf %296 : vector<8x128xf32> to vector<8x128xbf16>
    %c0_140 = arith.constant 0 : index
    %c0_141 = arith.constant 0 : index
    %299 = vector.load %arg12[%c0_140, %c0_141] : memref<8x128xbf16, #tpu.memory_space<vmem>>, vector<8x128xbf16>
    tpu.vector_store %arg12[%c0_140, %c0_141], %298 {strides = array<i32>} : memref<8x128xbf16, #tpu.memory_space<vmem>>, vector<8x128xbf16>,
    %c3_142 = arith.constant 3 : index
    %c0_143 = arith.constant 0 : index
    %c0_144 = arith.constant 0 : index
    %300 = vector.load %arg15[%c3_142, %c0_143, %c0_144] : memref<8x8x128xbf16, #tpu.memory_space<vmem>>, vector<1x8x128xbf16>
    %301 = vector.shape_cast %300 : vector<1x8x128xbf16> to vector<8x128xbf16>
    %302 = vector.shape_cast %298 : vector<8x128xbf16> to vector<1x8x128xbf16>
    tpu.vector_store %arg15[%c3_142, %c0_143, %c0_144], %302 {strides = array<i32>} : memref<8x8x128xbf16, #tpu.memory_space<vmem>>, vector<1x8x128xbf16>,
    %c4 = arith.constant 4 : index
    %c0_145 = arith.constant 0 : index
    %c0_146 = arith.constant 0 : index
    %303 = vector.load %arg14[%c4, %c0_145, %c0_146] : memref<8x8x512xf32, #tpu.memory_space<vmem>>, vector<1x8x512xf32>
    %304 = vector.shape_cast %303 : vector<1x8x512xf32> to vector<8x512xf32>
    %c0_147 = arith.constant 0 : index
    %c0_148 = arith.constant 0 : index
    %305 = vector.load %arg10[%c0_147, %c0_148] : memref<8x128xbf16, #tpu.memory_space<vmem>>, vector<8x128xbf16>
    %c0_149 = arith.constant 0 : index
    %c0_150 = arith.constant 0 : index
    %306 = vector.load %arg3[%c0_149, %c0_150] : memref<128x512xbf16, #tpu.memory_space<vmem>>, vector<128x512xbf16>
    %cst_151 = arith.constant dense<0.000000e+00> : vector<8x512xf32>
    %307 = tpu.matmul %305, %306, %cst_151 {dimension_numbers = #tpu.dot_dimension_numbers<[1], [0], [0], [1], [0, 0, 1, 1], [], []>} : vector<8x128xbf16>, vector<128x512xbf16>, vector<8x512xf32> -> vector<8x512xf32>
    %308 = arith.addf %304, %307 : vector<8x512xf32>
    %309 = vector.extract_strided_slice %308 {offsets = [0, 0], sizes = [8, 128], strides = [1, 1]} : vector<8x512xf32> to vector<8x128xf32>
    %310 = arith.negf %309 : vector<8x128xf32>
    %311 = math.exp %310 : vector<8x128xf32>
    %cst_152 = arith.constant 1.000000e+00 : f32
    %312 = vector.broadcast %cst_152 : f32 to vector<8x128xf32>
    %313 = arith.addf %312, %311 : vector<8x128xf32>
    %314 = arith.divf %312, %313 : vector<8x128xf32>
    %315 = vector.extract_strided_slice %308 {offsets = [0, 128], sizes = [8, 128], strides = [1, 1]} : vector<8x512xf32> to vector<8x128xf32>
    %316 = arith.negf %315 : vector<8x128xf32>
    %317 = math.exp %316 : vector<8x128xf32>
    %cst_153 = arith.constant 1.000000e+00 : f32
    %318 = vector.broadcast %cst_153 : f32 to vector<8x128xf32>
    %319 = arith.addf %318, %317 : vector<8x128xf32>
    %320 = arith.divf %318, %319 : vector<8x128xf32>
    %321 = vector.extract_strided_slice %308 {offsets = [0, 256], sizes = [8, 128], strides = [1, 1]} : vector<8x512xf32> to vector<8x128xf32>
    %322 = math.tanh %321 : vector<8x128xf32>
    %323 = vector.extract_strided_slice %308 {offsets = [0, 384], sizes = [8, 128], strides = [1, 1]} : vector<8x512xf32> to vector<8x128xf32>
    %324 = arith.negf %323 : vector<8x128xf32>
    %325 = math.exp %324 : vector<8x128xf32>
    %cst_154 = arith.constant 1.000000e+00 : f32
    %326 = vector.broadcast %cst_154 : f32 to vector<8x128xf32>
    %327 = arith.addf %326, %325 : vector<8x128xf32>
    %328 = arith.divf %326, %327 : vector<8x128xf32>
    %c0_155 = arith.constant 0 : index
    %c0_156 = arith.constant 0 : index
    %329 = vector.load %arg11[%c0_155, %c0_156] : memref<8x128xf32, #tpu.memory_space<vmem>>, vector<8x128xf32>
    %330 = arith.mulf %320, %329 : vector<8x128xf32>
    %331 = arith.mulf %314, %322 : vector<8x128xf32>
    %332 = arith.addf %330, %331 : vector<8x128xf32>
    %333 = math.tanh %332 : vector<8x128xf32>
    %334 = arith.mulf %328, %333 : vector<8x128xf32>
    %c0_157 = arith.constant 0 : index
    %c0_158 = arith.constant 0 : index
    %335 = vector.load %arg11[%c0_157, %c0_158] : memref<8x128xf32, #tpu.memory_space<vmem>>, vector<8x128xf32>
    tpu.vector_store %arg11[%c0_157, %c0_158], %332 {strides = array<i32>} : memref<8x128xf32, #tpu.memory_space<vmem>>, vector<8x128xf32>,
    %336 = arith.truncf %334 : vector<8x128xf32> to vector<8x128xbf16>
    %c0_159 = arith.constant 0 : index
    %c0_160 = arith.constant 0 : index
    %337 = vector.load %arg10[%c0_159, %c0_160] : memref<8x128xbf16, #tpu.memory_space<vmem>>, vector<8x128xbf16>
    tpu.vector_store %arg10[%c0_159, %c0_160], %336 {strides = array<i32>} : memref<8x128xbf16, #tpu.memory_space<vmem>>, vector<8x128xbf16>,
    %c0_161 = arith.constant 0 : index
    %c0_162 = arith.constant 0 : index
    %338 = vector.load %arg12[%c0_161, %c0_162] : memref<8x128xbf16, #tpu.memory_space<vmem>>, vector<8x128xbf16>
    %339 = tpu.concatenate %336, %338 in 1 : vector<8x128xbf16>, vector<8x128xbf16> -> vector<8x256xbf16>
    %c0_163 = arith.constant 0 : index
    %c0_164 = arith.constant 0 : index
    %340 = vector.load %arg5[%c0_163, %c0_164] : memref<256x512xbf16, #tpu.memory_space<vmem>>, vector<256x512xbf16>
    %cst_165 = arith.constant dense<0.000000e+00> : vector<8x512xf32>
    %341 = tpu.matmul %339, %340, %cst_165 {dimension_numbers = #tpu.dot_dimension_numbers<[1], [0], [0], [1], [0, 0, 1, 1], [], []>} : vector<8x256xbf16>, vector<256x512xbf16>, vector<8x512xf32> -> vector<8x512xf32>
    %342 = arith.addf %341, %14 : vector<8x512xf32>
    %343 = vector.extract_strided_slice %342 {offsets = [0, 0], sizes = [8, 128], strides = [1, 1]} : vector<8x512xf32> to vector<8x128xf32>
    %344 = arith.negf %343 : vector<8x128xf32>
    %345 = math.exp %344 : vector<8x128xf32>
    %cst_166 = arith.constant 1.000000e+00 : f32
    %346 = vector.broadcast %cst_166 : f32 to vector<8x128xf32>
    %347 = arith.addf %346, %345 : vector<8x128xf32>
    %348 = arith.divf %346, %347 : vector<8x128xf32>
    %349 = vector.extract_strided_slice %342 {offsets = [0, 128], sizes = [8, 128], strides = [1, 1]} : vector<8x512xf32> to vector<8x128xf32>
    %350 = arith.negf %349 : vector<8x128xf32>
    %351 = math.exp %350 : vector<8x128xf32>
    %cst_167 = arith.constant 1.000000e+00 : f32
    %352 = vector.broadcast %cst_167 : f32 to vector<8x128xf32>
    %353 = arith.addf %352, %351 : vector<8x128xf32>
    %354 = arith.divf %352, %353 : vector<8x128xf32>
    %355 = vector.extract_strided_slice %342 {offsets = [0, 256], sizes = [8, 128], strides = [1, 1]} : vector<8x512xf32> to vector<8x128xf32>
    %356 = math.tanh %355 : vector<8x128xf32>
    %357 = vector.extract_strided_slice %342 {offsets = [0, 384], sizes = [8, 128], strides = [1, 1]} : vector<8x512xf32> to vector<8x128xf32>
    %358 = arith.negf %357 : vector<8x128xf32>
    %359 = math.exp %358 : vector<8x128xf32>
    %cst_168 = arith.constant 1.000000e+00 : f32
    %360 = vector.broadcast %cst_168 : f32 to vector<8x128xf32>
    %361 = arith.addf %360, %359 : vector<8x128xf32>
    %362 = arith.divf %360, %361 : vector<8x128xf32>
    %c0_169 = arith.constant 0 : index
    %c0_170 = arith.constant 0 : index
    %363 = vector.load %arg13[%c0_169, %c0_170] : memref<8x128xf32, #tpu.memory_space<vmem>>, vector<8x128xf32>
    %364 = arith.mulf %354, %363 : vector<8x128xf32>
    %365 = arith.mulf %348, %356 : vector<8x128xf32>
    %366 = arith.addf %364, %365 : vector<8x128xf32>
    %367 = math.tanh %366 : vector<8x128xf32>
    %368 = arith.mulf %362, %367 : vector<8x128xf32>
    %c0_171 = arith.constant 0 : index
    %c0_172 = arith.constant 0 : index
    %369 = vector.load %arg13[%c0_171, %c0_172] : memref<8x128xf32, #tpu.memory_space<vmem>>, vector<8x128xf32>
    tpu.vector_store %arg13[%c0_171, %c0_172], %366 {strides = array<i32>} : memref<8x128xf32, #tpu.memory_space<vmem>>, vector<8x128xf32>,
    %370 = arith.truncf %368 : vector<8x128xf32> to vector<8x128xbf16>
    %c0_173 = arith.constant 0 : index
    %c0_174 = arith.constant 0 : index
    %371 = vector.load %arg12[%c0_173, %c0_174] : memref<8x128xbf16, #tpu.memory_space<vmem>>, vector<8x128xbf16>
    tpu.vector_store %arg12[%c0_173, %c0_174], %370 {strides = array<i32>} : memref<8x128xbf16, #tpu.memory_space<vmem>>, vector<8x128xbf16>,
    %c4_175 = arith.constant 4 : index
    %c0_176 = arith.constant 0 : index
    %c0_177 = arith.constant 0 : index
    %372 = vector.load %arg15[%c4_175, %c0_176, %c0_177] : memref<8x8x128xbf16, #tpu.memory_space<vmem>>, vector<1x8x128xbf16>
    %373 = vector.shape_cast %372 : vector<1x8x128xbf16> to vector<8x128xbf16>
    %374 = vector.shape_cast %370 : vector<8x128xbf16> to vector<1x8x128xbf16>
    tpu.vector_store %arg15[%c4_175, %c0_176, %c0_177], %374 {strides = array<i32>} : memref<8x8x128xbf16, #tpu.memory_space<vmem>>, vector<1x8x128xbf16>,
    %c5 = arith.constant 5 : index
    %c0_178 = arith.constant 0 : index
    %c0_179 = arith.constant 0 : index
    %375 = vector.load %arg14[%c5, %c0_178, %c0_179] : memref<8x8x512xf32, #tpu.memory_space<vmem>>, vector<1x8x512xf32>
    %376 = vector.shape_cast %375 : vector<1x8x512xf32> to vector<8x512xf32>
    %c0_180 = arith.constant 0 : index
    %c0_181 = arith.constant 0 : index
    %377 = vector.load %arg10[%c0_180, %c0_181] : memref<8x128xbf16, #tpu.memory_space<vmem>>, vector<8x128xbf16>
    %c0_182 = arith.constant 0 : index
    %c0_183 = arith.constant 0 : index
    %378 = vector.load %arg3[%c0_182, %c0_183] : memref<128x512xbf16, #tpu.memory_space<vmem>>, vector<128x512xbf16>
    %cst_184 = arith.constant dense<0.000000e+00> : vector<8x512xf32>
    %379 = tpu.matmul %377, %378, %cst_184 {dimension_numbers = #tpu.dot_dimension_numbers<[1], [0], [0], [1], [0, 0, 1, 1], [], []>} : vector<8x128xbf16>, vector<128x512xbf16>, vector<8x512xf32> -> vector<8x512xf32>
    %380 = arith.addf %376, %379 : vector<8x512xf32>
    %381 = vector.extract_strided_slice %380 {offsets = [0, 0], sizes = [8, 128], strides = [1, 1]} : vector<8x512xf32> to vector<8x128xf32>
    %382 = arith.negf %381 : vector<8x128xf32>
    %383 = math.exp %382 : vector<8x128xf32>
    %cst_185 = arith.constant 1.000000e+00 : f32
    %384 = vector.broadcast %cst_185 : f32 to vector<8x128xf32>
    %385 = arith.addf %384, %383 : vector<8x128xf32>
    %386 = arith.divf %384, %385 : vector<8x128xf32>
    %387 = vector.extract_strided_slice %380 {offsets = [0, 128], sizes = [8, 128], strides = [1, 1]} : vector<8x512xf32> to vector<8x128xf32>
    %388 = arith.negf %387 : vector<8x128xf32>
    %389 = math.exp %388 : vector<8x128xf32>
    %cst_186 = arith.constant 1.000000e+00 : f32
    %390 = vector.broadcast %cst_186 : f32 to vector<8x128xf32>
    %391 = arith.addf %390, %389 : vector<8x128xf32>
    %392 = arith.divf %390, %391 : vector<8x128xf32>
    %393 = vector.extract_strided_slice %380 {offsets = [0, 256], sizes = [8, 128], strides = [1, 1]} : vector<8x512xf32> to vector<8x128xf32>
    %394 = math.tanh %393 : vector<8x128xf32>
    %395 = vector.extract_strided_slice %380 {offsets = [0, 384], sizes = [8, 128], strides = [1, 1]} : vector<8x512xf32> to vector<8x128xf32>
    %396 = arith.negf %395 : vector<8x128xf32>
    %397 = math.exp %396 : vector<8x128xf32>
    %cst_187 = arith.constant 1.000000e+00 : f32
    %398 = vector.broadcast %cst_187 : f32 to vector<8x128xf32>
    %399 = arith.addf %398, %397 : vector<8x128xf32>
    %400 = arith.divf %398, %399 : vector<8x128xf32>
    %c0_188 = arith.constant 0 : index
    %c0_189 = arith.constant 0 : index
    %401 = vector.load %arg11[%c0_188, %c0_189] : memref<8x128xf32, #tpu.memory_space<vmem>>, vector<8x128xf32>
    %402 = arith.mulf %392, %401 : vector<8x128xf32>
    %403 = arith.mulf %386, %394 : vector<8x128xf32>
    %404 = arith.addf %402, %403 : vector<8x128xf32>
    %405 = math.tanh %404 : vector<8x128xf32>
    %406 = arith.mulf %400, %405 : vector<8x128xf32>
    %c0_190 = arith.constant 0 : index
    %c0_191 = arith.constant 0 : index
    %407 = vector.load %arg11[%c0_190, %c0_191] : memref<8x128xf32, #tpu.memory_space<vmem>>, vector<8x128xf32>
    tpu.vector_store %arg11[%c0_190, %c0_191], %404 {strides = array<i32>} : memref<8x128xf32, #tpu.memory_space<vmem>>, vector<8x128xf32>,
    %408 = arith.truncf %406 : vector<8x128xf32> to vector<8x128xbf16>
    %c0_192 = arith.constant 0 : index
    %c0_193 = arith.constant 0 : index
    %409 = vector.load %arg10[%c0_192, %c0_193] : memref<8x128xbf16, #tpu.memory_space<vmem>>, vector<8x128xbf16>
    tpu.vector_store %arg10[%c0_192, %c0_193], %408 {strides = array<i32>} : memref<8x128xbf16, #tpu.memory_space<vmem>>, vector<8x128xbf16>,
    %c0_194 = arith.constant 0 : index
    %c0_195 = arith.constant 0 : index
    %410 = vector.load %arg12[%c0_194, %c0_195] : memref<8x128xbf16, #tpu.memory_space<vmem>>, vector<8x128xbf16>
    %411 = tpu.concatenate %408, %410 in 1 : vector<8x128xbf16>, vector<8x128xbf16> -> vector<8x256xbf16>
    %c0_196 = arith.constant 0 : index
    %c0_197 = arith.constant 0 : index
    %412 = vector.load %arg5[%c0_196, %c0_197] : memref<256x512xbf16, #tpu.memory_space<vmem>>, vector<256x512xbf16>
    %cst_198 = arith.constant dense<0.000000e+00> : vector<8x512xf32>
    %413 = tpu.matmul %411, %412, %cst_198 {dimension_numbers = #tpu.dot_dimension_numbers<[1], [0], [0], [1], [0, 0, 1, 1], [], []>} : vector<8x256xbf16>, vector<256x512xbf16>, vector<8x512xf32> -> vector<8x512xf32>
    %414 = arith.addf %413, %14 : vector<8x512xf32>
    %415 = vector.extract_strided_slice %414 {offsets = [0, 0], sizes = [8, 128], strides = [1, 1]} : vector<8x512xf32> to vector<8x128xf32>
    %416 = arith.negf %415 : vector<8x128xf32>
    %417 = math.exp %416 : vector<8x128xf32>
    %cst_199 = arith.constant 1.000000e+00 : f32
    %418 = vector.broadcast %cst_199 : f32 to vector<8x128xf32>
    %419 = arith.addf %418, %417 : vector<8x128xf32>
    %420 = arith.divf %418, %419 : vector<8x128xf32>
    %421 = vector.extract_strided_slice %414 {offsets = [0, 128], sizes = [8, 128], strides = [1, 1]} : vector<8x512xf32> to vector<8x128xf32>
    %422 = arith.negf %421 : vector<8x128xf32>
    %423 = math.exp %422 : vector<8x128xf32>
    %cst_200 = arith.constant 1.000000e+00 : f32
    %424 = vector.broadcast %cst_200 : f32 to vector<8x128xf32>
    %425 = arith.addf %424, %423 : vector<8x128xf32>
    %426 = arith.divf %424, %425 : vector<8x128xf32>
    %427 = vector.extract_strided_slice %414 {offsets = [0, 256], sizes = [8, 128], strides = [1, 1]} : vector<8x512xf32> to vector<8x128xf32>
    %428 = math.tanh %427 : vector<8x128xf32>
    %429 = vector.extract_strided_slice %414 {offsets = [0, 384], sizes = [8, 128], strides = [1, 1]} : vector<8x512xf32> to vector<8x128xf32>
    %430 = arith.negf %429 : vector<8x128xf32>
    %431 = math.exp %430 : vector<8x128xf32>
    %cst_201 = arith.constant 1.000000e+00 : f32
    %432 = vector.broadcast %cst_201 : f32 to vector<8x128xf32>
    %433 = arith.addf %432, %431 : vector<8x128xf32>
    %434 = arith.divf %432, %433 : vector<8x128xf32>
    %c0_202 = arith.constant 0 : index
    %c0_203 = arith.constant 0 : index
    %435 = vector.load %arg13[%c0_202, %c0_203] : memref<8x128xf32, #tpu.memory_space<vmem>>, vector<8x128xf32>
    %436 = arith.mulf %426, %435 : vector<8x128xf32>
    %437 = arith.mulf %420, %428 : vector<8x128xf32>
    %438 = arith.addf %436, %437 : vector<8x128xf32>
    %439 = math.tanh %438 : vector<8x128xf32>
    %440 = arith.mulf %434, %439 : vector<8x128xf32>
    %c0_204 = arith.constant 0 : index
    %c0_205 = arith.constant 0 : index
    %441 = vector.load %arg13[%c0_204, %c0_205] : memref<8x128xf32, #tpu.memory_space<vmem>>, vector<8x128xf32>
    tpu.vector_store %arg13[%c0_204, %c0_205], %438 {strides = array<i32>} : memref<8x128xf32, #tpu.memory_space<vmem>>, vector<8x128xf32>,
    %442 = arith.truncf %440 : vector<8x128xf32> to vector<8x128xbf16>
    %c0_206 = arith.constant 0 : index
    %c0_207 = arith.constant 0 : index
    %443 = vector.load %arg12[%c0_206, %c0_207] : memref<8x128xbf16, #tpu.memory_space<vmem>>, vector<8x128xbf16>
    tpu.vector_store %arg12[%c0_206, %c0_207], %442 {strides = array<i32>} : memref<8x128xbf16, #tpu.memory_space<vmem>>, vector<8x128xbf16>,
    %c5_208 = arith.constant 5 : index
    %c0_209 = arith.constant 0 : index
    %c0_210 = arith.constant 0 : index
    %444 = vector.load %arg15[%c5_208, %c0_209, %c0_210] : memref<8x8x128xbf16, #tpu.memory_space<vmem>>, vector<1x8x128xbf16>
    %445 = vector.shape_cast %444 : vector<1x8x128xbf16> to vector<8x128xbf16>
    %446 = vector.shape_cast %442 : vector<8x128xbf16> to vector<1x8x128xbf16>
    tpu.vector_store %arg15[%c5_208, %c0_209, %c0_210], %446 {strides = array<i32>} : memref<8x8x128xbf16, #tpu.memory_space<vmem>>, vector<1x8x128xbf16>,
    %c6 = arith.constant 6 : index
    %c0_211 = arith.constant 0 : index
    %c0_212 = arith.constant 0 : index
    %447 = vector.load %arg14[%c6, %c0_211, %c0_212] : memref<8x8x512xf32, #tpu.memory_space<vmem>>, vector<1x8x512xf32>
    %448 = vector.shape_cast %447 : vector<1x8x512xf32> to vector<8x512xf32>
    %c0_213 = arith.constant 0 : index
    %c0_214 = arith.constant 0 : index
    %449 = vector.load %arg10[%c0_213, %c0_214] : memref<8x128xbf16, #tpu.memory_space<vmem>>, vector<8x128xbf16>
    %c0_215 = arith.constant 0 : index
    %c0_216 = arith.constant 0 : index
    %450 = vector.load %arg3[%c0_215, %c0_216] : memref<128x512xbf16, #tpu.memory_space<vmem>>, vector<128x512xbf16>
    %cst_217 = arith.constant dense<0.000000e+00> : vector<8x512xf32>
    %451 = tpu.matmul %449, %450, %cst_217 {dimension_numbers = #tpu.dot_dimension_numbers<[1], [0], [0], [1], [0, 0, 1, 1], [], []>} : vector<8x128xbf16>, vector<128x512xbf16>, vector<8x512xf32> -> vector<8x512xf32>
    %452 = arith.addf %448, %451 : vector<8x512xf32>
    %453 = vector.extract_strided_slice %452 {offsets = [0, 0], sizes = [8, 128], strides = [1, 1]} : vector<8x512xf32> to vector<8x128xf32>
    %454 = arith.negf %453 : vector<8x128xf32>
    %455 = math.exp %454 : vector<8x128xf32>
    %cst_218 = arith.constant 1.000000e+00 : f32
    %456 = vector.broadcast %cst_218 : f32 to vector<8x128xf32>
    %457 = arith.addf %456, %455 : vector<8x128xf32>
    %458 = arith.divf %456, %457 : vector<8x128xf32>
    %459 = vector.extract_strided_slice %452 {offsets = [0, 128], sizes = [8, 128], strides = [1, 1]} : vector<8x512xf32> to vector<8x128xf32>
    %460 = arith.negf %459 : vector<8x128xf32>
    %461 = math.exp %460 : vector<8x128xf32>
    %cst_219 = arith.constant 1.000000e+00 : f32
    %462 = vector.broadcast %cst_219 : f32 to vector<8x128xf32>
    %463 = arith.addf %462, %461 : vector<8x128xf32>
    %464 = arith.divf %462, %463 : vector<8x128xf32>
    %465 = vector.extract_strided_slice %452 {offsets = [0, 256], sizes = [8, 128], strides = [1, 1]} : vector<8x512xf32> to vector<8x128xf32>
    %466 = math.tanh %465 : vector<8x128xf32>
    %467 = vector.extract_strided_slice %452 {offsets = [0, 384], sizes = [8, 128], strides = [1, 1]} : vector<8x512xf32> to vector<8x128xf32>
    %468 = arith.negf %467 : vector<8x128xf32>
    %469 = math.exp %468 : vector<8x128xf32>
    %cst_220 = arith.constant 1.000000e+00 : f32
    %470 = vector.broadcast %cst_220 : f32 to vector<8x128xf32>
    %471 = arith.addf %470, %469 : vector<8x128xf32>
    %472 = arith.divf %470, %471 : vector<8x128xf32>
    %c0_221 = arith.constant 0 : index
    %c0_222 = arith.constant 0 : index
    %473 = vector.load %arg11[%c0_221, %c0_222] : memref<8x128xf32, #tpu.memory_space<vmem>>, vector<8x128xf32>
    %474 = arith.mulf %464, %473 : vector<8x128xf32>
    %475 = arith.mulf %458, %466 : vector<8x128xf32>
    %476 = arith.addf %474, %475 : vector<8x128xf32>
    %477 = math.tanh %476 : vector<8x128xf32>
    %478 = arith.mulf %472, %477 : vector<8x128xf32>
    %c0_223 = arith.constant 0 : index
    %c0_224 = arith.constant 0 : index
    %479 = vector.load %arg11[%c0_223, %c0_224] : memref<8x128xf32, #tpu.memory_space<vmem>>, vector<8x128xf32>
    tpu.vector_store %arg11[%c0_223, %c0_224], %476 {strides = array<i32>} : memref<8x128xf32, #tpu.memory_space<vmem>>, vector<8x128xf32>,
    %480 = arith.truncf %478 : vector<8x128xf32> to vector<8x128xbf16>
    %c0_225 = arith.constant 0 : index
    %c0_226 = arith.constant 0 : index
    %481 = vector.load %arg10[%c0_225, %c0_226] : memref<8x128xbf16, #tpu.memory_space<vmem>>, vector<8x128xbf16>
    tpu.vector_store %arg10[%c0_225, %c0_226], %480 {strides = array<i32>} : memref<8x128xbf16, #tpu.memory_space<vmem>>, vector<8x128xbf16>,
    %c0_227 = arith.constant 0 : index
    %c0_228 = arith.constant 0 : index
    %482 = vector.load %arg12[%c0_227, %c0_228] : memref<8x128xbf16, #tpu.memory_space<vmem>>, vector<8x128xbf16>
    %483 = tpu.concatenate %480, %482 in 1 : vector<8x128xbf16>, vector<8x128xbf16> -> vector<8x256xbf16>
    %c0_229 = arith.constant 0 : index
    %c0_230 = arith.constant 0 : index
    %484 = vector.load %arg5[%c0_229, %c0_230] : memref<256x512xbf16, #tpu.memory_space<vmem>>, vector<256x512xbf16>
    %cst_231 = arith.constant dense<0.000000e+00> : vector<8x512xf32>
    %485 = tpu.matmul %483, %484, %cst_231 {dimension_numbers = #tpu.dot_dimension_numbers<[1], [0], [0], [1], [0, 0, 1, 1], [], []>} : vector<8x256xbf16>, vector<256x512xbf16>, vector<8x512xf32> -> vector<8x512xf32>
    %486 = arith.addf %485, %14 : vector<8x512xf32>
    %487 = vector.extract_strided_slice %486 {offsets = [0, 0], sizes = [8, 128], strides = [1, 1]} : vector<8x512xf32> to vector<8x128xf32>
    %488 = arith.negf %487 : vector<8x128xf32>
    %489 = math.exp %488 : vector<8x128xf32>
    %cst_232 = arith.constant 1.000000e+00 : f32
    %490 = vector.broadcast %cst_232 : f32 to vector<8x128xf32>
    %491 = arith.addf %490, %489 : vector<8x128xf32>
    %492 = arith.divf %490, %491 : vector<8x128xf32>
    %493 = vector.extract_strided_slice %486 {offsets = [0, 128], sizes = [8, 128], strides = [1, 1]} : vector<8x512xf32> to vector<8x128xf32>
    %494 = arith.negf %493 : vector<8x128xf32>
    %495 = math.exp %494 : vector<8x128xf32>
    %cst_233 = arith.constant 1.000000e+00 : f32
    %496 = vector.broadcast %cst_233 : f32 to vector<8x128xf32>
    %497 = arith.addf %496, %495 : vector<8x128xf32>
    %498 = arith.divf %496, %497 : vector<8x128xf32>
    %499 = vector.extract_strided_slice %486 {offsets = [0, 256], sizes = [8, 128], strides = [1, 1]} : vector<8x512xf32> to vector<8x128xf32>
    %500 = math.tanh %499 : vector<8x128xf32>
    %501 = vector.extract_strided_slice %486 {offsets = [0, 384], sizes = [8, 128], strides = [1, 1]} : vector<8x512xf32> to vector<8x128xf32>
    %502 = arith.negf %501 : vector<8x128xf32>
    %503 = math.exp %502 : vector<8x128xf32>
    %cst_234 = arith.constant 1.000000e+00 : f32
    %504 = vector.broadcast %cst_234 : f32 to vector<8x128xf32>
    %505 = arith.addf %504, %503 : vector<8x128xf32>
    %506 = arith.divf %504, %505 : vector<8x128xf32>
    %c0_235 = arith.constant 0 : index
    %c0_236 = arith.constant 0 : index
    %507 = vector.load %arg13[%c0_235, %c0_236] : memref<8x128xf32, #tpu.memory_space<vmem>>, vector<8x128xf32>
    %508 = arith.mulf %498, %507 : vector<8x128xf32>
    %509 = arith.mulf %492, %500 : vector<8x128xf32>
    %510 = arith.addf %508, %509 : vector<8x128xf32>
    %511 = math.tanh %510 : vector<8x128xf32>
    %512 = arith.mulf %506, %511 : vector<8x128xf32>
    %c0_237 = arith.constant 0 : index
    %c0_238 = arith.constant 0 : index
    %513 = vector.load %arg13[%c0_237, %c0_238] : memref<8x128xf32, #tpu.memory_space<vmem>>, vector<8x128xf32>
    tpu.vector_store %arg13[%c0_237, %c0_238], %510 {strides = array<i32>} : memref<8x128xf32, #tpu.memory_space<vmem>>, vector<8x128xf32>,
    %514 = arith.truncf %512 : vector<8x128xf32> to vector<8x128xbf16>
    %c0_239 = arith.constant 0 : index
    %c0_240 = arith.constant 0 : index
    %515 = vector.load %arg12[%c0_239, %c0_240] : memref<8x128xbf16, #tpu.memory_space<vmem>>, vector<8x128xbf16>
    tpu.vector_store %arg12[%c0_239, %c0_240], %514 {strides = array<i32>} : memref<8x128xbf16, #tpu.memory_space<vmem>>, vector<8x128xbf16>,
    %c6_241 = arith.constant 6 : index
    %c0_242 = arith.constant 0 : index
    %c0_243 = arith.constant 0 : index
    %516 = vector.load %arg15[%c6_241, %c0_242, %c0_243] : memref<8x8x128xbf16, #tpu.memory_space<vmem>>, vector<1x8x128xbf16>
    %517 = vector.shape_cast %516 : vector<1x8x128xbf16> to vector<8x128xbf16>
    %518 = vector.shape_cast %514 : vector<8x128xbf16> to vector<1x8x128xbf16>
    tpu.vector_store %arg15[%c6_241, %c0_242, %c0_243], %518 {strides = array<i32>} : memref<8x8x128xbf16, #tpu.memory_space<vmem>>, vector<1x8x128xbf16>,
    %c7 = arith.constant 7 : index
    %c0_244 = arith.constant 0 : index
    %c0_245 = arith.constant 0 : index
    %519 = vector.load %arg14[%c7, %c0_244, %c0_245] : memref<8x8x512xf32, #tpu.memory_space<vmem>>, vector<1x8x512xf32>
    %520 = vector.shape_cast %519 : vector<1x8x512xf32> to vector<8x512xf32>
    %c0_246 = arith.constant 0 : index
    %c0_247 = arith.constant 0 : index
    %521 = vector.load %arg10[%c0_246, %c0_247] : memref<8x128xbf16, #tpu.memory_space<vmem>>, vector<8x128xbf16>
    %c0_248 = arith.constant 0 : index
    %c0_249 = arith.constant 0 : index
    %522 = vector.load %arg3[%c0_248, %c0_249] : memref<128x512xbf16, #tpu.memory_space<vmem>>, vector<128x512xbf16>
    %cst_250 = arith.constant dense<0.000000e+00> : vector<8x512xf32>
    %523 = tpu.matmul %521, %522, %cst_250 {dimension_numbers = #tpu.dot_dimension_numbers<[1], [0], [0], [1], [0, 0, 1, 1], [], []>} : vector<8x128xbf16>, vector<128x512xbf16>, vector<8x512xf32> -> vector<8x512xf32>
    %524 = arith.addf %520, %523 : vector<8x512xf32>
    %525 = vector.extract_strided_slice %524 {offsets = [0, 0], sizes = [8, 128], strides = [1, 1]} : vector<8x512xf32> to vector<8x128xf32>
    %526 = arith.negf %525 : vector<8x128xf32>
    %527 = math.exp %526 : vector<8x128xf32>
    %cst_251 = arith.constant 1.000000e+00 : f32
    %528 = vector.broadcast %cst_251 : f32 to vector<8x128xf32>
    %529 = arith.addf %528, %527 : vector<8x128xf32>
    %530 = arith.divf %528, %529 : vector<8x128xf32>
    %531 = vector.extract_strided_slice %524 {offsets = [0, 128], sizes = [8, 128], strides = [1, 1]} : vector<8x512xf32> to vector<8x128xf32>
    %532 = arith.negf %531 : vector<8x128xf32>
    %533 = math.exp %532 : vector<8x128xf32>
    %cst_252 = arith.constant 1.000000e+00 : f32
    %534 = vector.broadcast %cst_252 : f32 to vector<8x128xf32>
    %535 = arith.addf %534, %533 : vector<8x128xf32>
    %536 = arith.divf %534, %535 : vector<8x128xf32>
    %537 = vector.extract_strided_slice %524 {offsets = [0, 256], sizes = [8, 128], strides = [1, 1]} : vector<8x512xf32> to vector<8x128xf32>
    %538 = math.tanh %537 : vector<8x128xf32>
    %539 = vector.extract_strided_slice %524 {offsets = [0, 384], sizes = [8, 128], strides = [1, 1]} : vector<8x512xf32> to vector<8x128xf32>
    %540 = arith.negf %539 : vector<8x128xf32>
    %541 = math.exp %540 : vector<8x128xf32>
    %cst_253 = arith.constant 1.000000e+00 : f32
    %542 = vector.broadcast %cst_253 : f32 to vector<8x128xf32>
    %543 = arith.addf %542, %541 : vector<8x128xf32>
    %544 = arith.divf %542, %543 : vector<8x128xf32>
    %c0_254 = arith.constant 0 : index
    %c0_255 = arith.constant 0 : index
    %545 = vector.load %arg11[%c0_254, %c0_255] : memref<8x128xf32, #tpu.memory_space<vmem>>, vector<8x128xf32>
    %546 = arith.mulf %536, %545 : vector<8x128xf32>
    %547 = arith.mulf %530, %538 : vector<8x128xf32>
    %548 = arith.addf %546, %547 : vector<8x128xf32>
    %549 = math.tanh %548 : vector<8x128xf32>
    %550 = arith.mulf %544, %549 : vector<8x128xf32>
    %c0_256 = arith.constant 0 : index
    %c0_257 = arith.constant 0 : index
    %551 = vector.load %arg11[%c0_256, %c0_257] : memref<8x128xf32, #tpu.memory_space<vmem>>, vector<8x128xf32>
    tpu.vector_store %arg11[%c0_256, %c0_257], %548 {strides = array<i32>} : memref<8x128xf32, #tpu.memory_space<vmem>>, vector<8x128xf32>,
    %552 = arith.truncf %550 : vector<8x128xf32> to vector<8x128xbf16>
    %c0_258 = arith.constant 0 : index
    %c0_259 = arith.constant 0 : index
    %553 = vector.load %arg10[%c0_258, %c0_259] : memref<8x128xbf16, #tpu.memory_space<vmem>>, vector<8x128xbf16>
    tpu.vector_store %arg10[%c0_258, %c0_259], %552 {strides = array<i32>} : memref<8x128xbf16, #tpu.memory_space<vmem>>, vector<8x128xbf16>,
    %c0_260 = arith.constant 0 : index
    %c0_261 = arith.constant 0 : index
    %554 = vector.load %arg12[%c0_260, %c0_261] : memref<8x128xbf16, #tpu.memory_space<vmem>>, vector<8x128xbf16>
    %555 = tpu.concatenate %552, %554 in 1 : vector<8x128xbf16>, vector<8x128xbf16> -> vector<8x256xbf16>
    %c0_262 = arith.constant 0 : index
    %c0_263 = arith.constant 0 : index
    %556 = vector.load %arg5[%c0_262, %c0_263] : memref<256x512xbf16, #tpu.memory_space<vmem>>, vector<256x512xbf16>
    %cst_264 = arith.constant dense<0.000000e+00> : vector<8x512xf32>
    %557 = tpu.matmul %555, %556, %cst_264 {dimension_numbers = #tpu.dot_dimension_numbers<[1], [0], [0], [1], [0, 0, 1, 1], [], []>} : vector<8x256xbf16>, vector<256x512xbf16>, vector<8x512xf32> -> vector<8x512xf32>
    %558 = arith.addf %557, %14 : vector<8x512xf32>
    %559 = vector.extract_strided_slice %558 {offsets = [0, 0], sizes = [8, 128], strides = [1, 1]} : vector<8x512xf32> to vector<8x128xf32>
    %560 = arith.negf %559 : vector<8x128xf32>
    %561 = math.exp %560 : vector<8x128xf32>
    %cst_265 = arith.constant 1.000000e+00 : f32
    %562 = vector.broadcast %cst_265 : f32 to vector<8x128xf32>
    %563 = arith.addf %562, %561 : vector<8x128xf32>
    %564 = arith.divf %562, %563 : vector<8x128xf32>
    %565 = vector.extract_strided_slice %558 {offsets = [0, 128], sizes = [8, 128], strides = [1, 1]} : vector<8x512xf32> to vector<8x128xf32>
    %566 = arith.negf %565 : vector<8x128xf32>
    %567 = math.exp %566 : vector<8x128xf32>
    %cst_266 = arith.constant 1.000000e+00 : f32
    %568 = vector.broadcast %cst_266 : f32 to vector<8x128xf32>
    %569 = arith.addf %568, %567 : vector<8x128xf32>
    %570 = arith.divf %568, %569 : vector<8x128xf32>
    %571 = vector.extract_strided_slice %558 {offsets = [0, 256], sizes = [8, 128], strides = [1, 1]} : vector<8x512xf32> to vector<8x128xf32>
    %572 = math.tanh %571 : vector<8x128xf32>
    %573 = vector.extract_strided_slice %558 {offsets = [0, 384], sizes = [8, 128], strides = [1, 1]} : vector<8x512xf32> to vector<8x128xf32>
    %574 = arith.negf %573 : vector<8x128xf32>
    %575 = math.exp %574 : vector<8x128xf32>
    %cst_267 = arith.constant 1.000000e+00 : f32
    %576 = vector.broadcast %cst_267 : f32 to vector<8x128xf32>
    %577 = arith.addf %576, %575 : vector<8x128xf32>
    %578 = arith.divf %576, %577 : vector<8x128xf32>
    %c0_268 = arith.constant 0 : index
    %c0_269 = arith.constant 0 : index
    %579 = vector.load %arg13[%c0_268, %c0_269] : memref<8x128xf32, #tpu.memory_space<vmem>>, vector<8x128xf32>
    %580 = arith.mulf %570, %579 : vector<8x128xf32>
    %581 = arith.mulf %564, %572 : vector<8x128xf32>
    %582 = arith.addf %580, %581 : vector<8x128xf32>
    %583 = math.tanh %582 : vector<8x128xf32>
    %584 = arith.mulf %578, %583 : vector<8x128xf32>
    %c0_270 = arith.constant 0 : index
    %c0_271 = arith.constant 0 : index
    %585 = vector.load %arg13[%c0_270, %c0_271] : memref<8x128xf32, #tpu.memory_space<vmem>>, vector<8x128xf32>
    tpu.vector_store %arg13[%c0_270, %c0_271], %582 {strides = array<i32>} : memref<8x128xf32, #tpu.memory_space<vmem>>, vector<8x128xf32>,
    %586 = arith.truncf %584 : vector<8x128xf32> to vector<8x128xbf16>
    %c0_272 = arith.constant 0 : index
    %c0_273 = arith.constant 0 : index
    %587 = vector.load %arg12[%c0_272, %c0_273] : memref<8x128xbf16, #tpu.memory_space<vmem>>, vector<8x128xbf16>
    tpu.vector_store %arg12[%c0_272, %c0_273], %586 {strides = array<i32>} : memref<8x128xbf16, #tpu.memory_space<vmem>>, vector<8x128xbf16>,
    %c7_274 = arith.constant 7 : index
    %c0_275 = arith.constant 0 : index
    %c0_276 = arith.constant 0 : index
    %588 = vector.load %arg15[%c7_274, %c0_275, %c0_276] : memref<8x8x128xbf16, #tpu.memory_space<vmem>>, vector<1x8x128xbf16>
    %589 = vector.shape_cast %588 : vector<1x8x128xbf16> to vector<8x128xbf16>
    %590 = vector.shape_cast %586 : vector<8x128xbf16> to vector<1x8x128xbf16>
    tpu.vector_store %arg15[%c7_274, %c0_275, %c0_276], %590 {strides = array<i32>} : memref<8x8x128xbf16, #tpu.memory_space<vmem>>, vector<1x8x128xbf16>,
    %c0_277 = arith.constant 0 : index
    %c0_278 = arith.constant 0 : index
    %c0_279 = arith.constant 0 : index
    %591 = vector.load %arg15[%c0_277, %c0_278, %c0_279] : memref<8x8x128xbf16, #tpu.memory_space<vmem>>, vector<8x8x128xbf16>
    %592 = vector.shape_cast %591 : vector<8x8x128xbf16> to vector<64x128xbf16>
    %c0_280 = arith.constant 0 : index
    %c0_281 = arith.constant 0 : index
    %593 = vector.load %arg7[%c0_280, %c0_281] : memref<128x128xbf16, #tpu.memory_space<vmem>>, vector<128x128xbf16>
    %cst_282 = arith.constant dense<0.000000e+00> : vector<64x128xf32>
    %594 = tpu.matmul %592, %593, %cst_282 {dimension_numbers = #tpu.dot_dimension_numbers<[1], [0], [0], [1], [0, 0, 1, 1], [], []>} : vector<64x128xbf16>, vector<128x128xbf16>, vector<64x128xf32> -> vector<64x128xf32>
    %c0_283 = arith.constant 0 : index
    %c0_284 = arith.constant 0 : index
    %595 = vector.load %arg8[%c0_283, %c0_284] : memref<1x128xf32, #tpu.memory_space<vmem>>, vector<1x128xf32>
    %596 = vector.broadcast %595 : vector<1x128xf32> to vector<64x128xf32>
    %597 = arith.addf %594, %596 : vector<64x128xf32>
    %598 = vector.shape_cast %597 : vector<64x128xf32> to vector<8x8x128xf32>
    %c0_285 = arith.constant 0 : index
    %c0_286 = arith.constant 0 : index
    %c0_287 = arith.constant 0 : index
    %599 = vector.load %arg9[%c0_285, %c0_286, %c0_287] : memref<8x8x128xf32, #tpu.memory_space<vmem>>, vector<8x8x128xf32>
    tpu.vector_store %arg9[%c0_285, %c0_286, %c0_287], %598 {strides = array<i32>} : memref<8x8x128xf32, #tpu.memory_space<vmem>>, vector<8x8x128xf32>,
    return
  }
  func.func @transform_0(%arg0: i32) -> (i32, i32, i32) {
    %c0_i32 = arith.constant 0 : i32
    %c0_i32_0 = arith.constant 0 : i32
    %c0_i32_1 = arith.constant 0 : i32
    return %arg0, %c0_i32, %c0_i32_0 : i32, i32, i32
  }
  func.func @transform_1(%arg0: i32) -> (i32, i32) {
    %c0_i32 = arith.constant 0 : i32
    %c0_i32_0 = arith.constant 0 : i32
    %c0_i32_1 = arith.constant 0 : i32
    return %c0_i32, %c0_i32_0 : i32, i32
  }
  func.func @transform_2(%arg0: i32) -> (i32, i32) {
    %c0_i32 = arith.constant 0 : i32
    %c0_i32_0 = arith.constant 0 : i32
    %c0_i32_1 = arith.constant 0 : i32
    return %c0_i32, %c0_i32_0 : i32, i32
  }
  func.func @transform_3(%arg0: i32) -> (i32, i32) {
    %c0_i32 = arith.constant 0 : i32
    %c0_i32_0 = arith.constant 0 : i32
    %c0_i32_1 = arith.constant 0 : i32
    return %c0_i32, %c0_i32_0 : i32, i32
  }
  func.func @transform_4(%arg0: i32) -> (i32, i32) {
    %c0_i32 = arith.constant 0 : i32
    %c0_i32_0 = arith.constant 0 : i32
    %c0_i32_1 = arith.constant 0 : i32
    return %c0_i32, %c0_i32_0 : i32, i32
  }
  func.func @transform_5(%arg0: i32) -> (i32, i32) {
    %c0_i32 = arith.constant 0 : i32
    %c0_i32_0 = arith.constant 0 : i32
    %c0_i32_1 = arith.constant 0 : i32
    return %c0_i32, %c0_i32_0 : i32, i32
  }
  func.func @transform_6(%arg0: i32) -> (i32, i32) {
    %c0_i32 = arith.constant 0 : i32
    %c0_i32_0 = arith.constant 0 : i32
    %c0_i32_1 = arith.constant 0 : i32
    return %c0_i32, %c0_i32_0 : i32, i32
  }
  func.func @transform_7(%arg0: i32) -> (i32, i32) {
    %c0_i32 = arith.constant 0 : i32
    %c0_i32_0 = arith.constant 0 : i32
    %c0_i32_1 = arith.constant 0 : i32
    return %c0_i32, %c0_i32_0 : i32, i32
  }
  func.func @transform_8(%arg0: i32) -> (i32, i32, i32) {
    %c0_i32 = arith.constant 0 : i32
    %c0_i32_0 = arith.constant 0 : i32
    %c0_i32_1 = arith.constant 0 : i32
    return %arg0, %c0_i32, %c0_i32_0 : i32, i32, i32
  }
}

</mosaic_0001>

<llo_original>
// kernel: beyond_sight_lstm.1
$region0: #{beyond_sight_lstm.1}
  #allocation0 [shape = 'u32[]', space=smem, size = 0x4, offset = 0x4, fixed_abs, tag = 'smem constant byte address 0x4 - core index']
  #allocation1 [shape = 'u32[144,128]{1,0:T(1,128)}', space=vmem, size = 0x12000, scoped, tag = 'internal scratch']
  #allocation2 [shape = 'bf16[8,128]{1,0:T(8,128)(2,1)}', space=vmem, size = 0x800, scoped, tag = 'scratch operand']
  #allocation3 [shape = 'f32[8,128]{1,0:T(8,128)}', space=vmem, size = 0x1000, scoped, tag = 'scratch operand']
  #allocation4 [shape = 'bf16[8,128]{1,0:T(8,128)(2,1)}', space=vmem, size = 0x800, scoped, tag = 'scratch operand']
  #allocation5 [shape = 'f32[8,128]{1,0:T(8,128)}', space=vmem, size = 0x1000, scoped, tag = 'scratch operand']
  #allocation6 [shape = 'f32[8,8,512]{2,1,0:T(8,128)}', space=vmem, size = 0x20000, scoped, tag = 'scratch operand']
  #allocation7 [shape = 'bf16[8,8,128]{2,1,0:T(8,128)(2,1)}', space=vmem, size = 0x4000, scoped, tag = 'scratch operand']
  %s0 = inlined_call_operand.vmem [shape: bf16[8,8,128], index: 0, kind: input, shape index: {}]
  %s1 = inlined_call_operand.vmem [shape: bf16[128,512], index: 1, kind: input, shape index: {}]
  %s2 = inlined_call_operand.vmem [shape: bf16[128,512], index: 2, kind: input, shape index: {}]
  %s3 = inlined_call_operand.vmem [shape: f32[1,512], index: 3, kind: input, shape index: {}]
  %s4 = inlined_call_operand.vmem [shape: bf16[256,512], index: 4, kind: input, shape index: {}]
  %s5 = inlined_call_operand.vmem [shape: f32[1,512], index: 5, kind: input, shape index: {}]
  %s6 = inlined_call_operand.vmem [shape: bf16[128,128], index: 6, kind: input, shape index: {}]
  %s7 = inlined_call_operand.vmem [shape: f32[1,128], index: 7, kind: input, shape index: {}]
  %s8 = inlined_call_operand.vmem [shape: f32[8,8,128], index: 8, kind: output, shape index: {}]
  %s9 = sld [smem:[#allocation0]]
  $region46: #{beyond_sight_lstm.1} parent=0
    _
  %s11 = ssub.s32 1, %s9
  %s12 = scalar_select 0, %s11, %s9
  // Predicated region
  $region2: #{beyond_sight_lstm.1} parent=0 // pred_check
    _
  $region3: #{beyond_sight_lstm.1} parent=0 // pred_check_branch
    %14 = sbr.rel (0) target = $region5
  $region4: #{beyond_sight_lstm.1} parent=0 // pred_region
    _
  $region5: #{beyond_sight_lstm.1} parent=0 // pred_fallthru
    _
  // Predicated region
  $region6: #{beyond_sight_lstm.1} parent=0 // pred_check
    _
  $region7: #{beyond_sight_lstm.1} parent=0 // pred_check_branch
    %16 = sbr.rel (0) target = $region9
  $region8: #{beyond_sight_lstm.1} parent=0 // pred_region
    _
  $region9: #{beyond_sight_lstm.1} parent=0 // pred_fallthru
    _
  // Predicated region
  $region10: #{beyond_sight_lstm.1} parent=0 // pred_check
    _
  $region11: #{beyond_sight_lstm.1} parent=0 // pred_check_branch
    %18 = sbr.rel (0) target = $region13
  $region12: #{beyond_sight_lstm.1} parent=0 // pred_region
    _
  $region13: #{beyond_sight_lstm.1} parent=0 // pred_fallthru
    _
  // Predicated region
  $region14: #{beyond_sight_lstm.1} parent=0 // pred_check
    _
  $region15: #{beyond_sight_lstm.1} parent=0 // pred_check_branch
    %20 = sbr.rel (0) target = $region17
  $region16: #{beyond_sight_lstm.1} parent=0 // pred_region
    _
  $region17: #{beyond_sight_lstm.1} parent=0 // pred_fallthru
    _
  // Predicated region
  $region18: #{beyond_sight_lstm.1} parent=0 // pred_check
    _
  $region19: #{beyond_sight_lstm.1} parent=0 // pred_check_branch
    %22 = sbr.rel (0) target = $region21
  $region20: #{beyond_sight_lstm.1} parent=0 // pred_region
    _
  $region21: #{beyond_sight_lstm.1} parent=0 // pred_fallthru
    _
  // Predicated region
  $region22: #{beyond_sight_lstm.1} parent=0 // pred_check
    _
  $region23: #{beyond_sight_lstm.1} parent=0 // pred_check_branch
    %24 = sbr.rel (0) target = $region25
  $region24: #{beyond_sight_lstm.1} parent=0 // pred_region
    _
  $region25: #{beyond_sight_lstm.1} parent=0 // pred_fallthru
    _
  // Predicated region
  $region26: #{beyond_sight_lstm.1} parent=0 // pred_check
    _
  $region27: #{beyond_sight_lstm.1} parent=0 // pred_check_branch
    %26 = sbr.rel (0) target = $region29
  $region28: #{beyond_sight_lstm.1} parent=0 // pred_region
    _
  $region29: #{beyond_sight_lstm.1} parent=0 // pred_fallthru
    _
  // Predicated region
  $region30: #{beyond_sight_lstm.1} parent=0 // pred_check
    _
  $region31: #{beyond_sight_lstm.1} parent=0 // pred_check_branch
    %28 = sbr.rel (0) target = $region33
  $region32: #{beyond_sight_lstm.1} parent=0 // pred_region
    _
  $region33: #{beyond_sight_lstm.1} parent=0 // pred_fallthru
    _
  %p30 = scmp.eq.s32.totalorder 0, 0
  // Predicated region
  $region34: #{beyond_sight_lstm.1} parent=0 // pred_check
    %p31 = pneg %p30
  $region35: #{beyond_sight_lstm.1} parent=0 // pred_check_branch
    %33 = sbr.rel (%p31) target = $region37
  $region36: #{beyond_sight_lstm.1} parent=0 // pred_region
    %34 = vst [vmem:[#allocation2] sm:$0xf] 0
    %35 = vst [vmem:[#allocation3] sm:$0xff] 0.0
    %36 = vst [vmem:[#allocation4] sm:$0xf] 0
    %37 = vst [vmem:[#allocation5] sm:$0xff] 0.0
  $region37: #{beyond_sight_lstm.1} parent=0 // pred_fallthru
    _
  %v38 = vld [vmem:[%s0] sm:$0xf]
  %v39 = vld [vmem:[%s0 + $0x4] sm:$0xf]
  %v40 = vld [vmem:[%s0 + $0x8] sm:$0xf]
  %v41 = vld [vmem:[%s0 + $0xc] sm:$0xf]
  %v42 = vld [vmem:[%s0 + $0x10] sm:$0xf]
  %v43 = vld [vmem:[%s0 + $0x14] sm:$0xf]
  %v44 = vld [vmem:[%s0 + $0x18] sm:$0xf]
  %v45 = vld [vmem:[%s0 + $0x1c] sm:$0xf]
  %v46 = vld [vmem:[%s1] sm:$0xff]
  %v47 = vld [vmem:[%s1 + $0x8] sm:$0xff]
  %v48 = vld [vmem:[%s1 + $0x10] sm:$0xff]
  %v49 = vld [vmem:[%s1 + $0x18] sm:$0xff]
  %v50 = vld [vmem:[%s1 + $0x20] sm:$0xff]
  %v51 = vld [vmem:[%s1 + $0x28] sm:$0xff]
  %v52 = vld [vmem:[%s1 + $0x30] sm:$0xff]
  %v53 = vld [vmem:[%s1 + $0x38] sm:$0xff]
  %v54 = vld [vmem:[%s1 + $0x40] sm:$0xff]
  %v55 = vld [vmem:[%s1 + $0x48] sm:$0xff]
  %v56 = vld [vmem:[%s1 + $0x50] sm:$0xff]
  %v57 = vld [vmem:[%s1 + $0x58] sm:$0xff]
  %v58 = vld [vmem:[%s1 + $0x60] sm:$0xff]
  %v59 = vld [vmem:[%s1 + $0x68] sm:$0xff]
  %v60 = vld [vmem:[%s1 + $0x70] sm:$0xff]
  %v61 = vld [vmem:[%s1 + $0x78] sm:$0xff]
  %v62 = vld [vmem:[%s1 + $0x80] sm:$0xff]
  %v63 = vld [vmem:[%s1 + $0x88] sm:$0xff]
  %v64 = vld [vmem:[%s1 + $0x90] sm:$0xff]
  %v65 = vld [vmem:[%s1 + $0x98] sm:$0xff]
  %v66 = vld [vmem:[%s1 + $0xa0] sm:$0xff]
  %v67 = vld [vmem:[%s1 + $0xa8] sm:$0xff]
  %v68 = vld [vmem:[%s1 + $0xb0] sm:$0xff]
  %v69 = vld [vmem:[%s1 + $0xb8] sm:$0xff]
  %v70 = vld [vmem:[%s1 + $0xc0] sm:$0xff]
  %v71 = vld [vmem:[%s1 + $0xc8] sm:$0xff]
  %v72 = vld [vmem:[%s1 + $0xd0] sm:$0xff]
  %v73 = vld [vmem:[%s1 + $0xd8] sm:$0xff]
  %v74 = vld [vmem:[%s1 + $0xe0] sm:$0xff]
  %v75 = vld [vmem:[%s1 + $0xe8] sm:$0xff]
  %v76 = vld [vmem:[%s1 + $0xf0] sm:$0xff]
  %v77 = vld [vmem:[%s1 + $0xf8] sm:$0xff]
  %v78 = vld [vmem:[%s3] sm:$0xf]
  %v80 = vlaneseq
  %v81 = vshrl.u32 %v80, 7
  %v82 = vsub.s32 0, %v81
  %v83 = vrot.slane %v78, %v82
  %v84 = vlaneseq
  %v85 = vshrl.u32 %v84, 7
  %v86 = vsub.s32 1, %v85
  %v87 = vrot.slane %v78, %v86
  %v88 = vlaneseq
  %v89 = vshrl.u32 %v88, 7
  %v90 = vsub.s32 2, %v89
  %v91 = vrot.slane %v78, %v90
  %v92 = vlaneseq
  %v93 = vshrl.u32 %v92, 7
  %v94 = vsub.s32 3, %v93
  %v95 = vrot.slane %v78, %v94
  %v108 = vunpack.c.l.b16 %v38
  %v109 = vunpack.c.l.b16 %v39
  %v110 = vunpack.c.l.b16 %v40
  %v111 = vunpack.c.l.b16 %v41
  %v112 = vunpack.c.l.b16 %v42
  %v113 = vunpack.c.l.b16 %v43
  %v114 = vunpack.c.l.b16 %v44
  %v115 = vunpack.c.l.b16 %v45
  %v116 = vpack.c.b16 %v109, %v108
  %v117 = vpack.c.b16 %v111, %v110
  %v118 = vpack.c.b16 %v113, %v112
  %v119 = vpack.c.b16 %v115, %v114
  %v156 = vunpack.c.l.b16 %v46
  %v157 = vunpack.c.h.b16 %v46
  %v158 = vunpack.c.l.b16 %v47
  %v159 = vunpack.c.h.b16 %v47
  %v160 = vunpack.c.l.b16 %v48
  %v161 = vunpack.c.h.b16 %v48
  %v162 = vunpack.c.l.b16 %v49
  %v163 = vunpack.c.h.b16 %v49
  %v164 = vunpack.c.l.b16 %v50
  %v165 = vunpack.c.h.b16 %v50
  %v166 = vunpack.c.l.b16 %v51
  %v167 = vunpack.c.h.b16 %v51
  %v168 = vunpack.c.l.b16 %v52
  %v169 = vunpack.c.h.b16 %v52
  %v170 = vunpack.c.l.b16 %v53
  %v171 = vunpack.c.h.b16 %v53
  %v172 = vunpack.c.l.b16 %v54
  %v173 = vunpack.c.h.b16 %v54
  %v174 = vunpack.c.l.b16 %v55
  %v175 = vunpack.c.h.b16 %v55
  %v176 = vunpack.c.l.b16 %v56
  %v177 = vunpack.c.h.b16 %v56
  %v178 = vunpack.c.l.b16 %v57
  %v179 = vunpack.c.h.b16 %v57
  %v180 = vunpack.c.l.b16 %v58
  %v181 = vunpack.c.h.b16 %v58
  %v182 = vunpack.c.l.b16 %v59
  %v183 = vunpack.c.h.b16 %v59
  %v184 = vunpack.c.l.b16 %v60
  %v185 = vunpack.c.h.b16 %v60
  %v186 = vunpack.c.l.b16 %v61
  %v187 = vunpack.c.h.b16 %v61
  %v188 = vunpack.c.l.b16 %v62
  %v189 = vunpack.c.h.b16 %v62
  %v190 = vunpack.c.l.b16 %v63
  %v191 = vunpack.c.h.b16 %v63
  %v192 = vunpack.c.l.b16 %v64
  %v193 = vunpack.c.h.b16 %v64
  %v194 = vunpack.c.l.b16 %v65
  %v195 = vunpack.c.h.b16 %v65
  %v196 = vunpack.c.l.b16 %v66
  %v197 = vunpack.c.h.b16 %v66
  %v198 = vunpack.c.l.b16 %v67
  %v199 = vunpack.c.h.b16 %v67
  %v200 = vunpack.c.l.b16 %v68
  %v201 = vunpack.c.h.b16 %v68
  %v202 = vunpack.c.l.b16 %v69
  %v203 = vunpack.c.h.b16 %v69
  %v204 = vunpack.c.l.b16 %v70
  %v205 = vunpack.c.h.b16 %v70
  %v206 = vunpack.c.l.b16 %v71
  %v207 = vunpack.c.h.b16 %v71
  %v208 = vunpack.c.l.b16 %v72
  %v209 = vunpack.c.h.b16 %v72
  %v210 = vunpack.c.l.b16 %v73
  %v211 = vunpack.c.h.b16 %v73
  %v212 = vunpack.c.l.b16 %v74
  %v213 = vunpack.c.h.b16 %v74
  %v214 = vunpack.c.l.b16 %v75
  %v215 = vunpack.c.h.b16 %v75
  %v216 = vunpack.c.l.b16 %v76
  %v217 = vunpack.c.h.b16 %v76
  %v218 = vunpack.c.l.b16 %v77
  %v219 = vunpack.c.h.b16 %v77
  %v220 = vpack.c.b16 %v160, %v156
  %v221 = vpack.c.b16 %v161, %v157
  %v222 = vpack.c.b16 %v162, %v158
  %v223 = vpack.c.b16 %v163, %v159
  %v224 = vpack.c.b16 %v168, %v164
  %v225 = vpack.c.b16 %v169, %v165
  %v226 = vpack.c.b16 %v170, %v166
  %v227 = vpack.c.b16 %v171, %v167
  %v228 = vpack.c.b16 %v176, %v172
  %v229 = vpack.c.b16 %v177, %v173
  %v230 = vpack.c.b16 %v178, %v174
  %v231 = vpack.c.b16 %v179, %v175
  %v232 = vpack.c.b16 %v184, %v180
  %v233 = vpack.c.b16 %v185, %v181
  %v234 = vpack.c.b16 %v186, %v182
  %v235 = vpack.c.b16 %v187, %v183
  %v236 = vpack.c.b16 %v192, %v188
  %v237 = vpack.c.b16 %v193, %v189
  %v238 = vpack.c.b16 %v194, %v190
  %v239 = vpack.c.b16 %v195, %v191
  %v240 = vpack.c.b16 %v200, %v196
  %v241 = vpack.c.b16 %v201, %v197
  %v242 = vpack.c.b16 %v202, %v198
  %v243 = vpack.c.b16 %v203, %v199
  %v244 = vpack.c.b16 %v208, %v204
  %v245 = vpack.c.b16 %v209, %v205
  %v246 = vpack.c.b16 %v210, %v206
  %v247 = vpack.c.b16 %v211, %v207
  %v248 = vpack.c.b16 %v216, %v212
  %v249 = vpack.c.b16 %v217, %v213
  %v250 = vpack.c.b16 %v218, %v214
  %v251 = vpack.c.b16 %v219, %v215
  %284 = vmatprep.subr.bf16.mxu0 %v249
  %285 = vmatpush1.bf16.msra.mxu0 %v248
  %286 = vmatprep.subr.bf16.mxu0 %v245
  %287 = vmatpush1.bf16.msra.mxu0 %v244
  %288 = vmatprep.subr.bf16.mxu0 %v241
  %289 = vmatpush1.bf16.msra.mxu0 %v240
  %290 = vmatprep.subr.bf16.mxu0 %v237
  %291 = vmatpush1.bf16.msra.mxu0 %v236
  %292 = vmatprep.subr.bf16.mxu0 %v233
  %293 = vmatpush1.bf16.msra.mxu0 %v232
  %294 = vmatprep.subr.bf16.mxu0 %v229
  %295 = vmatpush1.bf16.msra.mxu0 %v228
  %296 = vmatprep.subr.bf16.mxu0 %v225
  %297 = vmatpush1.bf16.msra.mxu0 %v224
  %298 = vmatprep.subr.bf16.mxu0 %v221
  %299 = vmatpush1.bf16.msra.mxu0 %v220
  %300 = vmatprep.subr.bf16.mxu0 0
  %301 = vmatpush2.bf16.msra.mxu0 0
  %302 = vmatprep.subr.bf16.mxu0 0
  %303 = vmatpush2.bf16.msra.mxu0 0
  %304 = vmatprep.subr.bf16.mxu0 0
  %305 = vmatpush2.bf16.msra.mxu0 0
  %306 = vmatprep.subr.bf16.mxu0 0
  %307 = vmatpush2.bf16.msra.mxu0 0
  %308 = vmatprep.subr.bf16.mxu0 0
  %309 = vmatpush2.bf16.msra.mxu0 0
  %310 = vmatprep.subr.bf16.mxu0 0
  %311 = vmatpush2.bf16.msra.mxu0 0
  %312 = vmatprep.subr.bf16.mxu0 0
  %313 = vmatpush2.bf16.msra.mxu0 0
  %314 = vmatprep.subr.bf16.mxu0 0
  %315 = vmatpush2.bf16.msra.mxu0 0
  %316 = vmatprep.mubr.bf16.mxu0 0
  %317 = vmatmul.mubr.bf16.gmra.mxu0 %v116
  %v318 = vpop.f32.mrf.mxu0
  %v319 = vadd.f32 %v83, %v318
  %v320 = vpop.f32.mrf.mxu0
  %v321 = vadd.f32 %v87, %v320
  %v322 = vpop.f32.mrf.mxu0
  %v323 = vadd.f32 %v83, %v322
  %v324 = vpop.f32.mrf.mxu0
  %v325 = vadd.f32 %v87, %v324
  %326 = vmatprep.mubr.bf16.mxu0 0
  %327 = vmatmul.mubr.bf16.gmra.mxu0 %v117
  %v328 = vpop.f32.mrf.mxu0
  %v329 = vadd.f32 %v83, %v328
  %v330 = vpop.f32.mrf.mxu0
  %v331 = vadd.f32 %v87, %v330
  %v332 = vpop.f32.mrf.mxu0
  %v333 = vadd.f32 %v83, %v332
  %v334 = vpop.f32.mrf.mxu0
  %v335 = vadd.f32 %v87, %v334
  %336 = vmatprep.mubr.bf16.mxu0 0
  %337 = vmatmul.mubr.bf16.gmra.mxu0 %v118
  %v338 = vpop.f32.mrf.mxu0
  %v339 = vadd.f32 %v83, %v338
  %v340 = vpop.f32.mrf.mxu0
  %v341 = vadd.f32 %v87, %v340
  %v342 = vpop.f32.mrf.mxu0
  %v343 = vadd.f32 %v83, %v342
  %v344 = vpop.f32.mrf.mxu0
  %v345 = vadd.f32 %v87, %v344
  %346 = vmatprep.mubr.bf16.mxu0 0
  %347 = vmatmul.mubr.bf16.gmra.mxu0 %v119
  %v348 = vpop.f32.mrf.mxu0
  %v349 = vadd.f32 %v83, %v348
  %v350 = vpop.f32.mrf.mxu0
  %v351 = vadd.f32 %v87, %v350
  %v352 = vpop.f32.mrf.mxu0
  %v353 = vadd.f32 %v83, %v352
  %v354 = vpop.f32.mrf.mxu0
  %v355 = vadd.f32 %v87, %v354
  %356 = vdwg.mxu0
  %357 = vmatprep.subr.bf16.mxu0 %v251
  %358 = vmatpush1.bf16.msra.mxu0 %v250
  %359 = vmatprep.subr.bf16.mxu0 %v247
  %360 = vmatpush1.bf16.msra.mxu0 %v246
  %361 = vmatprep.subr.bf16.mxu0 %v243
  %362 = vmatpush1.bf16.msra.mxu0 %v242
  %363 = vmatprep.subr.bf16.mxu0 %v239
  %364 = vmatpush1.bf16.msra.mxu0 %v238
  %365 = vmatprep.subr.bf16.mxu0 %v235
  %366 = vmatpush1.bf16.msra.mxu0 %v234
  %367 = vmatprep.subr.bf16.mxu0 %v231
  %368 = vmatpush1.bf16.msra.mxu0 %v230
  %369 = vmatprep.subr.bf16.mxu0 %v227
  %370 = vmatpush1.bf16.msra.mxu0 %v226
  %371 = vmatprep.subr.bf16.mxu0 %v223
  %372 = vmatpush1.bf16.msra.mxu0 %v222
  %373 = vmatprep.subr.bf16.mxu0 0
  %374 = vmatpush2.bf16.msra.mxu0 0
  %375 = vmatprep.subr.bf16.mxu0 0
  %376 = vmatpush2.bf16.msra.mxu0 0
  %377 = vmatprep.subr.bf16.mxu0 0
  %378 = vmatpush2.bf16.msra.mxu0 0
  %379 = vmatprep.subr.bf16.mxu0 0
  %380 = vmatpush2.bf16.msra.mxu0 0
  %381 = vmatprep.subr.bf16.mxu0 0
  %382 = vmatpush2.bf16.msra.mxu0 0
  %383 = vmatprep.subr.bf16.mxu0 0
  %384 = vmatpush2.bf16.msra.mxu0 0
  %385 = vmatprep.subr.bf16.mxu0 0
  %386 = vmatpush2.bf16.msra.mxu0 0
  %387 = vmatprep.subr.bf16.mxu0 0
  %388 = vmatpush2.bf16.msra.mxu0 0
  %389 = vmatprep.mubr.bf16.mxu0 0
  %390 = vmatmul.mubr.bf16.gmra.mxu0 %v116
  %v391 = vpop.f32.mrf.mxu0
  %v392 = vadd.f32 %v91, %v391
  %v393 = vpop.f32.mrf.mxu0
  %v394 = vadd.f32 %v95, %v393
  %v395 = vpop.f32.mrf.mxu0
  %v396 = vadd.f32 %v91, %v395
  %v397 = vpop.f32.mrf.mxu0
  %v398 = vadd.f32 %v95, %v397
  %399 = vmatprep.mubr.bf16.mxu0 0
  %400 = vmatmul.mubr.bf16.gmra.mxu0 %v117
  %v401 = vpop.f32.mrf.mxu0
  %v402 = vadd.f32 %v91, %v401
  %v403 = vpop.f32.mrf.mxu0
  %v404 = vadd.f32 %v95, %v403
  %v405 = vpop.f32.mrf.mxu0
  %v406 = vadd.f32 %v91, %v405
  %v407 = vpop.f32.mrf.mxu0
  %v408 = vadd.f32 %v95, %v407
  %409 = vmatprep.mubr.bf16.mxu0 0
  %410 = vmatmul.mubr.bf16.gmra.mxu0 %v118
  %v411 = vpop.f32.mrf.mxu0
  %v412 = vadd.f32 %v91, %v411
  %v413 = vpop.f32.mrf.mxu0
  %v414 = vadd.f32 %v95, %v413
  %v415 = vpop.f32.mrf.mxu0
  %v416 = vadd.f32 %v91, %v415
  %v417 = vpop.f32.mrf.mxu0
  %v418 = vadd.f32 %v95, %v417
  %419 = vmatprep.mubr.bf16.mxu0 0
  %420 = vmatmul.mubr.bf16.gmra.mxu0 %v119
  %v421 = vpop.f32.mrf.mxu0
  %v422 = vadd.f32 %v91, %v421
  %v423 = vpop.f32.mrf.mxu0
  %v424 = vadd.f32 %v95, %v423
  %v425 = vpop.f32.mrf.mxu0
  %v426 = vadd.f32 %v91, %v425
  %v427 = vpop.f32.mrf.mxu0
  %v428 = vadd.f32 %v95, %v427
  %429 = vdwg.mxu0
  %430 = vst [vmem:[#allocation6] sm:$0xff] %v319
  %431 = vst [vmem:[#allocation6 + $0x8] sm:$0xff] %v321
  %432 = vst [vmem:[#allocation6 + $0x10] sm:$0xff] %v392
  %433 = vst [vmem:[#allocation6 + $0x18] sm:$0xff] %v394
  %434 = vst [vmem:[#allocation6 + $0x20] sm:$0xff] %v323
  %435 = vst [vmem:[#allocation6 + $0x28] sm:$0xff] %v325
  %436 = vst [vmem:[#allocation6 + $0x30] sm:$0xff] %v396
  %437 = vst [vmem:[#allocation6 + $0x38] sm:$0xff] %v398
  %438 = vst [vmem:[#allocation6 + $0x40] sm:$0xff] %v329
  %439 = vst [vmem:[#allocation6 + $0x48] sm:$0xff] %v331
  %440 = vst [vmem:[#allocation6 + $0x50] sm:$0xff] %v402
  %441 = vst [vmem:[#allocation6 + $0x58] sm:$0xff] %v404
  %442 = vst [vmem:[#allocation6 + $0x60] sm:$0xff] %v333
  %443 = vst [vmem:[#allocation6 + $0x68] sm:$0xff] %v335
  %444 = vst [vmem:[#allocation6 + $0x70] sm:$0xff] %v406
  %445 = vst [vmem:[#allocation6 + $0x78] sm:$0xff] %v408
  %446 = vst [vmem:[#allocation6 + $0x80] sm:$0xff] %v339
  %447 = vst [vmem:[#allocation6 + $0x88] sm:$0xff] %v341
  %448 = vst [vmem:[#allocation6 + $0x90] sm:$0xff] %v412
  %449 = vst [vmem:[#allocation6 + $0x98] sm:$0xff] %v414
  %450 = vst [vmem:[#allocation6 + $0xa0] sm:$0xff] %v343
  %451 = vst [vmem:[#allocation6 + $0xa8] sm:$0xff] %v345
  %452 = vst [vmem:[#allocation6 + $0xb0] sm:$0xff] %v416
  %453 = vst [vmem:[#allocation6 + $0xb8] sm:$0xff] %v418
  %454 = vst [vmem:[#allocation6 + $0xc0] sm:$0xff] %v349
  %455 = vst [vmem:[#allocation6 + $0xc8] sm:$0xff] %v351
  %456 = vst [vmem:[#allocation6 + $0xd0] sm:$0xff] %v422
  %457 = vst [vmem:[#allocation6 + $0xd8] sm:$0xff] %v424
  %458 = vst [vmem:[#allocation6 + $0xe0] sm:$0xff] %v353
  %459 = vst [vmem:[#allocation6 + $0xe8] sm:$0xff] %v355
  %460 = vst [vmem:[#allocation6 + $0xf0] sm:$0xff] %v426
  %461 = vst [vmem:[#allocation6 + $0xf8] sm:$0xff] %v428
  %v462 = vld [vmem:[%s5] sm:$0xf]
  %v464 = vlaneseq
  %v465 = vshrl.u32 %v464, 7
  %v466 = vsub.s32 0, %v465
  %v467 = vrot.slane %v462, %v466
  %v468 = vlaneseq
  %v469 = vshrl.u32 %v468, 7
  %v470 = vsub.s32 1, %v469
  %v471 = vrot.slane %v462, %v470
  %v472 = vlaneseq
  %v473 = vshrl.u32 %v472, 7
  %v474 = vsub.s32 2, %v473
  %v475 = vrot.slane %v462, %v474
  %v476 = vlaneseq
  %v477 = vshrl.u32 %v476, 7
  %v478 = vsub.s32 3, %v477
  %v479 = vrot.slane %v462, %v478
  %v484 = vld [vmem:[#allocation6] sm:$0xff]
  %v485 = vld [vmem:[#allocation6 + $0x8] sm:$0xff]
  %v486 = vld [vmem:[#allocation6 + $0x10] sm:$0xff]
  %v487 = vld [vmem:[#allocation6 + $0x18] sm:$0xff]
  %v488 = vld [vmem:[#allocation2] sm:$0xf]
  %v489 = vld [vmem:[%s2] sm:$0xff]
  %v490 = vld [vmem:[%s2 + $0x8] sm:$0xff]
  %v491 = vld [vmem:[%s2 + $0x10] sm:$0xff]
  %v492 = vld [vmem:[%s2 + $0x18] sm:$0xff]
  %v493 = vld [vmem:[%s2 + $0x20] sm:$0xff]
  %v494 = vld [vmem:[%s2 + $0x28] sm:$0xff]
  %v495 = vld [vmem:[%s2 + $0x30] sm:$0xff]
  %v496 = vld [vmem:[%s2 + $0x38] sm:$0xff]
  %v497 = vld [vmem:[%s2 + $0x40] sm:$0xff]
  %v498 = vld [vmem:[%s2 + $0x48] sm:$0xff]
  %v499 = vld [vmem:[%s2 + $0x50] sm:$0xff]
  %v500 = vld [vmem:[%s2 + $0x58] sm:$0xff]
  %v501 = vld [vmem:[%s2 + $0x60] sm:$0xff]
  %v502 = vld [vmem:[%s2 + $0x68] sm:$0xff]
  %v503 = vld [vmem:[%s2 + $0x70] sm:$0xff]
  %v504 = vld [vmem:[%s2 + $0x78] sm:$0xff]
  %v505 = vld [vmem:[%s2 + $0x80] sm:$0xff]
  %v506 = vld [vmem:[%s2 + $0x88] sm:$0xff]
  %v507 = vld [vmem:[%s2 + $0x90] sm:$0xff]
  %v508 = vld [vmem:[%s2 + $0x98] sm:$0xff]
  %v509 = vld [vmem:[%s2 + $0xa0] sm:$0xff]
  %v510 = vld [vmem:[%s2 + $0xa8] sm:$0xff]
  %v511 = vld [vmem:[%s2 + $0xb0] sm:$0xff]
  %v512 = vld [vmem:[%s2 + $0xb8] sm:$0xff]
  %v513 = vld [vmem:[%s2 + $0xc0] sm:$0xff]
  %v514 = vld [vmem:[%s2 + $0xc8] sm:$0xff]
  %v515 = vld [vmem:[%s2 + $0xd0] sm:$0xff]
  %v516 = vld [vmem:[%s2 + $0xd8] sm:$0xff]
  %v517 = vld [vmem:[%s2 + $0xe0] sm:$0xff]
  %v518 = vld [vmem:[%s2 + $0xe8] sm:$0xff]
  %v519 = vld [vmem:[%s2 + $0xf0] sm:$0xff]
  %v520 = vld [vmem:[%s2 + $0xf8] sm:$0xff]
  %v553 = vunpack.c.l.b16 %v489
  %v554 = vunpack.c.h.b16 %v489
  %v555 = vunpack.c.l.b16 %v490
  %v556 = vunpack.c.h.b16 %v490
  %v557 = vunpack.c.l.b16 %v491
  %v558 = vunpack.c.h.b16 %v491
  %v559 = vunpack.c.l.b16 %v492
  %v560 = vunpack.c.h.b16 %v492
  %v561 = vunpack.c.l.b16 %v493
  %v562 = vunpack.c.h.b16 %v493
  %v563 = vunpack.c.l.b16 %v494
  %v564 = vunpack.c.h.b16 %v494
  %v565 = vunpack.c.l.b16 %v495
  %v566 = vunpack.c.h.b16 %v495
  %v567 = vunpack.c.l.b16 %v496
  %v568 = vunpack.c.h.b16 %v496
  %v569 = vunpack.c.l.b16 %v497
  %v570 = vunpack.c.h.b16 %v497
  %v571 = vunpack.c.l.b16 %v498
  %v572 = vunpack.c.h.b16 %v498
  %v573 = vunpack.c.l.b16 %v499
  %v574 = vunpack.c.h.b16 %v499
  %v575 = vunpack.c.l.b16 %v500
  %v576 = vunpack.c.h.b16 %v500
  %v577 = vunpack.c.l.b16 %v501
  %v578 = vunpack.c.h.b16 %v501
  %v579 = vunpack.c.l.b16 %v502
  %v580 = vunpack.c.h.b16 %v502
  %v581 = vunpack.c.l.b16 %v503
  %v582 = vunpack.c.h.b16 %v503
  %v583 = vunpack.c.l.b16 %v504
  %v584 = vunpack.c.h.b16 %v504
  %v585 = vunpack.c.l.b16 %v505
  %v586 = vunpack.c.h.b16 %v505
  %v587 = vunpack.c.l.b16 %v506
  %v588 = vunpack.c.h.b16 %v506
  %v589 = vunpack.c.l.b16 %v507
  %v590 = vunpack.c.h.b16 %v507
  %v591 = vunpack.c.l.b16 %v508
  %v592 = vunpack.c.h.b16 %v508
  %v593 = vunpack.c.l.b16 %v509
  %v594 = vunpack.c.h.b16 %v509
  %v595 = vunpack.c.l.b16 %v510
  %v596 = vunpack.c.h.b16 %v510
  %v597 = vunpack.c.l.b16 %v511
  %v598 = vunpack.c.h.b16 %v511
  %v599 = vunpack.c.l.b16 %v512
  %v600 = vunpack.c.h.b16 %v512
  %v601 = vunpack.c.l.b16 %v513
  %v602 = vunpack.c.h.b16 %v513
  %v603 = vunpack.c.l.b16 %v514
  %v604 = vunpack.c.h.b16 %v514
  %v605 = vunpack.c.l.b16 %v515
  %v606 = vunpack.c.h.b16 %v515
  %v607 = vunpack.c.l.b16 %v516
  %v608 = vunpack.c.h.b16 %v516
  %v609 = vunpack.c.l.b16 %v517
  %v610 = vunpack.c.h.b16 %v517
  %v611 = vunpack.c.l.b16 %v518
  %v612 = vunpack.c.h.b16 %v518
  %v613 = vunpack.c.l.b16 %v519
  %v614 = vunpack.c.h.b16 %v519
  %v615 = vunpack.c.l.b16 %v520
  %v616 = vunpack.c.h.b16 %v520
  %v617 = vpack.c.b16 %v557, %v553
  %v618 = vpack.c.b16 %v558, %v554
  %v619 = vpack.c.b16 %v559, %v555
  %v620 = vpack.c.b16 %v560, %v556
  %v621 = vpack.c.b16 %v565, %v561
  %v622 = vpack.c.b16 %v566, %v562
  %v623 = vpack.c.b16 %v567, %v563
  %v624 = vpack.c.b16 %v568, %v564
  %v625 = vpack.c.b16 %v573, %v569
  %v626 = vpack.c.b16 %v574, %v570
  %v627 = vpack.c.b16 %v575, %v571
  %v628 = vpack.c.b16 %v576, %v572
  %v629 = vpack.c.b16 %v581, %v577
  %v630 = vpack.c.b16 %v582, %v578
  %v631 = vpack.c.b16 %v583, %v579
  %v632 = vpack.c.b16 %v584, %v580
  %v633 = vpack.c.b16 %v589, %v585
  %v634 = vpack.c.b16 %v590, %v586
  %v635 = vpack.c.b16 %v591, %v587
  %v636 = vpack.c.b16 %v592, %v588
  %v637 = vpack.c.b16 %v597, %v593
  %v638 = vpack.c.b16 %v598, %v594
  %v639 = vpack.c.b16 %v599, %v595
  %v640 = vpack.c.b16 %v600, %v596
  %v641 = vpack.c.b16 %v605, %v601
  %v642 = vpack.c.b16 %v606, %v602
  %v643 = vpack.c.b16 %v607, %v603
  %v644 = vpack.c.b16 %v608, %v604
  %v645 = vpack.c.b16 %v613, %v609
  %v646 = vpack.c.b16 %v614, %v610
  %v647 = vpack.c.b16 %v615, %v611
  %v648 = vpack.c.b16 %v616, %v612
  %681 = vmatprep.subr.bf16.mxu0 %v646
  %682 = vmatpush1.bf16.msra.mxu0 %v645
  %683 = vmatprep.subr.bf16.mxu0 %v642
  %684 = vmatpush1.bf16.msra.mxu0 %v641
  %685 = vmatprep.subr.bf16.mxu0 %v638
  %686 = vmatpush1.bf16.msra.mxu0 %v637
  %687 = vmatprep.subr.bf16.mxu0 %v634
  %688 = vmatpush1.bf16.msra.mxu0 %v633
  %689 = vmatprep.subr.bf16.mxu0 %v630
  %690 = vmatpush1.bf16.msra.mxu0 %v629
  %691 = vmatprep.subr.bf16.mxu0 %v626
  %692 = vmatpush1.bf16.msra.mxu0 %v625
  %693 = vmatprep.subr.bf16.mxu0 %v622
  %694 = vmatpush1.bf16.msra.mxu0 %v621
  %695 = vmatprep.subr.bf16.mxu0 %v618
  %696 = vmatpush1.bf16.msra.mxu0 %v617
  %697 = vmatprep.subr.bf16.mxu0 0
  %698 = vmatpush2.bf16.msra.mxu0 0
  %699 = vmatprep.subr.bf16.mxu0 0
  %700 = vmatpush2.bf16.msra.mxu0 0
  %701 = vmatprep.subr.bf16.mxu0 0
  %702 = vmatpush2.bf16.msra.mxu0 0
  %703 = vmatprep.subr.bf16.mxu0 0
  %704 = vmatpush2.bf16.msra.mxu0 0
  %705 = vmatprep.subr.bf16.mxu0 0
  %706 = vmatpush2.bf16.msra.mxu0 0
  %707 = vmatprep.subr.bf16.mxu0 0
  %708 = vmatpush2.bf16.msra.mxu0 0
  %709 = vmatprep.subr.bf16.mxu0 0
  %710 = vmatpush2.bf16.msra.mxu0 0
  %711 = vmatprep.subr.bf16.mxu0 0
  %712 = vmatpush2.bf16.msra.mxu0 0
  %713 = vmatprep.mubr.bf16.mxu0 0
  %714 = vmatmul.mubr.bf16.gmra.mxu0 %v488
  %v715 = vpop.f32.mrf.mxu0
  %v716 = vadd.f32 0.0, %v715
  %v717 = vpop.f32.mrf.mxu0
  %v718 = vadd.f32 0.0, %v717
  %v719 = vpop.f32.mrf.mxu0
  %v720 = vpop.f32.mrf.mxu0
  %721 = vdwg.mxu0
  %722 = vmatprep.subr.bf16.mxu0 %v648
  %723 = vmatpush1.bf16.msra.mxu0 %v647
  %724 = vmatprep.subr.bf16.mxu0 %v644
  %725 = vmatpush1.bf16.msra.mxu0 %v643
  %726 = vmatprep.subr.bf16.mxu0 %v640
  %727 = vmatpush1.bf16.msra.mxu0 %v639
  %728 = vmatprep.subr.bf16.mxu0 %v636
  %729 = vmatpush1.bf16.msra.mxu0 %v635
  %730 = vmatprep.subr.bf16.mxu0 %v632
  %731 = vmatpush1.bf16.msra.mxu0 %v631
  %732 = vmatprep.subr.bf16.mxu0 %v628
  %733 = vmatpush1.bf16.msra.mxu0 %v627
  %734 = vmatprep.subr.bf16.mxu0 %v624
  %735 = vmatpush1.bf16.msra.mxu0 %v623
  %736 = vmatprep.subr.bf16.mxu0 %v620
  %737 = vmatpush1.bf16.msra.mxu0 %v619
  %738 = vmatprep.subr.bf16.mxu0 0
  %739 = vmatpush2.bf16.msra.mxu0 0
  %740 = vmatprep.subr.bf16.mxu0 0
  %741 = vmatpush2.bf16.msra.mxu0 0
  %742 = vmatprep.subr.bf16.mxu0 0
  %743 = vmatpush2.bf16.msra.mxu0 0
  %744 = vmatprep.subr.bf16.mxu0 0
  %745 = vmatpush2.bf16.msra.mxu0 0
  %746 = vmatprep.subr.bf16.mxu0 0
  %747 = vmatpush2.bf16.msra.mxu0 0
  %748 = vmatprep.subr.bf16.mxu0 0
  %749 = vmatpush2.bf16.msra.mxu0 0
  %750 = vmatprep.subr.bf16.mxu0 0
  %751 = vmatpush2.bf16.msra.mxu0 0
  %752 = vmatprep.subr.bf16.mxu0 0
  %753 = vmatpush2.bf16.msra.mxu0 0
  %754 = vmatprep.mubr.bf16.mxu0 0
  %755 = vmatmul.mubr.bf16.gmra.mxu0 %v488
  %v756 = vpop.f32.mrf.mxu0
  %v757 = vadd.f32 0.0, %v756
  %v758 = vpop.f32.mrf.mxu0
  %v759 = vadd.f32 0.0, %v758
  %v760 = vpop.f32.mrf.mxu0
  %v761 = vpop.f32.mrf.mxu0
  %762 = vdwg.mxu0
  %v763 = vadd.f32 %v484, %v716
  %v764 = vadd.f32 %v485, %v718
  %v765 = vadd.f32 %v486, %v757
  %v766 = vadd.f32 %v487, %v759
  %v767 = vxor.u32 %v763, 2147483648
  %v768 = vmul.f32 %v767, 1.442695
  %v769 = vpow.pop %v768
  %v770 = vadd.f32 %v769, 1.0
  %v771 = vrcp.pop %v770
  %v772 = vmul.f32 1.0, %v771
  %v773 = vxor.u32 %v764, 2147483648
  %v774 = vmul.f32 %v773, 1.442695
  %v775 = vpow.pop %v774
  %v776 = vadd.f32 %v775, 1.0
  %v777 = vrcp.pop %v776
  %v778 = vmul.f32 1.0, %v777
  %v779 = vtanh.pop %v765
  %v780 = vxor.u32 %v766, 2147483648
  %v781 = vmul.f32 %v780, 1.442695
  %v782 = vpow.pop %v781
  %v783 = vadd.f32 %v782, 1.0
  %v784 = vrcp.pop %v783
  %v785 = vmul.f32 1.0, %v784
  %v786 = vld [vmem:[#allocation3] sm:$0xff]
  %v787 = vmul.f32 %v778, %v786
  %v788 = vmul.f32 %v772, %v779
  %v789 = vadd.f32 %v787, %v788
  %v790 = vtanh.pop %v789
  %v791 = vmul.f32 %v785, %v790
  %792 = vst [vmem:[#allocation3] sm:$0xff] %v789
  %v793 = vpack.c.bf16 %v791, %v791
  %794 = vst [vmem:[#allocation2] sm:$0xf] %v793
  %v795 = vld [vmem:[#allocation4] sm:$0xf]
  %v796 = vld [vmem:[%s4] sm:$0xff]
  %v797 = vld [vmem:[%s4 + $0x8] sm:$0xff]
  %v798 = vld [vmem:[%s4 + $0x10] sm:$0xff]
  %v799 = vld [vmem:[%s4 + $0x18] sm:$0xff]
  %v800 = vld [vmem:[%s4 + $0x20] sm:$0xff]
  %v801 = vld [vmem:[%s4 + $0x28] sm:$0xff]
  %v802 = vld [vmem:[%s4 + $0x30] sm:$0xff]
  %v803 = vld [vmem:[%s4 + $0x38] sm:$0xff]
  %v804 = vld [vmem:[%s4 + $0x40] sm:$0xff]
  %v805 = vld [vmem:[%s4 + $0x48] sm:$0xff]
  %v806 = vld [vmem:[%s4 + $0x50] sm:$0xff]
  %v807 = vld [vmem:[%s4 + $0x58] sm:$0xff]
  %v808 = vld [vmem:[%s4 + $0x60] sm:$0xff]
  %v809 = vld [vmem:[%s4 + $0x68] sm:$0xff]
  %v810 = vld [vmem:[%s4 + $0x70] sm:$0xff]
  %v811 = vld [vmem:[%s4 + $0x78] sm:$0xff]
  %v812 = vld [vmem:[%s4 + $0x80] sm:$0xff]
  %v813 = vld [vmem:[%s4 + $0x88] sm:$0xff]
  %v814 = vld [vmem:[%s4 + $0x90] sm:$0xff]
  %v815 = vld [vmem:[%s4 + $0x98] sm:$0xff]
  %v816 = vld [vmem:[%s4 + $0xa0] sm:$0xff]
  %v817 = vld [vmem:[%s4 + $0xa8] sm:$0xff]
  %v818 = vld [vmem:[%s4 + $0xb0] sm:$0xff]
  %v819 = vld [vmem:[%s4 + $0xb8] sm:$0xff]
  %v820 = vld [vmem:[%s4 + $0xc0] sm:$0xff]
  %v821 = vld [vmem:[%s4 + $0xc8] sm:$0xff]
  %v822 = vld [vmem:[%s4 + $0xd0] sm:$0xff]
  %v823 = vld [vmem:[%s4 + $0xd8] sm:$0xff]
  %v824 = vld [vmem:[%s4 + $0xe0] sm:$0xff]
  %v825 = vld [vmem:[%s4 + $0xe8] sm:$0xff]
  %v826 = vld [vmem:[%s4 + $0xf0] sm:$0xff]
  %v827 = vld [vmem:[%s4 + $0xf8] sm:$0xff]
  %v828 = vld [vmem:[%s4 + $0x100] sm:$0xff]
  %v829 = vld [vmem:[%s4 + $0x108] sm:$0xff]
  %v830 = vld [vmem:[%s4 + $0x110] sm:$0xff]
  %v831 = vld [vmem:[%s4 + $0x118] sm:$0xff]
  %v832 = vld [vmem:[%s4 + $0x120] sm:$0xff]
  %v833 = vld [vmem:[%s4 + $0x128] sm:$0xff]
  %v834 = vld [vmem:[%s4 + $0x130] sm:$0xff]
  %v835 = vld [vmem:[%s4 + $0x138] sm:$0xff]
  %v836 = vld [vmem:[%s4 + $0x140] sm:$0xff]
  %v837 = vld [vmem:[%s4 + $0x148] sm:$0xff]
  %v838 = vld [vmem:[%s4 + $0x150] sm:$0xff]
  %v839 = vld [vmem:[%s4 + $0x158] sm:$0xff]
  %v840 = vld [vmem:[%s4 + $0x160] sm:$0xff]
  %v841 = vld [vmem:[%s4 + $0x168] sm:$0xff]
  %v842 = vld [vmem:[%s4 + $0x170] sm:$0xff]
  %v843 = vld [vmem:[%s4 + $0x178] sm:$0xff]
  %v844 = vld [vmem:[%s4 + $0x180] sm:$0xff]
  %v845 = vld [vmem:[%s4 + $0x188] sm:$0xff]
  %v846 = vld [vmem:[%s4 + $0x190] sm:$0xff]
  %v847 = vld [vmem:[%s4 + $0x198] sm:$0xff]
  %v848 = vld [vmem:[%s4 + $0x1a0] sm:$0xff]
  %v849 = vld [vmem:[%s4 + $0x1a8] sm:$0xff]
  %v850 = vld [vmem:[%s4 + $0x1b0] sm:$0xff]
  %v851 = vld [vmem:[%s4 + $0x1b8] sm:$0xff]
  %v852 = vld [vmem:[%s4 + $0x1c0] sm:$0xff]
  %v853 = vld [vmem:[%s4 + $0x1c8] sm:$0xff]
  %v854 = vld [vmem:[%s4 + $0x1d0] sm:$0xff]
  %v855 = vld [vmem:[%s4 + $0x1d8] sm:$0xff]
  %v856 = vld [vmem:[%s4 + $0x1e0] sm:$0xff]
  %v857 = vld [vmem:[%s4 + $0x1e8] sm:$0xff]
  %v858 = vld [vmem:[%s4 + $0x1f0] sm:$0xff]
  %v859 = vld [vmem:[%s4 + $0x1f8] sm:$0xff]
  %v924 = vunpack.c.l.b16 %v796
  %v925 = vunpack.c.h.b16 %v796
  %v926 = vunpack.c.l.b16 %v797
  %v927 = vunpack.c.h.b16 %v797
  %v928 = vunpack.c.l.b16 %v798
  %v929 = vunpack.c.h.b16 %v798
  %v930 = vunpack.c.l.b16 %v799
  %v931 = vunpack.c.h.b16 %v799
  %v932 = vunpack.c.l.b16 %v800
  %v933 = vunpack.c.h.b16 %v800
  %v934 = vunpack.c.l.b16 %v801
  %v935 = vunpack.c.h.b16 %v801
  %v936 = vunpack.c.l.b16 %v802
  %v937 = vunpack.c.h.b16 %v802
  %v938 = vunpack.c.l.b16 %v803
  %v939 = vunpack.c.h.b16 %v803
  %v940 = vunpack.c.l.b16 %v804
  %v941 = vunpack.c.h.b16 %v804
  %v942 = vunpack.c.l.b16 %v805
  %v943 = vunpack.c.h.b16 %v805
  %v944 = vunpack.c.l.b16 %v806
  %v945 = vunpack.c.h.b16 %v806
  %v946 = vunpack.c.l.b16 %v807
  %v947 = vunpack.c.h.b16 %v807
  %v948 = vunpack.c.l.b16 %v808
  %v949 = vunpack.c.h.b16 %v808
  %v950 = vunpack.c.l.b16 %v809
  %v951 = vunpack.c.h.b16 %v809
  %v952 = vunpack.c.l.b16 %v810
  %v953 = vunpack.c.h.b16 %v810
  %v954 = vunpack.c.l.b16 %v811
  %v955 = vunpack.c.h.b16 %v811
  %v956 = vunpack.c.l.b16 %v812
  %v957 = vunpack.c.h.b16 %v812
  %v958 = vunpack.c.l.b16 %v813
  %v959 = vunpack.c.h.b16 %v813
  %v960 = vunpack.c.l.b16 %v814
  %v961 = vunpack.c.h.b16 %v814
  %v962 = vunpack.c.l.b16 %v815
  %v963 = vunpack.c.h.b16 %v815
  %v964 = vunpack.c.l.b16 %v816
  %v965 = vunpack.c.h.b16 %v816
  %v966 = vunpack.c.l.b16 %v817
  %v967 = vunpack.c.h.b16 %v817
  %v968 = vunpack.c.l.b16 %v818
  %v969 = vunpack.c.h.b16 %v818
  %v970 = vunpack.c.l.b16 %v819
  %v971 = vunpack.c.h.b16 %v819
  %v972 = vunpack.c.l.b16 %v820
  %v973 = vunpack.c.h.b16 %v820
  %v974 = vunpack.c.l.b16 %v821
  %v975 = vunpack.c.h.b16 %v821
  %v976 = vunpack.c.l.b16 %v822
  %v977 = vunpack.c.h.b16 %v822
  %v978 = vunpack.c.l.b16 %v823
  %v979 = vunpack.c.h.b16 %v823
  %v980 = vunpack.c.l.b16 %v824
  %v981 = vunpack.c.h.b16 %v824
  %v982 = vunpack.c.l.b16 %v825
  %v983 = vunpack.c.h.b16 %v825
  %v984 = vunpack.c.l.b16 %v826
  %v985 = vunpack.c.h.b16 %v826
  %v986 = vunpack.c.l.b16 %v827
  %v987 = vunpack.c.h.b16 %v827
  %v988 = vunpack.c.l.b16 %v828
  %v989 = vunpack.c.h.b16 %v828
  %v990 = vunpack.c.l.b16 %v829
  %v991 = vunpack.c.h.b16 %v829
  %v992 = vunpack.c.l.b16 %v830
  %v993 = vunpack.c.h.b16 %v830
  %v994 = vunpack.c.l.b16 %v831
  %v995 = vunpack.c.h.b16 %v831
  %v996 = vunpack.c.l.b16 %v832
  %v997 = vunpack.c.h.b16 %v832
  %v998 = vunpack.c.l.b16 %v833
  %v999 = vunpack.c.h.b16 %v833
  %v1000 = vunpack.c.l.b16 %v834
  %v1001 = vunpack.c.h.b16 %v834
  %v1002 = vunpack.c.l.b16 %v835
  %v1003 = vunpack.c.h.b16 %v835
  %v1004 = vunpack.c.l.b16 %v836
  %v1005 = vunpack.c.h.b16 %v836
  %v1006 = vunpack.c.l.b16 %v837
  %v1007 = vunpack.c.h.b16 %v837
  %v1008 = vunpack.c.l.b16 %v838
  %v1009 = vunpack.c.h.b16 %v838
  %v1010 = vunpack.c.l.b16 %v839
  %v1011 = vunpack.c.h.b16 %v839
  %v1012 = vunpack.c.l.b16 %v840
  %v1013 = vunpack.c.h.b16 %v840
  %v1014 = vunpack.c.l.b16 %v841
  %v1015 = vunpack.c.h.b16 %v841
  %v1016 = vunpack.c.l.b16 %v842
  %v1017 = vunpack.c.h.b16 %v842
  %v1018 = vunpack.c.l.b16 %v843
  %v1019 = vunpack.c.h.b16 %v843
  %v1020 = vunpack.c.l.b16 %v844
  %v1021 = vunpack.c.h.b16 %v844
  %v1022 = vunpack.c.l.b16 %v845
  %v1023 = vunpack.c.h.b16 %v845
  %v1024 = vunpack.c.l.b16 %v846
  %v1025 = vunpack.c.h.b16 %v846
  %v1026 = vunpack.c.l.b16 %v847
  %v1027 = vunpack.c.h.b16 %v847
  %v1028 = vunpack.c.l.b16 %v848
  %v1029 = vunpack.c.h.b16 %v848
  %v1030 = vunpack.c.l.b16 %v849
  %v1031 = vunpack.c.h.b16 %v849
  %v1032 = vunpack.c.l.b16 %v850
  %v1033 = vunpack.c.h.b16 %v850
  %v1034 = vunpack.c.l.b16 %v851
  %v1035 = vunpack.c.h.b16 %v851
  %v1036 = vunpack.c.l.b16 %v852
  %v1037 = vunpack.c.h.b16 %v852
  %v1038 = vunpack.c.l.b16 %v853
  %v1039 = vunpack.c.h.b16 %v853
  %v1040 = vunpack.c.l.b16 %v854
  %v1041 = vunpack.c.h.b16 %v854
  %v1042 = vunpack.c.l.b16 %v855
  %v1043 = vunpack.c.h.b16 %v855
  %v1044 = vunpack.c.l.b16 %v856
  %v1045 = vunpack.c.h.b16 %v856
  %v1046 = vunpack.c.l.b16 %v857
  %v1047 = vunpack.c.h.b16 %v857
  %v1048 = vunpack.c.l.b16 %v858
  %v1049 = vunpack.c.h.b16 %v858
  %v1050 = vunpack.c.l.b16 %v859
  %v1051 = vunpack.c.h.b16 %v859
  %v1052 = vpack.c.b16 %v928, %v924
  %v1053 = vpack.c.b16 %v929, %v925
  %v1054 = vpack.c.b16 %v930, %v926
  %v1055 = vpack.c.b16 %v931, %v927
  %v1056 = vpack.c.b16 %v936, %v932
  %v1057 = vpack.c.b16 %v937, %v933
  %v1058 = vpack.c.b16 %v938, %v934
  %v1059 = vpack.c.b16 %v939, %v935
  %v1060 = vpack.c.b16 %v944, %v940
  %v1061 = vpack.c.b16 %v945, %v941
  %v1062 = vpack.c.b16 %v946, %v942
  %v1063 = vpack.c.b16 %v947, %v943
  %v1064 = vpack.c.b16 %v952, %v948
  %v1065 = vpack.c.b16 %v953, %v949
  %v1066 = vpack.c.b16 %v954, %v950
  %v1067 = vpack.c.b16 %v955, %v951
  %v1068 = vpack.c.b16 %v960, %v956
  %v1069 = vpack.c.b16 %v961, %v957
  %v1070 = vpack.c.b16 %v962, %v958
  %v1071 = vpack.c.b16 %v963, %v959
  %v1072 = vpack.c.b16 %v968, %v964
  %v1073 = vpack.c.b16 %v969, %v965
  %v1074 = vpack.c.b16 %v970, %v966
  %v1075 = vpack.c.b16 %v971, %v967
  %v1076 = vpack.c.b16 %v976, %v972
  %v1077 = vpack.c.b16 %v977, %v973
  %v1078 = vpack.c.b16 %v978, %v974
  %v1079 = vpack.c.b16 %v979, %v975
  %v1080 = vpack.c.b16 %v984, %v980
  %v1081 = vpack.c.b16 %v985, %v981
  %v1082 = vpack.c.b16 %v986, %v982
  %v1083 = vpack.c.b16 %v987, %v983
  %v1084 = vpack.c.b16 %v992, %v988
  %v1085 = vpack.c.b16 %v993, %v989
  %v1086 = vpack.c.b16 %v994, %v990
  %v1087 = vpack.c.b16 %v995, %v991
  %v1088 = vpack.c.b16 %v1000, %v996
  %v1089 = vpack.c.b16 %v1001, %v997
  %v1090 = vpack.c.b16 %v1002, %v998
  %v1091 = vpack.c.b16 %v1003, %v999
  %v1092 = vpack.c.b16 %v1008, %v1004
  %v1093 = vpack.c.b16 %v1009, %v1005
  %v1094 = vpack.c.b16 %v1010, %v1006
  %v1095 = vpack.c.b16 %v1011, %v1007
  %v1096 = vpack.c.b16 %v1016, %v1012
  %v1097 = vpack.c.b16 %v1017, %v1013
  %v1098 = vpack.c.b16 %v1018, %v1014
  %v1099 = vpack.c.b16 %v1019, %v1015
  %v1100 = vpack.c.b16 %v1024, %v1020
  %v1101 = vpack.c.b16 %v1025, %v1021
  %v1102 = vpack.c.b16 %v1026, %v1022
  %v1103 = vpack.c.b16 %v1027, %v1023
  %v1104 = vpack.c.b16 %v1032, %v1028
  %v1105 = vpack.c.b16 %v1033, %v1029
  %v1106 = vpack.c.b16 %v1034, %v1030
  %v1107 = vpack.c.b16 %v1035, %v1031
  %v1108 = vpack.c.b16 %v1040, %v1036
  %v1109 = vpack.c.b16 %v1041, %v1037
  %v1110 = vpack.c.b16 %v1042, %v1038
  %v1111 = vpack.c.b16 %v1043, %v1039
  %v1112 = vpack.c.b16 %v1048, %v1044
  %v1113 = vpack.c.b16 %v1049, %v1045
  %v1114 = vpack.c.b16 %v1050, %v1046
  %v1115 = vpack.c.b16 %v1051, %v1047
  %1180 = vmatprep.subr.bf16.mxu0 %v1081
  %1181 = vmatpush1.bf16.msra.mxu0 %v1080
  %1182 = vmatprep.subr.bf16.mxu0 %v1077
  %1183 = vmatpush1.bf16.msra.mxu0 %v1076
  %1184 = vmatprep.subr.bf16.mxu0 %v1073
  %1185 = vmatpush1.bf16.msra.mxu0 %v1072
  %1186 = vmatprep.subr.bf16.mxu0 %v1069
  %1187 = vmatpush1.bf16.msra.mxu0 %v1068
  %1188 = vmatprep.subr.bf16.mxu0 %v1065
  %1189 = vmatpush1.bf16.msra.mxu0 %v1064
  %1190 = vmatprep.subr.bf16.mxu0 %v1061
  %1191 = vmatpush1.bf16.msra.mxu0 %v1060
  %1192 = vmatprep.subr.bf16.mxu0 %v1057
  %1193 = vmatpush1.bf16.msra.mxu0 %v1056
  %1194 = vmatprep.subr.bf16.mxu0 %v1053
  %1195 = vmatpush1.bf16.msra.mxu0 %v1052
  %1196 = vmatprep.subr.bf16.mxu0 %v1113
  %1197 = vmatpush2.bf16.msra.mxu0 %v1112
  %1198 = vmatprep.subr.bf16.mxu0 %v1109
  %1199 = vmatpush2.bf16.msra.mxu0 %v1108
  %1200 = vmatprep.subr.bf16.mxu0 %v1105
  %1201 = vmatpush2.bf16.msra.mxu0 %v1104
  %1202 = vmatprep.subr.bf16.mxu0 %v1101
  %1203 = vmatpush2.bf16.msra.mxu0 %v1100
  %1204 = vmatprep.subr.bf16.mxu0 %v1097
  %1205 = vmatpush2.bf16.msra.mxu0 %v1096
  %1206 = vmatprep.subr.bf16.mxu0 %v1093
  %1207 = vmatpush2.bf16.msra.mxu0 %v1092
  %1208 = vmatprep.subr.bf16.mxu0 %v1089
  %1209 = vmatpush2.bf16.msra.mxu0 %v1088
  %1210 = vmatprep.subr.bf16.mxu0 %v1085
  %1211 = vmatpush2.bf16.msra.mxu0 %v1084
  %1212 = vmatprep.mubr.bf16.mxu0 %v795
  %1213 = vmatmul.mubr.bf16.gmra.mxu0 %v793
  %v1214 = vpop.f32.mrf.mxu0
  %v1215 = vadd.f32 %v467, %v1214
  %v1216 = vpop.f32.mrf.mxu0
  %v1217 = vadd.f32 %v471, %v1216
  %v1218 = vpop.f32.mrf.mxu0
  %v1219 = vpop.f32.mrf.mxu0
  %1220 = vdwg.mxu0
  %1221 = vmatprep.subr.bf16.mxu0 %v1083
  %1222 = vmatpush1.bf16.msra.mxu0 %v1082
  %1223 = vmatprep.subr.bf16.mxu0 %v1079
  %1224 = vmatpush1.bf16.msra.mxu0 %v1078
  %1225 = vmatprep.subr.bf16.mxu0 %v1075
  %1226 = vmatpush1.bf16.msra.mxu0 %v1074
  %1227 = vmatprep.subr.bf16.mxu0 %v1071
  %1228 = vmatpush1.bf16.msra.mxu0 %v1070
  %1229 = vmatprep.subr.bf16.mxu0 %v1067
  %1230 = vmatpush1.bf16.msra.mxu0 %v1066
  %1231 = vmatprep.subr.bf16.mxu0 %v1063
  %1232 = vmatpush1.bf16.msra.mxu0 %v1062
  %1233 = vmatprep.subr.bf16.mxu0 %v1059
  %1234 = vmatpush1.bf16.msra.mxu0 %v1058
  %1235 = vmatprep.subr.bf16.mxu0 %v1055
  %1236 = vmatpush1.bf16.msra.mxu0 %v1054
  %1237 = vmatprep.subr.bf16.mxu0 %v1115
  %1238 = vmatpush2.bf16.msra.mxu0 %v1114
  %1239 = vmatprep.subr.bf16.mxu0 %v1111
  %1240 = vmatpush2.bf16.msra.mxu0 %v1110
  %1241 = vmatprep.subr.bf16.mxu0 %v1107
  %1242 = vmatpush2.bf16.msra.mxu0 %v1106
  %1243 = vmatprep.subr.bf16.mxu0 %v1103
  %1244 = vmatpush2.bf16.msra.mxu0 %v1102
  %1245 = vmatprep.subr.bf16.mxu0 %v1099
  %1246 = vmatpush2.bf16.msra.mxu0 %v1098
  %1247 = vmatprep.subr.bf16.mxu0 %v1095
  %1248 = vmatpush2.bf16.msra.mxu0 %v1094
  %1249 = vmatprep.subr.bf16.mxu0 %v1091
  %1250 = vmatpush2.bf16.msra.mxu0 %v1090
  %1251 = vmatprep.subr.bf16.mxu0 %v1087
  %1252 = vmatpush2.bf16.msra.mxu0 %v1086
  %1253 = vmatprep.mubr.bf16.mxu0 %v795
  %1254 = vmatmul.mubr.bf16.gmra.mxu0 %v793
  %v1255 = vpop.f32.mrf.mxu0
  %v1256 = vadd.f32 %v475, %v1255
  %v1257 = vpop.f32.mrf.mxu0
  %v1258 = vadd.f32 %v479, %v1257
  %v1259 = vpop.f32.mrf.mxu0
  %v1260 = vpop.f32.mrf.mxu0
  %1261 = vdwg.mxu0
  %v1262 = vxor.u32 %v1215, 2147483648
  %v1263 = vmul.f32 %v1262, 1.442695
  %v1264 = vpow.pop %v1263
  %v1265 = vadd.f32 %v1264, 1.0
  %v1266 = vrcp.pop %v1265
  %v1267 = vmul.f32 1.0, %v1266
  %v1268 = vxor.u32 %v1217, 2147483648
  %v1269 = vmul.f32 %v1268, 1.442695
  %v1270 = vpow.pop %v1269
  %v1271 = vadd.f32 %v1270, 1.0
  %v1272 = vrcp.pop %v1271
  %v1273 = vmul.f32 1.0, %v1272
  %v1274 = vtanh.pop %v1256
  %v1275 = vxor.u32 %v1258, 2147483648
  %v1276 = vmul.f32 %v1275, 1.442695
  %v1277 = vpow.pop %v1276
  %v1278 = vadd.f32 %v1277, 1.0
  %v1279 = vrcp.pop %v1278
  %v1280 = vmul.f32 1.0, %v1279
  %v1281 = vld [vmem:[#allocation5] sm:$0xff]
  %v1282 = vmul.f32 %v1273, %v1281
  %v1283 = vmul.f32 %v1267, %v1274
  %v1284 = vadd.f32 %v1282, %v1283
  %v1285 = vtanh.pop %v1284
  %v1286 = vmul.f32 %v1280, %v1285
  %1287 = vst [vmem:[#allocation5] sm:$0xff] %v1284
  %v1288 = vpack.c.bf16 %v1286, %v1286
  %1289 = vst [vmem:[#allocation4] sm:$0xf] %v1288
  %1290 = vst [vmem:[#allocation7] sm:$0xf] %v1288
  %s1291 = scalar_lea.vmem [#allocation6], 32
  %v1292 = vld [vmem:[%s1291] sm:$0xff]
  %v1293 = vld [vmem:[%s1291 + $0x8] sm:$0xff]
  %v1294 = vld [vmem:[%s1291 + $0x10] sm:$0xff]
  %v1295 = vld [vmem:[%s1291 + $0x18] sm:$0xff]
  %v1296 = vld [vmem:[#allocation2] sm:$0xf]
  %v1297 = vld [vmem:[%s2] sm:$0xff]
  %v1298 = vld [vmem:[%s2 + $0x8] sm:$0xff]
  %v1299 = vld [vmem:[%s2 + $0x10] sm:$0xff]
  %v1300 = vld [vmem:[%s2 + $0x18] sm:$0xff]
  %v1301 = vld [vmem:[%s2 + $0x20] sm:$0xff]
  %v1302 = vld [vmem:[%s2 + $0x28] sm:$0xff]
  %v1303 = vld [vmem:[%s2 + $0x30] sm:$0xff]
  %v1304 = vld [vmem:[%s2 + $0x38] sm:$0xff]
  %v1305 = vld [vmem:[%s2 + $0x40] sm:$0xff]
  %v1306 = vld [vmem:[%s2 + $0x48] sm:$0xff]
  %v1307 = vld [vmem:[%s2 + $0x50] sm:$0xff]
  %v1308 = vld [vmem:[%s2 + $0x58] sm:$0xff]
  %v1309 = vld [vmem:[%s2 + $0x60] sm:$0xff]
  %v1310 = vld [vmem:[%s2 + $0x68] sm:$0xff]
  %v1311 = vld [vmem:[%s2 + $0x70] sm:$0xff]
  %v1312 = vld [vmem:[%s2 + $0x78] sm:$0xff]
  %v1313 = vld [vmem:[%s2 + $0x80] sm:$0xff]
  %v1314 = vld [vmem:[%s2 + $0x88] sm:$0xff]
  %v1315 = vld [vmem:[%s2 + $0x90] sm:$0xff]
  %v1316 = vld [vmem:[%s2 + $0x98] sm:$0xff]
  %v1317 = vld [vmem:[%s2 + $0xa0] sm:$0xff]
  %v1318 = vld [vmem:[%s2 + $0xa8] sm:$0xff]
  %v1319 = vld [vmem:[%s2 + $0xb0] sm:$0xff]
  %v1320 = vld [vmem:[%s2 + $0xb8] sm:$0xff]
  %v1321 = vld [vmem:[%s2 + $0xc0] sm:$0xff]
  %v1322 = vld [vmem:[%s2 + $0xc8] sm:$0xff]
  %v1323 = vld [vmem:[%s2 + $0xd0] sm:$0xff]
  %v1324 = vld [vmem:[%s2 + $0xd8] sm:$0xff]
  %v1325 = vld [vmem:[%s2 + $0xe0] sm:$0xff]
  %v1326 = vld [vmem:[%s2 + $0xe8] sm:$0xff]
  %v1327 = vld [vmem:[%s2 + $0xf0] sm:$0xff]
  %v1328 = vld [vmem:[%s2 + $0xf8] sm:$0xff]
  %v1361 = vunpack.c.l.b16 %v1297
  %v1362 = vunpack.c.h.b16 %v1297
  %v1363 = vunpack.c.l.b16 %v1298
  %v1364 = vunpack.c.h.b16 %v1298
  %v1365 = vunpack.c.l.b16 %v1299
  %v1366 = vunpack.c.h.b16 %v1299
  %v1367 = vunpack.c.l.b16 %v1300
  %v1368 = vunpack.c.h.b16 %v1300
  %v1369 = vunpack.c.l.b16 %v1301
  %v1370 = vunpack.c.h.b16 %v1301
  %v1371 = vunpack.c.l.b16 %v1302
  %v1372 = vunpack.c.h.b16 %v1302
  %v1373 = vunpack.c.l.b16 %v1303
  %v1374 = vunpack.c.h.b16 %v1303
  %v1375 = vunpack.c.l.b16 %v1304
  %v1376 = vunpack.c.h.b16 %v1304
  %v1377 = vunpack.c.l.b16 %v1305
  %v1378 = vunpack.c.h.b16 %v1305
  %v1379 = vunpack.c.l.b16 %v1306
  %v1380 = vunpack.c.h.b16 %v1306
  %v1381 = vunpack.c.l.b16 %v1307
  %v1382 = vunpack.c.h.b16 %v1307
  %v1383 = vunpack.c.l.b16 %v1308
  %v1384 = vunpack.c.h.b16 %v1308
  %v1385 = vunpack.c.l.b16 %v1309
  %v1386 = vunpack.c.h.b16 %v1309
  %v1387 = vunpack.c.l.b16 %v1310
  %v1388 = vunpack.c.h.b16 %v1310
  %v1389 = vunpack.c.l.b16 %v1311
  %v1390 = vunpack.c.h.b16 %v1311
  %v1391 = vunpack.c.l.b16 %v1312
  %v1392 = vunpack.c.h.b16 %v1312
  %v1393 = vunpack.c.l.b16 %v1313
  %v1394 = vunpack.c.h.b16 %v1313
  %v1395 = vunpack.c.l.b16 %v1314
  %v1396 = vunpack.c.h.b16 %v1314
  %v1397 = vunpack.c.l.b16 %v1315
  %v1398 = vunpack.c.h.b16 %v1315
  %v1399 = vunpack.c.l.b16 %v1316
  %v1400 = vunpack.c.h.b16 %v1316
  %v1401 = vunpack.c.l.b16 %v1317
  %v1402 = vunpack.c.h.b16 %v1317
  %v1403 = vunpack.c.l.b16 %v1318
  %v1404 = vunpack.c.h.b16 %v1318
  %v1405 = vunpack.c.l.b16 %v1319
  %v1406 = vunpack.c.h.b16 %v1319
  %v1407 = vunpack.c.l.b16 %v1320
  %v1408 = vunpack.c.h.b16 %v1320
  %v1409 = vunpack.c.l.b16 %v1321
  %v1410 = vunpack.c.h.b16 %v1321
  %v1411 = vunpack.c.l.b16 %v1322
  %v1412 = vunpack.c.h.b16 %v1322
  %v1413 = vunpack.c.l.b16 %v1323
  %v1414 = vunpack.c.h.b16 %v1323
  %v1415 = vunpack.c.l.b16 %v1324
  %v1416 = vunpack.c.h.b16 %v1324
  %v1417 = vunpack.c.l.b16 %v1325
  %v1418 = vunpack.c.h.b16 %v1325
  %v1419 = vunpack.c.l.b16 %v1326
  %v1420 = vunpack.c.h.b16 %v1326
  %v1421 = vunpack.c.l.b16 %v1327
  %v1422 = vunpack.c.h.b16 %v1327
  %v1423 = vunpack.c.l.b16 %v1328
  %v1424 = vunpack.c.h.b16 %v1328
  %v1425 = vpack.c.b16 %v1365, %v1361
  %v1426 = vpack.c.b16 %v1366, %v1362
  %v1427 = vpack.c.b16 %v1367, %v1363
  %v1428 = vpack.c.b16 %v1368, %v1364
  %v1429 = vpack.c.b16 %v1373, %v1369
  %v1430 = vpack.c.b16 %v1374, %v1370
  %v1431 = vpack.c.b16 %v1375, %v1371
  %v1432 = vpack.c.b16 %v1376, %v1372
  %v1433 = vpack.c.b16 %v1381, %v1377
  %v1434 = vpack.c.b16 %v1382, %v1378
  %v1435 = vpack.c.b16 %v1383, %v1379
  %v1436 = vpack.c.b16 %v1384, %v1380
  %v1437 = vpack.c.b16 %v1389, %v1385
  %v1438 = vpack.c.b16 %v1390, %v1386
  %v1439 = vpack.c.b16 %v1391, %v1387
  %v1440 = vpack.c.b16 %v1392, %v1388
  %v1441 = vpack.c.b16 %v1397, %v1393
  %v1442 = vpack.c.b16 %v1398, %v1394
  %v1443 = vpack.c.b16 %v1399, %v1395
  %v1444 = vpack.c.b16 %v1400, %v1396
  %v1445 = vpack.c.b16 %v1405, %v1401
  %v1446 = vpack.c.b16 %v1406, %v1402
  %v1447 = vpack.c.b16 %v1407, %v1403
  %v1448 = vpack.c.b16 %v1408, %v1404
  %v1449 = vpack.c.b16 %v1413, %v1409
  %v1450 = vpack.c.b16 %v1414, %v1410
  %v1451 = vpack.c.b16 %v1415, %v1411
  %v1452 = vpack.c.b16 %v1416, %v1412
  %v1453 = vpack.c.b16 %v1421, %v1417
  %v1454 = vpack.c.b16 %v1422, %v1418
  %v1455 = vpack.c.b16 %v1423, %v1419
  %v1456 = vpack.c.b16 %v1424, %v1420
  %1489 = vmatprep.subr.bf16.mxu0 %v1454
  %1490 = vmatpush1.bf16.msra.mxu0 %v1453
  %1491 = vmatprep.subr.bf16.mxu0 %v1450
  %1492 = vmatpush1.bf16.msra.mxu0 %v1449
  %1493 = vmatprep.subr.bf16.mxu0 %v1446
  %1494 = vmatpush1.bf16.msra.mxu0 %v1445
  %1495 = vmatprep.subr.bf16.mxu0 %v1442
  %1496 = vmatpush1.bf16.msra.mxu0 %v1441
  %1497 = vmatprep.subr.bf16.mxu0 %v1438
  %1498 = vmatpush1.bf16.msra.mxu0 %v1437
  %1499 = vmatprep.subr.bf16.mxu0 %v1434
  %1500 = vmatpush1.bf16.msra.mxu0 %v1433
  %1501 = vmatprep.subr.bf16.mxu0 %v1430
  %1502 = vmatpush1.bf16.msra.mxu0 %v1429
  %1503 = vmatprep.subr.bf16.mxu0 %v1426
  %1504 = vmatpush1.bf16.msra.mxu0 %v1425
  %1505 = vmatprep.subr.bf16.mxu0 0
  %1506 = vmatpush2.bf16.msra.mxu0 0
  %1507 = vmatprep.subr.bf16.mxu0 0
  %1508 = vmatpush2.bf16.msra.mxu0 0
  %1509 = vmatprep.subr.bf16.mxu0 0
  %1510 = vmatpush2.bf16.msra.mxu0 0
  %1511 = vmatprep.subr.bf16.mxu0 0
  %1512 = vmatpush2.bf16.msra.mxu0 0
  %1513 = vmatprep.subr.bf16.mxu0 0
  %1514 = vmatpush2.bf16.msra.mxu0 0
  %1515 = vmatprep.subr.bf16.mxu0 0
  %1516 = vmatpush2.bf16.msra.mxu0 0
  %1517 = vmatprep.subr.bf16.mxu0 0
  %1518 = vmatpush2.bf16.msra.mxu0 0
  %1519 = vmatprep.subr.bf16.mxu0 0
  %1520 = vmatpush2.bf16.msra.mxu0 0
  %1521 = vmatprep.mubr.bf16.mxu0 0
  %1522 = vmatmul.mubr.bf16.gmra.mxu0 %v1296
  %v1523 = vpop.f32.mrf.mxu0
  %v1524 = vadd.f32 0.0, %v1523
  %v1525 = vpop.f32.mrf.mxu0
  %v1526 = vadd.f32 0.0, %v1525
  %v1527 = vpop.f32.mrf.mxu0
  %v1528 = vpop.f32.mrf.mxu0
  %1529 = vdwg.mxu0
  %1530 = vmatprep.subr.bf16.mxu0 %v1456
  %1531 = vmatpush1.bf16.msra.mxu0 %v1455
  %1532 = vmatprep.subr.bf16.mxu0 %v1452
  %1533 = vmatpush1.bf16.msra.mxu0 %v1451
  %1534 = vmatprep.subr.bf16.mxu0 %v1448
  %1535 = vmatpush1.bf16.msra.mxu0 %v1447
  %1536 = vmatprep.subr.bf16.mxu0 %v1444
  %1537 = vmatpush1.bf16.msra.mxu0 %v1443
  %1538 = vmatprep.subr.bf16.mxu0 %v1440
  %1539 = vmatpush1.bf16.msra.mxu0 %v1439
  %1540 = vmatprep.subr.bf16.mxu0 %v1436
  %1541 = vmatpush1.bf16.msra.mxu0 %v1435
  %1542 = vmatprep.subr.bf16.mxu0 %v1432
  %1543 = vmatpush1.bf16.msra.mxu0 %v1431
  %1544 = vmatprep.subr.bf16.mxu0 %v1428
  %1545 = vmatpush1.bf16.msra.mxu0 %v1427
  %1546 = vmatprep.subr.bf16.mxu0 0
  %1547 = vmatpush2.bf16.msra.mxu0 0
  %1548 = vmatprep.subr.bf16.mxu0 0
  %1549 = vmatpush2.bf16.msra.mxu0 0
  %1550 = vmatprep.subr.bf16.mxu0 0
  %1551 = vmatpush2.bf16.msra.mxu0 0
  %1552 = vmatprep.subr.bf16.mxu0 0
  %1553 = vmatpush2.bf16.msra.mxu0 0
  %1554 = vmatprep.subr.bf16.mxu0 0
  %1555 = vmatpush2.bf16.msra.mxu0 0
  %1556 = vmatprep.subr.bf16.mxu0 0
  %1557 = vmatpush2.bf16.msra.mxu0 0
  %1558 = vmatprep.subr.bf16.mxu0 0
  %1559 = vmatpush2.bf16.msra.mxu0 0
  %1560 = vmatprep.subr.bf16.mxu0 0
  %1561 = vmatpush2.bf16.msra.mxu0 0
  %1562 = vmatprep.mubr.bf16.mxu0 0
  %1563 = vmatmul.mubr.bf16.gmra.mxu0 %v1296
  %v1564 = vpop.f32.mrf.mxu0
  %v1565 = vadd.f32 0.0, %v1564
  %v1566 = vpop.f32.mrf.mxu0
  %v1567 = vadd.f32 0.0, %v1566
  %v1568 = vpop.f32.mrf.mxu0
  %v1569 = vpop.f32.mrf.mxu0
  %1570 = vdwg.mxu0
  %v1571 = vadd.f32 %v1292, %v1524
  %v1572 = vadd.f32 %v1293, %v1526
  %v1573 = vadd.f32 %v1294, %v1565
  %v1574 = vadd.f32 %v1295, %v1567
  %v1575 = vxor.u32 %v1571, 2147483648
  %v1576 = vmul.f32 %v1575, 1.442695
  %v1577 = vpow.pop %v1576
  %v1578 = vadd.f32 %v1577, 1.0
  %v1579 = vrcp.pop %v1578
  %v1580 = vmul.f32 1.0, %v1579
  %v1581 = vxor.u32 %v1572, 2147483648
  %v1582 = vmul.f32 %v1581, 1.442695
  %v1583 = vpow.pop %v1582
  %v1584 = vadd.f32 %v1583, 1.0
  %v1585 = vrcp.pop %v1584
  %v1586 = vmul.f32 1.0, %v1585
  %v1587 = vtanh.pop %v1573
  %v1588 = vxor.u32 %v1574, 2147483648
  %v1589 = vmul.f32 %v1588, 1.442695
  %v1590 = vpow.pop %v1589
  %v1591 = vadd.f32 %v1590, 1.0
  %v1592 = vrcp.pop %v1591
  %v1593 = vmul.f32 1.0, %v1592
  %v1594 = vld [vmem:[#allocation3] sm:$0xff]
  %v1595 = vmul.f32 %v1586, %v1594
  %v1596 = vmul.f32 %v1580, %v1587
  %v1597 = vadd.f32 %v1595, %v1596
  %v1598 = vtanh.pop %v1597
  %v1599 = vmul.f32 %v1593, %v1598
  %1600 = vst [vmem:[#allocation3] sm:$0xff] %v1597
  %v1601 = vpack.c.bf16 %v1599, %v1599
  %1602 = vst [vmem:[#allocation2] sm:$0xf] %v1601
  %v1603 = vld [vmem:[#allocation4] sm:$0xf]
  %v1604 = vld [vmem:[%s4] sm:$0xff]
  %v1605 = vld [vmem:[%s4 + $0x8] sm:$0xff]
  %v1606 = vld [vmem:[%s4 + $0x10] sm:$0xff]
  %v1607 = vld [vmem:[%s4 + $0x18] sm:$0xff]
  %v1608 = vld [vmem:[%s4 + $0x20] sm:$0xff]
  %v1609 = vld [vmem:[%s4 + $0x28] sm:$0xff]
  %v1610 = vld [vmem:[%s4 + $0x30] sm:$0xff]
  %v1611 = vld [vmem:[%s4 + $0x38] sm:$0xff]
  %v1612 = vld [vmem:[%s4 + $0x40] sm:$0xff]
  %v1613 = vld [vmem:[%s4 + $0x48] sm:$0xff]
  %v1614 = vld [vmem:[%s4 + $0x50] sm:$0xff]
  %v1615 = vld [vmem:[%s4 + $0x58] sm:$0xff]
  %v1616 = vld [vmem:[%s4 + $0x60] sm:$0xff]
  %v1617 = vld [vmem:[%s4 + $0x68] sm:$0xff]
  %v1618 = vld [vmem:[%s4 + $0x70] sm:$0xff]
  %v1619 = vld [vmem:[%s4 + $0x78] sm:$0xff]
  %v1620 = vld [vmem:[%s4 + $0x80] sm:$0xff]
  %v1621 = vld [vmem:[%s4 + $0x88] sm:$0xff]
  %v1622 = vld [vmem:[%s4 + $0x90] sm:$0xff]
  %v1623 = vld [vmem:[%s4 + $0x98] sm:$0xff]
  %v1624 = vld [vmem:[%s4 + $0xa0] sm:$0xff]
  %v1625 = vld [vmem:[%s4 + $0xa8] sm:$0xff]
  %v1626 = vld [vmem:[%s4 + $0xb0] sm:$0xff]
  %v1627 = vld [vmem:[%s4 + $0xb8] sm:$0xff]
  %v1628 = vld [vmem:[%s4 + $0xc0] sm:$0xff]
  %v1629 = vld [vmem:[%s4 + $0xc8] sm:$0xff]
  %v1630 = vld [vmem:[%s4 + $0xd0] sm:$0xff]
  %v1631 = vld [vmem:[%s4 + $0xd8] sm:$0xff]
  %v1632 = vld [vmem:[%s4 + $0xe0] sm:$0xff]
  %v1633 = vld [vmem:[%s4 + $0xe8] sm:$0xff]
  %v1634 = vld [vmem:[%s4 + $0xf0] sm:$0xff]
  %v1635 = vld [vmem:[%s4 + $0xf8] sm:$0xff]
  %v1636 = vld [vmem:[%s4 + $0x100] sm:$0xff]
  %v1637 = vld [vmem:[%s4 + $0x108] sm:$0xff]
  %v1638 = vld [vmem:[%s4 + $0x110] sm:$0xff]
  %v1639 = vld [vmem:[%s4 + $0x118] sm:$0xff]
  %v1640 = vld [vmem:[%s4 + $0x120] sm:$0xff]
  %v1641 = vld [vmem:[%s4 + $0x128] sm:$0xff]
  %v1642 = vld [vmem:[%s4 + $0x130] sm:$0xff]
  %v1643 = vld [vmem:[%s4 + $0x138] sm:$0xff]
  %v1644 = vld [vmem:[%s4 + $0x140] sm:$0xff]
  %v1645 = vld [vmem:[%s4 + $0x148] sm:$0xff]
  %v1646 = vld [vmem:[%s4 + $0x150] sm:$0xff]
  %v1647 = vld [vmem:[%s4 + $0x158] sm:$0xff]
  %v1648 = vld [vmem:[%s4 + $0x160] sm:$0xff]
  %v1649 = vld [vmem:[%s4 + $0x168] sm:$0xff]
  %v1650 = vld [vmem:[%s4 + $0x170] sm:$0xff]
  %v1651 = vld [vmem:[%s4 + $0x178] sm:$0xff]
  %v1652 = vld [vmem:[%s4 + $0x180] sm:$0xff]
  %v1653 = vld [vmem:[%s4 + $0x188] sm:$0xff]
  %v1654 = vld [vmem:[%s4 + $0x190] sm:$0xff]
  %v1655 = vld [vmem:[%s4 + $0x198] sm:$0xff]
  %v1656 = vld [vmem:[%s4 + $0x1a0] sm:$0xff]
  %v1657 = vld [vmem:[%s4 + $0x1a8] sm:$0xff]
  %v1658 = vld [vmem:[%s4 + $0x1b0] sm:$0xff]
  %v1659 = vld [vmem:[%s4 + $0x1b8] sm:$0xff]
  %v1660 = vld [vmem:[%s4 + $0x1c0] sm:$0xff]
  %v1661 = vld [vmem:[%s4 + $0x1c8] sm:$0xff]
  %v1662 = vld [vmem:[%s4 + $0x1d0] sm:$0xff]
  %v1663 = vld [vmem:[%s4 + $0x1d8] sm:$0xff]
  %v1664 = vld [vmem:[%s4 + $0x1e0] sm:$0xff]
  %v1665 = vld [vmem:[%s4 + $0x1e8] sm:$0xff]
  %v1666 = vld [vmem:[%s4 + $0x1f0] sm:$0xff]
  %v1667 = vld [vmem:[%s4 + $0x1f8] sm:$0xff]
  %v1732 = vunpack.c.l.b16 %v1604
  %v1733 = vunpack.c.h.b16 %v1604
  %v1734 = vunpack.c.l.b16 %v1605
  %v1735 = vunpack.c.h.b16 %v1605
  %v1736 = vunpack.c.l.b16 %v1606
  %v1737 = vunpack.c.h.b16 %v1606
  %v1738 = vunpack.c.l.b16 %v1607
  %v1739 = vunpack.c.h.b16 %v1607
  %v1740 = vunpack.c.l.b16 %v1608
  %v1741 = vunpack.c.h.b16 %v1608
  %v1742 = vunpack.c.l.b16 %v1609
  %v1743 = vunpack.c.h.b16 %v1609
  %v1744 = vunpack.c.l.b16 %v1610
  %v1745 = vunpack.c.h.b16 %v1610
  %v1746 = vunpack.c.l.b16 %v1611
  %v1747 = vunpack.c.h.b16 %v1611
  %v1748 = vunpack.c.l.b16 %v1612
  %v1749 = vunpack.c.h.b16 %v1612
  %v1750 = vunpack.c.l.b16 %v1613
  %v1751 = vunpack.c.h.b16 %v1613
  %v1752 = vunpack.c.l.b16 %v1614
  %v1753 = vunpack.c.h.b16 %v1614
  %v1754 = vunpack.c.l.b16 %v1615
  %v1755 = vunpack.c.h.b16 %v1615
  %v1756 = vunpack.c.l.b16 %v1616
  %v1757 = vunpack.c.h.b16 %v1616
  %v1758 = vunpack.c.l.b16 %v1617
  %v1759 = vunpack.c.h.b16 %v1617
  %v1760 = vunpack.c.l.b16 %v1618
  %v1761 = vunpack.c.h.b16 %v1618
  %v1762 = vunpack.c.l.b16 %v1619
  %v1763 = vunpack.c.h.b16 %v1619
  %v1764 = vunpack.c.l.b16 %v1620
  %v1765 = vunpack.c.h.b16 %v1620
  %v1766 = vunpack.c.l.b16 %v1621
  %v1767 = vunpack.c.h.b16 %v1621
  %v1768 = vunpack.c.l.b16 %v1622
  %v1769 = vunpack.c.h.b16 %v1622
  %v1770 = vunpack.c.l.b16 %v1623
  %v1771 = vunpack.c.h.b16 %v1623
  %v1772 = vunpack.c.l.b16 %v1624
  %v1773 = vunpack.c.h.b16 %v1624
  %v1774 = vunpack.c.l.b16 %v1625
  %v1775 = vunpack.c.h.b16 %v1625
  %v1776 = vunpack.c.l.b16 %v1626
  %v1777 = vunpack.c.h.b16 %v1626
  %v1778 = vunpack.c.l.b16 %v1627
  %v1779 = vunpack.c.h.b16 %v1627
  %v1780 = vunpack.c.l.b16 %v1628
  %v1781 = vunpack.c.h.b16 %v1628
  %v1782 = vunpack.c.l.b16 %v1629
  %v1783 = vunpack.c.h.b16 %v1629
  %v1784 = vunpack.c.l.b16 %v1630
  %v1785 = vunpack.c.h.b16 %v1630
  %v1786 = vunpack.c.l.b16 %v1631
  %v1787 = vunpack.c.h.b16 %v1631
  %v1788 = vunpack.c.l.b16 %v1632
  %v1789 = vunpack.c.h.b16 %v1632
  %v1790 = vunpack.c.l.b16 %v1633
  %v1791 = vunpack.c.h.b16 %v1633
  %v1792 = vunpack.c.l.b16 %v1634
  %v1793 = vunpack.c.h.b16 %v1634
  %v1794 = vunpack.c.l.b16 %v1635
  %v1795 = vunpack.c.h.b16 %v1635
  %v1796 = vunpack.c.l.b16 %v1636
  %v1797 = vunpack.c.h.b16 %v1636
  %v1798 = vunpack.c.l.b16 %v1637
  %v1799 = vunpack.c.h.b16 %v1637
  %v1800 = vunpack.c.l.b16 %v1638
  %v1801 = vunpack.c.h.b16 %v1638
  %v1802 = vunpack.c.l.b16 %v1639
  %v1803 = vunpack.c.h.b16 %v1639
  %v1804 = vunpack.c.l.b16 %v1640
  %v1805 = vunpack.c.h.b16 %v1640
  %v1806 = vunpack.c.l.b16 %v1641
  %v1807 = vunpack.c.h.b16 %v1641
  %v1808 = vunpack.c.l.b16 %v1642
  %v1809 = vunpack.c.h.b16 %v1642
  %v1810 = vunpack.c.l.b16 %v1643
  %v1811 = vunpack.c.h.b16 %v1643
  %v1812 = vunpack.c.l.b16 %v1644
  %v1813 = vunpack.c.h.b16 %v1644
  %v1814 = vunpack.c.l.b16 %v1645
  %v1815 = vunpack.c.h.b16 %v1645
  %v1816 = vunpack.c.l.b16 %v1646
  %v1817 = vunpack.c.h.b16 %v1646
  %v1818 = vunpack.c.l.b16 %v1647
  %v1819 = vunpack.c.h.b16 %v1647
  %v1820 = vunpack.c.l.b16 %v1648
  %v1821 = vunpack.c.h.b16 %v1648
  %v1822 = vunpack.c.l.b16 %v1649
  %v1823 = vunpack.c.h.b16 %v1649
  %v1824 = vunpack.c.l.b16 %v1650
  %v1825 = vunpack.c.h.b16 %v1650
  %v1826 = vunpack.c.l.b16 %v1651
  %v1827 = vunpack.c.h.b16 %v1651
  %v1828 = vunpack.c.l.b16 %v1652
  %v1829 = vunpack.c.h.b16 %v1652
  %v1830 = vunpack.c.l.b16 %v1653
  %v1831 = vunpack.c.h.b16 %v1653
  %v1832 = vunpack.c.l.b16 %v1654
  %v1833 = vunpack.c.h.b16 %v1654
  %v1834 = vunpack.c.l.b16 %v1655
  %v1835 = vunpack.c.h.b16 %v1655
  %v1836 = vunpack.c.l.b16 %v1656
  %v1837 = vunpack.c.h.b16 %v1656
  %v1838 = vunpack.c.l.b16 %v1657
  %v1839 = vunpack.c.h.b16 %v1657
  %v1840 = vunpack.c.l.b16 %v1658
  %v1841 = vunpack.c.h.b16 %v1658
  %v1842 = vunpack.c.l.b16 %v1659
  %v1843 = vunpack.c.h.b16 %v1659
  %v1844 = vunpack.c.l.b16 %v1660
  %v1845 = vunpack.c.h.b16 %v1660
  %v1846 = vunpack.c.l.b16 %v1661
  %v1847 = vunpack.c.h.b16 %v1661
  %v1848 = vunpack.c.l.b16 %v1662
  %v1849 = vunpack.c.h.b16 %v1662
  %v1850 = vunpack.c.l.b16 %v1663
  %v1851 = vunpack.c.h.b16 %v1663
  %v1852 = vunpack.c.l.b16 %v1664
  %v1853 = vunpack.c.h.b16 %v1664
  %v1854 = vunpack.c.l.b16 %v1665
  %v1855 = vunpack.c.h.b16 %v1665
  %v1856 = vunpack.c.l.b16 %v1666
  %v1857 = vunpack.c.h.b16 %v1666
  %v1858 = vunpack.c.l.b16 %v1667
  %v1859 = vunpack.c.h.b16 %v1667
  %v1860 = vpack.c.b16 %v1736, %v1732
  %v1861 = vpack.c.b16 %v1737, %v1733
  %v1862 = vpack.c.b16 %v1738, %v1734
  %v1863 = vpack.c.b16 %v1739, %v1735
  %v1864 = vpack.c.b16 %v1744, %v1740
  %v1865 = vpack.c.b16 %v1745, %v1741
  %v1866 = vpack.c.b16 %v1746, %v1742
  %v1867 = vpack.c.b16 %v1747, %v1743
  %v1868 = vpack.c.b16 %v1752, %v1748
  %v1869 = vpack.c.b16 %v1753, %v1749
  %v1870 = vpack.c.b16 %v1754, %v1750
  %v1871 = vpack.c.b16 %v1755, %v1751
  %v1872 = vpack.c.b16 %v1760, %v1756
  %v1873 = vpack.c.b16 %v1761, %v1757
  %v1874 = vpack.c.b16 %v1762, %v1758
  %v1875 = vpack.c.b16 %v1763, %v1759
  %v1876 = vpack.c.b16 %v1768, %v1764
  %v1877 = vpack.c.b16 %v1769, %v1765
  %v1878 = vpack.c.b16 %v1770, %v1766
  %v1879 = vpack.c.b16 %v1771, %v1767
  %v1880 = vpack.c.b16 %v1776, %v1772
  %v1881 = vpack.c.b16 %v1777, %v1773
  %v1882 = vpack.c.b16 %v1778, %v1774
  %v1883 = vpack.c.b16 %v1779, %v1775
  %v1884 = vpack.c.b16 %v1784, %v1780
  %v1885 = vpack.c.b16 %v1785, %v1781
  %v1886 = vpack.c.b16 %v1786, %v1782
  %v1887 = vpack.c.b16 %v1787, %v1783
  %v1888 = vpack.c.b16 %v1792, %v1788
  %v1889 = vpack.c.b16 %v1793, %v1789
  %v1890 = vpack.c.b16 %v1794, %v1790
  %v1891 = vpack.c.b16 %v1795, %v1791
  %v1892 = vpack.c.b16 %v1800, %v1796
  %v1893 = vpack.c.b16 %v1801, %v1797
  %v1894 = vpack.c.b16 %v1802, %v1798
  %v1895 = vpack.c.b16 %v1803, %v1799
  %v1896 = vpack.c.b16 %v1808, %v1804
  %v1897 = vpack.c.b16 %v1809, %v1805
  %v1898 = vpack.c.b16 %v1810, %v1806
  %v1899 = vpack.c.b16 %v1811, %v1807
  %v1900 = vpack.c.b16 %v1816, %v1812
  %v1901 = vpack.c.b16 %v1817, %v1813
  %v1902 = vpack.c.b16 %v1818, %v1814
  %v1903 = vpack.c.b16 %v1819, %v1815
  %v1904 = vpack.c.b16 %v1824, %v1820
  %v1905 = vpack.c.b16 %v1825, %v1821
  %v1906 = vpack.c.b16 %v1826, %v1822
  %v1907 = vpack.c.b16 %v1827, %v1823
  %v1908 = vpack.c.b16 %v1832, %v1828
  %v1909 = vpack.c.b16 %v1833, %v1829
  %v1910 = vpack.c.b16 %v1834, %v1830
  %v1911 = vpack.c.b16 %v1835, %v1831
  %v1912 = vpack.c.b16 %v1840, %v1836
  %v1913 = vpack.c.b16 %v1841, %v1837
  %v1914 = vpack.c.b16 %v1842, %v1838
  %v1915 = vpack.c.b16 %v1843, %v1839
  %v1916 = vpack.c.b16 %v1848, %v1844
  %v1917 = vpack.c.b16 %v1849, %v1845
  %v1918 = vpack.c.b16 %v1850, %v1846
  %v1919 = vpack.c.b16 %v1851, %v1847
  %v1920 = vpack.c.b16 %v1856, %v1852
  %v1921 = vpack.c.b16 %v1857, %v1853
  %v1922 = vpack.c.b16 %v1858, %v1854
  %v1923 = vpack.c.b16 %v1859, %v1855
  %1988 = vmatprep.subr.bf16.mxu0 %v1889
  %1989 = vmatpush1.bf16.msra.mxu0 %v1888
  %1990 = vmatprep.subr.bf16.mxu0 %v1885
  %1991 = vmatpush1.bf16.msra.mxu0 %v1884
  %1992 = vmatprep.subr.bf16.mxu0 %v1881
  %1993 = vmatpush1.bf16.msra.mxu0 %v1880
  %1994 = vmatprep.subr.bf16.mxu0 %v1877
  %1995 = vmatpush1.bf16.msra.mxu0 %v1876
  %1996 = vmatprep.subr.bf16.mxu0 %v1873
  %1997 = vmatpush1.bf16.msra.mxu0 %v1872
  %1998 = vmatprep.subr.bf16.mxu0 %v1869
  %1999 = vmatpush1.bf16.msra.mxu0 %v1868
  %2000 = vmatprep.subr.bf16.mxu0 %v1865
  %2001 = vmatpush1.bf16.msra.mxu0 %v1864
  %2002 = vmatprep.subr.bf16.mxu0 %v1861
  %2003 = vmatpush1.bf16.msra.mxu0 %v1860
  %2004 = vmatprep.subr.bf16.mxu0 %v1921
  %2005 = vmatpush2.bf16.msra.mxu0 %v1920
  %2006 = vmatprep.subr.bf16.mxu0 %v1917
  %2007 = vmatpush2.bf16.msra.mxu0 %v1916
  %2008 = vmatprep.subr.bf16.mxu0 %v1913
  %2009 = vmatpush2.bf16.msra.mxu0 %v1912
  %2010 = vmatprep.subr.bf16.mxu0 %v1909
  %2011 = vmatpush2.bf16.msra.mxu0 %v1908
  %2012 = vmatprep.subr.bf16.mxu0 %v1905
  %2013 = vmatpush2.bf16.msra.mxu0 %v1904
  %2014 = vmatprep.subr.bf16.mxu0 %v1901
  %2015 = vmatpush2.bf16.msra.mxu0 %v1900
  %2016 = vmatprep.subr.bf16.mxu0 %v1897
  %2017 = vmatpush2.bf16.msra.mxu0 %v1896
  %2018 = vmatprep.subr.bf16.mxu0 %v1893
  %2019 = vmatpush2.bf16.msra.mxu0 %v1892
  %2020 = vmatprep.mubr.bf16.mxu0 %v1603
  %2021 = vmatmul.mubr.bf16.gmra.mxu0 %v1601
  %v2022 = vpop.f32.mrf.mxu0
  %v2023 = vadd.f32 %v467, %v2022
  %v2024 = vpop.f32.mrf.mxu0
  %v2025 = vadd.f32 %v471, %v2024
  %v2026 = vpop.f32.mrf.mxu0
  %v2027 = vpop.f32.mrf.mxu0
  %2028 = vdwg.mxu0
  %2029 = vmatprep.subr.bf16.mxu0 %v1891
  %2030 = vmatpush1.bf16.msra.mxu0 %v1890
  %2031 = vmatprep.subr.bf16.mxu0 %v1887
  %2032 = vmatpush1.bf16.msra.mxu0 %v1886
  %2033 = vmatprep.subr.bf16.mxu0 %v1883
  %2034 = vmatpush1.bf16.msra.mxu0 %v1882
  %2035 = vmatprep.subr.bf16.mxu0 %v1879
  %2036 = vmatpush1.bf16.msra.mxu0 %v1878
  %2037 = vmatprep.subr.bf16.mxu0 %v1875
  %2038 = vmatpush1.bf16.msra.mxu0 %v1874
  %2039 = vmatprep.subr.bf16.mxu0 %v1871
  %2040 = vmatpush1.bf16.msra.mxu0 %v1870
  %2041 = vmatprep.subr.bf16.mxu0 %v1867
  %2042 = vmatpush1.bf16.msra.mxu0 %v1866
  %2043 = vmatprep.subr.bf16.mxu0 %v1863
  %2044 = vmatpush1.bf16.msra.mxu0 %v1862
  %2045 = vmatprep.subr.bf16.mxu0 %v1923
  %2046 = vmatpush2.bf16.msra.mxu0 %v1922
  %2047 = vmatprep.subr.bf16.mxu0 %v1919
  %2048 = vmatpush2.bf16.msra.mxu0 %v1918
  %2049 = vmatprep.subr.bf16.mxu0 %v1915
  %2050 = vmatpush2.bf16.msra.mxu0 %v1914
  %2051 = vmatprep.subr.bf16.mxu0 %v1911
  %2052 = vmatpush2.bf16.msra.mxu0 %v1910
  %2053 = vmatprep.subr.bf16.mxu0 %v1907
  %2054 = vmatpush2.bf16.msra.mxu0 %v1906
  %2055 = vmatprep.subr.bf16.mxu0 %v1903
  %2056 = vmatpush2.bf16.msra.mxu0 %v1902
  %2057 = vmatprep.subr.bf16.mxu0 %v1899
  %2058 = vmatpush2.bf16.msra.mxu0 %v1898
  %2059 = vmatprep.subr.bf16.mxu0 %v1895
  %2060 = vmatpush2.bf16.msra.mxu0 %v1894
  %2061 = vmatprep.mubr.bf16.mxu0 %v1603
  %2062 = vmatmul.mubr.bf16.gmra.mxu0 %v1601
  %v2063 = vpop.f32.mrf.mxu0
  %v2064 = vadd.f32 %v475, %v2063
  %v2065 = vpop.f32.mrf.mxu0
  %v2066 = vadd.f32 %v479, %v2065
  %v2067 = vpop.f32.mrf.mxu0
  %v2068 = vpop.f32.mrf.mxu0
  %2069 = vdwg.mxu0
  %v2070 = vxor.u32 %v2023, 2147483648
  %v2071 = vmul.f32 %v2070, 1.442695
  %v2072 = vpow.pop %v2071
  %v2073 = vadd.f32 %v2072, 1.0
  %v2074 = vrcp.pop %v2073
  %v2075 = vmul.f32 1.0, %v2074
  %v2076 = vxor.u32 %v2025, 2147483648
  %v2077 = vmul.f32 %v2076, 1.442695
  %v2078 = vpow.pop %v2077
  %v2079 = vadd.f32 %v2078, 1.0
  %v2080 = vrcp.pop %v2079
  %v2081 = vmul.f32 1.0, %v2080
  %v2082 = vtanh.pop %v2064
  %v2083 = vxor.u32 %v2066, 2147483648
  %v2084 = vmul.f32 %v2083, 1.442695
  %v2085 = vpow.pop %v2084
  %v2086 = vadd.f32 %v2085, 1.0
  %v2087 = vrcp.pop %v2086
  %v2088 = vmul.f32 1.0, %v2087
  %v2089 = vld [vmem:[#allocation5] sm:$0xff]
  %v2090 = vmul.f32 %v2081, %v2089
  %v2091 = vmul.f32 %v2075, %v2082
  %v2092 = vadd.f32 %v2090, %v2091
  %v2093 = vtanh.pop %v2092
  %v2094 = vmul.f32 %v2088, %v2093
  %2095 = vst [vmem:[#allocation5] sm:$0xff] %v2092
  %v2096 = vpack.c.bf16 %v2094, %v2094
  %2097 = vst [vmem:[#allocation4] sm:$0xf] %v2096
  %s2098 = scalar_lea.vmem [#allocation7], 4
  %2099 = vst [vmem:[%s2098] sm:$0xf] %v2096
  %s2100 = scalar_lea.vmem [#allocation6], 64
  %v2101 = vld [vmem:[%s2100] sm:$0xff]
  %v2102 = vld [vmem:[%s2100 + $0x8] sm:$0xff]
  %v2103 = vld [vmem:[%s2100 + $0x10] sm:$0xff]
  %v2104 = vld [vmem:[%s2100 + $0x18] sm:$0xff]
  %v2105 = vld [vmem:[#allocation2] sm:$0xf]
  %v2106 = vld [vmem:[%s2] sm:$0xff]
  %v2107 = vld [vmem:[%s2 + $0x8] sm:$0xff]
  %v2108 = vld [vmem:[%s2 + $0x10] sm:$0xff]
  %v2109 = vld [vmem:[%s2 + $0x18] sm:$0xff]
  %v2110 = vld [vmem:[%s2 + $0x20] sm:$0xff]
  %v2111 = vld [vmem:[%s2 + $0x28] sm:$0xff]
  %v2112 = vld [vmem:[%s2 + $0x30] sm:$0xff]
  %v2113 = vld [vmem:[%s2 + $0x38] sm:$0xff]
  %v2114 = vld [vmem:[%s2 + $0x40] sm:$0xff]
  %v2115 = vld [vmem:[%s2 + $0x48] sm:$0xff]
  %v2116 = vld [vmem:[%s2 + $0x50] sm:$0xff]
  %v2117 = vld [vmem:[%s2 + $0x58] sm:$0xff]
  %v2118 = vld [vmem:[%s2 + $0x60] sm:$0xff]
  %v2119 = vld [vmem:[%s2 + $0x68] sm:$0xff]
  %v2120 = vld [vmem:[%s2 + $0x70] sm:$0xff]
  %v2121 = vld [vmem:[%s2 + $0x78] sm:$0xff]
  %v2122 = vld [vmem:[%s2 + $0x80] sm:$0xff]
  %v2123 = vld [vmem:[%s2 + $0x88] sm:$0xff]
  %v2124 = vld [vmem:[%s2 + $0x90] sm:$0xff]
  %v2125 = vld [vmem:[%s2 + $0x98] sm:$0xff]
  %v2126 = vld [vmem:[%s2 + $0xa0] sm:$0xff]
  %v2127 = vld [vmem:[%s2 + $0xa8] sm:$0xff]
  %v2128 = vld [vmem:[%s2 + $0xb0] sm:$0xff]
  %v2129 = vld [vmem:[%s2 + $0xb8] sm:$0xff]
  %v2130 = vld [vmem:[%s2 + $0xc0] sm:$0xff]
  %v2131 = vld [vmem:[%s2 + $0xc8] sm:$0xff]
  %v2132 = vld [vmem:[%s2 + $0xd0] sm:$0xff]
  %v2133 = vld [vmem:[%s2 + $0xd8] sm:$0xff]
  %v2134 = vld [vmem:[%s2 + $0xe0] sm:$0xff]
  %v2135 = vld [vmem:[%s2 + $0xe8] sm:$0xff]
  %v2136 = vld [vmem:[%s2 + $0xf0] sm:$0xff]
  %v2137 = vld [vmem:[%s2 + $0xf8] sm:$0xff]
  %v2170 = vunpack.c.l.b16 %v2106
  %v2171 = vunpack.c.h.b16 %v2106
  %v2172 = vunpack.c.l.b16 %v2107
  %v2173 = vunpack.c.h.b16 %v2107
  %v2174 = vunpack.c.l.b16 %v2108
  %v2175 = vunpack.c.h.b16 %v2108
  %v2176 = vunpack.c.l.b16 %v2109
  %v2177 = vunpack.c.h.b16 %v2109
  %v2178 = vunpack.c.l.b16 %v2110
  %v2179 = vunpack.c.h.b16 %v2110
  %v2180 = vunpack.c.l.b16 %v2111
  %v2181 = vunpack.c.h.b16 %v2111
  %v2182 = vunpack.c.l.b16 %v2112
  %v2183 = vunpack.c.h.b16 %v2112
  %v2184 = vunpack.c.l.b16 %v2113
  %v2185 = vunpack.c.h.b16 %v2113
  %v2186 = vunpack.c.l.b16 %v2114
  %v2187 = vunpack.c.h.b16 %v2114
  %v2188 = vunpack.c.l.b16 %v2115
  %v2189 = vunpack.c.h.b16 %v2115
  %v2190 = vunpack.c.l.b16 %v2116
  %v2191 = vunpack.c.h.b16 %v2116
  %v2192 = vunpack.c.l.b16 %v2117
  %v2193 = vunpack.c.h.b16 %v2117
  %v2194 = vunpack.c.l.b16 %v2118
  %v2195 = vunpack.c.h.b16 %v2118
  %v2196 = vunpack.c.l.b16 %v2119
  %v2197 = vunpack.c.h.b16 %v2119
  %v2198 = vunpack.c.l.b16 %v2120
  %v2199 = vunpack.c.h.b16 %v2120
  %v2200 = vunpack.c.l.b16 %v2121
  %v2201 = vunpack.c.h.b16 %v2121
  %v2202 = vunpack.c.l.b16 %v2122
  %v2203 = vunpack.c.h.b16 %v2122
  %v2204 = vunpack.c.l.b16 %v2123
  %v2205 = vunpack.c.h.b16 %v2123
  %v2206 = vunpack.c.l.b16 %v2124
  %v2207 = vunpack.c.h.b16 %v2124
  %v2208 = vunpack.c.l.b16 %v2125
  %v2209 = vunpack.c.h.b16 %v2125
  %v2210 = vunpack.c.l.b16 %v2126
  %v2211 = vunpack.c.h.b16 %v2126
  %v2212 = vunpack.c.l.b16 %v2127
  %v2213 = vunpack.c.h.b16 %v2127
  %v2214 = vunpack.c.l.b16 %v2128
  %v2215 = vunpack.c.h.b16 %v2128
  %v2216 = vunpack.c.l.b16 %v2129
  %v2217 = vunpack.c.h.b16 %v2129
  %v2218 = vunpack.c.l.b16 %v2130
  %v2219 = vunpack.c.h.b16 %v2130
  %v2220 = vunpack.c.l.b16 %v2131
  %v2221 = vunpack.c.h.b16 %v2131
  %v2222 = vunpack.c.l.b16 %v2132
  %v2223 = vunpack.c.h.b16 %v2132
  %v2224 = vunpack.c.l.b16 %v2133
  %v2225 = vunpack.c.h.b16 %v2133
  %v2226 = vunpack.c.l.b16 %v2134
  %v2227 = vunpack.c.h.b16 %v2134
  %v2228 = vunpack.c.l.b16 %v2135
  %v2229 = vunpack.c.h.b16 %v2135
  %v2230 = vunpack.c.l.b16 %v2136
  %v2231 = vunpack.c.h.b16 %v2136
  %v2232 = vunpack.c.l.b16 %v2137
  %v2233 = vunpack.c.h.b16 %v2137
  %v2234 = vpack.c.b16 %v2174, %v2170
  %v2235 = vpack.c.b16 %v2175, %v2171
  %v2236 = vpack.c.b16 %v2176, %v2172
  %v2237 = vpack.c.b16 %v2177, %v2173
  %v2238 = vpack.c.b16 %v2182, %v2178
  %v2239 = vpack.c.b16 %v2183, %v2179
  %v2240 = vpack.c.b16 %v2184, %v2180
  %v2241 = vpack.c.b16 %v2185, %v2181
  %v2242 = vpack.c.b16 %v2190, %v2186
  %v2243 = vpack.c.b16 %v2191, %v2187
  %v2244 = vpack.c.b16 %v2192, %v2188
  %v2245 = vpack.c.b16 %v2193, %v2189
  %v2246 = vpack.c.b16 %v2198, %v2194
  %v2247 = vpack.c.b16 %v2199, %v2195
  %v2248 = vpack.c.b16 %v2200, %v2196
  %v2249 = vpack.c.b16 %v2201, %v2197
  %v2250 = vpack.c.b16 %v2206, %v2202
  %v2251 = vpack.c.b16 %v2207, %v2203
  %v2252 = vpack.c.b16 %v2208, %v2204
  %v2253 = vpack.c.b16 %v2209, %v2205
  %v2254 = vpack.c.b16 %v2214, %v2210
  %v2255 = vpack.c.b16 %v2215, %v2211
  %v2256 = vpack.c.b16 %v2216, %v2212
  %v2257 = vpack.c.b16 %v2217, %v2213
  %v2258 = vpack.c.b16 %v2222, %v2218
  %v2259 = vpack.c.b16 %v2223, %v2219
  %v2260 = vpack.c.b16 %v2224, %v2220
  %v2261 = vpack.c.b16 %v2225, %v2221
  %v2262 = vpack.c.b16 %v2230, %v2226
  %v2263 = vpack.c.b16 %v2231, %v2227
  %v2264 = vpack.c.b16 %v2232, %v2228
  %v2265 = vpack.c.b16 %v2233, %v2229
  %2298 = vmatprep.subr.bf16.mxu0 %v2263
  %2299 = vmatpush1.bf16.msra.mxu0 %v2262
  %2300 = vmatprep.subr.bf16.mxu0 %v2259
  %2301 = vmatpush1.bf16.msra.mxu0 %v2258
  %2302 = vmatprep.subr.bf16.mxu0 %v2255
  %2303 = vmatpush1.bf16.msra.mxu0 %v2254
  %2304 = vmatprep.subr.bf16.mxu0 %v2251
  %2305 = vmatpush1.bf16.msra.mxu0 %v2250
  %2306 = vmatprep.subr.bf16.mxu0 %v2247
  %2307 = vmatpush1.bf16.msra.mxu0 %v2246
  %2308 = vmatprep.subr.bf16.mxu0 %v2243
  %2309 = vmatpush1.bf16.msra.mxu0 %v2242
  %2310 = vmatprep.subr.bf16.mxu0 %v2239
  %2311 = vmatpush1.bf16.msra.mxu0 %v2238
  %2312 = vmatprep.subr.bf16.mxu0 %v2235
  %2313 = vmatpush1.bf16.msra.mxu0 %v2234
  %2314 = vmatprep.subr.bf16.mxu0 0
  %2315 = vmatpush2.bf16.msra.mxu0 0
  %2316 = vmatprep.subr.bf16.mxu0 0
  %2317 = vmatpush2.bf16.msra.mxu0 0
  %2318 = vmatprep.subr.bf16.mxu0 0
  %2319 = vmatpush2.bf16.msra.mxu0 0
  %2320 = vmatprep.subr.bf16.mxu0 0
  %2321 = vmatpush2.bf16.msra.mxu0 0
  %2322 = vmatprep.subr.bf16.mxu0 0
  %2323 = vmatpush2.bf16.msra.mxu0 0
  %2324 = vmatprep.subr.bf16.mxu0 0
  %2325 = vmatpush2.bf16.msra.mxu0 0
  %2326 = vmatprep.subr.bf16.mxu0 0
  %2327 = vmatpush2.bf16.msra.mxu0 0
  %2328 = vmatprep.subr.bf16.mxu0 0
  %2329 = vmatpush2.bf16.msra.mxu0 0
  %2330 = vmatprep.mubr.bf16.mxu0 0
  %2331 = vmatmul.mubr.bf16.gmra.mxu0 %v2105
  %v2332 = vpop.f32.mrf.mxu0
  %v2333 = vadd.f32 0.0, %v2332
  %v2334 = vpop.f32.mrf.mxu0
  %v2335 = vadd.f32 0.0, %v2334
  %v2336 = vpop.f32.mrf.mxu0
  %v2337 = vpop.f32.mrf.mxu0
  %2338 = vdwg.mxu0
  %2339 = vmatprep.subr.bf16.mxu0 %v2265
  %2340 = vmatpush1.bf16.msra.mxu0 %v2264
  %2341 = vmatprep.subr.bf16.mxu0 %v2261
  %2342 = vmatpush1.bf16.msra.mxu0 %v2260
  %2343 = vmatprep.subr.bf16.mxu0 %v2257
  %2344 = vmatpush1.bf16.msra.mxu0 %v2256
  %2345 = vmatprep.subr.bf16.mxu0 %v2253
  %2346 = vmatpush1.bf16.msra.mxu0 %v2252
  %2347 = vmatprep.subr.bf16.mxu0 %v2249
  %2348 = vmatpush1.bf16.msra.mxu0 %v2248
  %2349 = vmatprep.subr.bf16.mxu0 %v2245
  %2350 = vmatpush1.bf16.msra.mxu0 %v2244
  %2351 = vmatprep.subr.bf16.mxu0 %v2241
  %2352 = vmatpush1.bf16.msra.mxu0 %v2240
  %2353 = vmatprep.subr.bf16.mxu0 %v2237
  %2354 = vmatpush1.bf16.msra.mxu0 %v2236
  %2355 = vmatprep.subr.bf16.mxu0 0
  %2356 = vmatpush2.bf16.msra.mxu0 0
  %2357 = vmatprep.subr.bf16.mxu0 0
  %2358 = vmatpush2.bf16.msra.mxu0 0
  %2359 = vmatprep.subr.bf16.mxu0 0
  %2360 = vmatpush2.bf16.msra.mxu0 0
  %2361 = vmatprep.subr.bf16.mxu0 0
  %2362 = vmatpush2.bf16.msra.mxu0 0
  %2363 = vmatprep.subr.bf16.mxu0 0
  %2364 = vmatpush2.bf16.msra.mxu0 0
  %2365 = vmatprep.subr.bf16.mxu0 0
  %2366 = vmatpush2.bf16.msra.mxu0 0
  %2367 = vmatprep.subr.bf16.mxu0 0
  %2368 = vmatpush2.bf16.msra.mxu0 0
  %2369 = vmatprep.subr.bf16.mxu0 0
  %2370 = vmatpush2.bf16.msra.mxu0 0
  %2371 = vmatprep.mubr.bf16.mxu0 0
  %2372 = vmatmul.mubr.bf16.gmra.mxu0 %v2105
  %v2373 = vpop.f32.mrf.mxu0
  %v2374 = vadd.f32 0.0, %v2373
  %v2375 = vpop.f32.mrf.mxu0
  %v2376 = vadd.f32 0.0, %v2375
  %v2377 = vpop.f32.mrf.mxu0
  %v2378 = vpop.f32.mrf.mxu0
  %2379 = vdwg.mxu0
  %v2380 = vadd.f32 %v2101, %v2333
  %v2381 = vadd.f32 %v2102, %v2335
  %v2382 = vadd.f32 %v2103, %v2374
  %v2383 = vadd.f32 %v2104, %v2376
  %v2384 = vxor.u32 %v2380, 2147483648
  %v2385 = vmul.f32 %v2384, 1.442695
  %v2386 = vpow.pop %v2385
  %v2387 = vadd.f32 %v2386, 1.0
  %v2388 = vrcp.pop %v2387
  %v2389 = vmul.f32 1.0, %v2388
  %v2390 = vxor.u32 %v2381, 2147483648
  %v2391 = vmul.f32 %v2390, 1.442695
  %v2392 = vpow.pop %v2391
  %v2393 = vadd.f32 %v2392, 1.0
  %v2394 = vrcp.pop %v2393
  %v2395 = vmul.f32 1.0, %v2394
  %v2396 = vtanh.pop %v2382
  %v2397 = vxor.u32 %v2383, 2147483648
  %v2398 = vmul.f32 %v2397, 1.442695
  %v2399 = vpow.pop %v2398
  %v2400 = vadd.f32 %v2399, 1.0
  %v2401 = vrcp.pop %v2400
  %v2402 = vmul.f32 1.0, %v2401
  %v2403 = vld [vmem:[#allocation3] sm:$0xff]
  %v2404 = vmul.f32 %v2395, %v2403
  %v2405 = vmul.f32 %v2389, %v2396
  %v2406 = vadd.f32 %v2404, %v2405
  %v2407 = vtanh.pop %v2406
  %v2408 = vmul.f32 %v2402, %v2407
  %2409 = vst [vmem:[#allocation3] sm:$0xff] %v2406
  %v2410 = vpack.c.bf16 %v2408, %v2408
  %2411 = vst [vmem:[#allocation2] sm:$0xf] %v2410
  %v2412 = vld [vmem:[#allocation4] sm:$0xf]
  %v2413 = vld [vmem:[%s4] sm:$0xff]
  %v2414 = vld [vmem:[%s4 + $0x8] sm:$0xff]
  %v2415 = vld [vmem:[%s4 + $0x10] sm:$0xff]
  %v2416 = vld [vmem:[%s4 + $0x18] sm:$0xff]
  %v2417 = vld [vmem:[%s4 + $0x20] sm:$0xff]
  %v2418 = vld [vmem:[%s4 + $0x28] sm:$0xff]
  %v2419 = vld [vmem:[%s4 + $0x30] sm:$0xff]
  %v2420 = vld [vmem:[%s4 + $0x38] sm:$0xff]
  %v2421 = vld [vmem:[%s4 + $0x40] sm:$0xff]
  %v2422 = vld [vmem:[%s4 + $0x48] sm:$0xff]
  %v2423 = vld [vmem:[%s4 + $0x50] sm:$0xff]
  %v2424 = vld [vmem:[%s4 + $0x58] sm:$0xff]
  %v2425 = vld [vmem:[%s4 + $0x60] sm:$0xff]
  %v2426 = vld [vmem:[%s4 + $0x68] sm:$0xff]
  %v2427 = vld [vmem:[%s4 + $0x70] sm:$0xff]
  %v2428 = vld [vmem:[%s4 + $0x78] sm:$0xff]
  %v2429 = vld [vmem:[%s4 + $0x80] sm:$0xff]
  %v2430 = vld [vmem:[%s4 + $0x88] sm:$0xff]
  %v2431 = vld [vmem:[%s4 + $0x90] sm:$0xff]
  %v2432 = vld [vmem:[%s4 + $0x98] sm:$0xff]
  %v2433 = vld [vmem:[%s4 + $0xa0] sm:$0xff]
  %v2434 = vld [vmem:[%s4 + $0xa8] sm:$0xff]
  %v2435 = vld [vmem:[%s4 + $0xb0] sm:$0xff]
  %v2436 = vld [vmem:[%s4 + $0xb8] sm:$0xff]
  %v2437 = vld [vmem:[%s4 + $0xc0] sm:$0xff]
  %v2438 = vld [vmem:[%s4 + $0xc8] sm:$0xff]
  %v2439 = vld [vmem:[%s4 + $0xd0] sm:$0xff]
  %v2440 = vld [vmem:[%s4 + $0xd8] sm:$0xff]
  %v2441 = vld [vmem:[%s4 + $0xe0] sm:$0xff]
  %v2442 = vld [vmem:[%s4 + $0xe8] sm:$0xff]
  %v2443 = vld [vmem:[%s4 + $0xf0] sm:$0xff]
  %v2444 = vld [vmem:[%s4 + $0xf8] sm:$0xff]
  %v2445 = vld [vmem:[%s4 + $0x100] sm:$0xff]
  %v2446 = vld [vmem:[%s4 + $0x108] sm:$0xff]
  %v2447 = vld [vmem:[%s4 + $0x110] sm:$0xff]
  %v2448 = vld [vmem:[%s4 + $0x118] sm:$0xff]
  %v2449 = vld [vmem:[%s4 + $0x120] sm:$0xff]
  %v2450 = vld [vmem:[%s4 + $0x128] sm:$0xff]
  %v2451 = vld [vmem:[%s4 + $0x130] sm:$0xff]
  %v2452 = vld [vmem:[%s4 + $0x138] sm:$0xff]
  %v2453 = vld [vmem:[%s4 + $0x140] sm:$0xff]
  %v2454 = vld [vmem:[%s4 + $0x148] sm:$0xff]
  %v2455 = vld [vmem:[%s4 + $0x150] sm:$0xff]
  %v2456 = vld [vmem:[%s4 + $0x158] sm:$0xff]
  %v2457 = vld [vmem:[%s4 + $0x160] sm:$0xff]
  %v2458 = vld [vmem:[%s4 + $0x168] sm:$0xff]
  %v2459 = vld [vmem:[%s4 + $0x170] sm:$0xff]
  %v2460 = vld [vmem:[%s4 + $0x178] sm:$0xff]
  %v2461 = vld [vmem:[%s4 + $0x180] sm:$0xff]
  %v2462 = vld [vmem:[%s4 + $0x188] sm:$0xff]
  %v2463 = vld [vmem:[%s4 + $0x190] sm:$0xff]
  %v2464 = vld [vmem:[%s4 + $0x198] sm:$0xff]
  %v2465 = vld [vmem:[%s4 + $0x1a0] sm:$0xff]
  %v2466 = vld [vmem:[%s4 + $0x1a8] sm:$0xff]
  %v2467 = vld [vmem:[%s4 + $0x1b0] sm:$0xff]
  %v2468 = vld [vmem:[%s4 + $0x1b8] sm:$0xff]
  %v2469 = vld [vmem:[%s4 + $0x1c0] sm:$0xff]
  %v2470 = vld [vmem:[%s4 + $0x1c8] sm:$0xff]
  %v2471 = vld [vmem:[%s4 + $0x1d0] sm:$0xff]
  %v2472 = vld [vmem:[%s4 + $0x1d8] sm:$0xff]
  %v2473 = vld [vmem:[%s4 + $0x1e0] sm:$0xff]
  %v2474 = vld [vmem:[%s4 + $0x1e8] sm:$0xff]
  %v2475 = vld [vmem:[%s4 + $0x1f0] sm:$0xff]
  %v2476 = vld [vmem:[%s4 + $0x1f8] sm:$0xff]
  %v2541 = vunpack.c.l.b16 %v2413
  %v2542 = vunpack.c.h.b16 %v2413
  %v2543 = vunpack.c.l.b16 %v2414
  %v2544 = vunpack.c.h.b16 %v2414
  %v2545 = vunpack.c.l.b16 %v2415
  %v2546 = vunpack.c.h.b16 %v2415
  %v2547 = vunpack.c.l.b16 %v2416
  %v2548 = vunpack.c.h.b16 %v2416
  %v2549 = vunpack.c.l.b16 %v2417
  %v2550 = vunpack.c.h.b16 %v2417
  %v2551 = vunpack.c.l.b16 %v2418
  %v2552 = vunpack.c.h.b16 %v2418
  %v2553 = vunpack.c.l.b16 %v2419
  %v2554 = vunpack.c.h.b16 %v2419
  %v2555 = vunpack.c.l.b16 %v2420
  %v2556 = vunpack.c.h.b16 %v2420
  %v2557 = vunpack.c.l.b16 %v2421
  %v2558 = vunpack.c.h.b16 %v2421
  %v2559 = vunpack.c.l.b16 %v2422
  %v2560 = vunpack.c.h.b16 %v2422
  %v2561 = vunpack.c.l.b16 %v2423
  %v2562 = vunpack.c.h.b16 %v2423
  %v2563 = vunpack.c.l.b16 %v2424
  %v2564 = vunpack.c.h.b16 %v2424
  %v2565 = vunpack.c.l.b16 %v2425
  %v2566 = vunpack.c.h.b16 %v2425
  %v2567 = vunpack.c.l.b16 %v2426
  %v2568 = vunpack.c.h.b16 %v2426
  %v2569 = vunpack.c.l.b16 %v2427
  %v2570 = vunpack.c.h.b16 %v2427
  %v2571 = vunpack.c.l.b16 %v2428
  %v2572 = vunpack.c.h.b16 %v2428
  %v2573 = vunpack.c.l.b16 %v2429
  %v2574 = vunpack.c.h.b16 %v2429
  %v2575 = vunpack.c.l.b16 %v2430
  %v2576 = vunpack.c.h.b16 %v2430
  %v2577 = vunpack.c.l.b16 %v2431
  %v2578 = vunpack.c.h.b16 %v2431
  %v2579 = vunpack.c.l.b16 %v2432
  %v2580 = vunpack.c.h.b16 %v2432
  %v2581 = vunpack.c.l.b16 %v2433
  %v2582 = vunpack.c.h.b16 %v2433
  %v2583 = vunpack.c.l.b16 %v2434
  %v2584 = vunpack.c.h.b16 %v2434
  %v2585 = vunpack.c.l.b16 %v2435
  %v2586 = vunpack.c.h.b16 %v2435
  %v2587 = vunpack.c.l.b16 %v2436
  %v2588 = vunpack.c.h.b16 %v2436
  %v2589 = vunpack.c.l.b16 %v2437
  %v2590 = vunpack.c.h.b16 %v2437
  %v2591 = vunpack.c.l.b16 %v2438
  %v2592 = vunpack.c.h.b16 %v2438
  %v2593 = vunpack.c.l.b16 %v2439
  %v2594 = vunpack.c.h.b16 %v2439
  %v2595 = vunpack.c.l.b16 %v2440
  %v2596 = vunpack.c.h.b16 %v2440
  %v2597 = vunpack.c.l.b16 %v2441
  %v2598 = vunpack.c.h.b16 %v2441
  %v2599 = vunpack.c.l.b16 %v2442
  %v2600 = vunpack.c.h.b16 %v2442
  %v2601 = vunpack.c.l.b16 %v2443
  %v2602 = vunpack.c.h.b16 %v2443
  %v2603 = vunpack.c.l.b16 %v2444
  %v2604 = vunpack.c.h.b16 %v2444
  %v2605 = vunpack.c.l.b16 %v2445
  %v2606 = vunpack.c.h.b16 %v2445
  %v2607 = vunpack.c.l.b16 %v2446
  %v2608 = vunpack.c.h.b16 %v2446
  %v2609 = vunpack.c.l.b16 %v2447
  %v2610 = vunpack.c.h.b16 %v2447
  %v2611 = vunpack.c.l.b16 %v2448
  %v2612 = vunpack.c.h.b16 %v2448
  %v2613 = vunpack.c.l.b16 %v2449
  %v2614 = vunpack.c.h.b16 %v2449
  %v2615 = vunpack.c.l.b16 %v2450
  %v2616 = vunpack.c.h.b16 %v2450
  %v2617 = vunpack.c.l.b16 %v2451
  %v2618 = vunpack.c.h.b16 %v2451
  %v2619 = vunpack.c.l.b16 %v2452
  %v2620 = vunpack.c.h.b16 %v2452
  %v2621 = vunpack.c.l.b16 %v2453
  %v2622 = vunpack.c.h.b16 %v2453
  %v2623 = vunpack.c.l.b16 %v2454
  %v2624 = vunpack.c.h.b16 %v2454
  %v2625 = vunpack.c.l.b16 %v2455
  %v2626 = vunpack.c.h.b16 %v2455
  %v2627 = vunpack.c.l.b16 %v2456
  %v2628 = vunpack.c.h.b16 %v2456
  %v2629 = vunpack.c.l.b16 %v2457
  %v2630 = vunpack.c.h.b16 %v2457
  %v2631 = vunpack.c.l.b16 %v2458
  %v2632 = vunpack.c.h.b16 %v2458
  %v2633 = vunpack.c.l.b16 %v2459
  %v2634 = vunpack.c.h.b16 %v2459
  %v2635 = vunpack.c.l.b16 %v2460
  %v2636 = vunpack.c.h.b16 %v2460
  %v2637 = vunpack.c.l.b16 %v2461
  %v2638 = vunpack.c.h.b16 %v2461
  %v2639 = vunpack.c.l.b16 %v2462
  %v2640 = vunpack.c.h.b16 %v2462
  %v2641 = vunpack.c.l.b16 %v2463
  %v2642 = vunpack.c.h.b16 %v2463
  %v2643 = vunpack.c.l.b16 %v2464
  %v2644 = vunpack.c.h.b16 %v2464
  %v2645 = vunpack.c.l.b16 %v2465
  %v2646 = vunpack.c.h.b16 %v2465
  %v2647 = vunpack.c.l.b16 %v2466
  %v2648 = vunpack.c.h.b16 %v2466
  %v2649 = vunpack.c.l.b16 %v2467
  %v2650 = vunpack.c.h.b16 %v2467
  %v2651 = vunpack.c.l.b16 %v2468
  %v2652 = vunpack.c.h.b16 %v2468
  %v2653 = vunpack.c.l.b16 %v2469
  %v2654 = vunpack.c.h.b16 %v2469
  %v2655 = vunpack.c.l.b16 %v2470
  %v2656 = vunpack.c.h.b16 %v2470
  %v2657 = vunpack.c.l.b16 %v2471
  %v2658 = vunpack.c.h.b16 %v2471
  %v2659 = vunpack.c.l.b16 %v2472
  %v2660 = vunpack.c.h.b16 %v2472
  %v2661 = vunpack.c.l.b16 %v2473
  %v2662 = vunpack.c.h.b16 %v2473
  %v2663 = vunpack.c.l.b16 %v2474
  %v2664 = vunpack.c.h.b16 %v2474
  %v2665 = vunpack.c.l.b16 %v2475
  %v2666 = vunpack.c.h.b16 %v2475
  %v2667 = vunpack.c.l.b16 %v2476
  %v2668 = vunpack.c.h.b16 %v2476
  %v2669 = vpack.c.b16 %v2545, %v2541
  %v2670 = vpack.c.b16 %v2546, %v2542
  %v2671 = vpack.c.b16 %v2547, %v2543
  %v2672 = vpack.c.b16 %v2548, %v2544
  %v2673 = vpack.c.b16 %v2553, %v2549
  %v2674 = vpack.c.b16 %v2554, %v2550
  %v2675 = vpack.c.b16 %v2555, %v2551
  %v2676 = vpack.c.b16 %v2556, %v2552
  %v2677 = vpack.c.b16 %v2561, %v2557
  %v2678 = vpack.c.b16 %v2562, %v2558
  %v2679 = vpack.c.b16 %v2563, %v2559
  %v2680 = vpack.c.b16 %v2564, %v2560
  %v2681 = vpack.c.b16 %v2569, %v2565
  %v2682 = vpack.c.b16 %v2570, %v2566
  %v2683 = vpack.c.b16 %v2571, %v2567
  %v2684 = vpack.c.b16 %v2572, %v2568
  %v2685 = vpack.c.b16 %v2577, %v2573
  %v2686 = vpack.c.b16 %v2578, %v2574
  %v2687 = vpack.c.b16 %v2579, %v2575
  %v2688 = vpack.c.b16 %v2580, %v2576
  %v2689 = vpack.c.b16 %v2585, %v2581
  %v2690 = vpack.c.b16 %v2586, %v2582
  %v2691 = vpack.c.b16 %v2587, %v2583
  %v2692 = vpack.c.b16 %v2588, %v2584
  %v2693 = vpack.c.b16 %v2593, %v2589
  %v2694 = vpack.c.b16 %v2594, %v2590
  %v2695 = vpack.c.b16 %v2595, %v2591
  %v2696 = vpack.c.b16 %v2596, %v2592
  %v2697 = vpack.c.b16 %v2601, %v2597
  %v2698 = vpack.c.b16 %v2602, %v2598
  %v2699 = vpack.c.b16 %v2603, %v2599
  %v2700 = vpack.c.b16 %v2604, %v2600
  %v2701 = vpack.c.b16 %v2609, %v2605
  %v2702 = vpack.c.b16 %v2610, %v2606
  %v2703 = vpack.c.b16 %v2611, %v2607
  %v2704 = vpack.c.b16 %v2612, %v2608
  %v2705 = vpack.c.b16 %v2617, %v2613
  %v2706 = vpack.c.b16 %v2618, %v2614
  %v2707 = vpack.c.b16 %v2619, %v2615
  %v2708 = vpack.c.b16 %v2620, %v2616
  %v2709 = vpack.c.b16 %v2625, %v2621
  %v2710 = vpack.c.b16 %v2626, %v2622
  %v2711 = vpack.c.b16 %v2627, %v2623
  %v2712 = vpack.c.b16 %v2628, %v2624
  %v2713 = vpack.c.b16 %v2633, %v2629
  %v2714 = vpack.c.b16 %v2634, %v2630
  %v2715 = vpack.c.b16 %v2635, %v2631
  %v2716 = vpack.c.b16 %v2636, %v2632
  %v2717 = vpack.c.b16 %v2641, %v2637
  %v2718 = vpack.c.b16 %v2642, %v2638
  %v2719 = vpack.c.b16 %v2643, %v2639
  %v2720 = vpack.c.b16 %v2644, %v2640
  %v2721 = vpack.c.b16 %v2649, %v2645
  %v2722 = vpack.c.b16 %v2650, %v2646
  %v2723 = vpack.c.b16 %v2651, %v2647
  %v2724 = vpack.c.b16 %v2652, %v2648
  %v2725 = vpack.c.b16 %v2657, %v2653
  %v2726 = vpack.c.b16 %v2658, %v2654
  %v2727 = vpack.c.b16 %v2659, %v2655
  %v2728 = vpack.c.b16 %v2660, %v2656
  %v2729 = vpack.c.b16 %v2665, %v2661
  %v2730 = vpack.c.b16 %v2666, %v2662
  %v2731 = vpack.c.b16 %v2667, %v2663
  %v2732 = vpack.c.b16 %v2668, %v2664
  %2797 = vmatprep.subr.bf16.mxu0 %v2698
  %2798 = vmatpush1.bf16.msra.mxu0 %v2697
  %2799 = vmatprep.subr.bf16.mxu0 %v2694
  %2800 = vmatpush1.bf16.msra.mxu0 %v2693
  %2801 = vmatprep.subr.bf16.mxu0 %v2690
  %2802 = vmatpush1.bf16.msra.mxu0 %v2689
  %2803 = vmatprep.subr.bf16.mxu0 %v2686
  %2804 = vmatpush1.bf16.msra.mxu0 %v2685
  %2805 = vmatprep.subr.bf16.mxu0 %v2682
  %2806 = vmatpush1.bf16.msra.mxu0 %v2681
  %2807 = vmatprep.subr.bf16.mxu0 %v2678
  %2808 = vmatpush1.bf16.msra.mxu0 %v2677
  %2809 = vmatprep.subr.bf16.mxu0 %v2674
  %2810 = vmatpush1.bf16.msra.mxu0 %v2673
  %2811 = vmatprep.subr.bf16.mxu0 %v2670
  %2812 = vmatpush1.bf16.msra.mxu0 %v2669
  %2813 = vmatprep.subr.bf16.mxu0 %v2730
  %2814 = vmatpush2.bf16.msra.mxu0 %v2729
  %2815 = vmatprep.subr.bf16.mxu0 %v2726
  %2816 = vmatpush2.bf16.msra.mxu0 %v2725
  %2817 = vmatprep.subr.bf16.mxu0 %v2722
  %2818 = vmatpush2.bf16.msra.mxu0 %v2721
  %2819 = vmatprep.subr.bf16.mxu0 %v2718
  %2820 = vmatpush2.bf16.msra.mxu0 %v2717
  %2821 = vmatprep.subr.bf16.mxu0 %v2714
  %2822 = vmatpush2.bf16.msra.mxu0 %v2713
  %2823 = vmatprep.subr.bf16.mxu0 %v2710
  %2824 = vmatpush2.bf16.msra.mxu0 %v2709
  %2825 = vmatprep.subr.bf16.mxu0 %v2706
  %2826 = vmatpush2.bf16.msra.mxu0 %v2705
  %2827 = vmatprep.subr.bf16.mxu0 %v2702
  %2828 = vmatpush2.bf16.msra.mxu0 %v2701
  %2829 = vmatprep.mubr.bf16.mxu0 %v2412
  %2830 = vmatmul.mubr.bf16.gmra.mxu0 %v2410
  %v2831 = vpop.f32.mrf.mxu0
  %v2832 = vadd.f32 %v467, %v2831
  %v2833 = vpop.f32.mrf.mxu0
  %v2834 = vadd.f32 %v471, %v2833
  %v2835 = vpop.f32.mrf.mxu0
  %v2836 = vpop.f32.mrf.mxu0
  %2837 = vdwg.mxu0
  %2838 = vmatprep.subr.bf16.mxu0 %v2700
  %2839 = vmatpush1.bf16.msra.mxu0 %v2699
  %2840 = vmatprep.subr.bf16.mxu0 %v2696
  %2841 = vmatpush1.bf16.msra.mxu0 %v2695
  %2842 = vmatprep.subr.bf16.mxu0 %v2692
  %2843 = vmatpush1.bf16.msra.mxu0 %v2691
  %2844 = vmatprep.subr.bf16.mxu0 %v2688
  %2845 = vmatpush1.bf16.msra.mxu0 %v2687
  %2846 = vmatprep.subr.bf16.mxu0 %v2684
  %2847 = vmatpush1.bf16.msra.mxu0 %v2683
  %2848 = vmatprep.subr.bf16.mxu0 %v2680
  %2849 = vmatpush1.bf16.msra.mxu0 %v2679
  %2850 = vmatprep.subr.bf16.mxu0 %v2676
  %2851 = vmatpush1.bf16.msra.mxu0 %v2675
  %2852 = vmatprep.subr.bf16.mxu0 %v2672
  %2853 = vmatpush1.bf16.msra.mxu0 %v2671
  %2854 = vmatprep.subr.bf16.mxu0 %v2732
  %2855 = vmatpush2.bf16.msra.mxu0 %v2731
  %2856 = vmatprep.subr.bf16.mxu0 %v2728
  %2857 = vmatpush2.bf16.msra.mxu0 %v2727
  %2858 = vmatprep.subr.bf16.mxu0 %v2724
  %2859 = vmatpush2.bf16.msra.mxu0 %v2723
  %2860 = vmatprep.subr.bf16.mxu0 %v2720
  %2861 = vmatpush2.bf16.msra.mxu0 %v2719
  %2862 = vmatprep.subr.bf16.mxu0 %v2716
  %2863 = vmatpush2.bf16.msra.mxu0 %v2715
  %2864 = vmatprep.subr.bf16.mxu0 %v2712
  %2865 = vmatpush2.bf16.msra.mxu0 %v2711
  %2866 = vmatprep.subr.bf16.mxu0 %v2708
  %2867 = vmatpush2.bf16.msra.mxu0 %v2707
  %2868 = vmatprep.subr.bf16.mxu0 %v2704
  %2869 = vmatpush2.bf16.msra.mxu0 %v2703
  %2870 = vmatprep.mubr.bf16.mxu0 %v2412
  %2871 = vmatmul.mubr.bf16.gmra.mxu0 %v2410
  %v2872 = vpop.f32.mrf.mxu0
  %v2873 = vadd.f32 %v475, %v2872
  %v2874 = vpop.f32.mrf.mxu0
  %v2875 = vadd.f32 %v479, %v2874
  %v2876 = vpop.f32.mrf.mxu0
  %v2877 = vpop.f32.mrf.mxu0
  %2878 = vdwg.mxu0
  %v2879 = vxor.u32 %v2832, 2147483648
  %v2880 = vmul.f32 %v2879, 1.442695
  %v2881 = vpow.pop %v2880
  %v2882 = vadd.f32 %v2881, 1.0
  %v2883 = vrcp.pop %v2882
  %v2884 = vmul.f32 1.0, %v2883
  %v2885 = vxor.u32 %v2834, 2147483648
  %v2886 = vmul.f32 %v2885, 1.442695
  %v2887 = vpow.pop %v2886
  %v2888 = vadd.f32 %v2887, 1.0
  %v2889 = vrcp.pop %v2888
  %v2890 = vmul.f32 1.0, %v2889
  %v2891 = vtanh.pop %v2873
  %v2892 = vxor.u32 %v2875, 2147483648
  %v2893 = vmul.f32 %v2892, 1.442695
  %v2894 = vpow.pop %v2893
  %v2895 = vadd.f32 %v2894, 1.0
  %v2896 = vrcp.pop %v2895
  %v2897 = vmul.f32 1.0, %v2896
  %v2898 = vld [vmem:[#allocation5] sm:$0xff]
  %v2899 = vmul.f32 %v2890, %v2898
  %v2900 = vmul.f32 %v2884, %v2891
  %v2901 = vadd.f32 %v2899, %v2900
  %v2902 = vtanh.pop %v2901
  %v2903 = vmul.f32 %v2897, %v2902
  %2904 = vst [vmem:[#allocation5] sm:$0xff] %v2901
  %v2905 = vpack.c.bf16 %v2903, %v2903
  %2906 = vst [vmem:[#allocation4] sm:$0xf] %v2905
  %s2907 = scalar_lea.vmem [#allocation7], 8
  %2908 = vst [vmem:[%s2907] sm:$0xf] %v2905
  %s2909 = scalar_lea.vmem [#allocation6], 96
  %v2910 = vld [vmem:[%s2909] sm:$0xff]
  %v2911 = vld [vmem:[%s2909 + $0x8] sm:$0xff]
  %v2912 = vld [vmem:[%s2909 + $0x10] sm:$0xff]
  %v2913 = vld [vmem:[%s2909 + $0x18] sm:$0xff]
  %v2914 = vld [vmem:[#allocation2] sm:$0xf]
  %v2915 = vld [vmem:[%s2] sm:$0xff]
  %v2916 = vld [vmem:[%s2 + $0x8] sm:$0xff]
  %v2917 = vld [vmem:[%s2 + $0x10] sm:$0xff]
  %v2918 = vld [vmem:[%s2 + $0x18] sm:$0xff]
  %v2919 = vld [vmem:[%s2 + $0x20] sm:$0xff]
  %v2920 = vld [vmem:[%s2 + $0x28] sm:$0xff]
  %v2921 = vld [vmem:[%s2 + $0x30] sm:$0xff]
  %v2922 = vld [vmem:[%s2 + $0x38] sm:$0xff]
  %v2923 = vld [vmem:[%s2 + $0x40] sm:$0xff]
  %v2924 = vld [vmem:[%s2 + $0x48] sm:$0xff]
  %v2925 = vld [vmem:[%s2 + $0x50] sm:$0xff]
  %v2926 = vld [vmem:[%s2 + $0x58] sm:$0xff]
  %v2927 = vld [vmem:[%s2 + $0x60] sm:$0xff]
  %v2928 = vld [vmem:[%s2 + $0x68] sm:$0xff]
  %v2929 = vld [vmem:[%s2 + $0x70] sm:$0xff]
  %v2930 = vld [vmem:[%s2 + $0x78] sm:$0xff]
  %v2931 = vld [vmem:[%s2 + $0x80] sm:$0xff]
  %v2932 = vld [vmem:[%s2 + $0x88] sm:$0xff]
  %v2933 = vld [vmem:[%s2 + $0x90] sm:$0xff]
  %v2934 = vld [vmem:[%s2 + $0x98] sm:$0xff]
  %v2935 = vld [vmem:[%s2 + $0xa0] sm:$0xff]
  %v2936 = vld [vmem:[%s2 + $0xa8] sm:$0xff]
  %v2937 = vld [vmem:[%s2 + $0xb0] sm:$0xff]
  %v2938 = vld [vmem:[%s2 + $0xb8] sm:$0xff]
  %v2939 = vld [vmem:[%s2 + $0xc0] sm:$0xff]
  %v2940 = vld [vmem:[%s2 + $0xc8] sm:$0xff]
  %v2941 = vld [vmem:[%s2 + $0xd0] sm:$0xff]
  %v2942 = vld [vmem:[%s2 + $0xd8] sm:$0xff]
  %v2943 = vld [vmem:[%s2 + $0xe0] sm:$0xff]
  %v2944 = vld [vmem:[%s2 + $0xe8] sm:$0xff]
  %v2945 = vld [vmem:[%s2 + $0xf0] sm:$0xff]
  %v2946 = vld [vmem:[%s2 + $0xf8] sm:$0xff]
  %v2979 = vunpack.c.l.b16 %v2915
  %v2980 = vunpack.c.h.b16 %v2915
  %v2981 = vunpack.c.l.b16 %v2916
  %v2982 = vunpack.c.h.b16 %v2916
  %v2983 = vunpack.c.l.b16 %v2917
  %v2984 = vunpack.c.h.b16 %v2917
  %v2985 = vunpack.c.l.b16 %v2918
  %v2986 = vunpack.c.h.b16 %v2918
  %v2987 = vunpack.c.l.b16 %v2919
  %v2988 = vunpack.c.h.b16 %v2919
  %v2989 = vunpack.c.l.b16 %v2920
  %v2990 = vunpack.c.h.b16 %v2920
  %v2991 = vunpack.c.l.b16 %v2921
  %v2992 = vunpack.c.h.b16 %v2921
  %v2993 = vunpack.c.l.b16 %v2922
  %v2994 = vunpack.c.h.b16 %v2922
  %v2995 = vunpack.c.l.b16 %v2923
  %v2996 = vunpack.c.h.b16 %v2923
  %v2997 = vunpack.c.l.b16 %v2924
  %v2998 = vunpack.c.h.b16 %v2924
  %v2999 = vunpack.c.l.b16 %v2925
  %v3000 = vunpack.c.h.b16 %v2925
  %v3001 = vunpack.c.l.b16 %v2926
  %v3002 = vunpack.c.h.b16 %v2926
  %v3003 = vunpack.c.l.b16 %v2927
  %v3004 = vunpack.c.h.b16 %v2927
  %v3005 = vunpack.c.l.b16 %v2928
  %v3006 = vunpack.c.h.b16 %v2928
  %v3007 = vunpack.c.l.b16 %v2929
  %v3008 = vunpack.c.h.b16 %v2929
  %v3009 = vunpack.c.l.b16 %v2930
  %v3010 = vunpack.c.h.b16 %v2930
  %v3011 = vunpack.c.l.b16 %v2931
  %v3012 = vunpack.c.h.b16 %v2931
  %v3013 = vunpack.c.l.b16 %v2932
  %v3014 = vunpack.c.h.b16 %v2932
  %v3015 = vunpack.c.l.b16 %v2933
  %v3016 = vunpack.c.h.b16 %v2933
  %v3017 = vunpack.c.l.b16 %v2934
  %v3018 = vunpack.c.h.b16 %v2934
  %v3019 = vunpack.c.l.b16 %v2935
  %v3020 = vunpack.c.h.b16 %v2935
  %v3021 = vunpack.c.l.b16 %v2936
  %v3022 = vunpack.c.h.b16 %v2936
  %v3023 = vunpack.c.l.b16 %v2937
  %v3024 = vunpack.c.h.b16 %v2937
  %v3025 = vunpack.c.l.b16 %v2938
  %v3026 = vunpack.c.h.b16 %v2938
  %v3027 = vunpack.c.l.b16 %v2939
  %v3028 = vunpack.c.h.b16 %v2939
  %v3029 = vunpack.c.l.b16 %v2940
  %v3030 = vunpack.c.h.b16 %v2940
  %v3031 = vunpack.c.l.b16 %v2941
  %v3032 = vunpack.c.h.b16 %v2941
  %v3033 = vunpack.c.l.b16 %v2942
  %v3034 = vunpack.c.h.b16 %v2942
  %v3035 = vunpack.c.l.b16 %v2943
  %v3036 = vunpack.c.h.b16 %v2943
  %v3037 = vunpack.c.l.b16 %v2944
  %v3038 = vunpack.c.h.b16 %v2944
  %v3039 = vunpack.c.l.b16 %v2945
  %v3040 = vunpack.c.h.b16 %v2945
  %v3041 = vunpack.c.l.b16 %v2946
  %v3042 = vunpack.c.h.b16 %v2946
  %v3043 = vpack.c.b16 %v2983, %v2979
  %v3044 = vpack.c.b16 %v2984, %v2980
  %v3045 = vpack.c.b16 %v2985, %v2981
  %v3046 = vpack.c.b16 %v2986, %v2982
  %v3047 = vpack.c.b16 %v2991, %v2987
  %v3048 = vpack.c.b16 %v2992, %v2988
  %v3049 = vpack.c.b16 %v2993, %v2989
  %v3050 = vpack.c.b16 %v2994, %v2990
  %v3051 = vpack.c.b16 %v2999, %v2995
  %v3052 = vpack.c.b16 %v3000, %v2996
  %v3053 = vpack.c.b16 %v3001, %v2997
  %v3054 = vpack.c.b16 %v3002, %v2998
  %v3055 = vpack.c.b16 %v3007, %v3003
  %v3056 = vpack.c.b16 %v3008, %v3004
  %v3057 = vpack.c.b16 %v3009, %v3005
  %v3058 = vpack.c.b16 %v3010, %v3006
  %v3059 = vpack.c.b16 %v3015, %v3011
  %v3060 = vpack.c.b16 %v3016, %v3012
  %v3061 = vpack.c.b16 %v3017, %v3013
  %v3062 = vpack.c.b16 %v3018, %v3014
  %v3063 = vpack.c.b16 %v3023, %v3019
  %v3064 = vpack.c.b16 %v3024, %v3020
  %v3065 = vpack.c.b16 %v3025, %v3021
  %v3066 = vpack.c.b16 %v3026, %v3022
  %v3067 = vpack.c.b16 %v3031, %v3027
  %v3068 = vpack.c.b16 %v3032, %v3028
  %v3069 = vpack.c.b16 %v3033, %v3029
  %v3070 = vpack.c.b16 %v3034, %v3030
  %v3071 = vpack.c.b16 %v3039, %v3035
  %v3072 = vpack.c.b16 %v3040, %v3036
  %v3073 = vpack.c.b16 %v3041, %v3037
  %v3074 = vpack.c.b16 %v3042, %v3038
  %3107 = vmatprep.subr.bf16.mxu0 %v3072
  %3108 = vmatpush1.bf16.msra.mxu0 %v3071
  %3109 = vmatprep.subr.bf16.mxu0 %v3068
  %3110 = vmatpush1.bf16.msra.mxu0 %v3067
  %3111 = vmatprep.subr.bf16.mxu0 %v3064
  %3112 = vmatpush1.bf16.msra.mxu0 %v3063
  %3113 = vmatprep.subr.bf16.mxu0 %v3060
  %3114 = vmatpush1.bf16.msra.mxu0 %v3059
  %3115 = vmatprep.subr.bf16.mxu0 %v3056
  %3116 = vmatpush1.bf16.msra.mxu0 %v3055
  %3117 = vmatprep.subr.bf16.mxu0 %v3052
  %3118 = vmatpush1.bf16.msra.mxu0 %v3051
  %3119 = vmatprep.subr.bf16.mxu0 %v3048
  %3120 = vmatpush1.bf16.msra.mxu0 %v3047
  %3121 = vmatprep.subr.bf16.mxu0 %v3044
  %3122 = vmatpush1.bf16.msra.mxu0 %v3043
  %3123 = vmatprep.subr.bf16.mxu0 0
  %3124 = vmatpush2.bf16.msra.mxu0 0
  %3125 = vmatprep.subr.bf16.mxu0 0
  %3126 = vmatpush2.bf16.msra.mxu0 0
  %3127 = vmatprep.subr.bf16.mxu0 0
  %3128 = vmatpush2.bf16.msra.mxu0 0
  %3129 = vmatprep.subr.bf16.mxu0 0
  %3130 = vmatpush2.bf16.msra.mxu0 0
  %3131 = vmatprep.subr.bf16.mxu0 0
  %3132 = vmatpush2.bf16.msra.mxu0 0
  %3133 = vmatprep.subr.bf16.mxu0 0
  %3134 = vmatpush2.bf16.msra.mxu0 0
  %3135 = vmatprep.subr.bf16.mxu0 0
  %3136 = vmatpush2.bf16.msra.mxu0 0
  %3137 = vmatprep.subr.bf16.mxu0 0
  %3138 = vmatpush2.bf16.msra.mxu0 0
  %3139 = vmatprep.mubr.bf16.mxu0 0
  %3140 = vmatmul.mubr.bf16.gmra.mxu0 %v2914
  %v3141 = vpop.f32.mrf.mxu0
  %v3142 = vadd.f32 0.0, %v3141
  %v3143 = vpop.f32.mrf.mxu0
  %v3144 = vadd.f32 0.0, %v3143
  %v3145 = vpop.f32.mrf.mxu0
  %v3146 = vpop.f32.mrf.mxu0
  %3147 = vdwg.mxu0
  %3148 = vmatprep.subr.bf16.mxu0 %v3074
  %3149 = vmatpush1.bf16.msra.mxu0 %v3073
  %3150 = vmatprep.subr.bf16.mxu0 %v3070
  %3151 = vmatpush1.bf16.msra.mxu0 %v3069
  %3152 = vmatprep.subr.bf16.mxu0 %v3066
  %3153 = vmatpush1.bf16.msra.mxu0 %v3065
  %3154 = vmatprep.subr.bf16.mxu0 %v3062
  %3155 = vmatpush1.bf16.msra.mxu0 %v3061
  %3156 = vmatprep.subr.bf16.mxu0 %v3058
  %3157 = vmatpush1.bf16.msra.mxu0 %v3057
  %3158 = vmatprep.subr.bf16.mxu0 %v3054
  %3159 = vmatpush1.bf16.msra.mxu0 %v3053
  %3160 = vmatprep.subr.bf16.mxu0 %v3050
  %3161 = vmatpush1.bf16.msra.mxu0 %v3049
  %3162 = vmatprep.subr.bf16.mxu0 %v3046
  %3163 = vmatpush1.bf16.msra.mxu0 %v3045
  %3164 = vmatprep.subr.bf16.mxu0 0
  %3165 = vmatpush2.bf16.msra.mxu0 0
  %3166 = vmatprep.subr.bf16.mxu0 0
  %3167 = vmatpush2.bf16.msra.mxu0 0
  %3168 = vmatprep.subr.bf16.mxu0 0
  %3169 = vmatpush2.bf16.msra.mxu0 0
  %3170 = vmatprep.subr.bf16.mxu0 0
  %3171 = vmatpush2.bf16.msra.mxu0 0
  %3172 = vmatprep.subr.bf16.mxu0 0
  %3173 = vmatpush2.bf16.msra.mxu0 0
  %3174 = vmatprep.subr.bf16.mxu0 0
  %3175 = vmatpush2.bf16.msra.mxu0 0
  %3176 = vmatprep.subr.bf16.mxu0 0
  %3177 = vmatpush2.bf16.msra.mxu0 0
  %3178 = vmatprep.subr.bf16.mxu0 0
  %3179 = vmatpush2.bf16.msra.mxu0 0
  %3180 = vmatprep.mubr.bf16.mxu0 0
  %3181 = vmatmul.mubr.bf16.gmra.mxu0 %v2914
  %v3182 = vpop.f32.mrf.mxu0
  %v3183 = vadd.f32 0.0, %v3182
  %v3184 = vpop.f32.mrf.mxu0
  %v3185 = vadd.f32 0.0, %v3184
  %v3186 = vpop.f32.mrf.mxu0
  %v3187 = vpop.f32.mrf.mxu0
  %3188 = vdwg.mxu0
  %v3189 = vadd.f32 %v2910, %v3142
  %v3190 = vadd.f32 %v2911, %v3144
  %v3191 = vadd.f32 %v2912, %v3183
  %v3192 = vadd.f32 %v2913, %v3185
  %v3193 = vxor.u32 %v3189, 2147483648
  %v3194 = vmul.f32 %v3193, 1.442695
  %v3195 = vpow.pop %v3194
  %v3196 = vadd.f32 %v3195, 1.0
  %v3197 = vrcp.pop %v3196
  %v3198 = vmul.f32 1.0, %v3197
  %v3199 = vxor.u32 %v3190, 2147483648
  %v3200 = vmul.f32 %v3199, 1.442695
  %v3201 = vpow.pop %v3200
  %v3202 = vadd.f32 %v3201, 1.0
  %v3203 = vrcp.pop %v3202
  %v3204 = vmul.f32 1.0, %v3203
  %v3205 = vtanh.pop %v3191
  %v3206 = vxor.u32 %v3192, 2147483648
  %v3207 = vmul.f32 %v3206, 1.442695
  %v3208 = vpow.pop %v3207
  %v3209 = vadd.f32 %v3208, 1.0
  %v3210 = vrcp.pop %v3209
  %v3211 = vmul.f32 1.0, %v3210
  %v3212 = vld [vmem:[#allocation3] sm:$0xff]
  %v3213 = vmul.f32 %v3204, %v3212
  %v3214 = vmul.f32 %v3198, %v3205
  %v3215 = vadd.f32 %v3213, %v3214
  %v3216 = vtanh.pop %v3215
  %v3217 = vmul.f32 %v3211, %v3216
  %3218 = vst [vmem:[#allocation3] sm:$0xff] %v3215
  %v3219 = vpack.c.bf16 %v3217, %v3217
  %3220 = vst [vmem:[#allocation2] sm:$0xf] %v3219
  %v3221 = vld [vmem:[#allocation4] sm:$0xf]
  %v3222 = vld [vmem:[%s4] sm:$0xff]
  %v3223 = vld [vmem:[%s4 + $0x8] sm:$0xff]
  %v3224 = vld [vmem:[%s4 + $0x10] sm:$0xff]
  %v3225 = vld [vmem:[%s4 + $0x18] sm:$0xff]
  %v3226 = vld [vmem:[%s4 + $0x20] sm:$0xff]
  %v3227 = vld [vmem:[%s4 + $0x28] sm:$0xff]
  %v3228 = vld [vmem:[%s4 + $0x30] sm:$0xff]
  %v3229 = vld [vmem:[%s4 + $0x38] sm:$0xff]
  %v3230 = vld [vmem:[%s4 + $0x40] sm:$0xff]
  %v3231 = vld [vmem:[%s4 + $0x48] sm:$0xff]
  %v3232 = vld [vmem:[%s4 + $0x50] sm:$0xff]
  %v3233 = vld [vmem:[%s4 + $0x58] sm:$0xff]
  %v3234 = vld [vmem:[%s4 + $0x60] sm:$0xff]
  %v3235 = vld [vmem:[%s4 + $0x68] sm:$0xff]
  %v3236 = vld [vmem:[%s4 + $0x70] sm:$0xff]
  %v3237 = vld [vmem:[%s4 + $0x78] sm:$0xff]
  %v3238 = vld [vmem:[%s4 + $0x80] sm:$0xff]
  %v3239 = vld [vmem:[%s4 + $0x88] sm:$0xff]
  %v3240 = vld [vmem:[%s4 + $0x90] sm:$0xff]
  %v3241 = vld [vmem:[%s4 + $0x98] sm:$0xff]
  %v3242 = vld [vmem:[%s4 + $0xa0] sm:$0xff]
  %v3243 = vld [vmem:[%s4 + $0xa8] sm:$0xff]
  %v3244 = vld [vmem:[%s4 + $0xb0] sm:$0xff]
  %v3245 = vld [vmem:[%s4 + $0xb8] sm:$0xff]
  %v3246 = vld [vmem:[%s4 + $0xc0] sm:$0xff]
  %v3247 = vld [vmem:[%s4 + $0xc8] sm:$0xff]
  %v3248 = vld [vmem:[%s4 + $0xd0] sm:$0xff]
  %v3249 = vld [vmem:[%s4 + $0xd8] sm:$0xff]
  %v3250 = vld [vmem:[%s4 + $0xe0] sm:$0xff]
  %v3251 = vld [vmem:[%s4 + $0xe8] sm:$0xff]
  %v3252 = vld [vmem:[%s4 + $0xf0] sm:$0xff]
  %v3253 = vld [vmem:[%s4 + $0xf8] sm:$0xff]
  %v3254 = vld [vmem:[%s4 + $0x100] sm:$0xff]
  %v3255 = vld [vmem:[%s4 + $0x108] sm:$0xff]
  %v3256 = vld [vmem:[%s4 + $0x110] sm:$0xff]
  %v3257 = vld [vmem:[%s4 + $0x118] sm:$0xff]
  %v3258 = vld [vmem:[%s4 + $0x120] sm:$0xff]
  %v3259 = vld [vmem:[%s4 + $0x128] sm:$0xff]
  %v3260 = vld [vmem:[%s4 + $0x130] sm:$0xff]
  %v3261 = vld [vmem:[%s4 + $0x138] sm:$0xff]
  %v3262 = vld [vmem:[%s4 + $0x140] sm:$0xff]
  %v3263 = vld [vmem:[%s4 + $0x148] sm:$0xff]
  %v3264 = vld [vmem:[%s4 + $0x150] sm:$0xff]
  %v3265 = vld [vmem:[%s4 + $0x158] sm:$0xff]
  %v3266 = vld [vmem:[%s4 + $0x160] sm:$0xff]
  %v3267 = vld [vmem:[%s4 + $0x168] sm:$0xff]
  %v3268 = vld [vmem:[%s4 + $0x170] sm:$0xff]
  %v3269 = vld [vmem:[%s4 + $0x178] sm:$0xff]
  %v3270 = vld [vmem:[%s4 + $0x180] sm:$0xff]
  %v3271 = vld [vmem:[%s4 + $0x188] sm:$0xff]
  %v3272 = vld [vmem:[%s4 + $0x190] sm:$0xff]
  %v3273 = vld [vmem:[%s4 + $0x198] sm:$0xff]
  %v3274 = vld [vmem:[%s4 + $0x1a0] sm:$0xff]
  %v3275 = vld [vmem:[%s4 + $0x1a8] sm:$0xff]
  %v3276 = vld [vmem:[%s4 + $0x1b0] sm:$0xff]
  %v3277 = vld [vmem:[%s4 + $0x1b8] sm:$0xff]
  %v3278 = vld [vmem:[%s4 + $0x1c0] sm:$0xff]
  %v3279 = vld [vmem:[%s4 + $0x1c8] sm:$0xff]
  %v3280 = vld [vmem:[%s4 + $0x1d0] sm:$0xff]
  %v3281 = vld [vmem:[%s4 + $0x1d8] sm:$0xff]
  %v3282 = vld [vmem:[%s4 + $0x1e0] sm:$0xff]
  %v3283 = vld [vmem:[%s4 + $0x1e8] sm:$0xff]
  %v3284 = vld [vmem:[%s4 + $0x1f0] sm:$0xff]
  %v3285 = vld [vmem:[%s4 + $0x1f8] sm:$0xff]
  %v3350 = vunpack.c.l.b16 %v3222
  %v3351 = vunpack.c.h.b16 %v3222
  %v3352 = vunpack.c.l.b16 %v3223
  %v3353 = vunpack.c.h.b16 %v3223
  %v3354 = vunpack.c.l.b16 %v3224
  %v3355 = vunpack.c.h.b16 %v3224
  %v3356 = vunpack.c.l.b16 %v3225
  %v3357 = vunpack.c.h.b16 %v3225
  %v3358 = vunpack.c.l.b16 %v3226
  %v3359 = vunpack.c.h.b16 %v3226
  %v3360 = vunpack.c.l.b16 %v3227
  %v3361 = vunpack.c.h.b16 %v3227
  %v3362 = vunpack.c.l.b16 %v3228
  %v3363 = vunpack.c.h.b16 %v3228
  %v3364 = vunpack.c.l.b16 %v3229
  %v3365 = vunpack.c.h.b16 %v3229
  %v3366 = vunpack.c.l.b16 %v3230
  %v3367 = vunpack.c.h.b16 %v3230
  %v3368 = vunpack.c.l.b16 %v3231
  %v3369 = vunpack.c.h.b16 %v3231
  %v3370 = vunpack.c.l.b16 %v3232
  %v3371 = vunpack.c.h.b16 %v3232
  %v3372 = vunpack.c.l.b16 %v3233
  %v3373 = vunpack.c.h.b16 %v3233
  %v3374 = vunpack.c.l.b16 %v3234
  %v3375 = vunpack.c.h.b16 %v3234
  %v3376 = vunpack.c.l.b16 %v3235
  %v3377 = vunpack.c.h.b16 %v3235
  %v3378 = vunpack.c.l.b16 %v3236
  %v3379 = vunpack.c.h.b16 %v3236
  %v3380 = vunpack.c.l.b16 %v3237
  %v3381 = vunpack.c.h.b16 %v3237
  %v3382 = vunpack.c.l.b16 %v3238
  %v3383 = vunpack.c.h.b16 %v3238
  %v3384 = vunpack.c.l.b16 %v3239
  %v3385 = vunpack.c.h.b16 %v3239
  %v3386 = vunpack.c.l.b16 %v3240
  %v3387 = vunpack.c.h.b16 %v3240
  %v3388 = vunpack.c.l.b16 %v3241
  %v3389 = vunpack.c.h.b16 %v3241
  %v3390 = vunpack.c.l.b16 %v3242
  %v3391 = vunpack.c.h.b16 %v3242
  %v3392 = vunpack.c.l.b16 %v3243
  %v3393 = vunpack.c.h.b16 %v3243
  %v3394 = vunpack.c.l.b16 %v3244
  %v3395 = vunpack.c.h.b16 %v3244
  %v3396 = vunpack.c.l.b16 %v3245
  %v3397 = vunpack.c.h.b16 %v3245
  %v3398 = vunpack.c.l.b16 %v3246
  %v3399 = vunpack.c.h.b16 %v3246
  %v3400 = vunpack.c.l.b16 %v3247
  %v3401 = vunpack.c.h.b16 %v3247
  %v3402 = vunpack.c.l.b16 %v3248
  %v3403 = vunpack.c.h.b16 %v3248
  %v3404 = vunpack.c.l.b16 %v3249
  %v3405 = vunpack.c.h.b16 %v3249
  %v3406 = vunpack.c.l.b16 %v3250
  %v3407 = vunpack.c.h.b16 %v3250
  %v3408 = vunpack.c.l.b16 %v3251
  %v3409 = vunpack.c.h.b16 %v3251
  %v3410 = vunpack.c.l.b16 %v3252
  %v3411 = vunpack.c.h.b16 %v3252
  %v3412 = vunpack.c.l.b16 %v3253
  %v3413 = vunpack.c.h.b16 %v3253
  %v3414 = vunpack.c.l.b16 %v3254
  %v3415 = vunpack.c.h.b16 %v3254
  %v3416 = vunpack.c.l.b16 %v3255
  %v3417 = vunpack.c.h.b16 %v3255
  %v3418 = vunpack.c.l.b16 %v3256
  %v3419 = vunpack.c.h.b16 %v3256
  %v3420 = vunpack.c.l.b16 %v3257
  %v3421 = vunpack.c.h.b16 %v3257
  %v3422 = vunpack.c.l.b16 %v3258
  %v3423 = vunpack.c.h.b16 %v3258
  %v3424 = vunpack.c.l.b16 %v3259
  %v3425 = vunpack.c.h.b16 %v3259
  %v3426 = vunpack.c.l.b16 %v3260
  %v3427 = vunpack.c.h.b16 %v3260
  %v3428 = vunpack.c.l.b16 %v3261
  %v3429 = vunpack.c.h.b16 %v3261
  %v3430 = vunpack.c.l.b16 %v3262
  %v3431 = vunpack.c.h.b16 %v3262
  %v3432 = vunpack.c.l.b16 %v3263
  %v3433 = vunpack.c.h.b16 %v3263
  %v3434 = vunpack.c.l.b16 %v3264
  %v3435 = vunpack.c.h.b16 %v3264
  %v3436 = vunpack.c.l.b16 %v3265
  %v3437 = vunpack.c.h.b16 %v3265
  %v3438 = vunpack.c.l.b16 %v3266
  %v3439 = vunpack.c.h.b16 %v3266
  %v3440 = vunpack.c.l.b16 %v3267
  %v3441 = vunpack.c.h.b16 %v3267
  %v3442 = vunpack.c.l.b16 %v3268
  %v3443 = vunpack.c.h.b16 %v3268
  %v3444 = vunpack.c.l.b16 %v3269
  %v3445 = vunpack.c.h.b16 %v3269
  %v3446 = vunpack.c.l.b16 %v3270
  %v3447 = vunpack.c.h.b16 %v3270
  %v3448 = vunpack.c.l.b16 %v3271
  %v3449 = vunpack.c.h.b16 %v3271
  %v3450 = vunpack.c.l.b16 %v3272
  %v3451 = vunpack.c.h.b16 %v3272
  %v3452 = vunpack.c.l.b16 %v3273
  %v3453 = vunpack.c.h.b16 %v3273
  %v3454 = vunpack.c.l.b16 %v3274
  %v3455 = vunpack.c.h.b16 %v3274
  %v3456 = vunpack.c.l.b16 %v3275
  %v3457 = vunpack.c.h.b16 %v3275
  %v3458 = vunpack.c.l.b16 %v3276
  %v3459 = vunpack.c.h.b16 %v3276
  %v3460 = vunpack.c.l.b16 %v3277
  %v3461 = vunpack.c.h.b16 %v3277
  %v3462 = vunpack.c.l.b16 %v3278
  %v3463 = vunpack.c.h.b16 %v3278
  %v3464 = vunpack.c.l.b16 %v3279
  %v3465 = vunpack.c.h.b16 %v3279
  %v3466 = vunpack.c.l.b16 %v3280
  %v3467 = vunpack.c.h.b16 %v3280
  %v3468 = vunpack.c.l.b16 %v3281
  %v3469 = vunpack.c.h.b16 %v3281
  %v3470 = vunpack.c.l.b16 %v3282
  %v3471 = vunpack.c.h.b16 %v3282
  %v3472 = vunpack.c.l.b16 %v3283
  %v3473 = vunpack.c.h.b16 %v3283
  %v3474 = vunpack.c.l.b16 %v3284
  %v3475 = vunpack.c.h.b16 %v3284
  %v3476 = vunpack.c.l.b16 %v3285
  %v3477 = vunpack.c.h.b16 %v3285
  %v3478 = vpack.c.b16 %v3354, %v3350
  %v3479 = vpack.c.b16 %v3355, %v3351
  %v3480 = vpack.c.b16 %v3356, %v3352
  %v3481 = vpack.c.b16 %v3357, %v3353
  %v3482 = vpack.c.b16 %v3362, %v3358
  %v3483 = vpack.c.b16 %v3363, %v3359
  %v3484 = vpack.c.b16 %v3364, %v3360
  %v3485 = vpack.c.b16 %v3365, %v3361
  %v3486 = vpack.c.b16 %v3370, %v3366
  %v3487 = vpack.c.b16 %v3371, %v3367
  %v3488 = vpack.c.b16 %v3372, %v3368
  %v3489 = vpack.c.b16 %v3373, %v3369
  %v3490 = vpack.c.b16 %v3378, %v3374
  %v3491 = vpack.c.b16 %v3379, %v3375
  %v3492 = vpack.c.b16 %v3380, %v3376
  %v3493 = vpack.c.b16 %v3381, %v3377
  %v3494 = vpack.c.b16 %v3386, %v3382
  %v3495 = vpack.c.b16 %v3387, %v3383
  %v3496 = vpack.c.b16 %v3388, %v3384
  %v3497 = vpack.c.b16 %v3389, %v3385
  %v3498 = vpack.c.b16 %v3394, %v3390
  %v3499 = vpack.c.b16 %v3395, %v3391
  %v3500 = vpack.c.b16 %v3396, %v3392
  %v3501 = vpack.c.b16 %v3397, %v3393
  %v3502 = vpack.c.b16 %v3402, %v3398
  %v3503 = vpack.c.b16 %v3403, %v3399
  %v3504 = vpack.c.b16 %v3404, %v3400
  %v3505 = vpack.c.b16 %v3405, %v3401
  %v3506 = vpack.c.b16 %v3410, %v3406
  %v3507 = vpack.c.b16 %v3411, %v3407
  %v3508 = vpack.c.b16 %v3412, %v3408
  %v3509 = vpack.c.b16 %v3413, %v3409
  %v3510 = vpack.c.b16 %v3418, %v3414
  %v3511 = vpack.c.b16 %v3419, %v3415
  %v3512 = vpack.c.b16 %v3420, %v3416
  %v3513 = vpack.c.b16 %v3421, %v3417
  %v3514 = vpack.c.b16 %v3426, %v3422
  %v3515 = vpack.c.b16 %v3427, %v3423
  %v3516 = vpack.c.b16 %v3428, %v3424
  %v3517 = vpack.c.b16 %v3429, %v3425
  %v3518 = vpack.c.b16 %v3434, %v3430
  %v3519 = vpack.c.b16 %v3435, %v3431
  %v3520 = vpack.c.b16 %v3436, %v3432
  %v3521 = vpack.c.b16 %v3437, %v3433
  %v3522 = vpack.c.b16 %v3442, %v3438
  %v3523 = vpack.c.b16 %v3443, %v3439
  %v3524 = vpack.c.b16 %v3444, %v3440
  %v3525 = vpack.c.b16 %v3445, %v3441
  %v3526 = vpack.c.b16 %v3450, %v3446
  %v3527 = vpack.c.b16 %v3451, %v3447
  %v3528 = vpack.c.b16 %v3452, %v3448
  %v3529 = vpack.c.b16 %v3453, %v3449
  %v3530 = vpack.c.b16 %v3458, %v3454
  %v3531 = vpack.c.b16 %v3459, %v3455
  %v3532 = vpack.c.b16 %v3460, %v3456
  %v3533 = vpack.c.b16 %v3461, %v3457
  %v3534 = vpack.c.b16 %v3466, %v3462
  %v3535 = vpack.c.b16 %v3467, %v3463
  %v3536 = vpack.c.b16 %v3468, %v3464
  %v3537 = vpack.c.b16 %v3469, %v3465
  %v3538 = vpack.c.b16 %v3474, %v3470
  %v3539 = vpack.c.b16 %v3475, %v3471
  %v3540 = vpack.c.b16 %v3476, %v3472
  %v3541 = vpack.c.b16 %v3477, %v3473
  %3606 = vmatprep.subr.bf16.mxu0 %v3507
  %3607 = vmatpush1.bf16.msra.mxu0 %v3506
  %3608 = vmatprep.subr.bf16.mxu0 %v3503
  %3609 = vmatpush1.bf16.msra.mxu0 %v3502
  %3610 = vmatprep.subr.bf16.mxu0 %v3499
  %3611 = vmatpush1.bf16.msra.mxu0 %v3498
  %3612 = vmatprep.subr.bf16.mxu0 %v3495
  %3613 = vmatpush1.bf16.msra.mxu0 %v3494
  %3614 = vmatprep.subr.bf16.mxu0 %v3491
  %3615 = vmatpush1.bf16.msra.mxu0 %v3490
  %3616 = vmatprep.subr.bf16.mxu0 %v3487
  %3617 = vmatpush1.bf16.msra.mxu0 %v3486
  %3618 = vmatprep.subr.bf16.mxu0 %v3483
  %3619 = vmatpush1.bf16.msra.mxu0 %v3482
  %3620 = vmatprep.subr.bf16.mxu0 %v3479
  %3621 = vmatpush1.bf16.msra.mxu0 %v3478
  %3622 = vmatprep.subr.bf16.mxu0 %v3539
  %3623 = vmatpush2.bf16.msra.mxu0 %v3538
  %3624 = vmatprep.subr.bf16.mxu0 %v3535
  %3625 = vmatpush2.bf16.msra.mxu0 %v3534
  %3626 = vmatprep.subr.bf16.mxu0 %v3531
  %3627 = vmatpush2.bf16.msra.mxu0 %v3530
  %3628 = vmatprep.subr.bf16.mxu0 %v3527
  %3629 = vmatpush2.bf16.msra.mxu0 %v3526
  %3630 = vmatprep.subr.bf16.mxu0 %v3523
  %3631 = vmatpush2.bf16.msra.mxu0 %v3522
  %3632 = vmatprep.subr.bf16.mxu0 %v3519
  %3633 = vmatpush2.bf16.msra.mxu0 %v3518
  %3634 = vmatprep.subr.bf16.mxu0 %v3515
  %3635 = vmatpush2.bf16.msra.mxu0 %v3514
  %3636 = vmatprep.subr.bf16.mxu0 %v3511
  %3637 = vmatpush2.bf16.msra.mxu0 %v3510
  %3638 = vmatprep.mubr.bf16.mxu0 %v3221
  %3639 = vmatmul.mubr.bf16.gmra.mxu0 %v3219
  %v3640 = vpop.f32.mrf.mxu0
  %v3641 = vadd.f32 %v467, %v3640
  %v3642 = vpop.f32.mrf.mxu0
  %v3643 = vadd.f32 %v471, %v3642
  %v3644 = vpop.f32.mrf.mxu0
  %v3645 = vpop.f32.mrf.mxu0
  %3646 = vdwg.mxu0
  %3647 = vmatprep.subr.bf16.mxu0 %v3509
  %3648 = vmatpush1.bf16.msra.mxu0 %v3508
  %3649 = vmatprep.subr.bf16.mxu0 %v3505
  %3650 = vmatpush1.bf16.msra.mxu0 %v3504
  %3651 = vmatprep.subr.bf16.mxu0 %v3501
  %3652 = vmatpush1.bf16.msra.mxu0 %v3500
  %3653 = vmatprep.subr.bf16.mxu0 %v3497
  %3654 = vmatpush1.bf16.msra.mxu0 %v3496
  %3655 = vmatprep.subr.bf16.mxu0 %v3493
  %3656 = vmatpush1.bf16.msra.mxu0 %v3492
  %3657 = vmatprep.subr.bf16.mxu0 %v3489
  %3658 = vmatpush1.bf16.msra.mxu0 %v3488
  %3659 = vmatprep.subr.bf16.mxu0 %v3485
  %3660 = vmatpush1.bf16.msra.mxu0 %v3484
  %3661 = vmatprep.subr.bf16.mxu0 %v3481
  %3662 = vmatpush1.bf16.msra.mxu0 %v3480
  %3663 = vmatprep.subr.bf16.mxu0 %v3541
  %3664 = vmatpush2.bf16.msra.mxu0 %v3540
  %3665 = vmatprep.subr.bf16.mxu0 %v3537
  %3666 = vmatpush2.bf16.msra.mxu0 %v3536
  %3667 = vmatprep.subr.bf16.mxu0 %v3533
  %3668 = vmatpush2.bf16.msra.mxu0 %v3532
  %3669 = vmatprep.subr.bf16.mxu0 %v3529
  %3670 = vmatpush2.bf16.msra.mxu0 %v3528
  %3671 = vmatprep.subr.bf16.mxu0 %v3525
  %3672 = vmatpush2.bf16.msra.mxu0 %v3524
  %3673 = vmatprep.subr.bf16.mxu0 %v3521
  %3674 = vmatpush2.bf16.msra.mxu0 %v3520
  %3675 = vmatprep.subr.bf16.mxu0 %v3517
  %3676 = vmatpush2.bf16.msra.mxu0 %v3516
  %3677 = vmatprep.subr.bf16.mxu0 %v3513
  %3678 = vmatpush2.bf16.msra.mxu0 %v3512
  %3679 = vmatprep.mubr.bf16.mxu0 %v3221
  %3680 = vmatmul.mubr.bf16.gmra.mxu0 %v3219
  %v3681 = vpop.f32.mrf.mxu0
  %v3682 = vadd.f32 %v475, %v3681
  %v3683 = vpop.f32.mrf.mxu0
  %v3684 = vadd.f32 %v479, %v3683
  %v3685 = vpop.f32.mrf.mxu0
  %v3686 = vpop.f32.mrf.mxu0
  %3687 = vdwg.mxu0
  %v3688 = vxor.u32 %v3641, 2147483648
  %v3689 = vmul.f32 %v3688, 1.442695
  %v3690 = vpow.pop %v3689
  %v3691 = vadd.f32 %v3690, 1.0
  %v3692 = vrcp.pop %v3691
  %v3693 = vmul.f32 1.0, %v3692
  %v3694 = vxor.u32 %v3643, 2147483648
  %v3695 = vmul.f32 %v3694, 1.442695
  %v3696 = vpow.pop %v3695
  %v3697 = vadd.f32 %v3696, 1.0
  %v3698 = vrcp.pop %v3697
  %v3699 = vmul.f32 1.0, %v3698
  %v3700 = vtanh.pop %v3682
  %v3701 = vxor.u32 %v3684, 2147483648
  %v3702 = vmul.f32 %v3701, 1.442695
  %v3703 = vpow.pop %v3702
  %v3704 = vadd.f32 %v3703, 1.0
  %v3705 = vrcp.pop %v3704
  %v3706 = vmul.f32 1.0, %v3705
  %v3707 = vld [vmem:[#allocation5] sm:$0xff]
  %v3708 = vmul.f32 %v3699, %v3707
  %v3709 = vmul.f32 %v3693, %v3700
  %v3710 = vadd.f32 %v3708, %v3709
  %v3711 = vtanh.pop %v3710
  %v3712 = vmul.f32 %v3706, %v3711
  %3713 = vst [vmem:[#allocation5] sm:$0xff] %v3710
  %v3714 = vpack.c.bf16 %v3712, %v3712
  %3715 = vst [vmem:[#allocation4] sm:$0xf] %v3714
  %s3716 = scalar_lea.vmem [#allocation7], 12
  %3717 = vst [vmem:[%s3716] sm:$0xf] %v3714
  %s3718 = scalar_lea.vmem [#allocation6], 128
  %v3719 = vld [vmem:[%s3718] sm:$0xff]
  %v3720 = vld [vmem:[%s3718 + $0x8] sm:$0xff]
  %v3721 = vld [vmem:[%s3718 + $0x10] sm:$0xff]
  %v3722 = vld [vmem:[%s3718 + $0x18] sm:$0xff]
  %v3723 = vld [vmem:[#allocation2] sm:$0xf]
  %v3724 = vld [vmem:[%s2] sm:$0xff]
  %v3725 = vld [vmem:[%s2 + $0x8] sm:$0xff]
  %v3726 = vld [vmem:[%s2 + $0x10] sm:$0xff]
  %v3727 = vld [vmem:[%s2 + $0x18] sm:$0xff]
  %v3728 = vld [vmem:[%s2 + $0x20] sm:$0xff]
  %v3729 = vld [vmem:[%s2 + $0x28] sm:$0xff]
  %v3730 = vld [vmem:[%s2 + $0x30] sm:$0xff]
  %v3731 = vld [vmem:[%s2 + $0x38] sm:$0xff]
  %v3732 = vld [vmem:[%s2 + $0x40] sm:$0xff]
  %v3733 = vld [vmem:[%s2 + $0x48] sm:$0xff]
  %v3734 = vld [vmem:[%s2 + $0x50] sm:$0xff]
  %v3735 = vld [vmem:[%s2 + $0x58] sm:$0xff]
  %v3736 = vld [vmem:[%s2 + $0x60] sm:$0xff]
  %v3737 = vld [vmem:[%s2 + $0x68] sm:$0xff]
  %v3738 = vld [vmem:[%s2 + $0x70] sm:$0xff]
  %v3739 = vld [vmem:[%s2 + $0x78] sm:$0xff]
  %v3740 = vld [vmem:[%s2 + $0x80] sm:$0xff]
  %v3741 = vld [vmem:[%s2 + $0x88] sm:$0xff]
  %v3742 = vld [vmem:[%s2 + $0x90] sm:$0xff]
  %v3743 = vld [vmem:[%s2 + $0x98] sm:$0xff]
  %v3744 = vld [vmem:[%s2 + $0xa0] sm:$0xff]
  %v3745 = vld [vmem:[%s2 + $0xa8] sm:$0xff]
  %v3746 = vld [vmem:[%s2 + $0xb0] sm:$0xff]
  %v3747 = vld [vmem:[%s2 + $0xb8] sm:$0xff]
  %v3748 = vld [vmem:[%s2 + $0xc0] sm:$0xff]
  %v3749 = vld [vmem:[%s2 + $0xc8] sm:$0xff]
  %v3750 = vld [vmem:[%s2 + $0xd0] sm:$0xff]
  %v3751 = vld [vmem:[%s2 + $0xd8] sm:$0xff]
  %v3752 = vld [vmem:[%s2 + $0xe0] sm:$0xff]
  %v3753 = vld [vmem:[%s2 + $0xe8] sm:$0xff]
  %v3754 = vld [vmem:[%s2 + $0xf0] sm:$0xff]
  %v3755 = vld [vmem:[%s2 + $0xf8] sm:$0xff]
  %v3788 = vunpack.c.l.b16 %v3724
  %v3789 = vunpack.c.h.b16 %v3724
  %v3790 = vunpack.c.l.b16 %v3725
  %v3791 = vunpack.c.h.b16 %v3725
  %v3792 = vunpack.c.l.b16 %v3726
  %v3793 = vunpack.c.h.b16 %v3726
  %v3794 = vunpack.c.l.b16 %v3727
  %v3795 = vunpack.c.h.b16 %v3727
  %v3796 = vunpack.c.l.b16 %v3728
  %v3797 = vunpack.c.h.b16 %v3728
  %v3798 = vunpack.c.l.b16 %v3729
  %v3799 = vunpack.c.h.b16 %v3729
  %v3800 = vunpack.c.l.b16 %v3730
  %v3801 = vunpack.c.h.b16 %v3730
  %v3802 = vunpack.c.l.b16 %v3731
  %v3803 = vunpack.c.h.b16 %v3731
  %v3804 = vunpack.c.l.b16 %v3732
  %v3805 = vunpack.c.h.b16 %v3732
  %v3806 = vunpack.c.l.b16 %v3733
  %v3807 = vunpack.c.h.b16 %v3733
  %v3808 = vunpack.c.l.b16 %v3734
  %v3809 = vunpack.c.h.b16 %v3734
  %v3810 = vunpack.c.l.b16 %v3735
  %v3811 = vunpack.c.h.b16 %v3735
  %v3812 = vunpack.c.l.b16 %v3736
  %v3813 = vunpack.c.h.b16 %v3736
  %v3814 = vunpack.c.l.b16 %v3737
  %v3815 = vunpack.c.h.b16 %v3737
  %v3816 = vunpack.c.l.b16 %v3738
  %v3817 = vunpack.c.h.b16 %v3738
  %v3818 = vunpack.c.l.b16 %v3739
  %v3819 = vunpack.c.h.b16 %v3739
  %v3820 = vunpack.c.l.b16 %v3740
  %v3821 = vunpack.c.h.b16 %v3740
  %v3822 = vunpack.c.l.b16 %v3741
  %v3823 = vunpack.c.h.b16 %v3741
  %v3824 = vunpack.c.l.b16 %v3742
  %v3825 = vunpack.c.h.b16 %v3742
  %v3826 = vunpack.c.l.b16 %v3743
  %v3827 = vunpack.c.h.b16 %v3743
  %v3828 = vunpack.c.l.b16 %v3744
  %v3829 = vunpack.c.h.b16 %v3744
  %v3830 = vunpack.c.l.b16 %v3745
  %v3831 = vunpack.c.h.b16 %v3745
  %v3832 = vunpack.c.l.b16 %v3746
  %v3833 = vunpack.c.h.b16 %v3746
  %v3834 = vunpack.c.l.b16 %v3747
  %v3835 = vunpack.c.h.b16 %v3747
  %v3836 = vunpack.c.l.b16 %v3748
  %v3837 = vunpack.c.h.b16 %v3748
  %v3838 = vunpack.c.l.b16 %v3749
  %v3839 = vunpack.c.h.b16 %v3749
  %v3840 = vunpack.c.l.b16 %v3750
  %v3841 = vunpack.c.h.b16 %v3750
  %v3842 = vunpack.c.l.b16 %v3751
  %v3843 = vunpack.c.h.b16 %v3751
  %v3844 = vunpack.c.l.b16 %v3752
  %v3845 = vunpack.c.h.b16 %v3752
  %v3846 = vunpack.c.l.b16 %v3753
  %v3847 = vunpack.c.h.b16 %v3753
  %v3848 = vunpack.c.l.b16 %v3754
  %v3849 = vunpack.c.h.b16 %v3754
  %v3850 = vunpack.c.l.b16 %v3755
  %v3851 = vunpack.c.h.b16 %v3755
  %v3852 = vpack.c.b16 %v3792, %v3788
  %v3853 = vpack.c.b16 %v3793, %v3789
  %v3854 = vpack.c.b16 %v3794, %v3790
  %v3855 = vpack.c.b16 %v3795, %v3791
  %v3856 = vpack.c.b16 %v3800, %v3796
  %v3857 = vpack.c.b16 %v3801, %v3797
  %v3858 = vpack.c.b16 %v3802, %v3798
  %v3859 = vpack.c.b16 %v3803, %v3799
  %v3860 = vpack.c.b16 %v3808, %v3804
  %v3861 = vpack.c.b16 %v3809, %v3805
  %v3862 = vpack.c.b16 %v3810, %v3806
  %v3863 = vpack.c.b16 %v3811, %v3807
  %v3864 = vpack.c.b16 %v3816, %v3812
  %v3865 = vpack.c.b16 %v3817, %v3813
  %v3866 = vpack.c.b16 %v3818, %v3814
  %v3867 = vpack.c.b16 %v3819, %v3815
  %v3868 = vpack.c.b16 %v3824, %v3820
  %v3869 = vpack.c.b16 %v3825, %v3821
  %v3870 = vpack.c.b16 %v3826, %v3822
  %v3871 = vpack.c.b16 %v3827, %v3823
  %v3872 = vpack.c.b16 %v3832, %v3828
  %v3873 = vpack.c.b16 %v3833, %v3829
  %v3874 = vpack.c.b16 %v3834, %v3830
  %v3875 = vpack.c.b16 %v3835, %v3831
  %v3876 = vpack.c.b16 %v3840, %v3836
  %v3877 = vpack.c.b16 %v3841, %v3837
  %v3878 = vpack.c.b16 %v3842, %v3838
  %v3879 = vpack.c.b16 %v3843, %v3839
  %v3880 = vpack.c.b16 %v3848, %v3844
  %v3881 = vpack.c.b16 %v3849, %v3845
  %v3882 = vpack.c.b16 %v3850, %v3846
  %v3883 = vpack.c.b16 %v3851, %v3847
  %3916 = vmatprep.subr.bf16.mxu0 %v3881
  %3917 = vmatpush1.bf16.msra.mxu0 %v3880
  %3918 = vmatprep.subr.bf16.mxu0 %v3877
  %3919 = vmatpush1.bf16.msra.mxu0 %v3876
  %3920 = vmatprep.subr.bf16.mxu0 %v3873
  %3921 = vmatpush1.bf16.msra.mxu0 %v3872
  %3922 = vmatprep.subr.bf16.mxu0 %v3869
  %3923 = vmatpush1.bf16.msra.mxu0 %v3868
  %3924 = vmatprep.subr.bf16.mxu0 %v3865
  %3925 = vmatpush1.bf16.msra.mxu0 %v3864
  %3926 = vmatprep.subr.bf16.mxu0 %v3861
  %3927 = vmatpush1.bf16.msra.mxu0 %v3860
  %3928 = vmatprep.subr.bf16.mxu0 %v3857
  %3929 = vmatpush1.bf16.msra.mxu0 %v3856
  %3930 = vmatprep.subr.bf16.mxu0 %v3853
  %3931 = vmatpush1.bf16.msra.mxu0 %v3852
  %3932 = vmatprep.subr.bf16.mxu0 0
  %3933 = vmatpush2.bf16.msra.mxu0 0
  %3934 = vmatprep.subr.bf16.mxu0 0
  %3935 = vmatpush2.bf16.msra.mxu0 0
  %3936 = vmatprep.subr.bf16.mxu0 0
  %3937 = vmatpush2.bf16.msra.mxu0 0
  %3938 = vmatprep.subr.bf16.mxu0 0
  %3939 = vmatpush2.bf16.msra.mxu0 0
  %3940 = vmatprep.subr.bf16.mxu0 0
  %3941 = vmatpush2.bf16.msra.mxu0 0
  %3942 = vmatprep.subr.bf16.mxu0 0
  %3943 = vmatpush2.bf16.msra.mxu0 0
  %3944 = vmatprep.subr.bf16.mxu0 0
  %3945 = vmatpush2.bf16.msra.mxu0 0
  %3946 = vmatprep.subr.bf16.mxu0 0
  %3947 = vmatpush2.bf16.msra.mxu0 0
  %3948 = vmatprep.mubr.bf16.mxu0 0
  %3949 = vmatmul.mubr.bf16.gmra.mxu0 %v3723
  %v3950 = vpop.f32.mrf.mxu0
  %v3951 = vadd.f32 0.0, %v3950
  %v3952 = vpop.f32.mrf.mxu0
  %v3953 = vadd.f32 0.0, %v3952
  %v3954 = vpop.f32.mrf.mxu0
  %v3955 = vpop.f32.mrf.mxu0
  %3956 = vdwg.mxu0
  %3957 = vmatprep.subr.bf16.mxu0 %v3883
  %3958 = vmatpush1.bf16.msra.mxu0 %v3882
  %3959 = vmatprep.subr.bf16.mxu0 %v3879
  %3960 = vmatpush1.bf16.msra.mxu0 %v3878
  %3961 = vmatprep.subr.bf16.mxu0 %v3875
  %3962 = vmatpush1.bf16.msra.mxu0 %v3874
  %3963 = vmatprep.subr.bf16.mxu0 %v3871
  %3964 = vmatpush1.bf16.msra.mxu0 %v3870
  %3965 = vmatprep.subr.bf16.mxu0 %v3867
  %3966 = vmatpush1.bf16.msra.mxu0 %v3866
  %3967 = vmatprep.subr.bf16.mxu0 %v3863
  %3968 = vmatpush1.bf16.msra.mxu0 %v3862
  %3969 = vmatprep.subr.bf16.mxu0 %v3859
  %3970 = vmatpush1.bf16.msra.mxu0 %v3858
  %3971 = vmatprep.subr.bf16.mxu0 %v3855
  %3972 = vmatpush1.bf16.msra.mxu0 %v3854
  %3973 = vmatprep.subr.bf16.mxu0 0
  %3974 = vmatpush2.bf16.msra.mxu0 0
  %3975 = vmatprep.subr.bf16.mxu0 0
  %3976 = vmatpush2.bf16.msra.mxu0 0
  %3977 = vmatprep.subr.bf16.mxu0 0
  %3978 = vmatpush2.bf16.msra.mxu0 0
  %3979 = vmatprep.subr.bf16.mxu0 0
  %3980 = vmatpush2.bf16.msra.mxu0 0
  %3981 = vmatprep.subr.bf16.mxu0 0
  %3982 = vmatpush2.bf16.msra.mxu0 0
  %3983 = vmatprep.subr.bf16.mxu0 0
  %3984 = vmatpush2.bf16.msra.mxu0 0
  %3985 = vmatprep.subr.bf16.mxu0 0
  %3986 = vmatpush2.bf16.msra.mxu0 0
  %3987 = vmatprep.subr.bf16.mxu0 0
  %3988 = vmatpush2.bf16.msra.mxu0 0
  %3989 = vmatprep.mubr.bf16.mxu0 0
  %3990 = vmatmul.mubr.bf16.gmra.mxu0 %v3723
  %v3991 = vpop.f32.mrf.mxu0
  %v3992 = vadd.f32 0.0, %v3991
  %v3993 = vpop.f32.mrf.mxu0
  %v3994 = vadd.f32 0.0, %v3993
  %v3995 = vpop.f32.mrf.mxu0
  %v3996 = vpop.f32.mrf.mxu0
  %3997 = vdwg.mxu0
  %v3998 = vadd.f32 %v3719, %v3951
  %v3999 = vadd.f32 %v3720, %v3953
  %v4000 = vadd.f32 %v3721, %v3992
  %v4001 = vadd.f32 %v3722, %v3994
  %v4002 = vxor.u32 %v3998, 2147483648
  %v4003 = vmul.f32 %v4002, 1.442695
  %v4004 = vpow.pop %v4003
  %v4005 = vadd.f32 %v4004, 1.0
  %v4006 = vrcp.pop %v4005
  %v4007 = vmul.f32 1.0, %v4006
  %v4008 = vxor.u32 %v3999, 2147483648
  %v4009 = vmul.f32 %v4008, 1.442695
  %v4010 = vpow.pop %v4009
  %v4011 = vadd.f32 %v4010, 1.0
  %v4012 = vrcp.pop %v4011
  %v4013 = vmul.f32 1.0, %v4012
  %v4014 = vtanh.pop %v4000
  %v4015 = vxor.u32 %v4001, 2147483648
  %v4016 = vmul.f32 %v4015, 1.442695
  %v4017 = vpow.pop %v4016
  %v4018 = vadd.f32 %v4017, 1.0
  %v4019 = vrcp.pop %v4018
  %v4020 = vmul.f32 1.0, %v4019
  %v4021 = vld [vmem:[#allocation3] sm:$0xff]
  %v4022 = vmul.f32 %v4013, %v4021
  %v4023 = vmul.f32 %v4007, %v4014
  %v4024 = vadd.f32 %v4022, %v4023
  %v4025 = vtanh.pop %v4024
  %v4026 = vmul.f32 %v4020, %v4025
  %4027 = vst [vmem:[#allocation3] sm:$0xff] %v4024
  %v4028 = vpack.c.bf16 %v4026, %v4026
  %4029 = vst [vmem:[#allocation2] sm:$0xf] %v4028
  %v4030 = vld [vmem:[#allocation4] sm:$0xf]
  %v4031 = vld [vmem:[%s4] sm:$0xff]
  %v4032 = vld [vmem:[%s4 + $0x8] sm:$0xff]
  %v4033 = vld [vmem:[%s4 + $0x10] sm:$0xff]
  %v4034 = vld [vmem:[%s4 + $0x18] sm:$0xff]
  %v4035 = vld [vmem:[%s4 + $0x20] sm:$0xff]
  %v4036 = vld [vmem:[%s4 + $0x28] sm:$0xff]
  %v4037 = vld [vmem:[%s4 + $0x30] sm:$0xff]
  %v4038 = vld [vmem:[%s4 + $0x38] sm:$0xff]
  %v4039 = vld [vmem:[%s4 + $0x40] sm:$0xff]
  %v4040 = vld [vmem:[%s4 + $0x48] sm:$0xff]
  %v4041 = vld [vmem:[%s4 + $0x50] sm:$0xff]
  %v4042 = vld [vmem:[%s4 + $0x58] sm:$0xff]
  %v4043 = vld [vmem:[%s4 + $0x60] sm:$0xff]
  %v4044 = vld [vmem:[%s4 + $0x68] sm:$0xff]
  %v4045 = vld [vmem:[%s4 + $0x70] sm:$0xff]
  %v4046 = vld [vmem:[%s4 + $0x78] sm:$0xff]
  %v4047 = vld [vmem:[%s4 + $0x80] sm:$0xff]
  %v4048 = vld [vmem:[%s4 + $0x88] sm:$0xff]
  %v4049 = vld [vmem:[%s4 + $0x90] sm:$0xff]
  %v4050 = vld [vmem:[%s4 + $0x98] sm:$0xff]
  %v4051 = vld [vmem:[%s4 + $0xa0] sm:$0xff]
  %v4052 = vld [vmem:[%s4 + $0xa8] sm:$0xff]
  %v4053 = vld [vmem:[%s4 + $0xb0] sm:$0xff]
  %v4054 = vld [vmem:[%s4 + $0xb8] sm:$0xff]
  %v4055 = vld [vmem:[%s4 + $0xc0] sm:$0xff]
  %v4056 = vld [vmem:[%s4 + $0xc8] sm:$0xff]
  %v4057 = vld [vmem:[%s4 + $0xd0] sm:$0xff]
  %v4058 = vld [vmem:[%s4 + $0xd8] sm:$0xff]
  %v4059 = vld [vmem:[%s4 + $0xe0] sm:$0xff]
  %v4060 = vld [vmem:[%s4 + $0xe8] sm:$0xff]
  %v4061 = vld [vmem:[%s4 + $0xf0] sm:$0xff]
  %v4062 = vld [vmem:[%s4 + $0xf8] sm:$0xff]
  %v4063 = vld [vmem:[%s4 + $0x100] sm:$0xff]
  %v4064 = vld [vmem:[%s4 + $0x108] sm:$0xff]
  %v4065 = vld [vmem:[%s4 + $0x110] sm:$0xff]
  %v4066 = vld [vmem:[%s4 + $0x118] sm:$0xff]
  %v4067 = vld [vmem:[%s4 + $0x120] sm:$0xff]
  %v4068 = vld [vmem:[%s4 + $0x128] sm:$0xff]
  %v4069 = vld [vmem:[%s4 + $0x130] sm:$0xff]
  %v4070 = vld [vmem:[%s4 + $0x138] sm:$0xff]
  %v4071 = vld [vmem:[%s4 + $0x140] sm:$0xff]
  %v4072 = vld [vmem:[%s4 + $0x148] sm:$0xff]
  %v4073 = vld [vmem:[%s4 + $0x150] sm:$0xff]
  %v4074 = vld [vmem:[%s4 + $0x158] sm:$0xff]
  %v4075 = vld [vmem:[%s4 + $0x160] sm:$0xff]
  %v4076 = vld [vmem:[%s4 + $0x168] sm:$0xff]
  %v4077 = vld [vmem:[%s4 + $0x170] sm:$0xff]
  %v4078 = vld [vmem:[%s4 + $0x178] sm:$0xff]
  %v4079 = vld [vmem:[%s4 + $0x180] sm:$0xff]
  %v4080 = vld [vmem:[%s4 + $0x188] sm:$0xff]
  %v4081 = vld [vmem:[%s4 + $0x190] sm:$0xff]
  %v4082 = vld [vmem:[%s4 + $0x198] sm:$0xff]
  %v4083 = vld [vmem:[%s4 + $0x1a0] sm:$0xff]
  %v4084 = vld [vmem:[%s4 + $0x1a8] sm:$0xff]
  %v4085 = vld [vmem:[%s4 + $0x1b0] sm:$0xff]
  %v4086 = vld [vmem:[%s4 + $0x1b8] sm:$0xff]
  %v4087 = vld [vmem:[%s4 + $0x1c0] sm:$0xff]
  %v4088 = vld [vmem:[%s4 + $0x1c8] sm:$0xff]
  %v4089 = vld [vmem:[%s4 + $0x1d0] sm:$0xff]
  %v4090 = vld [vmem:[%s4 + $0x1d8] sm:$0xff]
  %v4091 = vld [vmem:[%s4 + $0x1e0] sm:$0xff]
  %v4092 = vld [vmem:[%s4 + $0x1e8] sm:$0xff]
  %v4093 = vld [vmem:[%s4 + $0x1f0] sm:$0xff]
  %v4094 = vld [vmem:[%s4 + $0x1f8] sm:$0xff]
  %v4159 = vunpack.c.l.b16 %v4031
  %v4160 = vunpack.c.h.b16 %v4031
  %v4161 = vunpack.c.l.b16 %v4032
  %v4162 = vunpack.c.h.b16 %v4032
  %v4163 = vunpack.c.l.b16 %v4033
  %v4164 = vunpack.c.h.b16 %v4033
  %v4165 = vunpack.c.l.b16 %v4034
  %v4166 = vunpack.c.h.b16 %v4034
  %v4167 = vunpack.c.l.b16 %v4035
  %v4168 = vunpack.c.h.b16 %v4035
  %v4169 = vunpack.c.l.b16 %v4036
  %v4170 = vunpack.c.h.b16 %v4036
  %v4171 = vunpack.c.l.b16 %v4037
  %v4172 = vunpack.c.h.b16 %v4037
  %v4173 = vunpack.c.l.b16 %v4038
  %v4174 = vunpack.c.h.b16 %v4038
  %v4175 = vunpack.c.l.b16 %v4039
  %v4176 = vunpack.c.h.b16 %v4039
  %v4177 = vunpack.c.l.b16 %v4040
  %v4178 = vunpack.c.h.b16 %v4040
  %v4179 = vunpack.c.l.b16 %v4041
  %v4180 = vunpack.c.h.b16 %v4041
  %v4181 = vunpack.c.l.b16 %v4042
  %v4182 = vunpack.c.h.b16 %v4042
  %v4183 = vunpack.c.l.b16 %v4043
  %v4184 = vunpack.c.h.b16 %v4043
  %v4185 = vunpack.c.l.b16 %v4044
  %v4186 = vunpack.c.h.b16 %v4044
  %v4187 = vunpack.c.l.b16 %v4045
  %v4188 = vunpack.c.h.b16 %v4045
  %v4189 = vunpack.c.l.b16 %v4046
  %v4190 = vunpack.c.h.b16 %v4046
  %v4191 = vunpack.c.l.b16 %v4047
  %v4192 = vunpack.c.h.b16 %v4047
  %v4193 = vunpack.c.l.b16 %v4048
  %v4194 = vunpack.c.h.b16 %v4048
  %v4195 = vunpack.c.l.b16 %v4049
  %v4196 = vunpack.c.h.b16 %v4049
  %v4197 = vunpack.c.l.b16 %v4050
  %v4198 = vunpack.c.h.b16 %v4050
  %v4199 = vunpack.c.l.b16 %v4051
  %v4200 = vunpack.c.h.b16 %v4051
  %v4201 = vunpack.c.l.b16 %v4052
  %v4202 = vunpack.c.h.b16 %v4052
  %v4203 = vunpack.c.l.b16 %v4053
  %v4204 = vunpack.c.h.b16 %v4053
  %v4205 = vunpack.c.l.b16 %v4054
  %v4206 = vunpack.c.h.b16 %v4054
  %v4207 = vunpack.c.l.b16 %v4055
  %v4208 = vunpack.c.h.b16 %v4055
  %v4209 = vunpack.c.l.b16 %v4056
  %v4210 = vunpack.c.h.b16 %v4056
  %v4211 = vunpack.c.l.b16 %v4057
  %v4212 = vunpack.c.h.b16 %v4057
  %v4213 = vunpack.c.l.b16 %v4058
  %v4214 = vunpack.c.h.b16 %v4058
  %v4215 = vunpack.c.l.b16 %v4059
  %v4216 = vunpack.c.h.b16 %v4059
  %v4217 = vunpack.c.l.b16 %v4060
  %v4218 = vunpack.c.h.b16 %v4060
  %v4219 = vunpack.c.l.b16 %v4061
  %v4220 = vunpack.c.h.b16 %v4061
  %v4221 = vunpack.c.l.b16 %v4062
  %v4222 = vunpack.c.h.b16 %v4062
  %v4223 = vunpack.c.l.b16 %v4063
  %v4224 = vunpack.c.h.b16 %v4063
  %v4225 = vunpack.c.l.b16 %v4064
  %v4226 = vunpack.c.h.b16 %v4064
  %v4227 = vunpack.c.l.b16 %v4065
  %v4228 = vunpack.c.h.b16 %v4065
  %v4229 = vunpack.c.l.b16 %v4066
  %v4230 = vunpack.c.h.b16 %v4066
  %v4231 = vunpack.c.l.b16 %v4067
  %v4232 = vunpack.c.h.b16 %v4067
  %v4233 = vunpack.c.l.b16 %v4068
  %v4234 = vunpack.c.h.b16 %v4068
  %v4235 = vunpack.c.l.b16 %v4069
  %v4236 = vunpack.c.h.b16 %v4069
  %v4237 = vunpack.c.l.b16 %v4070
  %v4238 = vunpack.c.h.b16 %v4070
  %v4239 = vunpack.c.l.b16 %v4071
  %v4240 = vunpack.c.h.b16 %v4071
  %v4241 = vunpack.c.l.b16 %v4072
  %v4242 = vunpack.c.h.b16 %v4072
  %v4243 = vunpack.c.l.b16 %v4073
  %v4244 = vunpack.c.h.b16 %v4073
  %v4245 = vunpack.c.l.b16 %v4074
  %v4246 = vunpack.c.h.b16 %v4074
  %v4247 = vunpack.c.l.b16 %v4075
  %v4248 = vunpack.c.h.b16 %v4075
  %v4249 = vunpack.c.l.b16 %v4076
  %v4250 = vunpack.c.h.b16 %v4076
  %v4251 = vunpack.c.l.b16 %v4077
  %v4252 = vunpack.c.h.b16 %v4077
  %v4253 = vunpack.c.l.b16 %v4078
  %v4254 = vunpack.c.h.b16 %v4078
  %v4255 = vunpack.c.l.b16 %v4079
  %v4256 = vunpack.c.h.b16 %v4079
  %v4257 = vunpack.c.l.b16 %v4080
  %v4258 = vunpack.c.h.b16 %v4080
  %v4259 = vunpack.c.l.b16 %v4081
  %v4260 = vunpack.c.h.b16 %v4081
  %v4261 = vunpack.c.l.b16 %v4082
  %v4262 = vunpack.c.h.b16 %v4082
  %v4263 = vunpack.c.l.b16 %v4083
  %v4264 = vunpack.c.h.b16 %v4083
  %v4265 = vunpack.c.l.b16 %v4084
  %v4266 = vunpack.c.h.b16 %v4084
  %v4267 = vunpack.c.l.b16 %v4085
  %v4268 = vunpack.c.h.b16 %v4085
  %v4269 = vunpack.c.l.b16 %v4086
  %v4270 = vunpack.c.h.b16 %v4086
  %v4271 = vunpack.c.l.b16 %v4087
  %v4272 = vunpack.c.h.b16 %v4087
  %v4273 = vunpack.c.l.b16 %v4088
  %v4274 = vunpack.c.h.b16 %v4088
  %v4275 = vunpack.c.l.b16 %v4089
  %v4276 = vunpack.c.h.b16 %v4089
  %v4277 = vunpack.c.l.b16 %v4090
  %v4278 = vunpack.c.h.b16 %v4090
  %v4279 = vunpack.c.l.b16 %v4091
  %v4280 = vunpack.c.h.b16 %v4091
  %v4281 = vunpack.c.l.b16 %v4092
  %v4282 = vunpack.c.h.b16 %v4092
  %v4283 = vunpack.c.l.b16 %v4093
  %v4284 = vunpack.c.h.b16 %v4093
  %v4285 = vunpack.c.l.b16 %v4094
  %v4286 = vunpack.c.h.b16 %v4094
  %v4287 = vpack.c.b16 %v4163, %v4159
  %v4288 = vpack.c.b16 %v4164, %v4160
  %v4289 = vpack.c.b16 %v4165, %v4161
  %v4290 = vpack.c.b16 %v4166, %v4162
  %v4291 = vpack.c.b16 %v4171, %v4167
  %v4292 = vpack.c.b16 %v4172, %v4168
  %v4293 = vpack.c.b16 %v4173, %v4169
  %v4294 = vpack.c.b16 %v4174, %v4170
  %v4295 = vpack.c.b16 %v4179, %v4175
  %v4296 = vpack.c.b16 %v4180, %v4176
  %v4297 = vpack.c.b16 %v4181, %v4177
  %v4298 = vpack.c.b16 %v4182, %v4178
  %v4299 = vpack.c.b16 %v4187, %v4183
  %v4300 = vpack.c.b16 %v4188, %v4184
  %v4301 = vpack.c.b16 %v4189, %v4185
  %v4302 = vpack.c.b16 %v4190, %v4186
  %v4303 = vpack.c.b16 %v4195, %v4191
  %v4304 = vpack.c.b16 %v4196, %v4192
  %v4305 = vpack.c.b16 %v4197, %v4193
  %v4306 = vpack.c.b16 %v4198, %v4194
  %v4307 = vpack.c.b16 %v4203, %v4199
  %v4308 = vpack.c.b16 %v4204, %v4200
  %v4309 = vpack.c.b16 %v4205, %v4201
  %v4310 = vpack.c.b16 %v4206, %v4202
  %v4311 = vpack.c.b16 %v4211, %v4207
  %v4312 = vpack.c.b16 %v4212, %v4208
  %v4313 = vpack.c.b16 %v4213, %v4209
  %v4314 = vpack.c.b16 %v4214, %v4210
  %v4315 = vpack.c.b16 %v4219, %v4215
  %v4316 = vpack.c.b16 %v4220, %v4216
  %v4317 = vpack.c.b16 %v4221, %v4217
  %v4318 = vpack.c.b16 %v4222, %v4218
  %v4319 = vpack.c.b16 %v4227, %v4223
  %v4320 = vpack.c.b16 %v4228, %v4224
  %v4321 = vpack.c.b16 %v4229, %v4225
  %v4322 = vpack.c.b16 %v4230, %v4226
  %v4323 = vpack.c.b16 %v4235, %v4231
  %v4324 = vpack.c.b16 %v4236, %v4232
  %v4325 = vpack.c.b16 %v4237, %v4233
  %v4326 = vpack.c.b16 %v4238, %v4234
  %v4327 = vpack.c.b16 %v4243, %v4239
  %v4328 = vpack.c.b16 %v4244, %v4240
  %v4329 = vpack.c.b16 %v4245, %v4241
  %v4330 = vpack.c.b16 %v4246, %v4242
  %v4331 = vpack.c.b16 %v4251, %v4247
  %v4332 = vpack.c.b16 %v4252, %v4248
  %v4333 = vpack.c.b16 %v4253, %v4249
  %v4334 = vpack.c.b16 %v4254, %v4250
  %v4335 = vpack.c.b16 %v4259, %v4255
  %v4336 = vpack.c.b16 %v4260, %v4256
  %v4337 = vpack.c.b16 %v4261, %v4257
  %v4338 = vpack.c.b16 %v4262, %v4258
  %v4339 = vpack.c.b16 %v4267, %v4263
  %v4340 = vpack.c.b16 %v4268, %v4264
  %v4341 = vpack.c.b16 %v4269, %v4265
  %v4342 = vpack.c.b16 %v4270, %v4266
  %v4343 = vpack.c.b16 %v4275, %v4271
  %v4344 = vpack.c.b16 %v4276, %v4272
  %v4345 = vpack.c.b16 %v4277, %v4273
  %v4346 = vpack.c.b16 %v4278, %v4274
  %v4347 = vpack.c.b16 %v4283, %v4279
  %v4348 = vpack.c.b16 %v4284, %v4280
  %v4349 = vpack.c.b16 %v4285, %v4281
  %v4350 = vpack.c.b16 %v4286, %v4282
  %4415 = vmatprep.subr.bf16.mxu0 %v4316
  %4416 = vmatpush1.bf16.msra.mxu0 %v4315
  %4417 = vmatprep.subr.bf16.mxu0 %v4312
  %4418 = vmatpush1.bf16.msra.mxu0 %v4311
  %4419 = vmatprep.subr.bf16.mxu0 %v4308
  %4420 = vmatpush1.bf16.msra.mxu0 %v4307
  %4421 = vmatprep.subr.bf16.mxu0 %v4304
  %4422 = vmatpush1.bf16.msra.mxu0 %v4303
  %4423 = vmatprep.subr.bf16.mxu0 %v4300
  %4424 = vmatpush1.bf16.msra.mxu0 %v4299
  %4425 = vmatprep.subr.bf16.mxu0 %v4296
  %4426 = vmatpush1.bf16.msra.mxu0 %v4295
  %4427 = vmatprep.subr.bf16.mxu0 %v4292
  %4428 = vmatpush1.bf16.msra.mxu0 %v4291
  %4429 = vmatprep.subr.bf16.mxu0 %v4288
  %4430 = vmatpush1.bf16.msra.mxu0 %v4287
  %4431 = vmatprep.subr.bf16.mxu0 %v4348
  %4432 = vmatpush2.bf16.msra.mxu0 %v4347
  %4433 = vmatprep.subr.bf16.mxu0 %v4344
  %4434 = vmatpush2.bf16.msra.mxu0 %v4343
  %4435 = vmatprep.subr.bf16.mxu0 %v4340
  %4436 = vmatpush2.bf16.msra.mxu0 %v4339
  %4437 = vmatprep.subr.bf16.mxu0 %v4336
  %4438 = vmatpush2.bf16.msra.mxu0 %v4335
  %4439 = vmatprep.subr.bf16.mxu0 %v4332
  %4440 = vmatpush2.bf16.msra.mxu0 %v4331
  %4441 = vmatprep.subr.bf16.mxu0 %v4328
  %4442 = vmatpush2.bf16.msra.mxu0 %v4327
  %4443 = vmatprep.subr.bf16.mxu0 %v4324
  %4444 = vmatpush2.bf16.msra.mxu0 %v4323
  %4445 = vmatprep.subr.bf16.mxu0 %v4320
  %4446 = vmatpush2.bf16.msra.mxu0 %v4319
  %4447 = vmatprep.mubr.bf16.mxu0 %v4030
  %4448 = vmatmul.mubr.bf16.gmra.mxu0 %v4028
  %v4449 = vpop.f32.mrf.mxu0
  %v4450 = vadd.f32 %v467, %v4449
  %v4451 = vpop.f32.mrf.mxu0
  %v4452 = vadd.f32 %v471, %v4451
  %v4453 = vpop.f32.mrf.mxu0
  %v4454 = vpop.f32.mrf.mxu0
  %4455 = vdwg.mxu0
  %4456 = vmatprep.subr.bf16.mxu0 %v4318
  %4457 = vmatpush1.bf16.msra.mxu0 %v4317
  %4458 = vmatprep.subr.bf16.mxu0 %v4314
  %4459 = vmatpush1.bf16.msra.mxu0 %v4313
  %4460 = vmatprep.subr.bf16.mxu0 %v4310
  %4461 = vmatpush1.bf16.msra.mxu0 %v4309
  %4462 = vmatprep.subr.bf16.mxu0 %v4306
  %4463 = vmatpush1.bf16.msra.mxu0 %v4305
  %4464 = vmatprep.subr.bf16.mxu0 %v4302
  %4465 = vmatpush1.bf16.msra.mxu0 %v4301
  %4466 = vmatprep.subr.bf16.mxu0 %v4298
  %4467 = vmatpush1.bf16.msra.mxu0 %v4297
  %4468 = vmatprep.subr.bf16.mxu0 %v4294
  %4469 = vmatpush1.bf16.msra.mxu0 %v4293
  %4470 = vmatprep.subr.bf16.mxu0 %v4290
  %4471 = vmatpush1.bf16.msra.mxu0 %v4289
  %4472 = vmatprep.subr.bf16.mxu0 %v4350
  %4473 = vmatpush2.bf16.msra.mxu0 %v4349
  %4474 = vmatprep.subr.bf16.mxu0 %v4346
  %4475 = vmatpush2.bf16.msra.mxu0 %v4345
  %4476 = vmatprep.subr.bf16.mxu0 %v4342
  %4477 = vmatpush2.bf16.msra.mxu0 %v4341
  %4478 = vmatprep.subr.bf16.mxu0 %v4338
  %4479 = vmatpush2.bf16.msra.mxu0 %v4337
  %4480 = vmatprep.subr.bf16.mxu0 %v4334
  %4481 = vmatpush2.bf16.msra.mxu0 %v4333
  %4482 = vmatprep.subr.bf16.mxu0 %v4330
  %4483 = vmatpush2.bf16.msra.mxu0 %v4329
  %4484 = vmatprep.subr.bf16.mxu0 %v4326
  %4485 = vmatpush2.bf16.msra.mxu0 %v4325
  %4486 = vmatprep.subr.bf16.mxu0 %v4322
  %4487 = vmatpush2.bf16.msra.mxu0 %v4321
  %4488 = vmatprep.mubr.bf16.mxu0 %v4030
  %4489 = vmatmul.mubr.bf16.gmra.mxu0 %v4028
  %v4490 = vpop.f32.mrf.mxu0
  %v4491 = vadd.f32 %v475, %v4490
  %v4492 = vpop.f32.mrf.mxu0
  %v4493 = vadd.f32 %v479, %v4492
  %v4494 = vpop.f32.mrf.mxu0
  %v4495 = vpop.f32.mrf.mxu0
  %4496 = vdwg.mxu0
  %v4497 = vxor.u32 %v4450, 2147483648
  %v4498 = vmul.f32 %v4497, 1.442695
  %v4499 = vpow.pop %v4498
  %v4500 = vadd.f32 %v4499, 1.0
  %v4501 = vrcp.pop %v4500
  %v4502 = vmul.f32 1.0, %v4501
  %v4503 = vxor.u32 %v4452, 2147483648
  %v4504 = vmul.f32 %v4503, 1.442695
  %v4505 = vpow.pop %v4504
  %v4506 = vadd.f32 %v4505, 1.0
  %v4507 = vrcp.pop %v4506
  %v4508 = vmul.f32 1.0, %v4507
  %v4509 = vtanh.pop %v4491
  %v4510 = vxor.u32 %v4493, 2147483648
  %v4511 = vmul.f32 %v4510, 1.442695
  %v4512 = vpow.pop %v4511
  %v4513 = vadd.f32 %v4512, 1.0
  %v4514 = vrcp.pop %v4513
  %v4515 = vmul.f32 1.0, %v4514
  %v4516 = vld [vmem:[#allocation5] sm:$0xff]
  %v4517 = vmul.f32 %v4508, %v4516
  %v4518 = vmul.f32 %v4502, %v4509
  %v4519 = vadd.f32 %v4517, %v4518
  %v4520 = vtanh.pop %v4519
  %v4521 = vmul.f32 %v4515, %v4520
  %4522 = vst [vmem:[#allocation5] sm:$0xff] %v4519
  %v4523 = vpack.c.bf16 %v4521, %v4521
  %4524 = vst [vmem:[#allocation4] sm:$0xf] %v4523
  %s4525 = scalar_lea.vmem [#allocation7], 16
  %4526 = vst [vmem:[%s4525] sm:$0xf] %v4523
  %s4527 = scalar_lea.vmem [#allocation6], 160
  %v4528 = vld [vmem:[%s4527] sm:$0xff]
  %v4529 = vld [vmem:[%s4527 + $0x8] sm:$0xff]
  %v4530 = vld [vmem:[%s4527 + $0x10] sm:$0xff]
  %v4531 = vld [vmem:[%s4527 + $0x18] sm:$0xff]
  %v4532 = vld [vmem:[#allocation2] sm:$0xf]
  %v4533 = vld [vmem:[%s2] sm:$0xff]
  %v4534 = vld [vmem:[%s2 + $0x8] sm:$0xff]
  %v4535 = vld [vmem:[%s2 + $0x10] sm:$0xff]
  %v4536 = vld [vmem:[%s2 + $0x18] sm:$0xff]
  %v4537 = vld [vmem:[%s2 + $0x20] sm:$0xff]
  %v4538 = vld [vmem:[%s2 + $0x28] sm:$0xff]
  %v4539 = vld [vmem:[%s2 + $0x30] sm:$0xff]
  %v4540 = vld [vmem:[%s2 + $0x38] sm:$0xff]
  %v4541 = vld [vmem:[%s2 + $0x40] sm:$0xff]
  %v4542 = vld [vmem:[%s2 + $0x48] sm:$0xff]
  %v4543 = vld [vmem:[%s2 + $0x50] sm:$0xff]
  %v4544 = vld [vmem:[%s2 + $0x58] sm:$0xff]
  %v4545 = vld [vmem:[%s2 + $0x60] sm:$0xff]
  %v4546 = vld [vmem:[%s2 + $0x68] sm:$0xff]
  %v4547 = vld [vmem:[%s2 + $0x70] sm:$0xff]
  %v4548 = vld [vmem:[%s2 + $0x78] sm:$0xff]
  %v4549 = vld [vmem:[%s2 + $0x80] sm:$0xff]
  %v4550 = vld [vmem:[%s2 + $0x88] sm:$0xff]
  %v4551 = vld [vmem:[%s2 + $0x90] sm:$0xff]
  %v4552 = vld [vmem:[%s2 + $0x98] sm:$0xff]
  %v4553 = vld [vmem:[%s2 + $0xa0] sm:$0xff]
  %v4554 = vld [vmem:[%s2 + $0xa8] sm:$0xff]
  %v4555 = vld [vmem:[%s2 + $0xb0] sm:$0xff]
  %v4556 = vld [vmem:[%s2 + $0xb8] sm:$0xff]
  %v4557 = vld [vmem:[%s2 + $0xc0] sm:$0xff]
  %v4558 = vld [vmem:[%s2 + $0xc8] sm:$0xff]
  %v4559 = vld [vmem:[%s2 + $0xd0] sm:$0xff]
  %v4560 = vld [vmem:[%s2 + $0xd8] sm:$0xff]
  %v4561 = vld [vmem:[%s2 + $0xe0] sm:$0xff]
  %v4562 = vld [vmem:[%s2 + $0xe8] sm:$0xff]
  %v4563 = vld [vmem:[%s2 + $0xf0] sm:$0xff]
  %v4564 = vld [vmem:[%s2 + $0xf8] sm:$0xff]
  %v4597 = vunpack.c.l.b16 %v4533
  %v4598 = vunpack.c.h.b16 %v4533
  %v4599 = vunpack.c.l.b16 %v4534
  %v4600 = vunpack.c.h.b16 %v4534
  %v4601 = vunpack.c.l.b16 %v4535
  %v4602 = vunpack.c.h.b16 %v4535
  %v4603 = vunpack.c.l.b16 %v4536
  %v4604 = vunpack.c.h.b16 %v4536
  %v4605 = vunpack.c.l.b16 %v4537
  %v4606 = vunpack.c.h.b16 %v4537
  %v4607 = vunpack.c.l.b16 %v4538
  %v4608 = vunpack.c.h.b16 %v4538
  %v4609 = vunpack.c.l.b16 %v4539
  %v4610 = vunpack.c.h.b16 %v4539
  %v4611 = vunpack.c.l.b16 %v4540
  %v4612 = vunpack.c.h.b16 %v4540
  %v4613 = vunpack.c.l.b16 %v4541
  %v4614 = vunpack.c.h.b16 %v4541
  %v4615 = vunpack.c.l.b16 %v4542
  %v4616 = vunpack.c.h.b16 %v4542
  %v4617 = vunpack.c.l.b16 %v4543
  %v4618 = vunpack.c.h.b16 %v4543
  %v4619 = vunpack.c.l.b16 %v4544
  %v4620 = vunpack.c.h.b16 %v4544
  %v4621 = vunpack.c.l.b16 %v4545
  %v4622 = vunpack.c.h.b16 %v4545
  %v4623 = vunpack.c.l.b16 %v4546
  %v4624 = vunpack.c.h.b16 %v4546
  %v4625 = vunpack.c.l.b16 %v4547
  %v4626 = vunpack.c.h.b16 %v4547
  %v4627 = vunpack.c.l.b16 %v4548
  %v4628 = vunpack.c.h.b16 %v4548
  %v4629 = vunpack.c.l.b16 %v4549
  %v4630 = vunpack.c.h.b16 %v4549
  %v4631 = vunpack.c.l.b16 %v4550
  %v4632 = vunpack.c.h.b16 %v4550
  %v4633 = vunpack.c.l.b16 %v4551
  %v4634 = vunpack.c.h.b16 %v4551
  %v4635 = vunpack.c.l.b16 %v4552
  %v4636 = vunpack.c.h.b16 %v4552
  %v4637 = vunpack.c.l.b16 %v4553
  %v4638 = vunpack.c.h.b16 %v4553
  %v4639 = vunpack.c.l.b16 %v4554
  %v4640 = vunpack.c.h.b16 %v4554
  %v4641 = vunpack.c.l.b16 %v4555
  %v4642 = vunpack.c.h.b16 %v4555
  %v4643 = vunpack.c.l.b16 %v4556
  %v4644 = vunpack.c.h.b16 %v4556
  %v4645 = vunpack.c.l.b16 %v4557
  %v4646 = vunpack.c.h.b16 %v4557
  %v4647 = vunpack.c.l.b16 %v4558
  %v4648 = vunpack.c.h.b16 %v4558
  %v4649 = vunpack.c.l.b16 %v4559
  %v4650 = vunpack.c.h.b16 %v4559
  %v4651 = vunpack.c.l.b16 %v4560
  %v4652 = vunpack.c.h.b16 %v4560
  %v4653 = vunpack.c.l.b16 %v4561
  %v4654 = vunpack.c.h.b16 %v4561
  %v4655 = vunpack.c.l.b16 %v4562
  %v4656 = vunpack.c.h.b16 %v4562
  %v4657 = vunpack.c.l.b16 %v4563
  %v4658 = vunpack.c.h.b16 %v4563
  %v4659 = vunpack.c.l.b16 %v4564
  %v4660 = vunpack.c.h.b16 %v4564
  %v4661 = vpack.c.b16 %v4601, %v4597
  %v4662 = vpack.c.b16 %v4602, %v4598
  %v4663 = vpack.c.b16 %v4603, %v4599
  %v4664 = vpack.c.b16 %v4604, %v4600
  %v4665 = vpack.c.b16 %v4609, %v4605
  %v4666 = vpack.c.b16 %v4610, %v4606
  %v4667 = vpack.c.b16 %v4611, %v4607
  %v4668 = vpack.c.b16 %v4612, %v4608
  %v4669 = vpack.c.b16 %v4617, %v4613
  %v4670 = vpack.c.b16 %v4618, %v4614
  %v4671 = vpack.c.b16 %v4619, %v4615
  %v4672 = vpack.c.b16 %v4620, %v4616
  %v4673 = vpack.c.b16 %v4625, %v4621
  %v4674 = vpack.c.b16 %v4626, %v4622
  %v4675 = vpack.c.b16 %v4627, %v4623
  %v4676 = vpack.c.b16 %v4628, %v4624
  %v4677 = vpack.c.b16 %v4633, %v4629
  %v4678 = vpack.c.b16 %v4634, %v4630
  %v4679 = vpack.c.b16 %v4635, %v4631
  %v4680 = vpack.c.b16 %v4636, %v4632
  %v4681 = vpack.c.b16 %v4641, %v4637
  %v4682 = vpack.c.b16 %v4642, %v4638
  %v4683 = vpack.c.b16 %v4643, %v4639
  %v4684 = vpack.c.b16 %v4644, %v4640
  %v4685 = vpack.c.b16 %v4649, %v4645
  %v4686 = vpack.c.b16 %v4650, %v4646
  %v4687 = vpack.c.b16 %v4651, %v4647
  %v4688 = vpack.c.b16 %v4652, %v4648
  %v4689 = vpack.c.b16 %v4657, %v4653
  %v4690 = vpack.c.b16 %v4658, %v4654
  %v4691 = vpack.c.b16 %v4659, %v4655
  %v4692 = vpack.c.b16 %v4660, %v4656
  %4725 = vmatprep.subr.bf16.mxu0 %v4690
  %4726 = vmatpush1.bf16.msra.mxu0 %v4689
  %4727 = vmatprep.subr.bf16.mxu0 %v4686
  %4728 = vmatpush1.bf16.msra.mxu0 %v4685
  %4729 = vmatprep.subr.bf16.mxu0 %v4682
  %4730 = vmatpush1.bf16.msra.mxu0 %v4681
  %4731 = vmatprep.subr.bf16.mxu0 %v4678
  %4732 = vmatpush1.bf16.msra.mxu0 %v4677
  %4733 = vmatprep.subr.bf16.mxu0 %v4674
  %4734 = vmatpush1.bf16.msra.mxu0 %v4673
  %4735 = vmatprep.subr.bf16.mxu0 %v4670
  %4736 = vmatpush1.bf16.msra.mxu0 %v4669
  %4737 = vmatprep.subr.bf16.mxu0 %v4666
  %4738 = vmatpush1.bf16.msra.mxu0 %v4665
  %4739 = vmatprep.subr.bf16.mxu0 %v4662
  %4740 = vmatpush1.bf16.msra.mxu0 %v4661
  %4741 = vmatprep.subr.bf16.mxu0 0
  %4742 = vmatpush2.bf16.msra.mxu0 0
  %4743 = vmatprep.subr.bf16.mxu0 0
  %4744 = vmatpush2.bf16.msra.mxu0 0
  %4745 = vmatprep.subr.bf16.mxu0 0
  %4746 = vmatpush2.bf16.msra.mxu0 0
  %4747 = vmatprep.subr.bf16.mxu0 0
  %4748 = vmatpush2.bf16.msra.mxu0 0
  %4749 = vmatprep.subr.bf16.mxu0 0
  %4750 = vmatpush2.bf16.msra.mxu0 0
  %4751 = vmatprep.subr.bf16.mxu0 0
  %4752 = vmatpush2.bf16.msra.mxu0 0
  %4753 = vmatprep.subr.bf16.mxu0 0
  %4754 = vmatpush2.bf16.msra.mxu0 0
  %4755 = vmatprep.subr.bf16.mxu0 0
  %4756 = vmatpush2.bf16.msra.mxu0 0
  %4757 = vmatprep.mubr.bf16.mxu0 0
  %4758 = vmatmul.mubr.bf16.gmra.mxu0 %v4532
  %v4759 = vpop.f32.mrf.mxu0
  %v4760 = vadd.f32 0.0, %v4759
  %v4761 = vpop.f32.mrf.mxu0
  %v4762 = vadd.f32 0.0, %v4761
  %v4763 = vpop.f32.mrf.mxu0
  %v4764 = vpop.f32.mrf.mxu0
  %4765 = vdwg.mxu0
  %4766 = vmatprep.subr.bf16.mxu0 %v4692
  %4767 = vmatpush1.bf16.msra.mxu0 %v4691
  %4768 = vmatprep.subr.bf16.mxu0 %v4688
  %4769 = vmatpush1.bf16.msra.mxu0 %v4687
  %4770 = vmatprep.subr.bf16.mxu0 %v4684
  %4771 = vmatpush1.bf16.msra.mxu0 %v4683
  %4772 = vmatprep.subr.bf16.mxu0 %v4680
  %4773 = vmatpush1.bf16.msra.mxu0 %v4679
  %4774 = vmatprep.subr.bf16.mxu0 %v4676
  %4775 = vmatpush1.bf16.msra.mxu0 %v4675
  %4776 = vmatprep.subr.bf16.mxu0 %v4672
  %4777 = vmatpush1.bf16.msra.mxu0 %v4671
  %4778 = vmatprep.subr.bf16.mxu0 %v4668
  %4779 = vmatpush1.bf16.msra.mxu0 %v4667
  %4780 = vmatprep.subr.bf16.mxu0 %v4664
  %4781 = vmatpush1.bf16.msra.mxu0 %v4663
  %4782 = vmatprep.subr.bf16.mxu0 0
  %4783 = vmatpush2.bf16.msra.mxu0 0
  %4784 = vmatprep.subr.bf16.mxu0 0
  %4785 = vmatpush2.bf16.msra.mxu0 0
  %4786 = vmatprep.subr.bf16.mxu0 0
  %4787 = vmatpush2.bf16.msra.mxu0 0
  %4788 = vmatprep.subr.bf16.mxu0 0
  %4789 = vmatpush2.bf16.msra.mxu0 0
  %4790 = vmatprep.subr.bf16.mxu0 0
  %4791 = vmatpush2.bf16.msra.mxu0 0
  %4792 = vmatprep.subr.bf16.mxu0 0
  %4793 = vmatpush2.bf16.msra.mxu0 0
  %4794 = vmatprep.subr.bf16.mxu0 0
  %4795 = vmatpush2.bf16.msra.mxu0 0
  %4796 = vmatprep.subr.bf16.mxu0 0
  %4797 = vmatpush2.bf16.msra.mxu0 0
  %4798 = vmatprep.mubr.bf16.mxu0 0
  %4799 = vmatmul.mubr.bf16.gmra.mxu0 %v4532
  %v4800 = vpop.f32.mrf.mxu0
  %v4801 = vadd.f32 0.0, %v4800
  %v4802 = vpop.f32.mrf.mxu0
  %v4803 = vadd.f32 0.0, %v4802
  %v4804 = vpop.f32.mrf.mxu0
  %v4805 = vpop.f32.mrf.mxu0
  %4806 = vdwg.mxu0
  %v4807 = vadd.f32 %v4528, %v4760
  %v4808 = vadd.f32 %v4529, %v4762
  %v4809 = vadd.f32 %v4530, %v4801
  %v4810 = vadd.f32 %v4531, %v4803
  %v4811 = vxor.u32 %v4807, 2147483648
  %v4812 = vmul.f32 %v4811, 1.442695
  %v4813 = vpow.pop %v4812
  %v4814 = vadd.f32 %v4813, 1.0
  %v4815 = vrcp.pop %v4814
  %v4816 = vmul.f32 1.0, %v4815
  %v4817 = vxor.u32 %v4808, 2147483648
  %v4818 = vmul.f32 %v4817, 1.442695
  %v4819 = vpow.pop %v4818
  %v4820 = vadd.f32 %v4819, 1.0
  %v4821 = vrcp.pop %v4820
  %v4822 = vmul.f32 1.0, %v4821
  %v4823 = vtanh.pop %v4809
  %v4824 = vxor.u32 %v4810, 2147483648
  %v4825 = vmul.f32 %v4824, 1.442695
  %v4826 = vpow.pop %v4825
  %v4827 = vadd.f32 %v4826, 1.0
  %v4828 = vrcp.pop %v4827
  %v4829 = vmul.f32 1.0, %v4828
  %v4830 = vld [vmem:[#allocation3] sm:$0xff]
  %v4831 = vmul.f32 %v4822, %v4830
  %v4832 = vmul.f32 %v4816, %v4823
  %v4833 = vadd.f32 %v4831, %v4832
  %v4834 = vtanh.pop %v4833
  %v4835 = vmul.f32 %v4829, %v4834
  %4836 = vst [vmem:[#allocation3] sm:$0xff] %v4833
  %v4837 = vpack.c.bf16 %v4835, %v4835
  %4838 = vst [vmem:[#allocation2] sm:$0xf] %v4837
  %v4839 = vld [vmem:[#allocation4] sm:$0xf]
  %v4840 = vld [vmem:[%s4] sm:$0xff]
  %v4841 = vld [vmem:[%s4 + $0x8] sm:$0xff]
  %v4842 = vld [vmem:[%s4 + $0x10] sm:$0xff]
  %v4843 = vld [vmem:[%s4 + $0x18] sm:$0xff]
  %v4844 = vld [vmem:[%s4 + $0x20] sm:$0xff]
  %v4845 = vld [vmem:[%s4 + $0x28] sm:$0xff]
  %v4846 = vld [vmem:[%s4 + $0x30] sm:$0xff]
  %v4847 = vld [vmem:[%s4 + $0x38] sm:$0xff]
  %v4848 = vld [vmem:[%s4 + $0x40] sm:$0xff]
  %v4849 = vld [vmem:[%s4 + $0x48] sm:$0xff]
  %v4850 = vld [vmem:[%s4 + $0x50] sm:$0xff]
  %v4851 = vld [vmem:[%s4 + $0x58] sm:$0xff]
  %v4852 = vld [vmem:[%s4 + $0x60] sm:$0xff]
  %v4853 = vld [vmem:[%s4 + $0x68] sm:$0xff]
  %v4854 = vld [vmem:[%s4 + $0x70] sm:$0xff]
  %v4855 = vld [vmem:[%s4 + $0x78] sm:$0xff]
  %v4856 = vld [vmem:[%s4 + $0x80] sm:$0xff]
  %v4857 = vld [vmem:[%s4 + $0x88] sm:$0xff]
  %v4858 = vld [vmem:[%s4 + $0x90] sm:$0xff]
  %v4859 = vld [vmem:[%s4 + $0x98] sm:$0xff]
  %v4860 = vld [vmem:[%s4 + $0xa0] sm:$0xff]
  %v4861 = vld [vmem:[%s4 + $0xa8] sm:$0xff]
  %v4862 = vld [vmem:[%s4 + $0xb0] sm:$0xff]
  %v4863 = vld [vmem:[%s4 + $0xb8] sm:$0xff]
  %v4864 = vld [vmem:[%s4 + $0xc0] sm:$0xff]
  %v4865 = vld [vmem:[%s4 + $0xc8] sm:$0xff]
  %v4866 = vld [vmem:[%s4 + $0xd0] sm:$0xff]
  %v4867 = vld [vmem:[%s4 + $0xd8] sm:$0xff]
  %v4868 = vld [vmem:[%s4 + $0xe0] sm:$0xff]
  %v4869 = vld [vmem:[%s4 + $0xe8] sm:$0xff]
  %v4870 = vld [vmem:[%s4 + $0xf0] sm:$0xff]
  %v4871 = vld [vmem:[%s4 + $0xf8] sm:$0xff]
  %v4872 = vld [vmem:[%s4 + $0x100] sm:$0xff]
  %v4873 = vld [vmem:[%s4 + $0x108] sm:$0xff]
  %v4874 = vld [vmem:[%s4 + $0x110] sm:$0xff]
  %v4875 = vld [vmem:[%s4 + $0x118] sm:$0xff]
  %v4876 = vld [vmem:[%s4 + $0x120] sm:$0xff]
  %v4877 = vld [vmem:[%s4 + $0x128] sm:$0xff]
  %v4878 = vld [vmem:[%s4 + $0x130] sm:$0xff]
  %v4879 = vld [vmem:[%s4 + $0x138] sm:$0xff]
  %v4880 = vld [vmem:[%s4 + $0x140] sm:$0xff]
  %v4881 = vld [vmem:[%s4 + $0x148] sm:$0xff]
  %v4882 = vld [vmem:[%s4 + $0x150] sm:$0xff]
  %v4883 = vld [vmem:[%s4 + $0x158] sm:$0xff]
  %v4884 = vld [vmem:[%s4 + $0x160] sm:$0xff]
  %v4885 = vld [vmem:[%s4 + $0x168] sm:$0xff]
  %v4886 = vld [vmem:[%s4 + $0x170] sm:$0xff]
  %v4887 = vld [vmem:[%s4 + $0x178] sm:$0xff]
  %v4888 = vld [vmem:[%s4 + $0x180] sm:$0xff]
  %v4889 = vld [vmem:[%s4 + $0x188] sm:$0xff]
  %v4890 = vld [vmem:[%s4 + $0x190] sm:$0xff]
  %v4891 = vld [vmem:[%s4 + $0x198] sm:$0xff]
  %v4892 = vld [vmem:[%s4 + $0x1a0] sm:$0xff]
  %v4893 = vld [vmem:[%s4 + $0x1a8] sm:$0xff]
  %v4894 = vld [vmem:[%s4 + $0x1b0] sm:$0xff]
  %v4895 = vld [vmem:[%s4 + $0x1b8] sm:$0xff]
  %v4896 = vld [vmem:[%s4 + $0x1c0] sm:$0xff]
  %v4897 = vld [vmem:[%s4 + $0x1c8] sm:$0xff]
  %v4898 = vld [vmem:[%s4 + $0x1d0] sm:$0xff]
  %v4899 = vld [vmem:[%s4 + $0x1d8] sm:$0xff]
  %v4900 = vld [vmem:[%s4 + $0x1e0] sm:$0xff]
  %v4901 = vld [vmem:[%s4 + $0x1e8] sm:$0xff]
  %v4902 = vld [vmem:[%s4 + $0x1f0] sm:$0xff]
  %v4903 = vld [vmem:[%s4 + $0x1f8] sm:$0xff]
  %v4968 = vunpack.c.l.b16 %v4840
  %v4969 = vunpack.c.h.b16 %v4840
  %v4970 = vunpack.c.l.b16 %v4841
  %v4971 = vunpack.c.h.b16 %v4841
  %v4972 = vunpack.c.l.b16 %v4842
  %v4973 = vunpack.c.h.b16 %v4842
  %v4974 = vunpack.c.l.b16 %v4843
  %v4975 = vunpack.c.h.b16 %v4843
  %v4976 = vunpack.c.l.b16 %v4844
  %v4977 = vunpack.c.h.b16 %v4844
  %v4978 = vunpack.c.l.b16 %v4845
  %v4979 = vunpack.c.h.b16 %v4845
  %v4980 = vunpack.c.l.b16 %v4846
  %v4981 = vunpack.c.h.b16 %v4846
  %v4982 = vunpack.c.l.b16 %v4847
  %v4983 = vunpack.c.h.b16 %v4847
  %v4984 = vunpack.c.l.b16 %v4848
  %v4985 = vunpack.c.h.b16 %v4848
  %v4986 = vunpack.c.l.b16 %v4849
  %v4987 = vunpack.c.h.b16 %v4849
  %v4988 = vunpack.c.l.b16 %v4850
  %v4989 = vunpack.c.h.b16 %v4850
  %v4990 = vunpack.c.l.b16 %v4851
  %v4991 = vunpack.c.h.b16 %v4851
  %v4992 = vunpack.c.l.b16 %v4852
  %v4993 = vunpack.c.h.b16 %v4852
  %v4994 = vunpack.c.l.b16 %v4853
  %v4995 = vunpack.c.h.b16 %v4853
  %v4996 = vunpack.c.l.b16 %v4854
  %v4997 = vunpack.c.h.b16 %v4854
  %v4998 = vunpack.c.l.b16 %v4855
  %v4999 = vunpack.c.h.b16 %v4855
  %v5000 = vunpack.c.l.b16 %v4856
  %v5001 = vunpack.c.h.b16 %v4856
  %v5002 = vunpack.c.l.b16 %v4857
  %v5003 = vunpack.c.h.b16 %v4857
  %v5004 = vunpack.c.l.b16 %v4858
  %v5005 = vunpack.c.h.b16 %v4858
  %v5006 = vunpack.c.l.b16 %v4859
  %v5007 = vunpack.c.h.b16 %v4859
  %v5008 = vunpack.c.l.b16 %v4860
  %v5009 = vunpack.c.h.b16 %v4860
  %v5010 = vunpack.c.l.b16 %v4861
  %v5011 = vunpack.c.h.b16 %v4861
  %v5012 = vunpack.c.l.b16 %v4862
  %v5013 = vunpack.c.h.b16 %v4862
  %v5014 = vunpack.c.l.b16 %v4863
  %v5015 = vunpack.c.h.b16 %v4863
  %v5016 = vunpack.c.l.b16 %v4864
  %v5017 = vunpack.c.h.b16 %v4864
  %v5018 = vunpack.c.l.b16 %v4865
  %v5019 = vunpack.c.h.b16 %v4865
  %v5020 = vunpack.c.l.b16 %v4866
  %v5021 = vunpack.c.h.b16 %v4866
  %v5022 = vunpack.c.l.b16 %v4867
  %v5023 = vunpack.c.h.b16 %v4867
  %v5024 = vunpack.c.l.b16 %v4868
  %v5025 = vunpack.c.h.b16 %v4868
  %v5026 = vunpack.c.l.b16 %v4869
  %v5027 = vunpack.c.h.b16 %v4869
  %v5028 = vunpack.c.l.b16 %v4870
  %v5029 = vunpack.c.h.b16 %v4870
  %v5030 = vunpack.c.l.b16 %v4871
  %v5031 = vunpack.c.h.b16 %v4871
  %v5032 = vunpack.c.l.b16 %v4872
  %v5033 = vunpack.c.h.b16 %v4872
  %v5034 = vunpack.c.l.b16 %v4873
  %v5035 = vunpack.c.h.b16 %v4873
  %v5036 = vunpack.c.l.b16 %v4874
  %v5037 = vunpack.c.h.b16 %v4874
  %v5038 = vunpack.c.l.b16 %v4875
  %v5039 = vunpack.c.h.b16 %v4875
  %v5040 = vunpack.c.l.b16 %v4876
  %v5041 = vunpack.c.h.b16 %v4876
  %v5042 = vunpack.c.l.b16 %v4877
  %v5043 = vunpack.c.h.b16 %v4877
  %v5044 = vunpack.c.l.b16 %v4878
  %v5045 = vunpack.c.h.b16 %v4878
  %v5046 = vunpack.c.l.b16 %v4879
  %v5047 = vunpack.c.h.b16 %v4879
  %v5048 = vunpack.c.l.b16 %v4880
  %v5049 = vunpack.c.h.b16 %v4880
  %v5050 = vunpack.c.l.b16 %v4881
  %v5051 = vunpack.c.h.b16 %v4881
  %v5052 = vunpack.c.l.b16 %v4882
  %v5053 = vunpack.c.h.b16 %v4882
  %v5054 = vunpack.c.l.b16 %v4883
  %v5055 = vunpack.c.h.b16 %v4883
  %v5056 = vunpack.c.l.b16 %v4884
  %v5057 = vunpack.c.h.b16 %v4884
  %v5058 = vunpack.c.l.b16 %v4885
  %v5059 = vunpack.c.h.b16 %v4885
  %v5060 = vunpack.c.l.b16 %v4886
  %v5061 = vunpack.c.h.b16 %v4886
  %v5062 = vunpack.c.l.b16 %v4887
  %v5063 = vunpack.c.h.b16 %v4887
  %v5064 = vunpack.c.l.b16 %v4888
  %v5065 = vunpack.c.h.b16 %v4888
  %v5066 = vunpack.c.l.b16 %v4889
  %v5067 = vunpack.c.h.b16 %v4889
  %v5068 = vunpack.c.l.b16 %v4890
  %v5069 = vunpack.c.h.b16 %v4890
  %v5070 = vunpack.c.l.b16 %v4891
  %v5071 = vunpack.c.h.b16 %v4891
  %v5072 = vunpack.c.l.b16 %v4892
  %v5073 = vunpack.c.h.b16 %v4892
  %v5074 = vunpack.c.l.b16 %v4893
  %v5075 = vunpack.c.h.b16 %v4893
  %v5076 = vunpack.c.l.b16 %v4894
  %v5077 = vunpack.c.h.b16 %v4894
  %v5078 = vunpack.c.l.b16 %v4895
  %v5079 = vunpack.c.h.b16 %v4895
  %v5080 = vunpack.c.l.b16 %v4896
  %v5081 = vunpack.c.h.b16 %v4896
  %v5082 = vunpack.c.l.b16 %v4897
  %v5083 = vunpack.c.h.b16 %v4897
  %v5084 = vunpack.c.l.b16 %v4898
  %v5085 = vunpack.c.h.b16 %v4898
  %v5086 = vunpack.c.l.b16 %v4899
  %v5087 = vunpack.c.h.b16 %v4899
  %v5088 = vunpack.c.l.b16 %v4900
  %v5089 = vunpack.c.h.b16 %v4900
  %v5090 = vunpack.c.l.b16 %v4901
  %v5091 = vunpack.c.h.b16 %v4901
  %v5092 = vunpack.c.l.b16 %v4902
  %v5093 = vunpack.c.h.b16 %v4902
  %v5094 = vunpack.c.l.b16 %v4903
  %v5095 = vunpack.c.h.b16 %v4903
  %v5096 = vpack.c.b16 %v4972, %v4968
  %v5097 = vpack.c.b16 %v4973, %v4969
  %v5098 = vpack.c.b16 %v4974, %v4970
  %v5099 = vpack.c.b16 %v4975, %v4971
  %v5100 = vpack.c.b16 %v4980, %v4976
  %v5101 = vpack.c.b16 %v4981, %v4977
  %v5102 = vpack.c.b16 %v4982, %v4978
  %v5103 = vpack.c.b16 %v4983, %v4979
  %v5104 = vpack.c.b16 %v4988, %v4984
  %v5105 = vpack.c.b16 %v4989, %v4985
  %v5106 = vpack.c.b16 %v4990, %v4986
  %v5107 = vpack.c.b16 %v4991, %v4987
  %v5108 = vpack.c.b16 %v4996, %v4992
  %v5109 = vpack.c.b16 %v4997, %v4993
  %v5110 = vpack.c.b16 %v4998, %v4994
  %v5111 = vpack.c.b16 %v4999, %v4995
  %v5112 = vpack.c.b16 %v5004, %v5000
  %v5113 = vpack.c.b16 %v5005, %v5001
  %v5114 = vpack.c.b16 %v5006, %v5002
  %v5115 = vpack.c.b16 %v5007, %v5003
  %v5116 = vpack.c.b16 %v5012, %v5008
  %v5117 = vpack.c.b16 %v5013, %v5009
  %v5118 = vpack.c.b16 %v5014, %v5010
  %v5119 = vpack.c.b16 %v5015, %v5011
  %v5120 = vpack.c.b16 %v5020, %v5016
  %v5121 = vpack.c.b16 %v5021, %v5017
  %v5122 = vpack.c.b16 %v5022, %v5018
  %v5123 = vpack.c.b16 %v5023, %v5019
  %v5124 = vpack.c.b16 %v5028, %v5024
  %v5125 = vpack.c.b16 %v5029, %v5025
  %v5126 = vpack.c.b16 %v5030, %v5026
  %v5127 = vpack.c.b16 %v5031, %v5027
  %v5128 = vpack.c.b16 %v5036, %v5032
  %v5129 = vpack.c.b16 %v5037, %v5033
  %v5130 = vpack.c.b16 %v5038, %v5034
  %v5131 = vpack.c.b16 %v5039, %v5035
  %v5132 = vpack.c.b16 %v5044, %v5040
  %v5133 = vpack.c.b16 %v5045, %v5041
  %v5134 = vpack.c.b16 %v5046, %v5042
  %v5135 = vpack.c.b16 %v5047, %v5043
  %v5136 = vpack.c.b16 %v5052, %v5048
  %v5137 = vpack.c.b16 %v5053, %v5049
  %v5138 = vpack.c.b16 %v5054, %v5050
  %v5139 = vpack.c.b16 %v5055, %v5051
  %v5140 = vpack.c.b16 %v5060, %v5056
  %v5141 = vpack.c.b16 %v5061, %v5057
  %v5142 = vpack.c.b16 %v5062, %v5058
  %v5143 = vpack.c.b16 %v5063, %v5059
  %v5144 = vpack.c.b16 %v5068, %v5064
  %v5145 = vpack.c.b16 %v5069, %v5065
  %v5146 = vpack.c.b16 %v5070, %v5066
  %v5147 = vpack.c.b16 %v5071, %v5067
  %v5148 = vpack.c.b16 %v5076, %v5072
  %v5149 = vpack.c.b16 %v5077, %v5073
  %v5150 = vpack.c.b16 %v5078, %v5074
  %v5151 = vpack.c.b16 %v5079, %v5075
  %v5152 = vpack.c.b16 %v5084, %v5080
  %v5153 = vpack.c.b16 %v5085, %v5081
  %v5154 = vpack.c.b16 %v5086, %v5082
  %v5155 = vpack.c.b16 %v5087, %v5083
  %v5156 = vpack.c.b16 %v5092, %v5088
  %v5157 = vpack.c.b16 %v5093, %v5089
  %v5158 = vpack.c.b16 %v5094, %v5090
  %v5159 = vpack.c.b16 %v5095, %v5091
  %5224 = vmatprep.subr.bf16.mxu0 %v5125
  %5225 = vmatpush1.bf16.msra.mxu0 %v5124
  %5226 = vmatprep.subr.bf16.mxu0 %v5121
  %5227 = vmatpush1.bf16.msra.mxu0 %v5120
  %5228 = vmatprep.subr.bf16.mxu0 %v5117
  %5229 = vmatpush1.bf16.msra.mxu0 %v5116
  %5230 = vmatprep.subr.bf16.mxu0 %v5113
  %5231 = vmatpush1.bf16.msra.mxu0 %v5112
  %5232 = vmatprep.subr.bf16.mxu0 %v5109
  %5233 = vmatpush1.bf16.msra.mxu0 %v5108
  %5234 = vmatprep.subr.bf16.mxu0 %v5105
  %5235 = vmatpush1.bf16.msra.mxu0 %v5104
  %5236 = vmatprep.subr.bf16.mxu0 %v5101
  %5237 = vmatpush1.bf16.msra.mxu0 %v5100
  %5238 = vmatprep.subr.bf16.mxu0 %v5097
  %5239 = vmatpush1.bf16.msra.mxu0 %v5096
  %5240 = vmatprep.subr.bf16.mxu0 %v5157
  %5241 = vmatpush2.bf16.msra.mxu0 %v5156
  %5242 = vmatprep.subr.bf16.mxu0 %v5153
  %5243 = vmatpush2.bf16.msra.mxu0 %v5152
  %5244 = vmatprep.subr.bf16.mxu0 %v5149
  %5245 = vmatpush2.bf16.msra.mxu0 %v5148
  %5246 = vmatprep.subr.bf16.mxu0 %v5145
  %5247 = vmatpush2.bf16.msra.mxu0 %v5144
  %5248 = vmatprep.subr.bf16.mxu0 %v5141
  %5249 = vmatpush2.bf16.msra.mxu0 %v5140
  %5250 = vmatprep.subr.bf16.mxu0 %v5137
  %5251 = vmatpush2.bf16.msra.mxu0 %v5136
  %5252 = vmatprep.subr.bf16.mxu0 %v5133
  %5253 = vmatpush2.bf16.msra.mxu0 %v5132
  %5254 = vmatprep.subr.bf16.mxu0 %v5129
  %5255 = vmatpush2.bf16.msra.mxu0 %v5128
  %5256 = vmatprep.mubr.bf16.mxu0 %v4839
  %5257 = vmatmul.mubr.bf16.gmra.mxu0 %v4837
  %v5258 = vpop.f32.mrf.mxu0
  %v5259 = vadd.f32 %v467, %v5258
  %v5260 = vpop.f32.mrf.mxu0
  %v5261 = vadd.f32 %v471, %v5260
  %v5262 = vpop.f32.mrf.mxu0
  %v5263 = vpop.f32.mrf.mxu0
  %5264 = vdwg.mxu0
  %5265 = vmatprep.subr.bf16.mxu0 %v5127
  %5266 = vmatpush1.bf16.msra.mxu0 %v5126
  %5267 = vmatprep.subr.bf16.mxu0 %v5123
  %5268 = vmatpush1.bf16.msra.mxu0 %v5122
  %5269 = vmatprep.subr.bf16.mxu0 %v5119
  %5270 = vmatpush1.bf16.msra.mxu0 %v5118
  %5271 = vmatprep.subr.bf16.mxu0 %v5115
  %5272 = vmatpush1.bf16.msra.mxu0 %v5114
  %5273 = vmatprep.subr.bf16.mxu0 %v5111
  %5274 = vmatpush1.bf16.msra.mxu0 %v5110
  %5275 = vmatprep.subr.bf16.mxu0 %v5107
  %5276 = vmatpush1.bf16.msra.mxu0 %v5106
  %5277 = vmatprep.subr.bf16.mxu0 %v5103
  %5278 = vmatpush1.bf16.msra.mxu0 %v5102
  %5279 = vmatprep.subr.bf16.mxu0 %v5099
  %5280 = vmatpush1.bf16.msra.mxu0 %v5098
  %5281 = vmatprep.subr.bf16.mxu0 %v5159
  %5282 = vmatpush2.bf16.msra.mxu0 %v5158
  %5283 = vmatprep.subr.bf16.mxu0 %v5155
  %5284 = vmatpush2.bf16.msra.mxu0 %v5154
  %5285 = vmatprep.subr.bf16.mxu0 %v5151
  %5286 = vmatpush2.bf16.msra.mxu0 %v5150
  %5287 = vmatprep.subr.bf16.mxu0 %v5147
  %5288 = vmatpush2.bf16.msra.mxu0 %v5146
  %5289 = vmatprep.subr.bf16.mxu0 %v5143
  %5290 = vmatpush2.bf16.msra.mxu0 %v5142
  %5291 = vmatprep.subr.bf16.mxu0 %v5139
  %5292 = vmatpush2.bf16.msra.mxu0 %v5138
  %5293 = vmatprep.subr.bf16.mxu0 %v5135
  %5294 = vmatpush2.bf16.msra.mxu0 %v5134
  %5295 = vmatprep.subr.bf16.mxu0 %v5131
  %5296 = vmatpush2.bf16.msra.mxu0 %v5130
  %5297 = vmatprep.mubr.bf16.mxu0 %v4839
  %5298 = vmatmul.mubr.bf16.gmra.mxu0 %v4837
  %v5299 = vpop.f32.mrf.mxu0
  %v5300 = vadd.f32 %v475, %v5299
  %v5301 = vpop.f32.mrf.mxu0
  %v5302 = vadd.f32 %v479, %v5301
  %v5303 = vpop.f32.mrf.mxu0
  %v5304 = vpop.f32.mrf.mxu0
  %5305 = vdwg.mxu0
  %v5306 = vxor.u32 %v5259, 2147483648
  %v5307 = vmul.f32 %v5306, 1.442695
  %v5308 = vpow.pop %v5307
  %v5309 = vadd.f32 %v5308, 1.0
  %v5310 = vrcp.pop %v5309
  %v5311 = vmul.f32 1.0, %v5310
  %v5312 = vxor.u32 %v5261, 2147483648
  %v5313 = vmul.f32 %v5312, 1.442695
  %v5314 = vpow.pop %v5313
  %v5315 = vadd.f32 %v5314, 1.0
  %v5316 = vrcp.pop %v5315
  %v5317 = vmul.f32 1.0, %v5316
  %v5318 = vtanh.pop %v5300
  %v5319 = vxor.u32 %v5302, 2147483648
  %v5320 = vmul.f32 %v5319, 1.442695
  %v5321 = vpow.pop %v5320
  %v5322 = vadd.f32 %v5321, 1.0
  %v5323 = vrcp.pop %v5322
  %v5324 = vmul.f32 1.0, %v5323
  %v5325 = vld [vmem:[#allocation5] sm:$0xff]
  %v5326 = vmul.f32 %v5317, %v5325
  %v5327 = vmul.f32 %v5311, %v5318
  %v5328 = vadd.f32 %v5326, %v5327
  %v5329 = vtanh.pop %v5328
  %v5330 = vmul.f32 %v5324, %v5329
  %5331 = vst [vmem:[#allocation5] sm:$0xff] %v5328
  %v5332 = vpack.c.bf16 %v5330, %v5330
  %5333 = vst [vmem:[#allocation4] sm:$0xf] %v5332
  %s5334 = scalar_lea.vmem [#allocation7], 20
  %5335 = vst [vmem:[%s5334] sm:$0xf] %v5332
  %s5336 = scalar_lea.vmem [#allocation6], 192
  %v5337 = vld [vmem:[%s5336] sm:$0xff]
  %v5338 = vld [vmem:[%s5336 + $0x8] sm:$0xff]
  %v5339 = vld [vmem:[%s5336 + $0x10] sm:$0xff]
  %v5340 = vld [vmem:[%s5336 + $0x18] sm:$0xff]
  %v5341 = vld [vmem:[#allocation2] sm:$0xf]
  %v5342 = vld [vmem:[%s2] sm:$0xff]
  %v5343 = vld [vmem:[%s2 + $0x8] sm:$0xff]
  %v5344 = vld [vmem:[%s2 + $0x10] sm:$0xff]
  %v5345 = vld [vmem:[%s2 + $0x18] sm:$0xff]
  %v5346 = vld [vmem:[%s2 + $0x20] sm:$0xff]
  %v5347 = vld [vmem:[%s2 + $0x28] sm:$0xff]
  %v5348 = vld [vmem:[%s2 + $0x30] sm:$0xff]
  %v5349 = vld [vmem:[%s2 + $0x38] sm:$0xff]
  %v5350 = vld [vmem:[%s2 + $0x40] sm:$0xff]
  %v5351 = vld [vmem:[%s2 + $0x48] sm:$0xff]
  %v5352 = vld [vmem:[%s2 + $0x50] sm:$0xff]
  %v5353 = vld [vmem:[%s2 + $0x58] sm:$0xff]
  %v5354 = vld [vmem:[%s2 + $0x60] sm:$0xff]
  %v5355 = vld [vmem:[%s2 + $0x68] sm:$0xff]
  %v5356 = vld [vmem:[%s2 + $0x70] sm:$0xff]
  %v5357 = vld [vmem:[%s2 + $0x78] sm:$0xff]
  %v5358 = vld [vmem:[%s2 + $0x80] sm:$0xff]
  %v5359 = vld [vmem:[%s2 + $0x88] sm:$0xff]
  %v5360 = vld [vmem:[%s2 + $0x90] sm:$0xff]
  %v5361 = vld [vmem:[%s2 + $0x98] sm:$0xff]
  %v5362 = vld [vmem:[%s2 + $0xa0] sm:$0xff]
  %v5363 = vld [vmem:[%s2 + $0xa8] sm:$0xff]
  %v5364 = vld [vmem:[%s2 + $0xb0] sm:$0xff]
  %v5365 = vld [vmem:[%s2 + $0xb8] sm:$0xff]
  %v5366 = vld [vmem:[%s2 + $0xc0] sm:$0xff]
  %v5367 = vld [vmem:[%s2 + $0xc8] sm:$0xff]
  %v5368 = vld [vmem:[%s2 + $0xd0] sm:$0xff]
  %v5369 = vld [vmem:[%s2 + $0xd8] sm:$0xff]
  %v5370 = vld [vmem:[%s2 + $0xe0] sm:$0xff]
  %v5371 = vld [vmem:[%s2 + $0xe8] sm:$0xff]
  %v5372 = vld [vmem:[%s2 + $0xf0] sm:$0xff]
  %v5373 = vld [vmem:[%s2 + $0xf8] sm:$0xff]
  %v5406 = vunpack.c.l.b16 %v5342
  %v5407 = vunpack.c.h.b16 %v5342
  %v5408 = vunpack.c.l.b16 %v5343
  %v5409 = vunpack.c.h.b16 %v5343
  %v5410 = vunpack.c.l.b16 %v5344
  %v5411 = vunpack.c.h.b16 %v5344
  %v5412 = vunpack.c.l.b16 %v5345
  %v5413 = vunpack.c.h.b16 %v5345
  %v5414 = vunpack.c.l.b16 %v5346
  %v5415 = vunpack.c.h.b16 %v5346
  %v5416 = vunpack.c.l.b16 %v5347
  %v5417 = vunpack.c.h.b16 %v5347
  %v5418 = vunpack.c.l.b16 %v5348
  %v5419 = vunpack.c.h.b16 %v5348
  %v5420 = vunpack.c.l.b16 %v5349
  %v5421 = vunpack.c.h.b16 %v5349
  %v5422 = vunpack.c.l.b16 %v5350
  %v5423 = vunpack.c.h.b16 %v5350
  %v5424 = vunpack.c.l.b16 %v5351
  %v5425 = vunpack.c.h.b16 %v5351
  %v5426 = vunpack.c.l.b16 %v5352
  %v5427 = vunpack.c.h.b16 %v5352
  %v5428 = vunpack.c.l.b16 %v5353
  %v5429 = vunpack.c.h.b16 %v5353
  %v5430 = vunpack.c.l.b16 %v5354
  %v5431 = vunpack.c.h.b16 %v5354
  %v5432 = vunpack.c.l.b16 %v5355
  %v5433 = vunpack.c.h.b16 %v5355
  %v5434 = vunpack.c.l.b16 %v5356
  %v5435 = vunpack.c.h.b16 %v5356
  %v5436 = vunpack.c.l.b16 %v5357
  %v5437 = vunpack.c.h.b16 %v5357
  %v5438 = vunpack.c.l.b16 %v5358
  %v5439 = vunpack.c.h.b16 %v5358
  %v5440 = vunpack.c.l.b16 %v5359
  %v5441 = vunpack.c.h.b16 %v5359
  %v5442 = vunpack.c.l.b16 %v5360
  %v5443 = vunpack.c.h.b16 %v5360
  %v5444 = vunpack.c.l.b16 %v5361
  %v5445 = vunpack.c.h.b16 %v5361
  %v5446 = vunpack.c.l.b16 %v5362
  %v5447 = vunpack.c.h.b16 %v5362
  %v5448 = vunpack.c.l.b16 %v5363
  %v5449 = vunpack.c.h.b16 %v5363
  %v5450 = vunpack.c.l.b16 %v5364
  %v5451 = vunpack.c.h.b16 %v5364
  %v5452 = vunpack.c.l.b16 %v5365
  %v5453 = vunpack.c.h.b16 %v5365
  %v5454 = vunpack.c.l.b16 %v5366
  %v5455 = vunpack.c.h.b16 %v5366
  %v5456 = vunpack.c.l.b16 %v5367
  %v5457 = vunpack.c.h.b16 %v5367
  %v5458 = vunpack.c.l.b16 %v5368
  %v5459 = vunpack.c.h.b16 %v5368
  %v5460 = vunpack.c.l.b16 %v5369
  %v5461 = vunpack.c.h.b16 %v5369
  %v5462 = vunpack.c.l.b16 %v5370
  %v5463 = vunpack.c.h.b16 %v5370
  %v5464 = vunpack.c.l.b16 %v5371
  %v5465 = vunpack.c.h.b16 %v5371
  %v5466 = vunpack.c.l.b16 %v5372
  %v5467 = vunpack.c.h.b16 %v5372
  %v5468 = vunpack.c.l.b16 %v5373
  %v5469 = vunpack.c.h.b16 %v5373
  %v5470 = vpack.c.b16 %v5410, %v5406
  %v5471 = vpack.c.b16 %v5411, %v5407
  %v5472 = vpack.c.b16 %v5412, %v5408
  %v5473 = vpack.c.b16 %v5413, %v5409
  %v5474 = vpack.c.b16 %v5418, %v5414
  %v5475 = vpack.c.b16 %v5419, %v5415
  %v5476 = vpack.c.b16 %v5420, %v5416
  %v5477 = vpack.c.b16 %v5421, %v5417
  %v5478 = vpack.c.b16 %v5426, %v5422
  %v5479 = vpack.c.b16 %v5427, %v5423
  %v5480 = vpack.c.b16 %v5428, %v5424
  %v5481 = vpack.c.b16 %v5429, %v5425
  %v5482 = vpack.c.b16 %v5434, %v5430
  %v5483 = vpack.c.b16 %v5435, %v5431
  %v5484 = vpack.c.b16 %v5436, %v5432
  %v5485 = vpack.c.b16 %v5437, %v5433
  %v5486 = vpack.c.b16 %v5442, %v5438
  %v5487 = vpack.c.b16 %v5443, %v5439
  %v5488 = vpack.c.b16 %v5444, %v5440
  %v5489 = vpack.c.b16 %v5445, %v5441
  %v5490 = vpack.c.b16 %v5450, %v5446
  %v5491 = vpack.c.b16 %v5451, %v5447
  %v5492 = vpack.c.b16 %v5452, %v5448
  %v5493 = vpack.c.b16 %v5453, %v5449
  %v5494 = vpack.c.b16 %v5458, %v5454
  %v5495 = vpack.c.b16 %v5459, %v5455
  %v5496 = vpack.c.b16 %v5460, %v5456
  %v5497 = vpack.c.b16 %v5461, %v5457
  %v5498 = vpack.c.b16 %v5466, %v5462
  %v5499 = vpack.c.b16 %v5467, %v5463
  %v5500 = vpack.c.b16 %v5468, %v5464
  %v5501 = vpack.c.b16 %v5469, %v5465
  %5534 = vmatprep.subr.bf16.mxu0 %v5499
  %5535 = vmatpush1.bf16.msra.mxu0 %v5498
  %5536 = vmatprep.subr.bf16.mxu0 %v5495
  %5537 = vmatpush1.bf16.msra.mxu0 %v5494
  %5538 = vmatprep.subr.bf16.mxu0 %v5491
  %5539 = vmatpush1.bf16.msra.mxu0 %v5490
  %5540 = vmatprep.subr.bf16.mxu0 %v5487
  %5541 = vmatpush1.bf16.msra.mxu0 %v5486
  %5542 = vmatprep.subr.bf16.mxu0 %v5483
  %5543 = vmatpush1.bf16.msra.mxu0 %v5482
  %5544 = vmatprep.subr.bf16.mxu0 %v5479
  %5545 = vmatpush1.bf16.msra.mxu0 %v5478
  %5546 = vmatprep.subr.bf16.mxu0 %v5475
  %5547 = vmatpush1.bf16.msra.mxu0 %v5474
  %5548 = vmatprep.subr.bf16.mxu0 %v5471
  %5549 = vmatpush1.bf16.msra.mxu0 %v5470
  %5550 = vmatprep.subr.bf16.mxu0 0
  %5551 = vmatpush2.bf16.msra.mxu0 0
  %5552 = vmatprep.subr.bf16.mxu0 0
  %5553 = vmatpush2.bf16.msra.mxu0 0
  %5554 = vmatprep.subr.bf16.mxu0 0
  %5555 = vmatpush2.bf16.msra.mxu0 0
  %5556 = vmatprep.subr.bf16.mxu0 0
  %5557 = vmatpush2.bf16.msra.mxu0 0
  %5558 = vmatprep.subr.bf16.mxu0 0
  %5559 = vmatpush2.bf16.msra.mxu0 0
  %5560 = vmatprep.subr.bf16.mxu0 0
  %5561 = vmatpush2.bf16.msra.mxu0 0
  %5562 = vmatprep.subr.bf16.mxu0 0
  %5563 = vmatpush2.bf16.msra.mxu0 0
  %5564 = vmatprep.subr.bf16.mxu0 0
  %5565 = vmatpush2.bf16.msra.mxu0 0
  %5566 = vmatprep.mubr.bf16.mxu0 0
  %5567 = vmatmul.mubr.bf16.gmra.mxu0 %v5341
  %v5568 = vpop.f32.mrf.mxu0
  %v5569 = vadd.f32 0.0, %v5568
  %v5570 = vpop.f32.mrf.mxu0
  %v5571 = vadd.f32 0.0, %v5570
  %v5572 = vpop.f32.mrf.mxu0
  %v5573 = vpop.f32.mrf.mxu0
  %5574 = vdwg.mxu0
  %5575 = vmatprep.subr.bf16.mxu0 %v5501
  %5576 = vmatpush1.bf16.msra.mxu0 %v5500
  %5577 = vmatprep.subr.bf16.mxu0 %v5497
  %5578 = vmatpush1.bf16.msra.mxu0 %v5496
  %5579 = vmatprep.subr.bf16.mxu0 %v5493
  %5580 = vmatpush1.bf16.msra.mxu0 %v5492
  %5581 = vmatprep.subr.bf16.mxu0 %v5489
  %5582 = vmatpush1.bf16.msra.mxu0 %v5488
  %5583 = vmatprep.subr.bf16.mxu0 %v5485
  %5584 = vmatpush1.bf16.msra.mxu0 %v5484
  %5585 = vmatprep.subr.bf16.mxu0 %v5481
  %5586 = vmatpush1.bf16.msra.mxu0 %v5480
  %5587 = vmatprep.subr.bf16.mxu0 %v5477
  %5588 = vmatpush1.bf16.msra.mxu0 %v5476
  %5589 = vmatprep.subr.bf16.mxu0 %v5473
  %5590 = vmatpush1.bf16.msra.mxu0 %v5472
  %5591 = vmatprep.subr.bf16.mxu0 0
  %5592 = vmatpush2.bf16.msra.mxu0 0
  %5593 = vmatprep.subr.bf16.mxu0 0
  %5594 = vmatpush2.bf16.msra.mxu0 0
  %5595 = vmatprep.subr.bf16.mxu0 0
  %5596 = vmatpush2.bf16.msra.mxu0 0
  %5597 = vmatprep.subr.bf16.mxu0 0
  %5598 = vmatpush2.bf16.msra.mxu0 0
  %5599 = vmatprep.subr.bf16.mxu0 0
  %5600 = vmatpush2.bf16.msra.mxu0 0
  %5601 = vmatprep.subr.bf16.mxu0 0
  %5602 = vmatpush2.bf16.msra.mxu0 0
  %5603 = vmatprep.subr.bf16.mxu0 0
  %5604 = vmatpush2.bf16.msra.mxu0 0
  %5605 = vmatprep.subr.bf16.mxu0 0
  %5606 = vmatpush2.bf16.msra.mxu0 0
  %5607 = vmatprep.mubr.bf16.mxu0 0
  %5608 = vmatmul.mubr.bf16.gmra.mxu0 %v5341
  %v5609 = vpop.f32.mrf.mxu0
  %v5610 = vadd.f32 0.0, %v5609
  %v5611 = vpop.f32.mrf.mxu0
  %v5612 = vadd.f32 0.0, %v5611
  %v5613 = vpop.f32.mrf.mxu0
  %v5614 = vpop.f32.mrf.mxu0
  %5615 = vdwg.mxu0
  %v5616 = vadd.f32 %v5337, %v5569
  %v5617 = vadd.f32 %v5338, %v5571
  %v5618 = vadd.f32 %v5339, %v5610
  %v5619 = vadd.f32 %v5340, %v5612
  %v5620 = vxor.u32 %v5616, 2147483648
  %v5621 = vmul.f32 %v5620, 1.442695
  %v5622 = vpow.pop %v5621
  %v5623 = vadd.f32 %v5622, 1.0
  %v5624 = vrcp.pop %v5623
  %v5625 = vmul.f32 1.0, %v5624
  %v5626 = vxor.u32 %v5617, 2147483648
  %v5627 = vmul.f32 %v5626, 1.442695
  %v5628 = vpow.pop %v5627
  %v5629 = vadd.f32 %v5628, 1.0
  %v5630 = vrcp.pop %v5629
  %v5631 = vmul.f32 1.0, %v5630
  %v5632 = vtanh.pop %v5618
  %v5633 = vxor.u32 %v5619, 2147483648
  %v5634 = vmul.f32 %v5633, 1.442695
  %v5635 = vpow.pop %v5634
  %v5636 = vadd.f32 %v5635, 1.0
  %v5637 = vrcp.pop %v5636
  %v5638 = vmul.f32 1.0, %v5637
  %v5639 = vld [vmem:[#allocation3] sm:$0xff]
  %v5640 = vmul.f32 %v5631, %v5639
  %v5641 = vmul.f32 %v5625, %v5632
  %v5642 = vadd.f32 %v5640, %v5641
  %v5643 = vtanh.pop %v5642
  %v5644 = vmul.f32 %v5638, %v5643
  %5645 = vst [vmem:[#allocation3] sm:$0xff] %v5642
  %v5646 = vpack.c.bf16 %v5644, %v5644
  %5647 = vst [vmem:[#allocation2] sm:$0xf] %v5646
  %v5648 = vld [vmem:[#allocation4] sm:$0xf]
  %v5649 = vld [vmem:[%s4] sm:$0xff]
  %v5650 = vld [vmem:[%s4 + $0x8] sm:$0xff]
  %v5651 = vld [vmem:[%s4 + $0x10] sm:$0xff]
  %v5652 = vld [vmem:[%s4 + $0x18] sm:$0xff]
  %v5653 = vld [vmem:[%s4 + $0x20] sm:$0xff]
  %v5654 = vld [vmem:[%s4 + $0x28] sm:$0xff]
  %v5655 = vld [vmem:[%s4 + $0x30] sm:$0xff]
  %v5656 = vld [vmem:[%s4 + $0x38] sm:$0xff]
  %v5657 = vld [vmem:[%s4 + $0x40] sm:$0xff]
  %v5658 = vld [vmem:[%s4 + $0x48] sm:$0xff]
  %v5659 = vld [vmem:[%s4 + $0x50] sm:$0xff]
  %v5660 = vld [vmem:[%s4 + $0x58] sm:$0xff]
  %v5661 = vld [vmem:[%s4 + $0x60] sm:$0xff]
  %v5662 = vld [vmem:[%s4 + $0x68] sm:$0xff]
  %v5663 = vld [vmem:[%s4 + $0x70] sm:$0xff]
  %v5664 = vld [vmem:[%s4 + $0x78] sm:$0xff]
  %v5665 = vld [vmem:[%s4 + $0x80] sm:$0xff]
  %v5666 = vld [vmem:[%s4 + $0x88] sm:$0xff]
  %v5667 = vld [vmem:[%s4 + $0x90] sm:$0xff]
  %v5668 = vld [vmem:[%s4 + $0x98] sm:$0xff]
  %v5669 = vld [vmem:[%s4 + $0xa0] sm:$0xff]
  %v5670 = vld [vmem:[%s4 + $0xa8] sm:$0xff]
  %v5671 = vld [vmem:[%s4 + $0xb0] sm:$0xff]
  %v5672 = vld [vmem:[%s4 + $0xb8] sm:$0xff]
  %v5673 = vld [vmem:[%s4 + $0xc0] sm:$0xff]
  %v5674 = vld [vmem:[%s4 + $0xc8] sm:$0xff]
  %v5675 = vld [vmem:[%s4 + $0xd0] sm:$0xff]
  %v5676 = vld [vmem:[%s4 + $0xd8] sm:$0xff]
  %v5677 = vld [vmem:[%s4 + $0xe0] sm:$0xff]
  %v5678 = vld [vmem:[%s4 + $0xe8] sm:$0xff]
  %v5679 = vld [vmem:[%s4 + $0xf0] sm:$0xff]
  %v5680 = vld [vmem:[%s4 + $0xf8] sm:$0xff]
  %v5681 = vld [vmem:[%s4 + $0x100] sm:$0xff]
  %v5682 = vld [vmem:[%s4 + $0x108] sm:$0xff]
  %v5683 = vld [vmem:[%s4 + $0x110] sm:$0xff]
  %v5684 = vld [vmem:[%s4 + $0x118] sm:$0xff]
  %v5685 = vld [vmem:[%s4 + $0x120] sm:$0xff]
  %v5686 = vld [vmem:[%s4 + $0x128] sm:$0xff]
  %v5687 = vld [vmem:[%s4 + $0x130] sm:$0xff]
  %v5688 = vld [vmem:[%s4 + $0x138] sm:$0xff]
  %v5689 = vld [vmem:[%s4 + $0x140] sm:$0xff]
  %v5690 = vld [vmem:[%s4 + $0x148] sm:$0xff]
  %v5691 = vld [vmem:[%s4 + $0x150] sm:$0xff]
  %v5692 = vld [vmem:[%s4 + $0x158] sm:$0xff]
  %v5693 = vld [vmem:[%s4 + $0x160] sm:$0xff]
  %v5694 = vld [vmem:[%s4 + $0x168] sm:$0xff]
  %v5695 = vld [vmem:[%s4 + $0x170] sm:$0xff]
  %v5696 = vld [vmem:[%s4 + $0x178] sm:$0xff]
  %v5697 = vld [vmem:[%s4 + $0x180] sm:$0xff]
  %v5698 = vld [vmem:[%s4 + $0x188] sm:$0xff]
  %v5699 = vld [vmem:[%s4 + $0x190] sm:$0xff]
  %v5700 = vld [vmem:[%s4 + $0x198] sm:$0xff]
  %v5701 = vld [vmem:[%s4 + $0x1a0] sm:$0xff]
  %v5702 = vld [vmem:[%s4 + $0x1a8] sm:$0xff]
  %v5703 = vld [vmem:[%s4 + $0x1b0] sm:$0xff]
  %v5704 = vld [vmem:[%s4 + $0x1b8] sm:$0xff]
  %v5705 = vld [vmem:[%s4 + $0x1c0] sm:$0xff]
  %v5706 = vld [vmem:[%s4 + $0x1c8] sm:$0xff]
  %v5707 = vld [vmem:[%s4 + $0x1d0] sm:$0xff]
  %v5708 = vld [vmem:[%s4 + $0x1d8] sm:$0xff]
  %v5709 = vld [vmem:[%s4 + $0x1e0] sm:$0xff]
  %v5710 = vld [vmem:[%s4 + $0x1e8] sm:$0xff]
  %v5711 = vld [vmem:[%s4 + $0x1f0] sm:$0xff]
  %v5712 = vld [vmem:[%s4 + $0x1f8] sm:$0xff]
  %v5777 = vunpack.c.l.b16 %v5649
  %v5778 = vunpack.c.h.b16 %v5649
  %v5779 = vunpack.c.l.b16 %v5650
  %v5780 = vunpack.c.h.b16 %v5650
  %v5781 = vunpack.c.l.b16 %v5651
  %v5782 = vunpack.c.h.b16 %v5651
  %v5783 = vunpack.c.l.b16 %v5652
  %v5784 = vunpack.c.h.b16 %v5652
  %v5785 = vunpack.c.l.b16 %v5653
  %v5786 = vunpack.c.h.b16 %v5653
  %v5787 = vunpack.c.l.b16 %v5654
  %v5788 = vunpack.c.h.b16 %v5654
  %v5789 = vunpack.c.l.b16 %v5655
  %v5790 = vunpack.c.h.b16 %v5655
  %v5791 = vunpack.c.l.b16 %v5656
  %v5792 = vunpack.c.h.b16 %v5656
  %v5793 = vunpack.c.l.b16 %v5657
  %v5794 = vunpack.c.h.b16 %v5657
  %v5795 = vunpack.c.l.b16 %v5658
  %v5796 = vunpack.c.h.b16 %v5658
  %v5797 = vunpack.c.l.b16 %v5659
  %v5798 = vunpack.c.h.b16 %v5659
  %v5799 = vunpack.c.l.b16 %v5660
  %v5800 = vunpack.c.h.b16 %v5660
  %v5801 = vunpack.c.l.b16 %v5661
  %v5802 = vunpack.c.h.b16 %v5661
  %v5803 = vunpack.c.l.b16 %v5662
  %v5804 = vunpack.c.h.b16 %v5662
  %v5805 = vunpack.c.l.b16 %v5663
  %v5806 = vunpack.c.h.b16 %v5663
  %v5807 = vunpack.c.l.b16 %v5664
  %v5808 = vunpack.c.h.b16 %v5664
  %v5809 = vunpack.c.l.b16 %v5665
  %v5810 = vunpack.c.h.b16 %v5665
  %v5811 = vunpack.c.l.b16 %v5666
  %v5812 = vunpack.c.h.b16 %v5666
  %v5813 = vunpack.c.l.b16 %v5667
  %v5814 = vunpack.c.h.b16 %v5667
  %v5815 = vunpack.c.l.b16 %v5668
  %v5816 = vunpack.c.h.b16 %v5668
  %v5817 = vunpack.c.l.b16 %v5669
  %v5818 = vunpack.c.h.b16 %v5669
  %v5819 = vunpack.c.l.b16 %v5670
  %v5820 = vunpack.c.h.b16 %v5670
  %v5821 = vunpack.c.l.b16 %v5671
  %v5822 = vunpack.c.h.b16 %v5671
  %v5823 = vunpack.c.l.b16 %v5672
  %v5824 = vunpack.c.h.b16 %v5672
  %v5825 = vunpack.c.l.b16 %v5673
  %v5826 = vunpack.c.h.b16 %v5673
  %v5827 = vunpack.c.l.b16 %v5674
  %v5828 = vunpack.c.h.b16 %v5674
  %v5829 = vunpack.c.l.b16 %v5675
  %v5830 = vunpack.c.h.b16 %v5675
  %v5831 = vunpack.c.l.b16 %v5676
  %v5832 = vunpack.c.h.b16 %v5676
  %v5833 = vunpack.c.l.b16 %v5677
  %v5834 = vunpack.c.h.b16 %v5677
  %v5835 = vunpack.c.l.b16 %v5678
  %v5836 = vunpack.c.h.b16 %v5678
  %v5837 = vunpack.c.l.b16 %v5679
  %v5838 = vunpack.c.h.b16 %v5679
  %v5839 = vunpack.c.l.b16 %v5680
  %v5840 = vunpack.c.h.b16 %v5680
  %v5841 = vunpack.c.l.b16 %v5681
  %v5842 = vunpack.c.h.b16 %v5681
  %v5843 = vunpack.c.l.b16 %v5682
  %v5844 = vunpack.c.h.b16 %v5682
  %v5845 = vunpack.c.l.b16 %v5683
  %v5846 = vunpack.c.h.b16 %v5683
  %v5847 = vunpack.c.l.b16 %v5684
  %v5848 = vunpack.c.h.b16 %v5684
  %v5849 = vunpack.c.l.b16 %v5685
  %v5850 = vunpack.c.h.b16 %v5685
  %v5851 = vunpack.c.l.b16 %v5686
  %v5852 = vunpack.c.h.b16 %v5686
  %v5853 = vunpack.c.l.b16 %v5687
  %v5854 = vunpack.c.h.b16 %v5687
  %v5855 = vunpack.c.l.b16 %v5688
  %v5856 = vunpack.c.h.b16 %v5688
  %v5857 = vunpack.c.l.b16 %v5689
  %v5858 = vunpack.c.h.b16 %v5689
  %v5859 = vunpack.c.l.b16 %v5690
  %v5860 = vunpack.c.h.b16 %v5690
  %v5861 = vunpack.c.l.b16 %v5691
  %v5862 = vunpack.c.h.b16 %v5691
  %v5863 = vunpack.c.l.b16 %v5692
  %v5864 = vunpack.c.h.b16 %v5692
  %v5865 = vunpack.c.l.b16 %v5693
  %v5866 = vunpack.c.h.b16 %v5693
  %v5867 = vunpack.c.l.b16 %v5694
  %v5868 = vunpack.c.h.b16 %v5694
  %v5869 = vunpack.c.l.b16 %v5695
  %v5870 = vunpack.c.h.b16 %v5695
  %v5871 = vunpack.c.l.b16 %v5696
  %v5872 = vunpack.c.h.b16 %v5696
  %v5873 = vunpack.c.l.b16 %v5697
  %v5874 = vunpack.c.h.b16 %v5697
  %v5875 = vunpack.c.l.b16 %v5698
  %v5876 = vunpack.c.h.b16 %v5698
  %v5877 = vunpack.c.l.b16 %v5699
  %v5878 = vunpack.c.h.b16 %v5699
  %v5879 = vunpack.c.l.b16 %v5700
  %v5880 = vunpack.c.h.b16 %v5700
  %v5881 = vunpack.c.l.b16 %v5701
  %v5882 = vunpack.c.h.b16 %v5701
  %v5883 = vunpack.c.l.b16 %v5702
  %v5884 = vunpack.c.h.b16 %v5702
  %v5885 = vunpack.c.l.b16 %v5703
  %v5886 = vunpack.c.h.b16 %v5703
  %v5887 = vunpack.c.l.b16 %v5704
  %v5888 = vunpack.c.h.b16 %v5704
  %v5889 = vunpack.c.l.b16 %v5705
  %v5890 = vunpack.c.h.b16 %v5705
  %v5891 = vunpack.c.l.b16 %v5706
  %v5892 = vunpack.c.h.b16 %v5706
  %v5893 = vunpack.c.l.b16 %v5707
  %v5894 = vunpack.c.h.b16 %v5707
  %v5895 = vunpack.c.l.b16 %v5708
  %v5896 = vunpack.c.h.b16 %v5708
  %v5897 = vunpack.c.l.b16 %v5709
  %v5898 = vunpack.c.h.b16 %v5709
  %v5899 = vunpack.c.l.b16 %v5710
  %v5900 = vunpack.c.h.b16 %v5710
  %v5901 = vunpack.c.l.b16 %v5711
  %v5902 = vunpack.c.h.b16 %v5711
  %v5903 = vunpack.c.l.b16 %v5712
  %v5904 = vunpack.c.h.b16 %v5712
  %v5905 = vpack.c.b16 %v5781, %v5777
  %v5906 = vpack.c.b16 %v5782, %v5778
  %v5907 = vpack.c.b16 %v5783, %v5779
  %v5908 = vpack.c.b16 %v5784, %v5780
  %v5909 = vpack.c.b16 %v5789, %v5785
  %v5910 = vpack.c.b16 %v5790, %v5786
  %v5911 = vpack.c.b16 %v5791, %v5787
  %v5912 = vpack.c.b16 %v5792, %v5788
  %v5913 = vpack.c.b16 %v5797, %v5793
  %v5914 = vpack.c.b16 %v5798, %v5794
  %v5915 = vpack.c.b16 %v5799, %v5795
  %v5916 = vpack.c.b16 %v5800, %v5796
  %v5917 = vpack.c.b16 %v5805, %v5801
  %v5918 = vpack.c.b16 %v5806, %v5802
  %v5919 = vpack.c.b16 %v5807, %v5803
  %v5920 = vpack.c.b16 %v5808, %v5804
  %v5921 = vpack.c.b16 %v5813, %v5809
  %v5922 = vpack.c.b16 %v5814, %v5810
  %v5923 = vpack.c.b16 %v5815, %v5811
  %v5924 = vpack.c.b16 %v5816, %v5812
  %v5925 = vpack.c.b16 %v5821, %v5817
  %v5926 = vpack.c.b16 %v5822, %v5818
  %v5927 = vpack.c.b16 %v5823, %v5819
  %v5928 = vpack.c.b16 %v5824, %v5820
  %v5929 = vpack.c.b16 %v5829, %v5825
  %v5930 = vpack.c.b16 %v5830, %v5826
  %v5931 = vpack.c.b16 %v5831, %v5827
  %v5932 = vpack.c.b16 %v5832, %v5828
  %v5933 = vpack.c.b16 %v5837, %v5833
  %v5934 = vpack.c.b16 %v5838, %v5834
  %v5935 = vpack.c.b16 %v5839, %v5835
  %v5936 = vpack.c.b16 %v5840, %v5836
  %v5937 = vpack.c.b16 %v5845, %v5841
  %v5938 = vpack.c.b16 %v5846, %v5842
  %v5939 = vpack.c.b16 %v5847, %v5843
  %v5940 = vpack.c.b16 %v5848, %v5844
  %v5941 = vpack.c.b16 %v5853, %v5849
  %v5942 = vpack.c.b16 %v5854, %v5850
  %v5943 = vpack.c.b16 %v5855, %v5851
  %v5944 = vpack.c.b16 %v5856, %v5852
  %v5945 = vpack.c.b16 %v5861, %v5857
  %v5946 = vpack.c.b16 %v5862, %v5858
  %v5947 = vpack.c.b16 %v5863, %v5859
  %v5948 = vpack.c.b16 %v5864, %v5860
  %v5949 = vpack.c.b16 %v5869, %v5865
  %v5950 = vpack.c.b16 %v5870, %v5866
  %v5951 = vpack.c.b16 %v5871, %v5867
  %v5952 = vpack.c.b16 %v5872, %v5868
  %v5953 = vpack.c.b16 %v5877, %v5873
  %v5954 = vpack.c.b16 %v5878, %v5874
  %v5955 = vpack.c.b16 %v5879, %v5875
  %v5956 = vpack.c.b16 %v5880, %v5876
  %v5957 = vpack.c.b16 %v5885, %v5881
  %v5958 = vpack.c.b16 %v5886, %v5882
  %v5959 = vpack.c.b16 %v5887, %v5883
  %v5960 = vpack.c.b16 %v5888, %v5884
  %v5961 = vpack.c.b16 %v5893, %v5889
  %v5962 = vpack.c.b16 %v5894, %v5890
  %v5963 = vpack.c.b16 %v5895, %v5891
  %v5964 = vpack.c.b16 %v5896, %v5892
  %v5965 = vpack.c.b16 %v5901, %v5897
  %v5966 = vpack.c.b16 %v5902, %v5898
  %v5967 = vpack.c.b16 %v5903, %v5899
  %v5968 = vpack.c.b16 %v5904, %v5900
  %6033 = vmatprep.subr.bf16.mxu0 %v5934
  %6034 = vmatpush1.bf16.msra.mxu0 %v5933
  %6035 = vmatprep.subr.bf16.mxu0 %v5930
  %6036 = vmatpush1.bf16.msra.mxu0 %v5929
  %6037 = vmatprep.subr.bf16.mxu0 %v5926
  %6038 = vmatpush1.bf16.msra.mxu0 %v5925
  %6039 = vmatprep.subr.bf16.mxu0 %v5922
  %6040 = vmatpush1.bf16.msra.mxu0 %v5921
  %6041 = vmatprep.subr.bf16.mxu0 %v5918
  %6042 = vmatpush1.bf16.msra.mxu0 %v5917
  %6043 = vmatprep.subr.bf16.mxu0 %v5914
  %6044 = vmatpush1.bf16.msra.mxu0 %v5913
  %6045 = vmatprep.subr.bf16.mxu0 %v5910
  %6046 = vmatpush1.bf16.msra.mxu0 %v5909
  %6047 = vmatprep.subr.bf16.mxu0 %v5906
  %6048 = vmatpush1.bf16.msra.mxu0 %v5905
  %6049 = vmatprep.subr.bf16.mxu0 %v5966
  %6050 = vmatpush2.bf16.msra.mxu0 %v5965
  %6051 = vmatprep.subr.bf16.mxu0 %v5962
  %6052 = vmatpush2.bf16.msra.mxu0 %v5961
  %6053 = vmatprep.subr.bf16.mxu0 %v5958
  %6054 = vmatpush2.bf16.msra.mxu0 %v5957
  %6055 = vmatprep.subr.bf16.mxu0 %v5954
  %6056 = vmatpush2.bf16.msra.mxu0 %v5953
  %6057 = vmatprep.subr.bf16.mxu0 %v5950
  %6058 = vmatpush2.bf16.msra.mxu0 %v5949
  %6059 = vmatprep.subr.bf16.mxu0 %v5946
  %6060 = vmatpush2.bf16.msra.mxu0 %v5945
  %6061 = vmatprep.subr.bf16.mxu0 %v5942
  %6062 = vmatpush2.bf16.msra.mxu0 %v5941
  %6063 = vmatprep.subr.bf16.mxu0 %v5938
  %6064 = vmatpush2.bf16.msra.mxu0 %v5937
  %6065 = vmatprep.mubr.bf16.mxu0 %v5648
  %6066 = vmatmul.mubr.bf16.gmra.mxu0 %v5646
  %v6067 = vpop.f32.mrf.mxu0
  %v6068 = vadd.f32 %v467, %v6067
  %v6069 = vpop.f32.mrf.mxu0
  %v6070 = vadd.f32 %v471, %v6069
  %v6071 = vpop.f32.mrf.mxu0
  %v6072 = vpop.f32.mrf.mxu0
  %6073 = vdwg.mxu0
  %6074 = vmatprep.subr.bf16.mxu0 %v5936
  %6075 = vmatpush1.bf16.msra.mxu0 %v5935
  %6076 = vmatprep.subr.bf16.mxu0 %v5932
  %6077 = vmatpush1.bf16.msra.mxu0 %v5931
  %6078 = vmatprep.subr.bf16.mxu0 %v5928
  %6079 = vmatpush1.bf16.msra.mxu0 %v5927
  %6080 = vmatprep.subr.bf16.mxu0 %v5924
  %6081 = vmatpush1.bf16.msra.mxu0 %v5923
  %6082 = vmatprep.subr.bf16.mxu0 %v5920
  %6083 = vmatpush1.bf16.msra.mxu0 %v5919
  %6084 = vmatprep.subr.bf16.mxu0 %v5916
  %6085 = vmatpush1.bf16.msra.mxu0 %v5915
  %6086 = vmatprep.subr.bf16.mxu0 %v5912
  %6087 = vmatpush1.bf16.msra.mxu0 %v5911
  %6088 = vmatprep.subr.bf16.mxu0 %v5908
  %6089 = vmatpush1.bf16.msra.mxu0 %v5907
  %6090 = vmatprep.subr.bf16.mxu0 %v5968
  %6091 = vmatpush2.bf16.msra.mxu0 %v5967
  %6092 = vmatprep.subr.bf16.mxu0 %v5964
  %6093 = vmatpush2.bf16.msra.mxu0 %v5963
  %6094 = vmatprep.subr.bf16.mxu0 %v5960
  %6095 = vmatpush2.bf16.msra.mxu0 %v5959
  %6096 = vmatprep.subr.bf16.mxu0 %v5956
  %6097 = vmatpush2.bf16.msra.mxu0 %v5955
  %6098 = vmatprep.subr.bf16.mxu0 %v5952
  %6099 = vmatpush2.bf16.msra.mxu0 %v5951
  %6100 = vmatprep.subr.bf16.mxu0 %v5948
  %6101 = vmatpush2.bf16.msra.mxu0 %v5947
  %6102 = vmatprep.subr.bf16.mxu0 %v5944
  %6103 = vmatpush2.bf16.msra.mxu0 %v5943
  %6104 = vmatprep.subr.bf16.mxu0 %v5940
  %6105 = vmatpush2.bf16.msra.mxu0 %v5939
  %6106 = vmatprep.mubr.bf16.mxu0 %v5648
  %6107 = vmatmul.mubr.bf16.gmra.mxu0 %v5646
  %v6108 = vpop.f32.mrf.mxu0
  %v6109 = vadd.f32 %v475, %v6108
  %v6110 = vpop.f32.mrf.mxu0
  %v6111 = vadd.f32 %v479, %v6110
  %v6112 = vpop.f32.mrf.mxu0
  %v6113 = vpop.f32.mrf.mxu0
  %6114 = vdwg.mxu0
  %v6115 = vxor.u32 %v6068, 2147483648
  %v6116 = vmul.f32 %v6115, 1.442695
  %v6117 = vpow.pop %v6116
  %v6118 = vadd.f32 %v6117, 1.0
  %v6119 = vrcp.pop %v6118
  %v6120 = vmul.f32 1.0, %v6119
  %v6121 = vxor.u32 %v6070, 2147483648
  %v6122 = vmul.f32 %v6121, 1.442695
  %v6123 = vpow.pop %v6122
  %v6124 = vadd.f32 %v6123, 1.0
  %v6125 = vrcp.pop %v6124
  %v6126 = vmul.f32 1.0, %v6125
  %v6127 = vtanh.pop %v6109
  %v6128 = vxor.u32 %v6111, 2147483648
  %v6129 = vmul.f32 %v6128, 1.442695
  %v6130 = vpow.pop %v6129
  %v6131 = vadd.f32 %v6130, 1.0
  %v6132 = vrcp.pop %v6131
  %v6133 = vmul.f32 1.0, %v6132
  %v6134 = vld [vmem:[#allocation5] sm:$0xff]
  %v6135 = vmul.f32 %v6126, %v6134
  %v6136 = vmul.f32 %v6120, %v6127
  %v6137 = vadd.f32 %v6135, %v6136
  %v6138 = vtanh.pop %v6137
  %v6139 = vmul.f32 %v6133, %v6138
  %6140 = vst [vmem:[#allocation5] sm:$0xff] %v6137
  %v6141 = vpack.c.bf16 %v6139, %v6139
  %6142 = vst [vmem:[#allocation4] sm:$0xf] %v6141
  %s6143 = scalar_lea.vmem [#allocation7], 24
  %6144 = vst [vmem:[%s6143] sm:$0xf] %v6141
  %s6145 = scalar_lea.vmem [#allocation6], 224
  %v6146 = vld [vmem:[%s6145] sm:$0xff]
  %v6147 = vld [vmem:[%s6145 + $0x8] sm:$0xff]
  %v6148 = vld [vmem:[%s6145 + $0x10] sm:$0xff]
  %v6149 = vld [vmem:[%s6145 + $0x18] sm:$0xff]
  %v6150 = vld [vmem:[#allocation2] sm:$0xf]
  %v6151 = vld [vmem:[%s2] sm:$0xff]
  %v6152 = vld [vmem:[%s2 + $0x8] sm:$0xff]
  %v6153 = vld [vmem:[%s2 + $0x10] sm:$0xff]
  %v6154 = vld [vmem:[%s2 + $0x18] sm:$0xff]
  %v6155 = vld [vmem:[%s2 + $0x20] sm:$0xff]
  %v6156 = vld [vmem:[%s2 + $0x28] sm:$0xff]
  %v6157 = vld [vmem:[%s2 + $0x30] sm:$0xff]
  %v6158 = vld [vmem:[%s2 + $0x38] sm:$0xff]
  %v6159 = vld [vmem:[%s2 + $0x40] sm:$0xff]
  %v6160 = vld [vmem:[%s2 + $0x48] sm:$0xff]
  %v6161 = vld [vmem:[%s2 + $0x50] sm:$0xff]
  %v6162 = vld [vmem:[%s2 + $0x58] sm:$0xff]
  %v6163 = vld [vmem:[%s2 + $0x60] sm:$0xff]
  %v6164 = vld [vmem:[%s2 + $0x68] sm:$0xff]
  %v6165 = vld [vmem:[%s2 + $0x70] sm:$0xff]
  %v6166 = vld [vmem:[%s2 + $0x78] sm:$0xff]
  %v6167 = vld [vmem:[%s2 + $0x80] sm:$0xff]
  %v6168 = vld [vmem:[%s2 + $0x88] sm:$0xff]
  %v6169 = vld [vmem:[%s2 + $0x90] sm:$0xff]
  %v6170 = vld [vmem:[%s2 + $0x98] sm:$0xff]
  %v6171 = vld [vmem:[%s2 + $0xa0] sm:$0xff]
  %v6172 = vld [vmem:[%s2 + $0xa8] sm:$0xff]
  %v6173 = vld [vmem:[%s2 + $0xb0] sm:$0xff]
  %v6174 = vld [vmem:[%s2 + $0xb8] sm:$0xff]
  %v6175 = vld [vmem:[%s2 + $0xc0] sm:$0xff]
  %v6176 = vld [vmem:[%s2 + $0xc8] sm:$0xff]
  %v6177 = vld [vmem:[%s2 + $0xd0] sm:$0xff]
  %v6178 = vld [vmem:[%s2 + $0xd8] sm:$0xff]
  %v6179 = vld [vmem:[%s2 + $0xe0] sm:$0xff]
  %v6180 = vld [vmem:[%s2 + $0xe8] sm:$0xff]
  %v6181 = vld [vmem:[%s2 + $0xf0] sm:$0xff]
  %v6182 = vld [vmem:[%s2 + $0xf8] sm:$0xff]
  %v6215 = vunpack.c.l.b16 %v6151
  %v6216 = vunpack.c.h.b16 %v6151
  %v6217 = vunpack.c.l.b16 %v6152
  %v6218 = vunpack.c.h.b16 %v6152
  %v6219 = vunpack.c.l.b16 %v6153
  %v6220 = vunpack.c.h.b16 %v6153
  %v6221 = vunpack.c.l.b16 %v6154
  %v6222 = vunpack.c.h.b16 %v6154
  %v6223 = vunpack.c.l.b16 %v6155
  %v6224 = vunpack.c.h.b16 %v6155
  %v6225 = vunpack.c.l.b16 %v6156
  %v6226 = vunpack.c.h.b16 %v6156
  %v6227 = vunpack.c.l.b16 %v6157
  %v6228 = vunpack.c.h.b16 %v6157
  %v6229 = vunpack.c.l.b16 %v6158
  %v6230 = vunpack.c.h.b16 %v6158
  %v6231 = vunpack.c.l.b16 %v6159
  %v6232 = vunpack.c.h.b16 %v6159
  %v6233 = vunpack.c.l.b16 %v6160
  %v6234 = vunpack.c.h.b16 %v6160
  %v6235 = vunpack.c.l.b16 %v6161
  %v6236 = vunpack.c.h.b16 %v6161
  %v6237 = vunpack.c.l.b16 %v6162
  %v6238 = vunpack.c.h.b16 %v6162
  %v6239 = vunpack.c.l.b16 %v6163
  %v6240 = vunpack.c.h.b16 %v6163
  %v6241 = vunpack.c.l.b16 %v6164
  %v6242 = vunpack.c.h.b16 %v6164
  %v6243 = vunpack.c.l.b16 %v6165
  %v6244 = vunpack.c.h.b16 %v6165
  %v6245 = vunpack.c.l.b16 %v6166
  %v6246 = vunpack.c.h.b16 %v6166
  %v6247 = vunpack.c.l.b16 %v6167
  %v6248 = vunpack.c.h.b16 %v6167
  %v6249 = vunpack.c.l.b16 %v6168
  %v6250 = vunpack.c.h.b16 %v6168
  %v6251 = vunpack.c.l.b16 %v6169
  %v6252 = vunpack.c.h.b16 %v6169
  %v6253 = vunpack.c.l.b16 %v6170
  %v6254 = vunpack.c.h.b16 %v6170
  %v6255 = vunpack.c.l.b16 %v6171
  %v6256 = vunpack.c.h.b16 %v6171
  %v6257 = vunpack.c.l.b16 %v6172
  %v6258 = vunpack.c.h.b16 %v6172
  %v6259 = vunpack.c.l.b16 %v6173
  %v6260 = vunpack.c.h.b16 %v6173
  %v6261 = vunpack.c.l.b16 %v6174
  %v6262 = vunpack.c.h.b16 %v6174
  %v6263 = vunpack.c.l.b16 %v6175
  %v6264 = vunpack.c.h.b16 %v6175
  %v6265 = vunpack.c.l.b16 %v6176
  %v6266 = vunpack.c.h.b16 %v6176
  %v6267 = vunpack.c.l.b16 %v6177
  %v6268 = vunpack.c.h.b16 %v6177
  %v6269 = vunpack.c.l.b16 %v6178
  %v6270 = vunpack.c.h.b16 %v6178
  %v6271 = vunpack.c.l.b16 %v6179
  %v6272 = vunpack.c.h.b16 %v6179
  %v6273 = vunpack.c.l.b16 %v6180
  %v6274 = vunpack.c.h.b16 %v6180
  %v6275 = vunpack.c.l.b16 %v6181
  %v6276 = vunpack.c.h.b16 %v6181
  %v6277 = vunpack.c.l.b16 %v6182
  %v6278 = vunpack.c.h.b16 %v6182
  %v6279 = vpack.c.b16 %v6219, %v6215
  %v6280 = vpack.c.b16 %v6220, %v6216
  %v6281 = vpack.c.b16 %v6221, %v6217
  %v6282 = vpack.c.b16 %v6222, %v6218
  %v6283 = vpack.c.b16 %v6227, %v6223
  %v6284 = vpack.c.b16 %v6228, %v6224
  %v6285 = vpack.c.b16 %v6229, %v6225
  %v6286 = vpack.c.b16 %v6230, %v6226
  %v6287 = vpack.c.b16 %v6235, %v6231
  %v6288 = vpack.c.b16 %v6236, %v6232
  %v6289 = vpack.c.b16 %v6237, %v6233
  %v6290 = vpack.c.b16 %v6238, %v6234
  %v6291 = vpack.c.b16 %v6243, %v6239
  %v6292 = vpack.c.b16 %v6244, %v6240
  %v6293 = vpack.c.b16 %v6245, %v6241
  %v6294 = vpack.c.b16 %v6246, %v6242
  %v6295 = vpack.c.b16 %v6251, %v6247
  %v6296 = vpack.c.b16 %v6252, %v6248
  %v6297 = vpack.c.b16 %v6253, %v6249
  %v6298 = vpack.c.b16 %v6254, %v6250
  %v6299 = vpack.c.b16 %v6259, %v6255
  %v6300 = vpack.c.b16 %v6260, %v6256
  %v6301 = vpack.c.b16 %v6261, %v6257
  %v6302 = vpack.c.b16 %v6262, %v6258
  %v6303 = vpack.c.b16 %v6267, %v6263
  %v6304 = vpack.c.b16 %v6268, %v6264
  %v6305 = vpack.c.b16 %v6269, %v6265
  %v6306 = vpack.c.b16 %v6270, %v6266
  %v6307 = vpack.c.b16 %v6275, %v6271
  %v6308 = vpack.c.b16 %v6276, %v6272
  %v6309 = vpack.c.b16 %v6277, %v6273
  %v6310 = vpack.c.b16 %v6278, %v6274
  %6343 = vmatprep.subr.bf16.mxu0 %v6308
  %6344 = vmatpush1.bf16.msra.mxu0 %v6307
  %6345 = vmatprep.subr.bf16.mxu0 %v6304
  %6346 = vmatpush1.bf16.msra.mxu0 %v6303
  %6347 = vmatprep.subr.bf16.mxu0 %v6300
  %6348 = vmatpush1.bf16.msra.mxu0 %v6299
  %6349 = vmatprep.subr.bf16.mxu0 %v6296
  %6350 = vmatpush1.bf16.msra.mxu0 %v6295
  %6351 = vmatprep.subr.bf16.mxu0 %v6292
  %6352 = vmatpush1.bf16.msra.mxu0 %v6291
  %6353 = vmatprep.subr.bf16.mxu0 %v6288
  %6354 = vmatpush1.bf16.msra.mxu0 %v6287
  %6355 = vmatprep.subr.bf16.mxu0 %v6284
  %6356 = vmatpush1.bf16.msra.mxu0 %v6283
  %6357 = vmatprep.subr.bf16.mxu0 %v6280
  %6358 = vmatpush1.bf16.msra.mxu0 %v6279
  %6359 = vmatprep.subr.bf16.mxu0 0
  %6360 = vmatpush2.bf16.msra.mxu0 0
  %6361 = vmatprep.subr.bf16.mxu0 0
  %6362 = vmatpush2.bf16.msra.mxu0 0
  %6363 = vmatprep.subr.bf16.mxu0 0
  %6364 = vmatpush2.bf16.msra.mxu0 0
  %6365 = vmatprep.subr.bf16.mxu0 0
  %6366 = vmatpush2.bf16.msra.mxu0 0
  %6367 = vmatprep.subr.bf16.mxu0 0
  %6368 = vmatpush2.bf16.msra.mxu0 0
  %6369 = vmatprep.subr.bf16.mxu0 0
  %6370 = vmatpush2.bf16.msra.mxu0 0
  %6371 = vmatprep.subr.bf16.mxu0 0
  %6372 = vmatpush2.bf16.msra.mxu0 0
  %6373 = vmatprep.subr.bf16.mxu0 0
  %6374 = vmatpush2.bf16.msra.mxu0 0
  %6375 = vmatprep.mubr.bf16.mxu0 0
  %6376 = vmatmul.mubr.bf16.gmra.mxu0 %v6150
  %v6377 = vpop.f32.mrf.mxu0
  %v6378 = vadd.f32 0.0, %v6377
  %v6379 = vpop.f32.mrf.mxu0
  %v6380 = vadd.f32 0.0, %v6379
  %v6381 = vpop.f32.mrf.mxu0
  %v6382 = vpop.f32.mrf.mxu0
  %6383 = vdwg.mxu0
  %6384 = vmatprep.subr.bf16.mxu0 %v6310
  %6385 = vmatpush1.bf16.msra.mxu0 %v6309
  %6386 = vmatprep.subr.bf16.mxu0 %v6306
  %6387 = vmatpush1.bf16.msra.mxu0 %v6305
  %6388 = vmatprep.subr.bf16.mxu0 %v6302
  %6389 = vmatpush1.bf16.msra.mxu0 %v6301
  %6390 = vmatprep.subr.bf16.mxu0 %v6298
  %6391 = vmatpush1.bf16.msra.mxu0 %v6297
  %6392 = vmatprep.subr.bf16.mxu0 %v6294
  %6393 = vmatpush1.bf16.msra.mxu0 %v6293
  %6394 = vmatprep.subr.bf16.mxu0 %v6290
  %6395 = vmatpush1.bf16.msra.mxu0 %v6289
  %6396 = vmatprep.subr.bf16.mxu0 %v6286
  %6397 = vmatpush1.bf16.msra.mxu0 %v6285
  %6398 = vmatprep.subr.bf16.mxu0 %v6282
  %6399 = vmatpush1.bf16.msra.mxu0 %v6281
  %6400 = vmatprep.subr.bf16.mxu0 0
  %6401 = vmatpush2.bf16.msra.mxu0 0
  %6402 = vmatprep.subr.bf16.mxu0 0
  %6403 = vmatpush2.bf16.msra.mxu0 0
  %6404 = vmatprep.subr.bf16.mxu0 0
  %6405 = vmatpush2.bf16.msra.mxu0 0
  %6406 = vmatprep.subr.bf16.mxu0 0
  %6407 = vmatpush2.bf16.msra.mxu0 0
  %6408 = vmatprep.subr.bf16.mxu0 0
  %6409 = vmatpush2.bf16.msra.mxu0 0
  %6410 = vmatprep.subr.bf16.mxu0 0
  %6411 = vmatpush2.bf16.msra.mxu0 0
  %6412 = vmatprep.subr.bf16.mxu0 0
  %6413 = vmatpush2.bf16.msra.mxu0 0
  %6414 = vmatprep.subr.bf16.mxu0 0
  %6415 = vmatpush2.bf16.msra.mxu0 0
  %6416 = vmatprep.mubr.bf16.mxu0 0
  %6417 = vmatmul.mubr.bf16.gmra.mxu0 %v6150
  %v6418 = vpop.f32.mrf.mxu0
  %v6419 = vadd.f32 0.0, %v6418
  %v6420 = vpop.f32.mrf.mxu0
  %v6421 = vadd.f32 0.0, %v6420
  %v6422 = vpop.f32.mrf.mxu0
  %v6423 = vpop.f32.mrf.mxu0
  %6424 = vdwg.mxu0
  %v6425 = vadd.f32 %v6146, %v6378
  %v6426 = vadd.f32 %v6147, %v6380
  %v6427 = vadd.f32 %v6148, %v6419
  %v6428 = vadd.f32 %v6149, %v6421
  %v6429 = vxor.u32 %v6425, 2147483648
  %v6430 = vmul.f32 %v6429, 1.442695
  %v6431 = vpow.pop %v6430
  %v6432 = vadd.f32 %v6431, 1.0
  %v6433 = vrcp.pop %v6432
  %v6434 = vmul.f32 1.0, %v6433
  %v6435 = vxor.u32 %v6426, 2147483648
  %v6436 = vmul.f32 %v6435, 1.442695
  %v6437 = vpow.pop %v6436
  %v6438 = vadd.f32 %v6437, 1.0
  %v6439 = vrcp.pop %v6438
  %v6440 = vmul.f32 1.0, %v6439
  %v6441 = vtanh.pop %v6427
  %v6442 = vxor.u32 %v6428, 2147483648
  %v6443 = vmul.f32 %v6442, 1.442695
  %v6444 = vpow.pop %v6443
  %v6445 = vadd.f32 %v6444, 1.0
  %v6446 = vrcp.pop %v6445
  %v6447 = vmul.f32 1.0, %v6446
  %v6448 = vld [vmem:[#allocation3] sm:$0xff]
  %v6449 = vmul.f32 %v6440, %v6448
  %v6450 = vmul.f32 %v6434, %v6441
  %v6451 = vadd.f32 %v6449, %v6450
  %v6452 = vtanh.pop %v6451
  %v6453 = vmul.f32 %v6447, %v6452
  %6454 = vst [vmem:[#allocation3] sm:$0xff] %v6451
  %v6455 = vpack.c.bf16 %v6453, %v6453
  %6456 = vst [vmem:[#allocation2] sm:$0xf] %v6455
  %v6457 = vld [vmem:[#allocation4] sm:$0xf]
  %v6458 = vld [vmem:[%s4] sm:$0xff]
  %v6459 = vld [vmem:[%s4 + $0x8] sm:$0xff]
  %v6460 = vld [vmem:[%s4 + $0x10] sm:$0xff]
  %v6461 = vld [vmem:[%s4 + $0x18] sm:$0xff]
  %v6462 = vld [vmem:[%s4 + $0x20] sm:$0xff]
  %v6463 = vld [vmem:[%s4 + $0x28] sm:$0xff]
  %v6464 = vld [vmem:[%s4 + $0x30] sm:$0xff]
  %v6465 = vld [vmem:[%s4 + $0x38] sm:$0xff]
  %v6466 = vld [vmem:[%s4 + $0x40] sm:$0xff]
  %v6467 = vld [vmem:[%s4 + $0x48] sm:$0xff]
  %v6468 = vld [vmem:[%s4 + $0x50] sm:$0xff]
  %v6469 = vld [vmem:[%s4 + $0x58] sm:$0xff]
  %v6470 = vld [vmem:[%s4 + $0x60] sm:$0xff]
  %v6471 = vld [vmem:[%s4 + $0x68] sm:$0xff]
  %v6472 = vld [vmem:[%s4 + $0x70] sm:$0xff]
  %v6473 = vld [vmem:[%s4 + $0x78] sm:$0xff]
  %v6474 = vld [vmem:[%s4 + $0x80] sm:$0xff]
  %v6475 = vld [vmem:[%s4 + $0x88] sm:$0xff]
  %v6476 = vld [vmem:[%s4 + $0x90] sm:$0xff]
  %v6477 = vld [vmem:[%s4 + $0x98] sm:$0xff]
  %v6478 = vld [vmem:[%s4 + $0xa0] sm:$0xff]
  %v6479 = vld [vmem:[%s4 + $0xa8] sm:$0xff]
  %v6480 = vld [vmem:[%s4 + $0xb0] sm:$0xff]
  %v6481 = vld [vmem:[%s4 + $0xb8] sm:$0xff]
  %v6482 = vld [vmem:[%s4 + $0xc0] sm:$0xff]
  %v6483 = vld [vmem:[%s4 + $0xc8] sm:$0xff]
  %v6484 = vld [vmem:[%s4 + $0xd0] sm:$0xff]
  %v6485 = vld [vmem:[%s4 + $0xd8] sm:$0xff]
  %v6486 = vld [vmem:[%s4 + $0xe0] sm:$0xff]
  %v6487 = vld [vmem:[%s4 + $0xe8] sm:$0xff]
  %v6488 = vld [vmem:[%s4 + $0xf0] sm:$0xff]
  %v6489 = vld [vmem:[%s4 + $0xf8] sm:$0xff]
  %v6490 = vld [vmem:[%s4 + $0x100] sm:$0xff]
  %v6491 = vld [vmem:[%s4 + $0x108] sm:$0xff]
  %v6492 = vld [vmem:[%s4 + $0x110] sm:$0xff]
  %v6493 = vld [vmem:[%s4 + $0x118] sm:$0xff]
  %v6494 = vld [vmem:[%s4 + $0x120] sm:$0xff]
  %v6495 = vld [vmem:[%s4 + $0x128] sm:$0xff]
  %v6496 = vld [vmem:[%s4 + $0x130] sm:$0xff]
  %v6497 = vld [vmem:[%s4 + $0x138] sm:$0xff]
  %v6498 = vld [vmem:[%s4 + $0x140] sm:$0xff]
  %v6499 = vld [vmem:[%s4 + $0x148] sm:$0xff]
  %v6500 = vld [vmem:[%s4 + $0x150] sm:$0xff]
  %v6501 = vld [vmem:[%s4 + $0x158] sm:$0xff]
  %v6502 = vld [vmem:[%s4 + $0x160] sm:$0xff]
  %v6503 = vld [vmem:[%s4 + $0x168] sm:$0xff]
  %v6504 = vld [vmem:[%s4 + $0x170] sm:$0xff]
  %v6505 = vld [vmem:[%s4 + $0x178] sm:$0xff]
  %v6506 = vld [vmem:[%s4 + $0x180] sm:$0xff]
  %v6507 = vld [vmem:[%s4 + $0x188] sm:$0xff]
  %v6508 = vld [vmem:[%s4 + $0x190] sm:$0xff]
  %v6509 = vld [vmem:[%s4 + $0x198] sm:$0xff]
  %v6510 = vld [vmem:[%s4 + $0x1a0] sm:$0xff]
  %v6511 = vld [vmem:[%s4 + $0x1a8] sm:$0xff]
  %v6512 = vld [vmem:[%s4 + $0x1b0] sm:$0xff]
  %v6513 = vld [vmem:[%s4 + $0x1b8] sm:$0xff]
  %v6514 = vld [vmem:[%s4 + $0x1c0] sm:$0xff]
  %v6515 = vld [vmem:[%s4 + $0x1c8] sm:$0xff]
  %v6516 = vld [vmem:[%s4 + $0x1d0] sm:$0xff]
  %v6517 = vld [vmem:[%s4 + $0x1d8] sm:$0xff]
  %v6518 = vld [vmem:[%s4 + $0x1e0] sm:$0xff]
  %v6519 = vld [vmem:[%s4 + $0x1e8] sm:$0xff]
  %v6520 = vld [vmem:[%s4 + $0x1f0] sm:$0xff]
  %v6521 = vld [vmem:[%s4 + $0x1f8] sm:$0xff]
  %v6586 = vunpack.c.l.b16 %v6458
  %v6587 = vunpack.c.h.b16 %v6458
  %v6588 = vunpack.c.l.b16 %v6459
  %v6589 = vunpack.c.h.b16 %v6459
  %v6590 = vunpack.c.l.b16 %v6460
  %v6591 = vunpack.c.h.b16 %v6460
  %v6592 = vunpack.c.l.b16 %v6461
  %v6593 = vunpack.c.h.b16 %v6461
  %v6594 = vunpack.c.l.b16 %v6462
  %v6595 = vunpack.c.h.b16 %v6462
  %v6596 = vunpack.c.l.b16 %v6463
  %v6597 = vunpack.c.h.b16 %v6463
  %v6598 = vunpack.c.l.b16 %v6464
  %v6599 = vunpack.c.h.b16 %v6464
  %v6600 = vunpack.c.l.b16 %v6465
  %v6601 = vunpack.c.h.b16 %v6465
  %v6602 = vunpack.c.l.b16 %v6466
  %v6603 = vunpack.c.h.b16 %v6466
  %v6604 = vunpack.c.l.b16 %v6467
  %v6605 = vunpack.c.h.b16 %v6467
  %v6606 = vunpack.c.l.b16 %v6468
  %v6607 = vunpack.c.h.b16 %v6468
  %v6608 = vunpack.c.l.b16 %v6469
  %v6609 = vunpack.c.h.b16 %v6469
  %v6610 = vunpack.c.l.b16 %v6470
  %v6611 = vunpack.c.h.b16 %v6470
  %v6612 = vunpack.c.l.b16 %v6471
  %v6613 = vunpack.c.h.b16 %v6471
  %v6614 = vunpack.c.l.b16 %v6472
  %v6615 = vunpack.c.h.b16 %v6472
  %v6616 = vunpack.c.l.b16 %v6473
  %v6617 = vunpack.c.h.b16 %v6473
  %v6618 = vunpack.c.l.b16 %v6474
  %v6619 = vunpack.c.h.b16 %v6474
  %v6620 = vunpack.c.l.b16 %v6475
  %v6621 = vunpack.c.h.b16 %v6475
  %v6622 = vunpack.c.l.b16 %v6476
  %v6623 = vunpack.c.h.b16 %v6476
  %v6624 = vunpack.c.l.b16 %v6477
  %v6625 = vunpack.c.h.b16 %v6477
  %v6626 = vunpack.c.l.b16 %v6478
  %v6627 = vunpack.c.h.b16 %v6478
  %v6628 = vunpack.c.l.b16 %v6479
  %v6629 = vunpack.c.h.b16 %v6479
  %v6630 = vunpack.c.l.b16 %v6480
  %v6631 = vunpack.c.h.b16 %v6480
  %v6632 = vunpack.c.l.b16 %v6481
  %v6633 = vunpack.c.h.b16 %v6481
  %v6634 = vunpack.c.l.b16 %v6482
  %v6635 = vunpack.c.h.b16 %v6482
  %v6636 = vunpack.c.l.b16 %v6483
  %v6637 = vunpack.c.h.b16 %v6483
  %v6638 = vunpack.c.l.b16 %v6484
  %v6639 = vunpack.c.h.b16 %v6484
  %v6640 = vunpack.c.l.b16 %v6485
  %v6641 = vunpack.c.h.b16 %v6485
  %v6642 = vunpack.c.l.b16 %v6486
  %v6643 = vunpack.c.h.b16 %v6486
  %v6644 = vunpack.c.l.b16 %v6487
  %v6645 = vunpack.c.h.b16 %v6487
  %v6646 = vunpack.c.l.b16 %v6488
  %v6647 = vunpack.c.h.b16 %v6488
  %v6648 = vunpack.c.l.b16 %v6489
  %v6649 = vunpack.c.h.b16 %v6489
  %v6650 = vunpack.c.l.b16 %v6490
  %v6651 = vunpack.c.h.b16 %v6490
  %v6652 = vunpack.c.l.b16 %v6491
  %v6653 = vunpack.c.h.b16 %v6491
  %v6654 = vunpack.c.l.b16 %v6492
  %v6655 = vunpack.c.h.b16 %v6492
  %v6656 = vunpack.c.l.b16 %v6493
  %v6657 = vunpack.c.h.b16 %v6493
  %v6658 = vunpack.c.l.b16 %v6494
  %v6659 = vunpack.c.h.b16 %v6494
  %v6660 = vunpack.c.l.b16 %v6495
  %v6661 = vunpack.c.h.b16 %v6495
  %v6662 = vunpack.c.l.b16 %v6496
  %v6663 = vunpack.c.h.b16 %v6496
  %v6664 = vunpack.c.l.b16 %v6497
  %v6665 = vunpack.c.h.b16 %v6497
  %v6666 = vunpack.c.l.b16 %v6498
  %v6667 = vunpack.c.h.b16 %v6498
  %v6668 = vunpack.c.l.b16 %v6499
  %v6669 = vunpack.c.h.b16 %v6499
  %v6670 = vunpack.c.l.b16 %v6500
  %v6671 = vunpack.c.h.b16 %v6500
  %v6672 = vunpack.c.l.b16 %v6501
  %v6673 = vunpack.c.h.b16 %v6501
  %v6674 = vunpack.c.l.b16 %v6502
  %v6675 = vunpack.c.h.b16 %v6502
  %v6676 = vunpack.c.l.b16 %v6503
  %v6677 = vunpack.c.h.b16 %v6503
  %v6678 = vunpack.c.l.b16 %v6504
  %v6679 = vunpack.c.h.b16 %v6504
  %v6680 = vunpack.c.l.b16 %v6505
  %v6681 = vunpack.c.h.b16 %v6505
  %v6682 = vunpack.c.l.b16 %v6506
  %v6683 = vunpack.c.h.b16 %v6506
  %v6684 = vunpack.c.l.b16 %v6507
  %v6685 = vunpack.c.h.b16 %v6507
  %v6686 = vunpack.c.l.b16 %v6508
  %v6687 = vunpack.c.h.b16 %v6508
  %v6688 = vunpack.c.l.b16 %v6509
  %v6689 = vunpack.c.h.b16 %v6509
  %v6690 = vunpack.c.l.b16 %v6510
  %v6691 = vunpack.c.h.b16 %v6510
  %v6692 = vunpack.c.l.b16 %v6511
  %v6693 = vunpack.c.h.b16 %v6511
  %v6694 = vunpack.c.l.b16 %v6512
  %v6695 = vunpack.c.h.b16 %v6512
  %v6696 = vunpack.c.l.b16 %v6513
  %v6697 = vunpack.c.h.b16 %v6513
  %v6698 = vunpack.c.l.b16 %v6514
  %v6699 = vunpack.c.h.b16 %v6514
  %v6700 = vunpack.c.l.b16 %v6515
  %v6701 = vunpack.c.h.b16 %v6515
  %v6702 = vunpack.c.l.b16 %v6516
  %v6703 = vunpack.c.h.b16 %v6516
  %v6704 = vunpack.c.l.b16 %v6517
  %v6705 = vunpack.c.h.b16 %v6517
  %v6706 = vunpack.c.l.b16 %v6518
  %v6707 = vunpack.c.h.b16 %v6518
  %v6708 = vunpack.c.l.b16 %v6519
  %v6709 = vunpack.c.h.b16 %v6519
  %v6710 = vunpack.c.l.b16 %v6520
  %v6711 = vunpack.c.h.b16 %v6520
  %v6712 = vunpack.c.l.b16 %v6521
  %v6713 = vunpack.c.h.b16 %v6521
  %v6714 = vpack.c.b16 %v6590, %v6586
  %v6715 = vpack.c.b16 %v6591, %v6587
  %v6716 = vpack.c.b16 %v6592, %v6588
  %v6717 = vpack.c.b16 %v6593, %v6589
  %v6718 = vpack.c.b16 %v6598, %v6594
  %v6719 = vpack.c.b16 %v6599, %v6595
  %v6720 = vpack.c.b16 %v6600, %v6596
  %v6721 = vpack.c.b16 %v6601, %v6597
  %v6722 = vpack.c.b16 %v6606, %v6602
  %v6723 = vpack.c.b16 %v6607, %v6603
  %v6724 = vpack.c.b16 %v6608, %v6604
  %v6725 = vpack.c.b16 %v6609, %v6605
  %v6726 = vpack.c.b16 %v6614, %v6610
  %v6727 = vpack.c.b16 %v6615, %v6611
  %v6728 = vpack.c.b16 %v6616, %v6612
  %v6729 = vpack.c.b16 %v6617, %v6613
  %v6730 = vpack.c.b16 %v6622, %v6618
  %v6731 = vpack.c.b16 %v6623, %v6619
  %v6732 = vpack.c.b16 %v6624, %v6620
  %v6733 = vpack.c.b16 %v6625, %v6621
  %v6734 = vpack.c.b16 %v6630, %v6626
  %v6735 = vpack.c.b16 %v6631, %v6627
  %v6736 = vpack.c.b16 %v6632, %v6628
  %v6737 = vpack.c.b16 %v6633, %v6629
  %v6738 = vpack.c.b16 %v6638, %v6634
  %v6739 = vpack.c.b16 %v6639, %v6635
  %v6740 = vpack.c.b16 %v6640, %v6636
  %v6741 = vpack.c.b16 %v6641, %v6637
  %v6742 = vpack.c.b16 %v6646, %v6642
  %v6743 = vpack.c.b16 %v6647, %v6643
  %v6744 = vpack.c.b16 %v6648, %v6644
  %v6745 = vpack.c.b16 %v6649, %v6645
  %v6746 = vpack.c.b16 %v6654, %v6650
  %v6747 = vpack.c.b16 %v6655, %v6651
  %v6748 = vpack.c.b16 %v6656, %v6652
  %v6749 = vpack.c.b16 %v6657, %v6653
  %v6750 = vpack.c.b16 %v6662, %v6658
  %v6751 = vpack.c.b16 %v6663, %v6659
  %v6752 = vpack.c.b16 %v6664, %v6660
  %v6753 = vpack.c.b16 %v6665, %v6661
  %v6754 = vpack.c.b16 %v6670, %v6666
  %v6755 = vpack.c.b16 %v6671, %v6667
  %v6756 = vpack.c.b16 %v6672, %v6668
  %v6757 = vpack.c.b16 %v6673, %v6669
  %v6758 = vpack.c.b16 %v6678, %v6674
  %v6759 = vpack.c.b16 %v6679, %v6675
  %v6760 = vpack.c.b16 %v6680, %v6676
  %v6761 = vpack.c.b16 %v6681, %v6677
  %v6762 = vpack.c.b16 %v6686, %v6682
  %v6763 = vpack.c.b16 %v6687, %v6683
  %v6764 = vpack.c.b16 %v6688, %v6684
  %v6765 = vpack.c.b16 %v6689, %v6685
  %v6766 = vpack.c.b16 %v6694, %v6690
  %v6767 = vpack.c.b16 %v6695, %v6691
  %v6768 = vpack.c.b16 %v6696, %v6692
  %v6769 = vpack.c.b16 %v6697, %v6693
  %v6770 = vpack.c.b16 %v6702, %v6698
  %v6771 = vpack.c.b16 %v6703, %v6699
  %v6772 = vpack.c.b16 %v6704, %v6700
  %v6773 = vpack.c.b16 %v6705, %v6701
  %v6774 = vpack.c.b16 %v6710, %v6706
  %v6775 = vpack.c.b16 %v6711, %v6707
  %v6776 = vpack.c.b16 %v6712, %v6708
  %v6777 = vpack.c.b16 %v6713, %v6709
  %6842 = vmatprep.subr.bf16.mxu0 %v6743
  %6843 = vmatpush1.bf16.msra.mxu0 %v6742
  %6844 = vmatprep.subr.bf16.mxu0 %v6739
  %6845 = vmatpush1.bf16.msra.mxu0 %v6738
  %6846 = vmatprep.subr.bf16.mxu0 %v6735
  %6847 = vmatpush1.bf16.msra.mxu0 %v6734
  %6848 = vmatprep.subr.bf16.mxu0 %v6731
  %6849 = vmatpush1.bf16.msra.mxu0 %v6730
  %6850 = vmatprep.subr.bf16.mxu0 %v6727
  %6851 = vmatpush1.bf16.msra.mxu0 %v6726
  %6852 = vmatprep.subr.bf16.mxu0 %v6723
  %6853 = vmatpush1.bf16.msra.mxu0 %v6722
  %6854 = vmatprep.subr.bf16.mxu0 %v6719
  %6855 = vmatpush1.bf16.msra.mxu0 %v6718
  %6856 = vmatprep.subr.bf16.mxu0 %v6715
  %6857 = vmatpush1.bf16.msra.mxu0 %v6714
  %6858 = vmatprep.subr.bf16.mxu0 %v6775
  %6859 = vmatpush2.bf16.msra.mxu0 %v6774
  %6860 = vmatprep.subr.bf16.mxu0 %v6771
  %6861 = vmatpush2.bf16.msra.mxu0 %v6770
  %6862 = vmatprep.subr.bf16.mxu0 %v6767
  %6863 = vmatpush2.bf16.msra.mxu0 %v6766
  %6864 = vmatprep.subr.bf16.mxu0 %v6763
  %6865 = vmatpush2.bf16.msra.mxu0 %v6762
  %6866 = vmatprep.subr.bf16.mxu0 %v6759
  %6867 = vmatpush2.bf16.msra.mxu0 %v6758
  %6868 = vmatprep.subr.bf16.mxu0 %v6755
  %6869 = vmatpush2.bf16.msra.mxu0 %v6754
  %6870 = vmatprep.subr.bf16.mxu0 %v6751
  %6871 = vmatpush2.bf16.msra.mxu0 %v6750
  %6872 = vmatprep.subr.bf16.mxu0 %v6747
  %6873 = vmatpush2.bf16.msra.mxu0 %v6746
  %6874 = vmatprep.mubr.bf16.mxu0 %v6457
  %6875 = vmatmul.mubr.bf16.gmra.mxu0 %v6455
  %v6876 = vpop.f32.mrf.mxu0
  %v6877 = vadd.f32 %v467, %v6876
  %v6878 = vpop.f32.mrf.mxu0
  %v6879 = vadd.f32 %v471, %v6878
  %v6880 = vpop.f32.mrf.mxu0
  %v6881 = vpop.f32.mrf.mxu0
  %6882 = vdwg.mxu0
  %6883 = vmatprep.subr.bf16.mxu0 %v6745
  %6884 = vmatpush1.bf16.msra.mxu0 %v6744
  %6885 = vmatprep.subr.bf16.mxu0 %v6741
  %6886 = vmatpush1.bf16.msra.mxu0 %v6740
  %6887 = vmatprep.subr.bf16.mxu0 %v6737
  %6888 = vmatpush1.bf16.msra.mxu0 %v6736
  %6889 = vmatprep.subr.bf16.mxu0 %v6733
  %6890 = vmatpush1.bf16.msra.mxu0 %v6732
  %6891 = vmatprep.subr.bf16.mxu0 %v6729
  %6892 = vmatpush1.bf16.msra.mxu0 %v6728
  %6893 = vmatprep.subr.bf16.mxu0 %v6725
  %6894 = vmatpush1.bf16.msra.mxu0 %v6724
  %6895 = vmatprep.subr.bf16.mxu0 %v6721
  %6896 = vmatpush1.bf16.msra.mxu0 %v6720
  %6897 = vmatprep.subr.bf16.mxu0 %v6717
  %6898 = vmatpush1.bf16.msra.mxu0 %v6716
  %6899 = vmatprep.subr.bf16.mxu0 %v6777
  %6900 = vmatpush2.bf16.msra.mxu0 %v6776
  %6901 = vmatprep.subr.bf16.mxu0 %v6773
  %6902 = vmatpush2.bf16.msra.mxu0 %v6772
  %6903 = vmatprep.subr.bf16.mxu0 %v6769
  %6904 = vmatpush2.bf16.msra.mxu0 %v6768
  %6905 = vmatprep.subr.bf16.mxu0 %v6765
  %6906 = vmatpush2.bf16.msra.mxu0 %v6764
  %6907 = vmatprep.subr.bf16.mxu0 %v6761
  %6908 = vmatpush2.bf16.msra.mxu0 %v6760
  %6909 = vmatprep.subr.bf16.mxu0 %v6757
  %6910 = vmatpush2.bf16.msra.mxu0 %v6756
  %6911 = vmatprep.subr.bf16.mxu0 %v6753
  %6912 = vmatpush2.bf16.msra.mxu0 %v6752
  %6913 = vmatprep.subr.bf16.mxu0 %v6749
  %6914 = vmatpush2.bf16.msra.mxu0 %v6748
  %6915 = vmatprep.mubr.bf16.mxu0 %v6457
  %6916 = vmatmul.mubr.bf16.gmra.mxu0 %v6455
  %v6917 = vpop.f32.mrf.mxu0
  %v6918 = vadd.f32 %v475, %v6917
  %v6919 = vpop.f32.mrf.mxu0
  %v6920 = vadd.f32 %v479, %v6919
  %v6921 = vpop.f32.mrf.mxu0
  %v6922 = vpop.f32.mrf.mxu0
  %6923 = vdwg.mxu0
  %v6924 = vxor.u32 %v6877, 2147483648
  %v6925 = vmul.f32 %v6924, 1.442695
  %v6926 = vpow.pop %v6925
  %v6927 = vadd.f32 %v6926, 1.0
  %v6928 = vrcp.pop %v6927
  %v6929 = vmul.f32 1.0, %v6928
  %v6930 = vxor.u32 %v6879, 2147483648
  %v6931 = vmul.f32 %v6930, 1.442695
  %v6932 = vpow.pop %v6931
  %v6933 = vadd.f32 %v6932, 1.0
  %v6934 = vrcp.pop %v6933
  %v6935 = vmul.f32 1.0, %v6934
  %v6936 = vtanh.pop %v6918
  %v6937 = vxor.u32 %v6920, 2147483648
  %v6938 = vmul.f32 %v6937, 1.442695
  %v6939 = vpow.pop %v6938
  %v6940 = vadd.f32 %v6939, 1.0
  %v6941 = vrcp.pop %v6940
  %v6942 = vmul.f32 1.0, %v6941
  %v6943 = vld [vmem:[#allocation5] sm:$0xff]
  %v6944 = vmul.f32 %v6935, %v6943
  %v6945 = vmul.f32 %v6929, %v6936
  %v6946 = vadd.f32 %v6944, %v6945
  %v6947 = vtanh.pop %v6946
  %v6948 = vmul.f32 %v6942, %v6947
  %6949 = vst [vmem:[#allocation5] sm:$0xff] %v6946
  %v6950 = vpack.c.bf16 %v6948, %v6948
  %6951 = vst [vmem:[#allocation4] sm:$0xf] %v6950
  %s6952 = scalar_lea.vmem [#allocation7], 28
  %6953 = vst [vmem:[%s6952] sm:$0xf] %v6950
  %v6954 = vld [vmem:[#allocation7] sm:$0xf]
  %v6955 = vld [vmem:[#allocation7 + $0x4] sm:$0xf]
  %v6956 = vld [vmem:[#allocation7 + $0x8] sm:$0xf]
  %v6957 = vld [vmem:[#allocation7 + $0xc] sm:$0xf]
  %v6958 = vld [vmem:[#allocation7 + $0x10] sm:$0xf]
  %v6959 = vld [vmem:[#allocation7 + $0x14] sm:$0xf]
  %v6960 = vld [vmem:[#allocation7 + $0x18] sm:$0xf]
  %v6961 = vld [vmem:[#allocation7 + $0x1c] sm:$0xf]
  %v6962 = vld [vmem:[%s6] sm:$0xf]
  %v6963 = vld [vmem:[%s6 + $0x4] sm:$0xf]
  %v6964 = vld [vmem:[%s6 + $0x8] sm:$0xf]
  %v6965 = vld [vmem:[%s6 + $0xc] sm:$0xf]
  %v6966 = vld [vmem:[%s6 + $0x10] sm:$0xf]
  %v6967 = vld [vmem:[%s6 + $0x14] sm:$0xf]
  %v6968 = vld [vmem:[%s6 + $0x18] sm:$0xf]
  %v6969 = vld [vmem:[%s6 + $0x1c] sm:$0xf]
  %v6970 = vld [vmem:[%s6 + $0x20] sm:$0xf]
  %v6971 = vld [vmem:[%s6 + $0x24] sm:$0xf]
  %v6972 = vld [vmem:[%s6 + $0x28] sm:$0xf]
  %v6973 = vld [vmem:[%s6 + $0x2c] sm:$0xf]
  %v6974 = vld [vmem:[%s6 + $0x30] sm:$0xf]
  %v6975 = vld [vmem:[%s6 + $0x34] sm:$0xf]
  %v6976 = vld [vmem:[%s6 + $0x38] sm:$0xf]
  %v6977 = vld [vmem:[%s6 + $0x3c] sm:$0xf]
  %v6978 = vld [vmem:[%s7] sm:$0x1]
  %v6980 = vlaneseq
  %v6981 = vshrl.u32 %v6980, 7
  %v6982 = vsub.s32 0, %v6981
  %v6983 = vrot.slane %v6978, %v6982
  %v6993 = vunpack.c.l.b16 %v6954
  %v6994 = vunpack.c.l.b16 %v6955
  %v6995 = vunpack.c.l.b16 %v6956
  %v6996 = vunpack.c.l.b16 %v6957
  %v6997 = vunpack.c.l.b16 %v6958
  %v6998 = vunpack.c.l.b16 %v6959
  %v6999 = vunpack.c.l.b16 %v6960
  %v7000 = vunpack.c.l.b16 %v6961
  %v7001 = vpack.c.b16 %v6994, %v6993
  %v7002 = vpack.c.b16 %v6996, %v6995
  %v7003 = vpack.c.b16 %v6998, %v6997
  %v7004 = vpack.c.b16 %v7000, %v6999
  %v7025 = vunpack.c.l.b16 %v6962
  %v7026 = vunpack.c.l.b16 %v6963
  %v7027 = vunpack.c.l.b16 %v6964
  %v7028 = vunpack.c.l.b16 %v6965
  %v7029 = vunpack.c.l.b16 %v6966
  %v7030 = vunpack.c.l.b16 %v6967
  %v7031 = vunpack.c.l.b16 %v6968
  %v7032 = vunpack.c.l.b16 %v6969
  %v7033 = vunpack.c.l.b16 %v6970
  %v7034 = vunpack.c.l.b16 %v6971
  %v7035 = vunpack.c.l.b16 %v6972
  %v7036 = vunpack.c.l.b16 %v6973
  %v7037 = vunpack.c.l.b16 %v6974
  %v7038 = vunpack.c.l.b16 %v6975
  %v7039 = vunpack.c.l.b16 %v6976
  %v7040 = vunpack.c.l.b16 %v6977
  %v7041 = vpack.c.b16 %v7026, %v7025
  %v7042 = vpack.c.b16 %v7028, %v7027
  %v7043 = vpack.c.b16 %v7030, %v7029
  %v7044 = vpack.c.b16 %v7032, %v7031
  %v7045 = vpack.c.b16 %v7034, %v7033
  %v7046 = vpack.c.b16 %v7036, %v7035
  %v7047 = vpack.c.b16 %v7038, %v7037
  %v7048 = vpack.c.b16 %v7040, %v7039
  %7057 = vmatprep.subr.bf16.mxu0 0
  %7058 = vmatpush1.bf16.msra.mxu0 %v7048
  %7059 = vmatprep.subr.bf16.mxu0 0
  %7060 = vmatpush1.bf16.msra.mxu0 %v7047
  %7061 = vmatprep.subr.bf16.mxu0 0
  %7062 = vmatpush1.bf16.msra.mxu0 %v7046
  %7063 = vmatprep.subr.bf16.mxu0 0
  %7064 = vmatpush1.bf16.msra.mxu0 %v7045
  %7065 = vmatprep.subr.bf16.mxu0 0
  %7066 = vmatpush1.bf16.msra.mxu0 %v7044
  %7067 = vmatprep.subr.bf16.mxu0 0
  %7068 = vmatpush1.bf16.msra.mxu0 %v7043
  %7069 = vmatprep.subr.bf16.mxu0 0
  %7070 = vmatpush1.bf16.msra.mxu0 %v7042
  %7071 = vmatprep.subr.bf16.mxu0 0
  %7072 = vmatpush1.bf16.msra.mxu0 %v7041
  %7073 = vmatprep.subr.bf16.mxu0 0
  %7074 = vmatpush2.bf16.msra.mxu0 0
  %7075 = vmatprep.subr.bf16.mxu0 0
  %7076 = vmatpush2.bf16.msra.mxu0 0
  %7077 = vmatprep.subr.bf16.mxu0 0
  %7078 = vmatpush2.bf16.msra.mxu0 0
  %7079 = vmatprep.subr.bf16.mxu0 0
  %7080 = vmatpush2.bf16.msra.mxu0 0
  %7081 = vmatprep.subr.bf16.mxu0 0
  %7082 = vmatpush2.bf16.msra.mxu0 0
  %7083 = vmatprep.subr.bf16.mxu0 0
  %7084 = vmatpush2.bf16.msra.mxu0 0
  %7085 = vmatprep.subr.bf16.mxu0 0
  %7086 = vmatpush2.bf16.msra.mxu0 0
  %7087 = vmatprep.subr.bf16.mxu0 0
  %7088 = vmatpush2.bf16.msra.mxu0 0
  %7089 = vmatprep.mubr.bf16.mxu0 0
  %7090 = vmatmul.mubr.bf16.gmra.mxu0 %v7001
  %v7091 = vpop.f32.mrf.mxu0
  %v7092 = vadd.f32 %v6983, %v7091
  %v7093 = vpop.f32.mrf.mxu0
  %v7094 = vpop.f32.mrf.mxu0
  %v7095 = vadd.f32 %v6983, %v7094
  %v7096 = vpop.f32.mrf.mxu0
  %7097 = vmatprep.mubr.bf16.mxu0 0
  %7098 = vmatmul.mubr.bf16.gmra.mxu0 %v7002
  %v7099 = vpop.f32.mrf.mxu0
  %v7100 = vadd.f32 %v6983, %v7099
  %v7101 = vpop.f32.mrf.mxu0
  %v7102 = vpop.f32.mrf.mxu0
  %v7103 = vadd.f32 %v6983, %v7102
  %v7104 = vpop.f32.mrf.mxu0
  %7105 = vmatprep.mubr.bf16.mxu0 0
  %7106 = vmatmul.mubr.bf16.gmra.mxu0 %v7003
  %v7107 = vpop.f32.mrf.mxu0
  %v7108 = vadd.f32 %v6983, %v7107
  %v7109 = vpop.f32.mrf.mxu0
  %v7110 = vpop.f32.mrf.mxu0
  %v7111 = vadd.f32 %v6983, %v7110
  %v7112 = vpop.f32.mrf.mxu0
  %7113 = vmatprep.mubr.bf16.mxu0 0
  %7114 = vmatmul.mubr.bf16.gmra.mxu0 %v7004
  %v7115 = vpop.f32.mrf.mxu0
  %v7116 = vadd.f32 %v6983, %v7115
  %v7117 = vpop.f32.mrf.mxu0
  %v7118 = vpop.f32.mrf.mxu0
  %v7119 = vadd.f32 %v6983, %v7118
  %v7120 = vpop.f32.mrf.mxu0
  %7121 = vdwg.mxu0
  %7122 = vst [vmem:[%s8] sm:$0xff] %v7092
  %7123 = vst [vmem:[%s8 + $0x8] sm:$0xff] %v7095
  %7124 = vst [vmem:[%s8 + $0x10] sm:$0xff] %v7100
  %7125 = vst [vmem:[%s8 + $0x18] sm:$0xff] %v7103
  %7126 = vst [vmem:[%s8 + $0x20] sm:$0xff] %v7108
  %7127 = vst [vmem:[%s8 + $0x28] sm:$0xff] %v7111
  %7128 = vst [vmem:[%s8 + $0x30] sm:$0xff] %v7116
  %7129 = vst [vmem:[%s8 + $0x38] sm:$0xff] %v7119
  // Predicated region
  $region38: #{beyond_sight_lstm.1} parent=0 // pred_check
    _
  $region39: #{beyond_sight_lstm.1} parent=0 // pred_check_branch
    %7131 = sbr.rel (0) target = $region41
  $region40: #{beyond_sight_lstm.1} parent=0 // pred_region
    _
  $region41: #{beyond_sight_lstm.1} parent=0 // pred_fallthru
    _
  // Predicated region
  $region42: #{beyond_sight_lstm.1} parent=0 // pred_check
    _
  $region43: #{beyond_sight_lstm.1} parent=0 // pred_check_branch
    %7133 = sbr.rel (0) target = $region45
  $region44: #{beyond_sight_lstm.1} parent=0 // pred_region
    _
  $region45: #{beyond_sight_lstm.1} parent=0 // pred_fallthru
    _

</llo_original>
